<compile_context>
chip_gen: v6e
topology: v6e:2x2x1
jax: 0.10.0
libtpu: 0.0.40
codegen_flags: <defaults>
</compile_context>

<pallas_src>
import functools

import jax
import jax.numpy as jnp
import numpy as np
from jax.experimental import pallas as pl
from jax.experimental.pallas import tpu as pltpu

EPS = 1e-5
LANE = 128
VMEM_LIMIT = 32 * 1024 * 1024


def _rup(n, m=LANE):
    return ((n + m - 1) // m) * m


def _row_tile(m, target=256):
    t = min(target, m)
    while t > 8 and m % t != 0:
        t //= 2
    return t if m % t == 0 else m


def _pad_last(a, to):
    pad = to - a.shape[-1]
    if pad == 0:
        return a
    return jnp.pad(a, [(0, 0)] * (a.ndim - 1) + [(0, pad)])


# ----------------------------- in-kernel helpers -----------------------------
def _write_stats(psum_ref, psumsq_ref, y2d):
    """Write per-tile channel sums / sum-of-squares into a (1, 8, C) block."""
    c = y2d.shape[-1]
    z = jnp.zeros((1, 7, c), jnp.float32)
    psum_ref[:, 0:1, :] = jnp.sum(y2d, axis=0).reshape(1, 1, c)
    psum_ref[:, 1:8, :] = z
    psumsq_ref[:, 0:1, :] = jnp.sum(y2d * y2d, axis=0).reshape(1, 1, c)
    psumsq_ref[:, 1:8, :] = z


# ------------------------------ kernel bodies --------------------------------
def _matmul_bn_stats_kernel(apply_act, x_ref, w_ref, scale_ref, shift_ref,
                            y_ref, psum_ref, psumsq_ref):
    """(optional fused BN+ReLU prologue) -> 1x1 conv as matmul -> partial BN stats."""
    x = x_ref[...]                                          # (tm, K) f32
    if apply_act:                                           # fused BN(prev)+ReLU
        x = jnp.maximum(x * scale_ref[...] + shift_ref[...], 0.0)
    y = jnp.dot(x.astype(jnp.bfloat16), w_ref[...],
                preferred_element_type=jnp.float32)         # (tm, Co) f32 acc
    y_ref[...] = y
    _write_stats(psum_ref, psumsq_ref, y)


def _conv3x3_bn_relu_stats_kernel(x_ref, w_ref, scale_ref, shift_ref,
                                  y_ref, psum_ref, psumsq_ref,
                                  pad_ref, acc_ref):
    """Fused BN1+ReLU prologue -> 3x3 'same' conv (9 lane-dense MXU dots) -> stats."""
    _, H, W, C = x_ref.shape

    # zero ONLY the 1-pixel halo ring (interior is fully overwritten below)
    zrow = jnp.zeros((1, W + 2, C), jnp.float32)
    zcol = jnp.zeros((H, 1, C), jnp.float32)
    pad_ref[0:1, :, :] = zrow
    pad_ref[H + 1:H + 2, :, :] = zrow
    pad_ref[1:H + 1, 0:1, :] = zcol
    pad_ref[1:H + 1, W + 1:W + 2, :] = zcol

    # BN1 (batch affine) + ReLU fused on the input tile, stored into the interior
    scale = scale_ref[...].reshape(1, 1, 1, C)
    shift = shift_ref[...].reshape(1, 1, 1, C)
    act = jnp.maximum(x_ref[...] * scale + shift, 0.0)      # (1,H,W,C) f32
    pad_ref[1:H + 1, 1:W + 1, :] = act.reshape(H, W, C)

    # 9 shifted windows, each a (H*W, C) x (C, C) MXU dot, accumulated in VMEM
    for k in range(9):
        ky, kx = divmod(k, 3)
        win = pad_ref[ky:ky + H, kx:kx + W, :].astype(jnp.bfloat16).reshape(H * W, C)
        contrib = jnp.dot(win, w_ref[k], preferred_element_type=jnp.float32)
        if k == 0:
            acc_ref[...] = contrib
        else:
            acc_ref[...] += contrib

    y = acc_ref[...]                                        # (H*W, C) f32
    y_ref[...] = y.reshape(1, H, W, C)
    _write_stats(psum_ref, psumsq_ref, y)


def _bn_residual_relu_kernel(y_ref, r_ref, scale_ref, shift_ref, o_ref):
    """Final epilogue: BN3 (batch affine) + identity residual + ReLU."""
    o_ref[...] = jnp.maximum(
        y_ref[...] * scale_ref[...] + shift_ref[...] + r_ref[...], 0.0)


# ----------------------------- pallas_call wrappers ---------------------------
def _compiler_params():
    return pltpu.CompilerParams(dimension_semantics=("parallel",),
                                vmem_limit_bytes=VMEM_LIMIT)


def _matmul_bn_stats(x2d, w, scale, shift, apply_act):
    M, K = x2d.shape
    Co = w.shape[1]
    tm = _row_tile(M)
    nt = M // tm
    kernel = functools.partial(_matmul_bn_stats_kernel, apply_act)
    return pl.pallas_call(
        kernel,
        out_shape=(jax.ShapeDtypeStruct((M, Co), jnp.float32),
                   jax.ShapeDtypeStruct((nt, 8, Co), jnp.float32),
                   jax.ShapeDtypeStruct((nt, 8, Co), jnp.float32)),
        grid=(nt,),
        in_specs=[pl.BlockSpec((tm, K), lambda i: (i, 0)),
                  pl.BlockSpec((K, Co), lambda i: (0, 0)),
                  pl.BlockSpec((1, K), lambda i: (0, 0)),
                  pl.BlockSpec((1, K), lambda i: (0, 0))],
        out_specs=(pl.BlockSpec((tm, Co), lambda i: (i, 0)),
                   pl.BlockSpec((1, 8, Co), lambda i: (i, 0, 0)),
                   pl.BlockSpec((1, 8, Co), lambda i: (i, 0, 0))),
        compiler_params=_compiler_params(),
    )(x2d, w, scale, shift)


def _conv3x3_bn_relu_stats(y1, w, scale, shift):
    N, H, W, C = y1.shape
    return pl.pallas_call(
        _conv3x3_bn_relu_stats_kernel,
        out_shape=(jax.ShapeDtypeStruct((N, H, W, C), jnp.float32),
                   jax.ShapeDtypeStruct((N, 8, C), jnp.float32),
                   jax.ShapeDtypeStruct((N, 8, C), jnp.float32)),
        grid=(N,),
        in_specs=[pl.BlockSpec((1, H, W, C), lambda n: (n, 0, 0, 0)),
                  pl.BlockSpec((9, C, C), lambda n: (0, 0, 0)),
                  pl.BlockSpec((1, C), lambda n: (0, 0)),
                  pl.BlockSpec((1, C), lambda n: (0, 0))],
        out_specs=(pl.BlockSpec((1, H, W, C), lambda n: (n, 0, 0, 0)),
                   pl.BlockSpec((1, 8, C), lambda n: (n, 0, 0)),
                   pl.BlockSpec((1, 8, C), lambda n: (n, 0, 0))),
        scratch_shapes=[pltpu.VMEM((H + 2, W + 2, C), jnp.float32),
                        pltpu.VMEM((H * W, C), jnp.float32)],
        compiler_params=_compiler_params(),
    )(y1, w, scale, shift)


def _bn_residual_relu(y3, resid, scale, shift):
    M, C = y3.shape
    tm = _row_tile(M)
    return pl.pallas_call(
        _bn_residual_relu_kernel,
        out_shape=jax.ShapeDtypeStruct((M, C), jnp.float32),
        grid=(M // tm,),
        in_specs=[pl.BlockSpec((tm, C), lambda i: (i, 0)),
                  pl.BlockSpec((tm, C), lambda i: (i, 0)),
                  pl.BlockSpec((1, C), lambda i: (0, 0)),
                  pl.BlockSpec((1, C), lambda i: (0, 0))],
        out_specs=pl.BlockSpec((tm, C), lambda i: (i, 0)),
        compiler_params=_compiler_params(),
    )(y3, resid, scale, shift)


# ------------------------------- JAX glue -------------------------------------
def _finalize_bn(psum, psumsq, count, gamma_p, beta_p):
    """Fold batch-global BN (training-mode, biased var) into per-channel scale/shift."""
    s = jnp.sum(psum, axis=(0, 1))
    ss = jnp.sum(psumsq, axis=(0, 1))
    mean = s / count
    var = jnp.maximum(ss / count - mean * mean, 0.0)
    scale = gamma_p * jax.lax.rsqrt(var + EPS)
    shift = beta_p - mean * scale
    return scale.reshape(1, -1).astype(jnp.float32), shift.reshape(1, -1).astype(jnp.float32)


@jax.jit
def deconv_bottleneck(x_nchw, w1, g1, b1, w2, g2, b2, w3, g3, b3):
    """DeconvBottleneck forward (stride=1, upsample=None).

    x_nchw: (N, inplanes, H, W)
    w1: (planes, inplanes, 1, 1)   torch Conv2d
    w2: (planes, planes, 3, 3)     torch Conv2d (stride==1 branch)
    w3: (planes*expansion, planes, 1, 1)
    g*/b*: BatchNorm2d weight/bias.
    """
    N, inplanes, H, W = x_nchw.shape
    planes = w1.shape[0]
    out_planes = w3.shape[0]
    assert out_planes == inplanes, "identity residual requires inplanes == planes*expansion"

    Cp_in, Cp_mid, Cp_out = _rup(inplanes), _rup(planes), _rup(out_planes)
    M = N * H * W

    # NCHW -> NHWC, channel-pad to a lane-dense multiple of 128, flatten rows.
    x_nhwc = jnp.transpose(x_nchw, (0, 2, 3, 1)).astype(jnp.float32)
    x2d = _pad_last(x_nhwc, Cp_in).reshape(M, Cp_in)

    # Channel-padded bf16 conv weights (zero pad keeps the extra lanes inert).
    w1m = jnp.zeros((Cp_in, Cp_mid), jnp.float32).at[:inplanes, :planes].set(
        jnp.transpose(w1[:, :, 0, 0], (1, 0))).astype(jnp.bfloat16)
    w2m = jnp.zeros((3, 3, Cp_mid, Cp_mid), jnp.float32).at[:, :, :planes, :planes].set(
        jnp.transpose(w2, (2, 3, 1, 0))).reshape(9, Cp_mid, Cp_mid).astype(jnp.bfloat16)
    w3m = jnp.zeros((Cp_mid, Cp_out), jnp.float32).at[:planes, :out_planes].set(
        jnp.transpose(w3[:, :, 0, 0], (1, 0))).astype(jnp.bfloat16)

    g1p, b1p = _pad_last(g1.astype(jnp.float32), Cp_mid), _pad_last(b1.astype(jnp.float32), Cp_mid)
    g2p, b2p = _pad_last(g2.astype(jnp.float32), Cp_mid), _pad_last(b2.astype(jnp.float32), Cp_mid)
    g3p, b3p = _pad_last(g3.astype(jnp.float32), Cp_out), _pad_last(b3.astype(jnp.float32), Cp_out)

    ones_in = jnp.ones((1, Cp_in), jnp.float32)
    zeros_in = jnp.zeros((1, Cp_in), jnp.float32)

    # conv1 (1x1) + BN1 partial stats
    y1, p1, q1 = _matmul_bn_stats(x2d, w1m, ones_in, zeros_in, apply_act=False)
    scale1, shift1 = _finalize_bn(p1, q1, M, g1p, b1p)

    # BN1+ReLU fused into conv2 (3x3 "same") + BN2 partial stats
    y2, p2, q2 = _conv3x3_bn_relu_stats(y1.reshape(N, H, W, Cp_mid), w2m, scale1, shift1)
    scale2, shift2 = _finalize_bn(p2, q2, M, g2p, b2p)

    # BN2+ReLU fused into conv3 (1x1) + BN3 partial stats
    y3, p3, q3 = _matmul_bn_stats(y2.reshape(M, Cp_mid), w3m, scale2, shift2, apply_act=True)
    scale3, shift3 = _finalize_bn(p3, q3, M, g3p, b3p)

    # BN3 + residual + ReLU epilogue (lane-dense stores), then un-pad channels.
    out2d = _bn_residual_relu(y3, x2d, scale3, shift3)
    out = out2d.reshape(N, H, W, Cp_out)[..., :out_planes]
    return jnp.transpose(out, (0, 3, 1, 2))


# ----------------------------- pure-JAX reference ------------------------------
def _bn_ref(y, g, b):
    m = jnp.mean(y, axis=(0, 1, 2), keepdims=True)
    v = jnp.mean((y - m) ** 2, axis=(0, 1, 2), keepdims=True)
    return (y - m) * (g.reshape(1, 1, 1, -1) * jax.lax.rsqrt(v + EPS)) + b.reshape(1, 1, 1, -1)


def _conv1x1_ref(v, w):
    n, h, ww, i = v.shape
    wm = jnp.transpose(w[:, :, 0, 0], (1, 0)).astype(jnp.bfloat16)
    y = jnp.dot(v.reshape(-1, i).astype(jnp.bfloat16), wm,
                preferred_element_type=jnp.float32)
    return y.reshape(n, h, ww, -1)


def _conv3x3_ref(v, w):
    whwio = jnp.transpose(w, (2, 3, 1, 0)).astype(jnp.bfloat16)
    return jax.lax.conv_general_dilated(
        v.astype(jnp.bfloat16), whwio, window_strides=(1, 1),
        padding=((1, 1), (1, 1)),
        dimension_numbers=('NHWC', 'HWIO', 'NHWC'),
        preferred_element_type=jnp.float32)


def _reference(x_nchw, w1, g1, b1, w2, g2, b2, w3, g3, b3):
    x = jnp.transpose(x_nchw, (0, 2, 3, 1)).astype(jnp.float32)
    o = jnp.maximum(_bn_ref(_conv1x1_ref(x, w1), g1, b1), 0.0)
    o = jnp.maximum(_bn_ref(_conv3x3_ref(o, w2), g2, b2), 0.0)
    o = _bn_ref(_conv1x1_ref(o, w3), g3, b3) + x
    o = jnp.maximum(o, 0.0)
    return jnp.transpose(o, (0, 3, 1, 2))


if __name__ == "__main__":
    key = jax.random.PRNGKey(0)
    N, inplanes, H, W = 2, 8, 16, 16
    planes, expansion = 4, 2
    out_planes = planes * expansion          # == inplanes -> identity residual valid
    ks = jax.random.split(key, 10)

    x = jax.random.normal(ks[0], (N, inplanes, H, W), jnp.float32)
    w1 = jax.random.normal(ks[1], (planes, inplanes, 1, 1), jnp.float32) * 0.3
    w2 = jax.random.normal(ks[2], (planes, planes, 3, 3), jnp.float32) * 0.2
    w3 = jax.random.normal(ks[3], (out_planes, planes, 1, 1), jnp.float32) * 0.3
    g1 = 1.0 + 0.1 * jax.random.normal(ks[4], (planes,), jnp.float32)
    b1 = 0.1 * jax.random.normal(ks[5], (planes,), jnp.float32)
    g2 = 1.0 + 0.1 * jax.random.normal(ks[6], (planes,), jnp.float32)
    b2 = 0.1 * jax.random.normal(ks[7], (planes,), jnp.float32)
    g3 = 1.0 + 0.1 * jax.random.normal(ks[8], (out_planes,), jnp.float32)
    b3 = 0.1 * jax.random.normal(ks[9], (out_planes,), jnp.float32)

    out = jax.block_until_ready(
        deconv_bottleneck(x, w1, g1, b1, w2, g2, b2, w3, g3, b3))
    ref = jax.block_until_ready(
        _reference(x, w1, g1, b1, w2, g2, b2, w3, g3, b3))
    np.testing.assert_allclose(np.asarray(out), np.asarray(ref), rtol=5e-3, atol=5e-3)

    print("KERNEL_OK")
</pallas_src>

<mosaic_0001>
module attributes {stable_mosaic.version = 11 : i64} {
  func.func @_matmul_bn_stats_kernel(%arg0: i32, %arg1: memref<256x128xf32, #tpu.memory_space<vmem>>, %arg2: memref<128x128xbf16, #tpu.memory_space<vmem>>, %arg3: memref<1x128xf32, #tpu.memory_space<vmem>>, %arg4: memref<1x128xf32, #tpu.memory_space<vmem>>, %arg5: memref<256x128xf32, #tpu.memory_space<vmem>>, %arg6: memref<1x8x128xf32, #tpu.memory_space<vmem>>, %arg7: memref<1x8x128xf32, #tpu.memory_space<vmem>>) attributes {dimension_semantics = [#tpu.dimension_semantics<parallel>], iteration_bounds = array<i64: 2>, scalar_prefetch = 0 : i64, scratch_operands = 0 : i64, tpu.core_type = #tpu.core_type<tc>, window_params = [{transform_indices = @transform_0, window_bounds = array<i64: 256, 128>}, {pipeline_mode = #tpu.pipeline_mode<synchronous>, transform_indices = @transform_1, window_bounds = array<i64: 128, 128>}, {pipeline_mode = #tpu.pipeline_mode<synchronous>, transform_indices = @transform_2, window_bounds = array<i64: 1, 128>}, {pipeline_mode = #tpu.pipeline_mode<synchronous>, transform_indices = @transform_3, window_bounds = array<i64: 1, 128>}, {transform_indices = @transform_4, window_bounds = array<i64: 256, 128>}, {transform_indices = @transform_5, window_bounds = array<i64: 1, 8, 128>}, {transform_indices = @transform_6, window_bounds = array<i64: 1, 8, 128>}]} {
    %c0 = arith.constant 0 : index
    %c0_0 = arith.constant 0 : index
    %0 = vector.load %arg1[%c0, %c0_0] : memref<256x128xf32, #tpu.memory_space<vmem>>, vector<256x128xf32>
    %1 = arith.truncf %0 : vector<256x128xf32> to vector<256x128xbf16>
    %c0_1 = arith.constant 0 : index
    %c0_2 = arith.constant 0 : index
    %2 = vector.load %arg2[%c0_1, %c0_2] : memref<128x128xbf16, #tpu.memory_space<vmem>>, vector<128x128xbf16>
    %cst = arith.constant dense<0.000000e+00> : vector<256x128xf32>
    %3 = tpu.matmul %1, %2, %cst {dimension_numbers = #tpu.dot_dimension_numbers<[1], [0], [0], [1], [0, 0, 1, 1], [], []>} : vector<256x128xbf16>, vector<128x128xbf16>, vector<256x128xf32> -> vector<256x128xf32>
    %c0_3 = arith.constant 0 : index
    %c0_4 = arith.constant 0 : index
    %4 = vector.load %arg5[%c0_3, %c0_4] : memref<256x128xf32, #tpu.memory_space<vmem>>, vector<256x128xf32>
    tpu.vector_store %arg5[%c0_3, %c0_4], %3 {strides = array<i32>} : memref<256x128xf32, #tpu.memory_space<vmem>>, vector<256x128xf32>,
    %cst_5 = arith.constant 0.000000e+00 : f32
    %5 = vector.broadcast %cst_5 : f32 to vector<1x7x128xf32>
    %cst_6 = arith.constant dense<0.000000e+00> : vector<128xf32>
    %6 = vector.multi_reduction <add>, %3, %cst_6 [0] : vector<256x128xf32> to vector<128xf32>
    %7 = vector.shape_cast %6 : vector<128xf32> to vector<1x1x128xf32>
    %c0_7 = arith.constant 0 : index
    %c0_8 = arith.constant 0 : index
    %c0_9 = arith.constant 0 : index
    %8 = vector.load %arg6[%c0_7, %c0_8, %c0_9] : memref<1x8x128xf32, #tpu.memory_space<vmem>>, vector<1x1x128xf32>
    tpu.vector_store %arg6[%c0_7, %c0_8, %c0_9], %7 {strides = array<i32>} : memref<1x8x128xf32, #tpu.memory_space<vmem>>, vector<1x1x128xf32>,
    %c0_10 = arith.constant 0 : index
    %c1 = arith.constant 1 : index
    %c0_11 = arith.constant 0 : index
    %9 = vector.load %arg6[%c0_10, %c1, %c0_11] : memref<1x8x128xf32, #tpu.memory_space<vmem>>, vector<1x7x128xf32>
    tpu.vector_store %arg6[%c0_10, %c1, %c0_11], %5 {strides = array<i32>} : memref<1x8x128xf32, #tpu.memory_space<vmem>>, vector<1x7x128xf32>,
    %10 = arith.mulf %3, %3 : vector<256x128xf32>
    %cst_12 = arith.constant dense<0.000000e+00> : vector<128xf32>
    %11 = vector.multi_reduction <add>, %10, %cst_12 [0] : vector<256x128xf32> to vector<128xf32>
    %12 = vector.shape_cast %11 : vector<128xf32> to vector<1x1x128xf32>
    %c0_13 = arith.constant 0 : index
    %c0_14 = arith.constant 0 : index
    %c0_15 = arith.constant 0 : index
    %13 = vector.load %arg7[%c0_13, %c0_14, %c0_15] : memref<1x8x128xf32, #tpu.memory_space<vmem>>, vector<1x1x128xf32>
    tpu.vector_store %arg7[%c0_13, %c0_14, %c0_15], %12 {strides = array<i32>} : memref<1x8x128xf32, #tpu.memory_space<vmem>>, vector<1x1x128xf32>,
    %c0_16 = arith.constant 0 : index
    %c1_17 = arith.constant 1 : index
    %c0_18 = arith.constant 0 : index
    %14 = vector.load %arg7[%c0_16, %c1_17, %c0_18] : memref<1x8x128xf32, #tpu.memory_space<vmem>>, vector<1x7x128xf32>
    tpu.vector_store %arg7[%c0_16, %c1_17, %c0_18], %5 {strides = array<i32>} : memref<1x8x128xf32, #tpu.memory_space<vmem>>, vector<1x7x128xf32>,
    return
  }
  func.func @transform_0(%arg0: i32) -> (i32, i32) {
    %c0_i32 = arith.constant 0 : i32
    %c0_i32_0 = arith.constant 0 : i32
    return %arg0, %c0_i32 : i32, i32
  }
  func.func @transform_1(%arg0: i32) -> (i32, i32) {
    %c0_i32 = arith.constant 0 : i32
    %c0_i32_0 = arith.constant 0 : i32
    %c0_i32_1 = arith.constant 0 : i32
    return %c0_i32, %c0_i32_0 : i32, i32
  }
  func.func @transform_2(%arg0: i32) -> (i32, i32) {
    %c0_i32 = arith.constant 0 : i32
    %c0_i32_0 = arith.constant 0 : i32
    %c0_i32_1 = arith.constant 0 : i32
    return %c0_i32, %c0_i32_0 : i32, i32
  }
  func.func @transform_3(%arg0: i32) -> (i32, i32) {
    %c0_i32 = arith.constant 0 : i32
    %c0_i32_0 = arith.constant 0 : i32
    %c0_i32_1 = arith.constant 0 : i32
    return %c0_i32, %c0_i32_0 : i32, i32
  }
  func.func @transform_4(%arg0: i32) -> (i32, i32) {
    %c0_i32 = arith.constant 0 : i32
    %c0_i32_0 = arith.constant 0 : i32
    return %arg0, %c0_i32 : i32, i32
  }
  func.func @transform_5(%arg0: i32) -> (i32, i32, i32) {
    %c0_i32 = arith.constant 0 : i32
    %c0_i32_0 = arith.constant 0 : i32
    %c0_i32_1 = arith.constant 0 : i32
    return %arg0, %c0_i32, %c0_i32_0 : i32, i32, i32
  }
  func.func @transform_6(%arg0: i32) -> (i32, i32, i32) {
    %c0_i32 = arith.constant 0 : i32
    %c0_i32_0 = arith.constant 0 : i32
    %c0_i32_1 = arith.constant 0 : i32
    return %arg0, %c0_i32, %c0_i32_0 : i32, i32, i32
  }
}

module attributes {stable_mosaic.version = 11 : i64} {
  func.func @_conv3x3_bn_relu_stats_kernel(%arg0: i32, %arg1: memref<1x16x16x128xf32, #tpu.memory_space<vmem>>, %arg2: memref<9x128x128xbf16, #tpu.memory_space<vmem>>, %arg3: memref<1x128xf32, #tpu.memory_space<vmem>>, %arg4: memref<1x128xf32, #tpu.memory_space<vmem>>, %arg5: memref<1x16x16x128xf32, #tpu.memory_space<vmem>>, %arg6: memref<1x8x128xf32, #tpu.memory_space<vmem>>, %arg7: memref<1x8x128xf32, #tpu.memory_space<vmem>>, %arg8: memref<18x18x128xf32, #tpu.memory_space<vmem>>, %arg9: memref<256x128xf32, #tpu.memory_space<vmem>>) attributes {dimension_semantics = [#tpu.dimension_semantics<parallel>], iteration_bounds = array<i64: 2>, scalar_prefetch = 0 : i64, scratch_operands = 2 : i64, tpu.core_type = #tpu.core_type<tc>, window_params = [{transform_indices = @transform_0, window_bounds = array<i64: 1, 16, 16, 128>}, {pipeline_mode = #tpu.pipeline_mode<synchronous>, transform_indices = @transform_1, window_bounds = array<i64: 9, 128, 128>}, {pipeline_mode = #tpu.pipeline_mode<synchronous>, transform_indices = @transform_2, window_bounds = array<i64: 1, 128>}, {pipeline_mode = #tpu.pipeline_mode<synchronous>, transform_indices = @transform_3, window_bounds = array<i64: 1, 128>}, {transform_indices = @transform_4, window_bounds = array<i64: 1, 16, 16, 128>}, {transform_indices = @transform_5, window_bounds = array<i64: 1, 8, 128>}, {transform_indices = @transform_6, window_bounds = array<i64: 1, 8, 128>}]} {
    %cst = arith.constant 0.000000e+00 : f32
    %0 = vector.broadcast %cst : f32 to vector<1x18x128xf32>
    %cst_0 = arith.constant 0.000000e+00 : f32
    %1 = vector.broadcast %cst_0 : f32 to vector<16x1x128xf32>
    %c0 = arith.constant 0 : index
    %c0_1 = arith.constant 0 : index
    %c0_2 = arith.constant 0 : index
    %2 = vector.load %arg8[%c0, %c0_1, %c0_2] : memref<18x18x128xf32, #tpu.memory_space<vmem>>, vector<1x18x128xf32>
    tpu.vector_store %arg8[%c0, %c0_1, %c0_2], %0 {strides = array<i32>} : memref<18x18x128xf32, #tpu.memory_space<vmem>>, vector<1x18x128xf32>,
    %c17 = arith.constant 17 : index
    %c0_3 = arith.constant 0 : index
    %c0_4 = arith.constant 0 : index
    %3 = vector.load %arg8[%c17, %c0_3, %c0_4] : memref<18x18x128xf32, #tpu.memory_space<vmem>>, vector<1x18x128xf32>
    tpu.vector_store %arg8[%c17, %c0_3, %c0_4], %0 {strides = array<i32>} : memref<18x18x128xf32, #tpu.memory_space<vmem>>, vector<1x18x128xf32>,
    %c1 = arith.constant 1 : index
    %c0_5 = arith.constant 0 : index
    %c0_6 = arith.constant 0 : index
    %4 = vector.load %arg8[%c1, %c0_5, %c0_6] : memref<18x18x128xf32, #tpu.memory_space<vmem>>, vector<16x1x128xf32>
    tpu.vector_store %arg8[%c1, %c0_5, %c0_6], %1 {strides = array<i32>} : memref<18x18x128xf32, #tpu.memory_space<vmem>>, vector<16x1x128xf32>,
    %c1_7 = arith.constant 1 : index
    %c17_8 = arith.constant 17 : index
    %c0_9 = arith.constant 0 : index
    %5 = vector.load %arg8[%c1_7, %c17_8, %c0_9] : memref<18x18x128xf32, #tpu.memory_space<vmem>>, vector<16x1x128xf32>
    tpu.vector_store %arg8[%c1_7, %c17_8, %c0_9], %1 {strides = array<i32>} : memref<18x18x128xf32, #tpu.memory_space<vmem>>, vector<16x1x128xf32>,
    %c0_10 = arith.constant 0 : index
    %c0_11 = arith.constant 0 : index
    %6 = vector.load %arg3[%c0_10, %c0_11] : memref<1x128xf32, #tpu.memory_space<vmem>>, vector<1x128xf32>
    %7 = vector.shape_cast %6 : vector<1x128xf32> to vector<1x1x1x128xf32>
    %c0_12 = arith.constant 0 : index
    %c0_13 = arith.constant 0 : index
    %8 = vector.load %arg4[%c0_12, %c0_13] : memref<1x128xf32, #tpu.memory_space<vmem>>, vector<1x128xf32>
    %9 = vector.shape_cast %8 : vector<1x128xf32> to vector<1x1x1x128xf32>
    %c0_14 = arith.constant 0 : index
    %c0_15 = arith.constant 0 : index
    %c0_16 = arith.constant 0 : index
    %c0_17 = arith.constant 0 : index
    %10 = vector.load %arg1[%c0_14, %c0_15, %c0_16, %c0_17] : memref<1x16x16x128xf32, #tpu.memory_space<vmem>>, vector<1x16x16x128xf32>
    %11 = vector.broadcast %7 : vector<1x1x1x128xf32> to vector<1x16x16x128xf32>
    %12 = arith.mulf %10, %11 : vector<1x16x16x128xf32>
    %13 = vector.broadcast %9 : vector<1x1x1x128xf32> to vector<1x16x16x128xf32>
    %14 = arith.addf %12, %13 : vector<1x16x16x128xf32>
    %cst_18 = arith.constant 0.000000e+00 : f32
    %15 = vector.broadcast %cst_18 : f32 to vector<1x16x16x128xf32>
    %16 = arith.maximumf %14, %15 : vector<1x16x16x128xf32>
    %17 = vector.shape_cast %16 : vector<1x16x16x128xf32> to vector<16x16x128xf32>
    %c1_19 = arith.constant 1 : index
    %c1_20 = arith.constant 1 : index
    %c0_21 = arith.constant 0 : index
    %18 = vector.load %arg8[%c1_19, %c1_20, %c0_21] : memref<18x18x128xf32, #tpu.memory_space<vmem>>, vector<16x16x128xf32>
    tpu.vector_store %arg8[%c1_19, %c1_20, %c0_21], %17 {strides = array<i32>} : memref<18x18x128xf32, #tpu.memory_space<vmem>>, vector<16x16x128xf32>,
    %c0_22 = arith.constant 0 : index
    %c0_23 = arith.constant 0 : index
    %c0_24 = arith.constant 0 : index
    %19 = vector.load %arg8[%c0_22, %c0_23, %c0_24] : memref<18x18x128xf32, #tpu.memory_space<vmem>>, vector<16x16x128xf32>
    %20 = arith.truncf %19 : vector<16x16x128xf32> to vector<16x16x128xbf16>
    %21 = vector.shape_cast %20 : vector<16x16x128xbf16> to vector<256x128xbf16>
    %c0_25 = arith.constant 0 : index
    %c0_26 = arith.constant 0 : index
    %c0_27 = arith.constant 0 : index
    %22 = vector.load %arg2[%c0_25, %c0_26, %c0_27] : memref<9x128x128xbf16, #tpu.memory_space<vmem>>, vector<1x128x128xbf16>
    %23 = vector.shape_cast %22 : vector<1x128x128xbf16> to vector<128x128xbf16>
    %cst_28 = arith.constant dense<0.000000e+00> : vector<256x128xf32>
    %24 = tpu.matmul %21, %23, %cst_28 {dimension_numbers = #tpu.dot_dimension_numbers<[1], [0], [0], [1], [0, 0, 1, 1], [], []>} : vector<256x128xbf16>, vector<128x128xbf16>, vector<256x128xf32> -> vector<256x128xf32>
    %c0_29 = arith.constant 0 : index
    %c0_30 = arith.constant 0 : index
    %25 = vector.load %arg9[%c0_29, %c0_30] : memref<256x128xf32, #tpu.memory_space<vmem>>, vector<256x128xf32>
    tpu.vector_store %arg9[%c0_29, %c0_30], %24 {strides = array<i32>} : memref<256x128xf32, #tpu.memory_space<vmem>>, vector<256x128xf32>,
    %c0_31 = arith.constant 0 : index
    %c1_32 = arith.constant 1 : index
    %c0_33 = arith.constant 0 : index
    %26 = vector.load %arg8[%c0_31, %c1_32, %c0_33] : memref<18x18x128xf32, #tpu.memory_space<vmem>>, vector<16x16x128xf32>
    %27 = arith.truncf %26 : vector<16x16x128xf32> to vector<16x16x128xbf16>
    %28 = vector.shape_cast %27 : vector<16x16x128xbf16> to vector<256x128xbf16>
    %c1_34 = arith.constant 1 : index
    %c0_35 = arith.constant 0 : index
    %c0_36 = arith.constant 0 : index
    %29 = vector.load %arg2[%c1_34, %c0_35, %c0_36] : memref<9x128x128xbf16, #tpu.memory_space<vmem>>, vector<1x128x128xbf16>
    %30 = vector.shape_cast %29 : vector<1x128x128xbf16> to vector<128x128xbf16>
    %cst_37 = arith.constant dense<0.000000e+00> : vector<256x128xf32>
    %31 = tpu.matmul %28, %30, %cst_37 {dimension_numbers = #tpu.dot_dimension_numbers<[1], [0], [0], [1], [0, 0, 1, 1], [], []>} : vector<256x128xbf16>, vector<128x128xbf16>, vector<256x128xf32> -> vector<256x128xf32>
    %c0_38 = arith.constant 0 : index
    %c0_39 = arith.constant 0 : index
    %32 = vector.load %arg9[%c0_38, %c0_39] : memref<256x128xf32, #tpu.memory_space<vmem>>, vector<256x128xf32>
    %33 = arith.addf %32, %31 : vector<256x128xf32>
    %c0_40 = arith.constant 0 : index
    %c0_41 = arith.constant 0 : index
    %34 = vector.load %arg9[%c0_40, %c0_41] : memref<256x128xf32, #tpu.memory_space<vmem>>, vector<256x128xf32>
    tpu.vector_store %arg9[%c0_40, %c0_41], %33 {strides = array<i32>} : memref<256x128xf32, #tpu.memory_space<vmem>>, vector<256x128xf32>,
    %c0_42 = arith.constant 0 : index
    %c2 = arith.constant 2 : index
    %c0_43 = arith.constant 0 : index
    %35 = vector.load %arg8[%c0_42, %c2, %c0_43] : memref<18x18x128xf32, #tpu.memory_space<vmem>>, vector<16x16x128xf32>
    %36 = arith.truncf %35 : vector<16x16x128xf32> to vector<16x16x128xbf16>
    %37 = vector.shape_cast %36 : vector<16x16x128xbf16> to vector<256x128xbf16>
    %c2_44 = arith.constant 2 : index
    %c0_45 = arith.constant 0 : index
    %c0_46 = arith.constant 0 : index
    %38 = vector.load %arg2[%c2_44, %c0_45, %c0_46] : memref<9x128x128xbf16, #tpu.memory_space<vmem>>, vector<1x128x128xbf16>
    %39 = vector.shape_cast %38 : vector<1x128x128xbf16> to vector<128x128xbf16>
    %cst_47 = arith.constant dense<0.000000e+00> : vector<256x128xf32>
    %40 = tpu.matmul %37, %39, %cst_47 {dimension_numbers = #tpu.dot_dimension_numbers<[1], [0], [0], [1], [0, 0, 1, 1], [], []>} : vector<256x128xbf16>, vector<128x128xbf16>, vector<256x128xf32> -> vector<256x128xf32>
    %c0_48 = arith.constant 0 : index
    %c0_49 = arith.constant 0 : index
    %41 = vector.load %arg9[%c0_48, %c0_49] : memref<256x128xf32, #tpu.memory_space<vmem>>, vector<256x128xf32>
    %42 = arith.addf %41, %40 : vector<256x128xf32>
    %c0_50 = arith.constant 0 : index
    %c0_51 = arith.constant 0 : index
    %43 = vector.load %arg9[%c0_50, %c0_51] : memref<256x128xf32, #tpu.memory_space<vmem>>, vector<256x128xf32>
    tpu.vector_store %arg9[%c0_50, %c0_51], %42 {strides = array<i32>} : memref<256x128xf32, #tpu.memory_space<vmem>>, vector<256x128xf32>,
    %c1_52 = arith.constant 1 : index
    %c0_53 = arith.constant 0 : index
    %c0_54 = arith.constant 0 : index
    %44 = vector.load %arg8[%c1_52, %c0_53, %c0_54] : memref<18x18x128xf32, #tpu.memory_space<vmem>>, vector<16x16x128xf32>
    %45 = arith.truncf %44 : vector<16x16x128xf32> to vector<16x16x128xbf16>
    %46 = vector.shape_cast %45 : vector<16x16x128xbf16> to vector<256x128xbf16>
    %c3 = arith.constant 3 : index
    %c0_55 = arith.constant 0 : index
    %c0_56 = arith.constant 0 : index
    %47 = vector.load %arg2[%c3, %c0_55, %c0_56] : memref<9x128x128xbf16, #tpu.memory_space<vmem>>, vector<1x128x128xbf16>
    %48 = vector.shape_cast %47 : vector<1x128x128xbf16> to vector<128x128xbf16>
    %cst_57 = arith.constant dense<0.000000e+00> : vector<256x128xf32>
    %49 = tpu.matmul %46, %48, %cst_57 {dimension_numbers = #tpu.dot_dimension_numbers<[1], [0], [0], [1], [0, 0, 1, 1], [], []>} : vector<256x128xbf16>, vector<128x128xbf16>, vector<256x128xf32> -> vector<256x128xf32>
    %c0_58 = arith.constant 0 : index
    %c0_59 = arith.constant 0 : index
    %50 = vector.load %arg9[%c0_58, %c0_59] : memref<256x128xf32, #tpu.memory_space<vmem>>, vector<256x128xf32>
    %51 = arith.addf %50, %49 : vector<256x128xf32>
    %c0_60 = arith.constant 0 : index
    %c0_61 = arith.constant 0 : index
    %52 = vector.load %arg9[%c0_60, %c0_61] : memref<256x128xf32, #tpu.memory_space<vmem>>, vector<256x128xf32>
    tpu.vector_store %arg9[%c0_60, %c0_61], %51 {strides = array<i32>} : memref<256x128xf32, #tpu.memory_space<vmem>>, vector<256x128xf32>,
    %c1_62 = arith.constant 1 : index
    %c1_63 = arith.constant 1 : index
    %c0_64 = arith.constant 0 : index
    %53 = vector.load %arg8[%c1_62, %c1_63, %c0_64] : memref<18x18x128xf32, #tpu.memory_space<vmem>>, vector<16x16x128xf32>
    %54 = arith.truncf %53 : vector<16x16x128xf32> to vector<16x16x128xbf16>
    %55 = vector.shape_cast %54 : vector<16x16x128xbf16> to vector<256x128xbf16>
    %c4 = arith.constant 4 : index
    %c0_65 = arith.constant 0 : index
    %c0_66 = arith.constant 0 : index
    %56 = vector.load %arg2[%c4, %c0_65, %c0_66] : memref<9x128x128xbf16, #tpu.memory_space<vmem>>, vector<1x128x128xbf16>
    %57 = vector.shape_cast %56 : vector<1x128x128xbf16> to vector<128x128xbf16>
    %cst_67 = arith.constant dense<0.000000e+00> : vector<256x128xf32>
    %58 = tpu.matmul %55, %57, %cst_67 {dimension_numbers = #tpu.dot_dimension_numbers<[1], [0], [0], [1], [0, 0, 1, 1], [], []>} : vector<256x128xbf16>, vector<128x128xbf16>, vector<256x128xf32> -> vector<256x128xf32>
    %c0_68 = arith.constant 0 : index
    %c0_69 = arith.constant 0 : index
    %59 = vector.load %arg9[%c0_68, %c0_69] : memref<256x128xf32, #tpu.memory_space<vmem>>, vector<256x128xf32>
    %60 = arith.addf %59, %58 : vector<256x128xf32>
    %c0_70 = arith.constant 0 : index
    %c0_71 = arith.constant 0 : index
    %61 = vector.load %arg9[%c0_70, %c0_71] : memref<256x128xf32, #tpu.memory_space<vmem>>, vector<256x128xf32>
    tpu.vector_store %arg9[%c0_70, %c0_71], %60 {strides = array<i32>} : memref<256x128xf32, #tpu.memory_space<vmem>>, vector<256x128xf32>,
    %c1_72 = arith.constant 1 : index
    %c2_73 = arith.constant 2 : index
    %c0_74 = arith.constant 0 : index
    %62 = vector.load %arg8[%c1_72, %c2_73, %c0_74] : memref<18x18x128xf32, #tpu.memory_space<vmem>>, vector<16x16x128xf32>
    %63 = arith.truncf %62 : vector<16x16x128xf32> to vector<16x16x128xbf16>
    %64 = vector.shape_cast %63 : vector<16x16x128xbf16> to vector<256x128xbf16>
    %c5 = arith.constant 5 : index
    %c0_75 = arith.constant 0 : index
    %c0_76 = arith.constant 0 : index
    %65 = vector.load %arg2[%c5, %c0_75, %c0_76] : memref<9x128x128xbf16, #tpu.memory_space<vmem>>, vector<1x128x128xbf16>
    %66 = vector.shape_cast %65 : vector<1x128x128xbf16> to vector<128x128xbf16>
    %cst_77 = arith.constant dense<0.000000e+00> : vector<256x128xf32>
    %67 = tpu.matmul %64, %66, %cst_77 {dimension_numbers = #tpu.dot_dimension_numbers<[1], [0], [0], [1], [0, 0, 1, 1], [], []>} : vector<256x128xbf16>, vector<128x128xbf16>, vector<256x128xf32> -> vector<256x128xf32>
    %c0_78 = arith.constant 0 : index
    %c0_79 = arith.constant 0 : index
    %68 = vector.load %arg9[%c0_78, %c0_79] : memref<256x128xf32, #tpu.memory_space<vmem>>, vector<256x128xf32>
    %69 = arith.addf %68, %67 : vector<256x128xf32>
    %c0_80 = arith.constant 0 : index
    %c0_81 = arith.constant 0 : index
    %70 = vector.load %arg9[%c0_80, %c0_81] : memref<256x128xf32, #tpu.memory_space<vmem>>, vector<256x128xf32>
    tpu.vector_store %arg9[%c0_80, %c0_81], %69 {strides = array<i32>} : memref<256x128xf32, #tpu.memory_space<vmem>>, vector<256x128xf32>,
    %c2_82 = arith.constant 2 : index
    %c0_83 = arith.constant 0 : index
    %c0_84 = arith.constant 0 : index
    %71 = vector.load %arg8[%c2_82, %c0_83, %c0_84] : memref<18x18x128xf32, #tpu.memory_space<vmem>>, vector<16x16x128xf32>
    %72 = arith.truncf %71 : vector<16x16x128xf32> to vector<16x16x128xbf16>
    %73 = vector.shape_cast %72 : vector<16x16x128xbf16> to vector<256x128xbf16>
    %c6 = arith.constant 6 : index
    %c0_85 = arith.constant 0 : index
    %c0_86 = arith.constant 0 : index
    %74 = vector.load %arg2[%c6, %c0_85, %c0_86] : memref<9x128x128xbf16, #tpu.memory_space<vmem>>, vector<1x128x128xbf16>
    %75 = vector.shape_cast %74 : vector<1x128x128xbf16> to vector<128x128xbf16>
    %cst_87 = arith.constant dense<0.000000e+00> : vector<256x128xf32>
    %76 = tpu.matmul %73, %75, %cst_87 {dimension_numbers = #tpu.dot_dimension_numbers<[1], [0], [0], [1], [0, 0, 1, 1], [], []>} : vector<256x128xbf16>, vector<128x128xbf16>, vector<256x128xf32> -> vector<256x128xf32>
    %c0_88 = arith.constant 0 : index
    %c0_89 = arith.constant 0 : index
    %77 = vector.load %arg9[%c0_88, %c0_89] : memref<256x128xf32, #tpu.memory_space<vmem>>, vector<256x128xf32>
    %78 = arith.addf %77, %76 : vector<256x128xf32>
    %c0_90 = arith.constant 0 : index
    %c0_91 = arith.constant 0 : index
    %79 = vector.load %arg9[%c0_90, %c0_91] : memref<256x128xf32, #tpu.memory_space<vmem>>, vector<256x128xf32>
    tpu.vector_store %arg9[%c0_90, %c0_91], %78 {strides = array<i32>} : memref<256x128xf32, #tpu.memory_space<vmem>>, vector<256x128xf32>,
    %c2_92 = arith.constant 2 : index
    %c1_93 = arith.constant 1 : index
    %c0_94 = arith.constant 0 : index
    %80 = vector.load %arg8[%c2_92, %c1_93, %c0_94] : memref<18x18x128xf32, #tpu.memory_space<vmem>>, vector<16x16x128xf32>
    %81 = arith.truncf %80 : vector<16x16x128xf32> to vector<16x16x128xbf16>
    %82 = vector.shape_cast %81 : vector<16x16x128xbf16> to vector<256x128xbf16>
    %c7 = arith.constant 7 : index
    %c0_95 = arith.constant 0 : index
    %c0_96 = arith.constant 0 : index
    %83 = vector.load %arg2[%c7, %c0_95, %c0_96] : memref<9x128x128xbf16, #tpu.memory_space<vmem>>, vector<1x128x128xbf16>
    %84 = vector.shape_cast %83 : vector<1x128x128xbf16> to vector<128x128xbf16>
    %cst_97 = arith.constant dense<0.000000e+00> : vector<256x128xf32>
    %85 = tpu.matmul %82, %84, %cst_97 {dimension_numbers = #tpu.dot_dimension_numbers<[1], [0], [0], [1], [0, 0, 1, 1], [], []>} : vector<256x128xbf16>, vector<128x128xbf16>, vector<256x128xf32> -> vector<256x128xf32>
    %c0_98 = arith.constant 0 : index
    %c0_99 = arith.constant 0 : index
    %86 = vector.load %arg9[%c0_98, %c0_99] : memref<256x128xf32, #tpu.memory_space<vmem>>, vector<256x128xf32>
    %87 = arith.addf %86, %85 : vector<256x128xf32>
    %c0_100 = arith.constant 0 : index
    %c0_101 = arith.constant 0 : index
    %88 = vector.load %arg9[%c0_100, %c0_101] : memref<256x128xf32, #tpu.memory_space<vmem>>, vector<256x128xf32>
    tpu.vector_store %arg9[%c0_100, %c0_101], %87 {strides = array<i32>} : memref<256x128xf32, #tpu.memory_space<vmem>>, vector<256x128xf32>,
    %c2_102 = arith.constant 2 : index
    %c2_103 = arith.constant 2 : index
    %c0_104 = arith.constant 0 : index
    %89 = vector.load %arg8[%c2_102, %c2_103, %c0_104] : memref<18x18x128xf32, #tpu.memory_space<vmem>>, vector<16x16x128xf32>
    %90 = arith.truncf %89 : vector<16x16x128xf32> to vector<16x16x128xbf16>
    %91 = vector.shape_cast %90 : vector<16x16x128xbf16> to vector<256x128xbf16>
    %c8 = arith.constant 8 : index
    %c0_105 = arith.constant 0 : index
    %c0_106 = arith.constant 0 : index
    %92 = vector.load %arg2[%c8, %c0_105, %c0_106] : memref<9x128x128xbf16, #tpu.memory_space<vmem>>, vector<1x128x128xbf16>
    %93 = vector.shape_cast %92 : vector<1x128x128xbf16> to vector<128x128xbf16>
    %cst_107 = arith.constant dense<0.000000e+00> : vector<256x128xf32>
    %94 = tpu.matmul %91, %93, %cst_107 {dimension_numbers = #tpu.dot_dimension_numbers<[1], [0], [0], [1], [0, 0, 1, 1], [], []>} : vector<256x128xbf16>, vector<128x128xbf16>, vector<256x128xf32> -> vector<256x128xf32>
    %c0_108 = arith.constant 0 : index
    %c0_109 = arith.constant 0 : index
    %95 = vector.load %arg9[%c0_108, %c0_109] : memref<256x128xf32, #tpu.memory_space<vmem>>, vector<256x128xf32>
    %96 = arith.addf %95, %94 : vector<256x128xf32>
    %c0_110 = arith.constant 0 : index
    %c0_111 = arith.constant 0 : index
    %97 = vector.load %arg9[%c0_110, %c0_111] : memref<256x128xf32, #tpu.memory_space<vmem>>, vector<256x128xf32>
    tpu.vector_store %arg9[%c0_110, %c0_111], %96 {strides = array<i32>} : memref<256x128xf32, #tpu.memory_space<vmem>>, vector<256x128xf32>,
    %c0_112 = arith.constant 0 : index
    %c0_113 = arith.constant 0 : index
    %98 = vector.load %arg9[%c0_112, %c0_113] : memref<256x128xf32, #tpu.memory_space<vmem>>, vector<256x128xf32>
    %99 = vector.shape_cast %98 : vector<256x128xf32> to vector<1x16x16x128xf32>
    %c0_114 = arith.constant 0 : index
    %c0_115 = arith.constant 0 : index
    %c0_116 = arith.constant 0 : index
    %c0_117 = arith.constant 0 : index
    %100 = vector.load %arg5[%c0_114, %c0_115, %c0_116, %c0_117] : memref<1x16x16x128xf32, #tpu.memory_space<vmem>>, vector<1x16x16x128xf32>
    tpu.vector_store %arg5[%c0_114, %c0_115, %c0_116, %c0_117], %99 {strides = array<i32>} : memref<1x16x16x128xf32, #tpu.memory_space<vmem>>, vector<1x16x16x128xf32>,
    %cst_118 = arith.constant 0.000000e+00 : f32
    %101 = vector.broadcast %cst_118 : f32 to vector<1x7x128xf32>
    %cst_119 = arith.constant dense<0.000000e+00> : vector<128xf32>
    %102 = vector.multi_reduction <add>, %98, %cst_119 [0] : vector<256x128xf32> to vector<128xf32>
    %103 = vector.shape_cast %102 : vector<128xf32> to vector<1x1x128xf32>
    %c0_120 = arith.constant 0 : index
    %c0_121 = arith.constant 0 : index
    %c0_122 = arith.constant 0 : index
    %104 = vector.load %arg6[%c0_120, %c0_121, %c0_122] : memref<1x8x128xf32, #tpu.memory_space<vmem>>, vector<1x1x128xf32>
    tpu.vector_store %arg6[%c0_120, %c0_121, %c0_122], %103 {strides = array<i32>} : memref<1x8x128xf32, #tpu.memory_space<vmem>>, vector<1x1x128xf32>,
    %c0_123 = arith.constant 0 : index
    %c1_124 = arith.constant 1 : index
    %c0_125 = arith.constant 0 : index
    %105 = vector.load %arg6[%c0_123, %c1_124, %c0_125] : memref<1x8x128xf32, #tpu.memory_space<vmem>>, vector<1x7x128xf32>
    tpu.vector_store %arg6[%c0_123, %c1_124, %c0_125], %101 {strides = array<i32>} : memref<1x8x128xf32, #tpu.memory_space<vmem>>, vector<1x7x128xf32>,
    %106 = arith.mulf %98, %98 : vector<256x128xf32>
    %cst_126 = arith.constant dense<0.000000e+00> : vector<128xf32>
    %107 = vector.multi_reduction <add>, %106, %cst_126 [0] : vector<256x128xf32> to vector<128xf32>
    %108 = vector.shape_cast %107 : vector<128xf32> to vector<1x1x128xf32>
    %c0_127 = arith.constant 0 : index
    %c0_128 = arith.constant 0 : index
    %c0_129 = arith.constant 0 : index
    %109 = vector.load %arg7[%c0_127, %c0_128, %c0_129] : memref<1x8x128xf32, #tpu.memory_space<vmem>>, vector<1x1x128xf32>
    tpu.vector_store %arg7[%c0_127, %c0_128, %c0_129], %108 {strides = array<i32>} : memref<1x8x128xf32, #tpu.memory_space<vmem>>, vector<1x1x128xf32>,
    %c0_130 = arith.constant 0 : index
    %c1_131 = arith.constant 1 : index
    %c0_132 = arith.constant 0 : index
    %110 = vector.load %arg7[%c0_130, %c1_131, %c0_132] : memref<1x8x128xf32, #tpu.memory_space<vmem>>, vector<1x7x128xf32>
    tpu.vector_store %arg7[%c0_130, %c1_131, %c0_132], %101 {strides = array<i32>} : memref<1x8x128xf32, #tpu.memory_space<vmem>>, vector<1x7x128xf32>,
    return
  }
  func.func @transform_0(%arg0: i32) -> (i32, i32, i32, i32) {
    %c0_i32 = arith.constant 0 : i32
    %c0_i32_0 = arith.constant 0 : i32
    %c0_i32_1 = arith.constant 0 : i32
    %c0_i32_2 = arith.constant 0 : i32
    return %arg0, %c0_i32, %c0_i32_0, %c0_i32_1 : i32, i32, i32, i32
  }
  func.func @transform_1(%arg0: i32) -> (i32, i32, i32) {
    %c0_i32 = arith.constant 0 : i32
    %c0_i32_0 = arith.constant 0 : i32
    %c0_i32_1 = arith.constant 0 : i32
    %c0_i32_2 = arith.constant 0 : i32
    return %c0_i32, %c0_i32_0, %c0_i32_1 : i32, i32, i32
  }
  func.func @transform_2(%arg0: i32) -> (i32, i32) {
    %c0_i32 = arith.constant 0 : i32
    %c0_i32_0 = arith.constant 0 : i32
    %c0_i32_1 = arith.constant 0 : i32
    return %c0_i32, %c0_i32_0 : i32, i32
  }
  func.func @transform_3(%arg0: i32) -> (i32, i32) {
    %c0_i32 = arith.constant 0 : i32
    %c0_i32_0 = arith.constant 0 : i32
    %c0_i32_1 = arith.constant 0 : i32
    return %c0_i32, %c0_i32_0 : i32, i32
  }
  func.func @transform_4(%arg0: i32) -> (i32, i32, i32, i32) {
    %c0_i32 = arith.constant 0 : i32
    %c0_i32_0 = arith.constant 0 : i32
    %c0_i32_1 = arith.constant 0 : i32
    %c0_i32_2 = arith.constant 0 : i32
    return %arg0, %c0_i32, %c0_i32_0, %c0_i32_1 : i32, i32, i32, i32
  }
  func.func @transform_5(%arg0: i32) -> (i32, i32, i32) {
    %c0_i32 = arith.constant 0 : i32
    %c0_i32_0 = arith.constant 0 : i32
    %c0_i32_1 = arith.constant 0 : i32
    return %arg0, %c0_i32, %c0_i32_0 : i32, i32, i32
  }
  func.func @transform_6(%arg0: i32) -> (i32, i32, i32) {
    %c0_i32 = arith.constant 0 : i32
    %c0_i32_0 = arith.constant 0 : i32
    %c0_i32_1 = arith.constant 0 : i32
    return %arg0, %c0_i32, %c0_i32_0 : i32, i32, i32
  }
}

module attributes {stable_mosaic.version = 11 : i64} {
  func.func @_matmul_bn_stats_kernel(%arg0: i32, %arg1: memref<256x128xf32, #tpu.memory_space<vmem>>, %arg2: memref<128x128xbf16, #tpu.memory_space<vmem>>, %arg3: memref<1x128xf32, #tpu.memory_space<vmem>>, %arg4: memref<1x128xf32, #tpu.memory_space<vmem>>, %arg5: memref<256x128xf32, #tpu.memory_space<vmem>>, %arg6: memref<1x8x128xf32, #tpu.memory_space<vmem>>, %arg7: memref<1x8x128xf32, #tpu.memory_space<vmem>>) attributes {dimension_semantics = [#tpu.dimension_semantics<parallel>], iteration_bounds = array<i64: 2>, scalar_prefetch = 0 : i64, scratch_operands = 0 : i64, tpu.core_type = #tpu.core_type<tc>, window_params = [{transform_indices = @transform_0, window_bounds = array<i64: 256, 128>}, {pipeline_mode = #tpu.pipeline_mode<synchronous>, transform_indices = @transform_1, window_bounds = array<i64: 128, 128>}, {pipeline_mode = #tpu.pipeline_mode<synchronous>, transform_indices = @transform_2, window_bounds = array<i64: 1, 128>}, {pipeline_mode = #tpu.pipeline_mode<synchronous>, transform_indices = @transform_3, window_bounds = array<i64: 1, 128>}, {transform_indices = @transform_4, window_bounds = array<i64: 256, 128>}, {transform_indices = @transform_5, window_bounds = array<i64: 1, 8, 128>}, {transform_indices = @transform_6, window_bounds = array<i64: 1, 8, 128>}]} {
    %c0 = arith.constant 0 : index
    %c0_0 = arith.constant 0 : index
    %0 = vector.load %arg1[%c0, %c0_0] : memref<256x128xf32, #tpu.memory_space<vmem>>, vector<256x128xf32>
    %c0_1 = arith.constant 0 : index
    %c0_2 = arith.constant 0 : index
    %1 = vector.load %arg3[%c0_1, %c0_2] : memref<1x128xf32, #tpu.memory_space<vmem>>, vector<1x128xf32>
    %2 = vector.broadcast %1 : vector<1x128xf32> to vector<256x128xf32>
    %3 = arith.mulf %0, %2 : vector<256x128xf32>
    %c0_3 = arith.constant 0 : index
    %c0_4 = arith.constant 0 : index
    %4 = vector.load %arg4[%c0_3, %c0_4] : memref<1x128xf32, #tpu.memory_space<vmem>>, vector<1x128xf32>
    %5 = vector.broadcast %4 : vector<1x128xf32> to vector<256x128xf32>
    %6 = arith.addf %3, %5 : vector<256x128xf32>
    %cst = arith.constant 0.000000e+00 : f32
    %7 = vector.broadcast %cst : f32 to vector<256x128xf32>
    %8 = arith.maximumf %6, %7 : vector<256x128xf32>
    %9 = arith.truncf %8 : vector<256x128xf32> to vector<256x128xbf16>
    %c0_5 = arith.constant 0 : index
    %c0_6 = arith.constant 0 : index
    %10 = vector.load %arg2[%c0_5, %c0_6] : memref<128x128xbf16, #tpu.memory_space<vmem>>, vector<128x128xbf16>
    %cst_7 = arith.constant dense<0.000000e+00> : vector<256x128xf32>
    %11 = tpu.matmul %9, %10, %cst_7 {dimension_numbers = #tpu.dot_dimension_numbers<[1], [0], [0], [1], [0, 0, 1, 1], [], []>} : vector<256x128xbf16>, vector<128x128xbf16>, vector<256x128xf32> -> vector<256x128xf32>
    %c0_8 = arith.constant 0 : index
    %c0_9 = arith.constant 0 : index
    %12 = vector.load %arg5[%c0_8, %c0_9] : memref<256x128xf32, #tpu.memory_space<vmem>>, vector<256x128xf32>
    tpu.vector_store %arg5[%c0_8, %c0_9], %11 {strides = array<i32>} : memref<256x128xf32, #tpu.memory_space<vmem>>, vector<256x128xf32>,
    %cst_10 = arith.constant 0.000000e+00 : f32
    %13 = vector.broadcast %cst_10 : f32 to vector<1x7x128xf32>
    %cst_11 = arith.constant dense<0.000000e+00> : vector<128xf32>
    %14 = vector.multi_reduction <add>, %11, %cst_11 [0] : vector<256x128xf32> to vector<128xf32>
    %15 = vector.shape_cast %14 : vector<128xf32> to vector<1x1x128xf32>
    %c0_12 = arith.constant 0 : index
    %c0_13 = arith.constant 0 : index
    %c0_14 = arith.constant 0 : index
    %16 = vector.load %arg6[%c0_12, %c0_13, %c0_14] : memref<1x8x128xf32, #tpu.memory_space<vmem>>, vector<1x1x128xf32>
    tpu.vector_store %arg6[%c0_12, %c0_13, %c0_14], %15 {strides = array<i32>} : memref<1x8x128xf32, #tpu.memory_space<vmem>>, vector<1x1x128xf32>,
    %c0_15 = arith.constant 0 : index
    %c1 = arith.constant 1 : index
    %c0_16 = arith.constant 0 : index
    %17 = vector.load %arg6[%c0_15, %c1, %c0_16] : memref<1x8x128xf32, #tpu.memory_space<vmem>>, vector<1x7x128xf32>
    tpu.vector_store %arg6[%c0_15, %c1, %c0_16], %13 {strides = array<i32>} : memref<1x8x128xf32, #tpu.memory_space<vmem>>, vector<1x7x128xf32>,
    %18 = arith.mulf %11, %11 : vector<256x128xf32>
    %cst_17 = arith.constant dense<0.000000e+00> : vector<128xf32>
    %19 = vector.multi_reduction <add>, %18, %cst_17 [0] : vector<256x128xf32> to vector<128xf32>
    %20 = vector.shape_cast %19 : vector<128xf32> to vector<1x1x128xf32>
    %c0_18 = arith.constant 0 : index
    %c0_19 = arith.constant 0 : index
    %c0_20 = arith.constant 0 : index
    %21 = vector.load %arg7[%c0_18, %c0_19, %c0_20] : memref<1x8x128xf32, #tpu.memory_space<vmem>>, vector<1x1x128xf32>
    tpu.vector_store %arg7[%c0_18, %c0_19, %c0_20], %20 {strides = array<i32>} : memref<1x8x128xf32, #tpu.memory_space<vmem>>, vector<1x1x128xf32>,
    %c0_21 = arith.constant 0 : index
    %c1_22 = arith.constant 1 : index
    %c0_23 = arith.constant 0 : index
    %22 = vector.load %arg7[%c0_21, %c1_22, %c0_23] : memref<1x8x128xf32, #tpu.memory_space<vmem>>, vector<1x7x128xf32>
    tpu.vector_store %arg7[%c0_21, %c1_22, %c0_23], %13 {strides = array<i32>} : memref<1x8x128xf32, #tpu.memory_space<vmem>>, vector<1x7x128xf32>,
    return
  }
  func.func @transform_0(%arg0: i32) -> (i32, i32) {
    %c0_i32 = arith.constant 0 : i32
    %c0_i32_0 = arith.constant 0 : i32
    return %arg0, %c0_i32 : i32, i32
  }
  func.func @transform_1(%arg0: i32) -> (i32, i32) {
    %c0_i32 = arith.constant 0 : i32
    %c0_i32_0 = arith.constant 0 : i32
    %c0_i32_1 = arith.constant 0 : i32
    return %c0_i32, %c0_i32_0 : i32, i32
  }
  func.func @transform_2(%arg0: i32) -> (i32, i32) {
    %c0_i32 = arith.constant 0 : i32
    %c0_i32_0 = arith.constant 0 : i32
    %c0_i32_1 = arith.constant 0 : i32
    return %c0_i32, %c0_i32_0 : i32, i32
  }
  func.func @transform_3(%arg0: i32) -> (i32, i32) {
    %c0_i32 = arith.constant 0 : i32
    %c0_i32_0 = arith.constant 0 : i32
    %c0_i32_1 = arith.constant 0 : i32
    return %c0_i32, %c0_i32_0 : i32, i32
  }
  func.func @transform_4(%arg0: i32) -> (i32, i32) {
    %c0_i32 = arith.constant 0 : i32
    %c0_i32_0 = arith.constant 0 : i32
    return %arg0, %c0_i32 : i32, i32
  }
  func.func @transform_5(%arg0: i32) -> (i32, i32, i32) {
    %c0_i32 = arith.constant 0 : i32
    %c0_i32_0 = arith.constant 0 : i32
    %c0_i32_1 = arith.constant 0 : i32
    return %arg0, %c0_i32, %c0_i32_0 : i32, i32, i32
  }
  func.func @transform_6(%arg0: i32) -> (i32, i32, i32) {
    %c0_i32 = arith.constant 0 : i32
    %c0_i32_0 = arith.constant 0 : i32
    %c0_i32_1 = arith.constant 0 : i32
    return %arg0, %c0_i32, %c0_i32_0 : i32, i32, i32
  }
}

module attributes {stable_mosaic.version = 11 : i64} {
  func.func @_bn_residual_relu_kernel(%arg0: i32, %arg1: memref<256x128xf32, #tpu.memory_space<vmem>>, %arg2: memref<256x128xf32, #tpu.memory_space<vmem>>, %arg3: memref<1x128xf32, #tpu.memory_space<vmem>>, %arg4: memref<1x128xf32, #tpu.memory_space<vmem>>, %arg5: memref<256x128xf32, #tpu.memory_space<vmem>>) attributes {dimension_semantics = [#tpu.dimension_semantics<parallel>], iteration_bounds = array<i64: 2>, scalar_prefetch = 0 : i64, scratch_operands = 0 : i64, tpu.core_type = #tpu.core_type<tc>, window_params = [{transform_indices = @transform_0, window_bounds = array<i64: 256, 128>}, {transform_indices = @transform_1, window_bounds = array<i64: 256, 128>}, {pipeline_mode = #tpu.pipeline_mode<synchronous>, transform_indices = @transform_2, window_bounds = array<i64: 1, 128>}, {pipeline_mode = #tpu.pipeline_mode<synchronous>, transform_indices = @transform_3, window_bounds = array<i64: 1, 128>}, {transform_indices = @transform_4, window_bounds = array<i64: 256, 128>}]} {
    %c0 = arith.constant 0 : index
    %c0_0 = arith.constant 0 : index
    %0 = vector.load %arg1[%c0, %c0_0] : memref<256x128xf32, #tpu.memory_space<vmem>>, vector<256x128xf32>
    %c0_1 = arith.constant 0 : index
    %c0_2 = arith.constant 0 : index
    %1 = vector.load %arg3[%c0_1, %c0_2] : memref<1x128xf32, #tpu.memory_space<vmem>>, vector<1x128xf32>
    %2 = vector.broadcast %1 : vector<1x128xf32> to vector<256x128xf32>
    %3 = arith.mulf %0, %2 : vector<256x128xf32>
    %c0_3 = arith.constant 0 : index
    %c0_4 = arith.constant 0 : index
    %4 = vector.load %arg4[%c0_3, %c0_4] : memref<1x128xf32, #tpu.memory_space<vmem>>, vector<1x128xf32>
    %5 = vector.broadcast %4 : vector<1x128xf32> to vector<256x128xf32>
    %6 = arith.addf %3, %5 : vector<256x128xf32>
    %c0_5 = arith.constant 0 : index
    %c0_6 = arith.constant 0 : index
    %7 = vector.load %arg2[%c0_5, %c0_6] : memref<256x128xf32, #tpu.memory_space<vmem>>, vector<256x128xf32>
    %8 = arith.addf %6, %7 : vector<256x128xf32>
    %cst = arith.constant 0.000000e+00 : f32
    %9 = vector.broadcast %cst : f32 to vector<256x128xf32>
    %10 = arith.maximumf %8, %9 : vector<256x128xf32>
    %c0_7 = arith.constant 0 : index
    %c0_8 = arith.constant 0 : index
    %11 = vector.load %arg5[%c0_7, %c0_8] : memref<256x128xf32, #tpu.memory_space<vmem>>, vector<256x128xf32>
    tpu.vector_store %arg5[%c0_7, %c0_8], %10 {strides = array<i32>} : memref<256x128xf32, #tpu.memory_space<vmem>>, vector<256x128xf32>,
    return
  }
  func.func @transform_0(%arg0: i32) -> (i32, i32) {
    %c0_i32 = arith.constant 0 : i32
    %c0_i32_0 = arith.constant 0 : i32
    return %arg0, %c0_i32 : i32, i32
  }
  func.func @transform_1(%arg0: i32) -> (i32, i32) {
    %c0_i32 = arith.constant 0 : i32
    %c0_i32_0 = arith.constant 0 : i32
    return %arg0, %c0_i32 : i32, i32
  }
  func.func @transform_2(%arg0: i32) -> (i32, i32) {
    %c0_i32 = arith.constant 0 : i32
    %c0_i32_0 = arith.constant 0 : i32
    %c0_i32_1 = arith.constant 0 : i32
    return %c0_i32, %c0_i32_0 : i32, i32
  }
  func.func @transform_3(%arg0: i32) -> (i32, i32) {
    %c0_i32 = arith.constant 0 : i32
    %c0_i32_0 = arith.constant 0 : i32
    %c0_i32_1 = arith.constant 0 : i32
    return %c0_i32, %c0_i32_0 : i32, i32
  }
  func.func @transform_4(%arg0: i32) -> (i32, i32) {
    %c0_i32 = arith.constant 0 : i32
    %c0_i32_0 = arith.constant 0 : i32
    return %arg0, %c0_i32 : i32, i32
  }
}

</mosaic_0001>

<llo_original>
// kernel: deconv_bottleneck.7
$region0: #{deconv_bottleneck.7}
  #allocation0 [shape = 'u32[]', space=smem, size = 0x4, offset = 0x4, fixed_abs, tag = 'smem constant byte address 0x4 - core index']
  #allocation1 [shape = 'u32[144,128]{1,0:T(1,128)}', space=vmem, size = 0x12000, scoped, tag = 'internal scratch']
  %s0 = inlined_call_operand.vmem [shape: f32[512,128], index: 0, kind: input, shape index: {}]
  %s1 = inlined_call_operand.vmem [shape: f32[512,128], index: 1, kind: input, shape index: {}]
  %s2 = inlined_call_operand.vmem [shape: f32[1,128], index: 2, kind: input, shape index: {}]
  %s3 = inlined_call_operand.vmem [shape: f32[1,128], index: 3, kind: input, shape index: {}]
  %s4 = inlined_call_operand.vmem [shape: f32[512,128], index: 4, kind: output, shape index: {}]
  %s5 = sld [smem:[#allocation0]]
  $region49: #{deconv_bottleneck.7} parent=0
    _
  %s7 = ssub.s32 1, %s5
  %s8 = scalar_select 0, %s7, %s5
  loop: start=0, step=1, limit=4
  $region2: #{deconv_bottleneck.7} parent=0 // loop_pre_header
    _
  $region3: #{deconv_bottleneck.7} parent=0 // loop_header
    %s10 = sphi 0, %s14
    %p11 = scmp.ge.s32.totalorder %s10, 4
    %s20 = sphi 0, %s22
    %s23 = sphi 0, %s20
    %s24 = sphi 0, %s23
    %s40 = sphi 0, %s24
    %s46 = sphi 0, %s48
    %s49 = sphi 0, %s46
    %s50 = sphi 0, %s49
    %s66 = sphi 0, %s50
    %s70 = sphi 0, %s70
    %s72 = sphi 0, %s70
    %s73 = sphi 0, %s72
    %s87 = sphi 0, %s73
    %s91 = sphi 0, %s91
    %s93 = sphi 0, %s91
    %s94 = sphi 0, %s93
    %s108 = sphi 0, %s94
    %s114 = sphi 0, %s116
    %s117 = sphi 0, %s114
    %s118 = sphi 0, %s117
    %s134 = sphi 0, %s118
  $region4: #{deconv_bottleneck.7} parent=0 // loop_header_branch
    %13 = sbr.rel (%p11) target = $region8
  $region5: #{deconv_bottleneck.7} parent=0 // loop_body
    %s15 = ssub.s32 %s10, 1
    %s16 = ssub.s32 %s10, 2
    %s17 = sadd.s32 %s10, 1
    %s18 = ssub.s32 %s10, %s17
    %p19 = scmp.eq.s32.totalorder %s18, 0
    %s21 = sadd.s32 %s20, 1
    %s22 = scalar_select %p19, %s20, %s21
    %p25 = pneg %p19
    %p26 = scmp.eq.s32.totalorder %s10, 1
    %p27 = por %p25, %p26
    %p28 = scmp.ne.s32.totalorder %s20, %s23
    %p29 = scmp.eq.s32.totalorder %s10, 0
    %p30 = por %p28, %p29
    %p31 = scmp.ne.s32.totalorder %s20, %s23
    %p32 = scmp.eq.s32.totalorder %s15, 1
    %p33 = por %p31, %p32
    %p34 = scmp.ne.s32.totalorder %s23, %s24
    %p35 = scmp.eq.s32.totalorder %s15, 0
    %p36 = por %p34, %p35
    %p37 = scmp.ne.s32.totalorder %s23, %s24
    %p38 = scmp.eq.s32.totalorder %s16, 1
    %p39 = por %p37, %p38
    %p41 = scmp.ne.s32.totalorder %s24, %s40
    %p42 = scmp.eq.s32.totalorder %s16, 0
    %p43 = por %p41, %p42
    %s44 = ssub.s32 %s10, %s17
    %p45 = scmp.eq.s32.totalorder %s44, 0
    %s47 = sadd.s32 %s46, 1
    %s48 = scalar_select %p45, %s46, %s47
    %p51 = pneg %p45
    %p52 = scmp.eq.s32.totalorder %s10, 1
    %p53 = por %p51, %p52
    %p54 = scmp.ne.s32.totalorder %s46, %s49
    %p55 = scmp.eq.s32.totalorder %s10, 0
    %p56 = por %p54, %p55
    %p57 = scmp.ne.s32.totalorder %s46, %s49
    %p58 = scmp.eq.s32.totalorder %s15, 1
    %p59 = por %p57, %p58
    %p60 = scmp.ne.s32.totalorder %s49, %s50
    %p61 = scmp.eq.s32.totalorder %s15, 0
    %p62 = por %p60, %p61
    %p63 = scmp.ne.s32.totalorder %s49, %s50
    %p64 = scmp.eq.s32.totalorder %s16, 1
    %p65 = por %p63, %p64
    %p67 = scmp.ne.s32.totalorder %s50, %s66
    %p68 = scmp.eq.s32.totalorder %s16, 0
    %p69 = por %p67, %p68
    %s71 = sadd.s32 %s70, 1
    %p74 = scmp.eq.s32.totalorder %s10, 1
    %p75 = scmp.ne.s32.totalorder %s70, %s72
    %p76 = scmp.eq.s32.totalorder %s10, 0
    %p77 = por %p75, %p76
    %p78 = scmp.ne.s32.totalorder %s70, %s72
    %p79 = scmp.eq.s32.totalorder %s15, 1
    %p80 = por %p78, %p79
    %p81 = scmp.ne.s32.totalorder %s72, %s73
    %p82 = scmp.eq.s32.totalorder %s15, 0
    %p83 = por %p81, %p82
    %p84 = scmp.ne.s32.totalorder %s72, %s73
    %p85 = scmp.eq.s32.totalorder %s16, 1
    %p86 = por %p84, %p85
    %p88 = scmp.ne.s32.totalorder %s73, %s87
    %p89 = scmp.eq.s32.totalorder %s16, 0
    %p90 = por %p88, %p89
    %s92 = sadd.s32 %s91, 1
    %p95 = scmp.eq.s32.totalorder %s10, 1
    %p96 = scmp.ne.s32.totalorder %s91, %s93
    %p97 = scmp.eq.s32.totalorder %s10, 0
    %p98 = por %p96, %p97
    %p99 = scmp.ne.s32.totalorder %s91, %s93
    %p100 = scmp.eq.s32.totalorder %s15, 1
    %p101 = por %p99, %p100
    %p102 = scmp.ne.s32.totalorder %s93, %s94
    %p103 = scmp.eq.s32.totalorder %s15, 0
    %p104 = por %p102, %p103
    %p105 = scmp.ne.s32.totalorder %s93, %s94
    %p106 = scmp.eq.s32.totalorder %s16, 1
    %p107 = por %p105, %p106
    %p109 = scmp.ne.s32.totalorder %s94, %s108
    %p110 = scmp.eq.s32.totalorder %s16, 0
    %p111 = por %p109, %p110
    %s112 = ssub.s32 %s10, %s17
    %p113 = scmp.eq.s32.totalorder %s112, 0
    %s115 = sadd.s32 %s114, 1
    %s116 = scalar_select %p113, %s114, %s115
    %p119 = pneg %p113
    %p120 = scmp.eq.s32.totalorder %s10, 1
    %p121 = por %p119, %p120
    %p122 = scmp.ne.s32.totalorder %s114, %s117
    %p123 = scmp.eq.s32.totalorder %s10, 0
    %p124 = por %p122, %p123
    %p125 = scmp.ne.s32.totalorder %s114, %s117
    %p126 = scmp.eq.s32.totalorder %s15, 1
    %p127 = por %p125, %p126
    %p128 = scmp.ne.s32.totalorder %s117, %s118
    %p129 = scmp.eq.s32.totalorder %s15, 0
    %p130 = por %p128, %p129
    %p131 = scmp.ne.s32.totalorder %s117, %s118
    %p132 = scmp.eq.s32.totalorder %s16, 1
    %p133 = por %p131, %p132
    %p135 = scmp.ne.s32.totalorder %s118, %s134
    %p136 = scmp.eq.s32.totalorder %s16, 0
    %p137 = por %p135, %p136
    %p138 = scmp.le.s32.totalorder 1, %s10
    %p139 = scmp.lt.s32.totalorder %s10, 3
    %p140 = pnand %p138, %p139
    %p141 = pneg %p140
    // Predicated region
    $region9: #{deconv_bottleneck.7} parent=5 // pred_check
      _
    $region10: #{deconv_bottleneck.7} parent=5 // pred_check_branch
      %143 = sbr.rel (%p140) target = $region12
    $region11: #{deconv_bottleneck.7} parent=5 // pred_region
      %s144 = ssub.s32 %s10, 1
      // Predicated region
      $region13: #{deconv_bottleneck.7} parent=11 // pred_check
        %p145 = pneg %p83
      $region14: #{deconv_bottleneck.7} parent=11 // pred_check_branch
        %147 = sbr.rel (%p145) target = $region16
      $region15: #{deconv_bottleneck.7} parent=11 // pred_region
        _
      $region16: #{deconv_bottleneck.7} parent=11 // pred_fallthru
        _
      // Predicated region
      $region17: #{deconv_bottleneck.7} parent=11 // pred_check
        %p148 = pneg %p104
      $region18: #{deconv_bottleneck.7} parent=11 // pred_check_branch
        %150 = sbr.rel (%p148) target = $region20
      $region19: #{deconv_bottleneck.7} parent=11 // pred_region
        _
      $region20: #{deconv_bottleneck.7} parent=11 // pred_fallthru
        _
    $region12: #{deconv_bottleneck.7} parent=5 // pred_fallthru
      _
    %p151 = scmp.lt.s32.totalorder %s10, 2
    // Predicated region
    $region21: #{deconv_bottleneck.7} parent=5 // pred_check
      %p152 = pneg %p151
    $region22: #{deconv_bottleneck.7} parent=5 // pred_check_branch
      %154 = sbr.rel (%p152) target = $region24
    $region23: #{deconv_bottleneck.7} parent=5 // pred_region
      // Predicated region
      $region25: #{deconv_bottleneck.7} parent=23 // pred_check
        %p155 = pneg %p30
      $region26: #{deconv_bottleneck.7} parent=23 // pred_check_branch
        %157 = sbr.rel (%p155) target = $region28
      $region27: #{deconv_bottleneck.7} parent=23 // pred_region
        %s158 = smul.u32 32, %s10
        %p159 = scmp.lt.s32.totalorder %s158, 63
        %s160 = scalar_select %p159, %s158, 63
        %s161 = smul.addr %s160, 8
        %s162 = scalar_lea.vmem %s0, %s161
        %s163 = smul.u32 32, %s10
      $region28: #{deconv_bottleneck.7} parent=23 // pred_fallthru
        _
      // Predicated region
      $region29: #{deconv_bottleneck.7} parent=23 // pred_check
        %p164 = pneg %p56
      $region30: #{deconv_bottleneck.7} parent=23 // pred_check_branch
        %166 = sbr.rel (%p164) target = $region32
      $region31: #{deconv_bottleneck.7} parent=23 // pred_region
        %s167 = smul.u32 32, %s10
        %p168 = scmp.lt.s32.totalorder %s167, 63
        %s169 = scalar_select %p168, %s167, 63
        %s170 = smul.addr %s169, 8
        %s171 = scalar_lea.vmem %s1, %s170
        %s172 = smul.u32 32, %s10
      $region32: #{deconv_bottleneck.7} parent=23 // pred_fallthru
        _
    $region24: #{deconv_bottleneck.7} parent=5 // pred_fallthru
      _
    %p173 = scmp.le.s32.totalorder 1, %s10
    %p174 = scmp.lt.s32.totalorder %s10, 3
    %p175 = pnand %p173, %p174
    %p176 = pneg %p175
    // Predicated region
    $region33: #{deconv_bottleneck.7} parent=5 // pred_check
      _
    $region34: #{deconv_bottleneck.7} parent=5 // pred_check_branch
      %178 = sbr.rel (%p175) target = $region36
    $region35: #{deconv_bottleneck.7} parent=5 // pred_region
      %s179 = ssub.s32 %s10, 1
      %s180 = smul.u32 32, %s15
      %p181 = scmp.lt.s32.totalorder %s180, 63
      %s182 = scalar_select %p181, %s180, 63
      %s183 = smul.addr %s182, 8
      %s184 = scalar_lea.vmem %s0, %s183
      %p185 = pneg %p36
      %p186 = pneg %p33
      %s187 = smul.u32 32, %s15
      %p188 = scmp.lt.s32.totalorder %s187, 63
      %s189 = scalar_select %p188, %s187, 63
      %s190 = smul.addr %s189, 8
      %s191 = scalar_lea.vmem %s1, %s190
      %p192 = pneg %p62
      %p193 = pneg %p59
      %p194 = pneg %p83
      %p195 = pneg %p80
      %p196 = pneg %p104
      %p197 = pneg %p101
      %p198 = pneg %p130
      %p199 = pneg %p127
      %s200 = smul.u32 32, %s15
      %p201 = scmp.lt.s32.totalorder %s200, 63
      %s202 = scalar_select %p201, %s200, 63
      %s203 = smul.addr %s202, 8
      %s204 = scalar_lea.vmem %s4, %s203
      %s205 = smul.u32 32, %s15
      %p206 = scmp.lt.s32.totalorder %s205, 63
      %s207 = scalar_select %p206, %s205, 63
      %s208 = smul.addr %s207, 8
      %s209 = scalar_lea.vmem %s0, %s208
      %s210 = smul.u32 32, %s15
      %s211 = smul.u32 32, %s15
      %p212 = scmp.lt.s32.totalorder %s211, 63
      %s213 = scalar_select %p212, %s211, 63
      %s214 = smul.addr %s213, 8
      %s215 = scalar_lea.vmem %s1, %s214
      %s216 = smul.u32 32, %s15
      %s217 = smul.u32 32, %s15
      %p218 = scmp.lt.s32.totalorder %s217, 63
      %s219 = scalar_select %p218, %s217, 63
      %s220 = smul.addr %s219, 8
      %s221 = scalar_lea.vmem %s4, %s220
      %s222 = smul.u32 32, %s15
      %v223 = vld [vmem:[%s209] sm:$0xff]
      %v224 = vld [vmem:[%s209 + $0x8] sm:$0xff]
      %v225 = vld [vmem:[%s209 + $0x10] sm:$0xff]
      %v226 = vld [vmem:[%s209 + $0x18] sm:$0xff]
      %v227 = vld [vmem:[%s209 + $0x20] sm:$0xff]
      %v228 = vld [vmem:[%s209 + $0x28] sm:$0xff]
      %v229 = vld [vmem:[%s209 + $0x30] sm:$0xff]
      %v230 = vld [vmem:[%s209 + $0x38] sm:$0xff]
      %v231 = vld [vmem:[%s209 + $0x40] sm:$0xff]
      %v232 = vld [vmem:[%s209 + $0x48] sm:$0xff]
      %v233 = vld [vmem:[%s209 + $0x50] sm:$0xff]
      %v234 = vld [vmem:[%s209 + $0x58] sm:$0xff]
      %v235 = vld [vmem:[%s209 + $0x60] sm:$0xff]
      %v236 = vld [vmem:[%s209 + $0x68] sm:$0xff]
      %v237 = vld [vmem:[%s209 + $0x70] sm:$0xff]
      %v238 = vld [vmem:[%s209 + $0x78] sm:$0xff]
      %v239 = vld [vmem:[%s209 + $0x80] sm:$0xff]
      %v240 = vld [vmem:[%s209 + $0x88] sm:$0xff]
      %v241 = vld [vmem:[%s209 + $0x90] sm:$0xff]
      %v242 = vld [vmem:[%s209 + $0x98] sm:$0xff]
      %v243 = vld [vmem:[%s209 + $0xa0] sm:$0xff]
      %v244 = vld [vmem:[%s209 + $0xa8] sm:$0xff]
      %v245 = vld [vmem:[%s209 + $0xb0] sm:$0xff]
      %v246 = vld [vmem:[%s209 + $0xb8] sm:$0xff]
      %v247 = vld [vmem:[%s209 + $0xc0] sm:$0xff]
      %v248 = vld [vmem:[%s209 + $0xc8] sm:$0xff]
      %v249 = vld [vmem:[%s209 + $0xd0] sm:$0xff]
      %v250 = vld [vmem:[%s209 + $0xd8] sm:$0xff]
      %v251 = vld [vmem:[%s209 + $0xe0] sm:$0xff]
      %v252 = vld [vmem:[%s209 + $0xe8] sm:$0xff]
      %v253 = vld [vmem:[%s209 + $0xf0] sm:$0xff]
      %v254 = vld [vmem:[%s209 + $0xf8] sm:$0xff]
      %v255 = vld [vmem:[%s2] sm:$0x1]
      %v257 = vlaneseq
      %v258 = vshrl.u32 %v257, 7
      %v259 = vsub.s32 0, %v258
      %v260 = vrot.slane %v255, %v259
      %v262 = vmul.f32 %v223, %v260
      %v263 = vmul.f32 %v224, %v260
      %v264 = vmul.f32 %v225, %v260
      %v265 = vmul.f32 %v226, %v260
      %v266 = vmul.f32 %v227, %v260
      %v267 = vmul.f32 %v228, %v260
      %v268 = vmul.f32 %v229, %v260
      %v269 = vmul.f32 %v230, %v260
      %v270 = vmul.f32 %v231, %v260
      %v271 = vmul.f32 %v232, %v260
      %v272 = vmul.f32 %v233, %v260
      %v273 = vmul.f32 %v234, %v260
      %v274 = vmul.f32 %v235, %v260
      %v275 = vmul.f32 %v236, %v260
      %v276 = vmul.f32 %v237, %v260
      %v277 = vmul.f32 %v238, %v260
      %v278 = vmul.f32 %v239, %v260
      %v279 = vmul.f32 %v240, %v260
      %v280 = vmul.f32 %v241, %v260
      %v281 = vmul.f32 %v242, %v260
      %v282 = vmul.f32 %v243, %v260
      %v283 = vmul.f32 %v244, %v260
      %v284 = vmul.f32 %v245, %v260
      %v285 = vmul.f32 %v246, %v260
      %v286 = vmul.f32 %v247, %v260
      %v287 = vmul.f32 %v248, %v260
      %v288 = vmul.f32 %v249, %v260
      %v289 = vmul.f32 %v250, %v260
      %v290 = vmul.f32 %v251, %v260
      %v291 = vmul.f32 %v252, %v260
      %v292 = vmul.f32 %v253, %v260
      %v293 = vmul.f32 %v254, %v260
      %v294 = vld [vmem:[%s3] sm:$0x1]
      %v296 = vlaneseq
      %v297 = vshrl.u32 %v296, 7
      %v298 = vsub.s32 0, %v297
      %v299 = vrot.slane %v294, %v298
      %v301 = vadd.f32 %v262, %v299
      %v302 = vadd.f32 %v263, %v299
      %v303 = vadd.f32 %v264, %v299
      %v304 = vadd.f32 %v265, %v299
      %v305 = vadd.f32 %v266, %v299
      %v306 = vadd.f32 %v267, %v299
      %v307 = vadd.f32 %v268, %v299
      %v308 = vadd.f32 %v269, %v299
      %v309 = vadd.f32 %v270, %v299
      %v310 = vadd.f32 %v271, %v299
      %v311 = vadd.f32 %v272, %v299
      %v312 = vadd.f32 %v273, %v299
      %v313 = vadd.f32 %v274, %v299
      %v314 = vadd.f32 %v275, %v299
      %v315 = vadd.f32 %v276, %v299
      %v316 = vadd.f32 %v277, %v299
      %v317 = vadd.f32 %v278, %v299
      %v318 = vadd.f32 %v279, %v299
      %v319 = vadd.f32 %v280, %v299
      %v320 = vadd.f32 %v281, %v299
      %v321 = vadd.f32 %v282, %v299
      %v322 = vadd.f32 %v283, %v299
      %v323 = vadd.f32 %v284, %v299
      %v324 = vadd.f32 %v285, %v299
      %v325 = vadd.f32 %v286, %v299
      %v326 = vadd.f32 %v287, %v299
      %v327 = vadd.f32 %v288, %v299
      %v328 = vadd.f32 %v289, %v299
      %v329 = vadd.f32 %v290, %v299
      %v330 = vadd.f32 %v291, %v299
      %v331 = vadd.f32 %v292, %v299
      %v332 = vadd.f32 %v293, %v299
      %v333 = vld [vmem:[%s215] sm:$0xff]
      %v334 = vld [vmem:[%s215 + $0x8] sm:$0xff]
      %v335 = vld [vmem:[%s215 + $0x10] sm:$0xff]
      %v336 = vld [vmem:[%s215 + $0x18] sm:$0xff]
      %v337 = vld [vmem:[%s215 + $0x20] sm:$0xff]
      %v338 = vld [vmem:[%s215 + $0x28] sm:$0xff]
      %v339 = vld [vmem:[%s215 + $0x30] sm:$0xff]
      %v340 = vld [vmem:[%s215 + $0x38] sm:$0xff]
      %v341 = vld [vmem:[%s215 + $0x40] sm:$0xff]
      %v342 = vld [vmem:[%s215 + $0x48] sm:$0xff]
      %v343 = vld [vmem:[%s215 + $0x50] sm:$0xff]
      %v344 = vld [vmem:[%s215 + $0x58] sm:$0xff]
      %v345 = vld [vmem:[%s215 + $0x60] sm:$0xff]
      %v346 = vld [vmem:[%s215 + $0x68] sm:$0xff]
      %v347 = vld [vmem:[%s215 + $0x70] sm:$0xff]
      %v348 = vld [vmem:[%s215 + $0x78] sm:$0xff]
      %v349 = vld [vmem:[%s215 + $0x80] sm:$0xff]
      %v350 = vld [vmem:[%s215 + $0x88] sm:$0xff]
      %v351 = vld [vmem:[%s215 + $0x90] sm:$0xff]
      %v352 = vld [vmem:[%s215 + $0x98] sm:$0xff]
      %v353 = vld [vmem:[%s215 + $0xa0] sm:$0xff]
      %v354 = vld [vmem:[%s215 + $0xa8] sm:$0xff]
      %v355 = vld [vmem:[%s215 + $0xb0] sm:$0xff]
      %v356 = vld [vmem:[%s215 + $0xb8] sm:$0xff]
      %v357 = vld [vmem:[%s215 + $0xc0] sm:$0xff]
      %v358 = vld [vmem:[%s215 + $0xc8] sm:$0xff]
      %v359 = vld [vmem:[%s215 + $0xd0] sm:$0xff]
      %v360 = vld [vmem:[%s215 + $0xd8] sm:$0xff]
      %v361 = vld [vmem:[%s215 + $0xe0] sm:$0xff]
      %v362 = vld [vmem:[%s215 + $0xe8] sm:$0xff]
      %v363 = vld [vmem:[%s215 + $0xf0] sm:$0xff]
      %v364 = vld [vmem:[%s215 + $0xf8] sm:$0xff]
      %v365 = vadd.f32 %v301, %v333
      %v366 = vadd.f32 %v302, %v334
      %v367 = vadd.f32 %v303, %v335
      %v368 = vadd.f32 %v304, %v336
      %v369 = vadd.f32 %v305, %v337
      %v370 = vadd.f32 %v306, %v338
      %v371 = vadd.f32 %v307, %v339
      %v372 = vadd.f32 %v308, %v340
      %v373 = vadd.f32 %v309, %v341
      %v374 = vadd.f32 %v310, %v342
      %v375 = vadd.f32 %v311, %v343
      %v376 = vadd.f32 %v312, %v344
      %v377 = vadd.f32 %v313, %v345
      %v378 = vadd.f32 %v314, %v346
      %v379 = vadd.f32 %v315, %v347
      %v380 = vadd.f32 %v316, %v348
      %v381 = vadd.f32 %v317, %v349
      %v382 = vadd.f32 %v318, %v350
      %v383 = vadd.f32 %v319, %v351
      %v384 = vadd.f32 %v320, %v352
      %v385 = vadd.f32 %v321, %v353
      %v386 = vadd.f32 %v322, %v354
      %v387 = vadd.f32 %v323, %v355
      %v388 = vadd.f32 %v324, %v356
      %v389 = vadd.f32 %v325, %v357
      %v390 = vadd.f32 %v326, %v358
      %v391 = vadd.f32 %v327, %v359
      %v392 = vadd.f32 %v328, %v360
      %v393 = vadd.f32 %v329, %v361
      %v394 = vadd.f32 %v330, %v362
      %v395 = vadd.f32 %v331, %v363
      %v396 = vadd.f32 %v332, %v364
      %v397 = vmax.f32 %v365, 0.0
      %v398 = vmax.f32 %v366, 0.0
      %v399 = vmax.f32 %v367, 0.0
      %v400 = vmax.f32 %v368, 0.0
      %v401 = vmax.f32 %v369, 0.0
      %v402 = vmax.f32 %v370, 0.0
      %v403 = vmax.f32 %v371, 0.0
      %v404 = vmax.f32 %v372, 0.0
      %v405 = vmax.f32 %v373, 0.0
      %v406 = vmax.f32 %v374, 0.0
      %v407 = vmax.f32 %v375, 0.0
      %v408 = vmax.f32 %v376, 0.0
      %v409 = vmax.f32 %v377, 0.0
      %v410 = vmax.f32 %v378, 0.0
      %v411 = vmax.f32 %v379, 0.0
      %v412 = vmax.f32 %v380, 0.0
      %v413 = vmax.f32 %v381, 0.0
      %v414 = vmax.f32 %v382, 0.0
      %v415 = vmax.f32 %v383, 0.0
      %v416 = vmax.f32 %v384, 0.0
      %v417 = vmax.f32 %v385, 0.0
      %v418 = vmax.f32 %v386, 0.0
      %v419 = vmax.f32 %v387, 0.0
      %v420 = vmax.f32 %v388, 0.0
      %v421 = vmax.f32 %v389, 0.0
      %v422 = vmax.f32 %v390, 0.0
      %v423 = vmax.f32 %v391, 0.0
      %v424 = vmax.f32 %v392, 0.0
      %v425 = vmax.f32 %v393, 0.0
      %v426 = vmax.f32 %v394, 0.0
      %v427 = vmax.f32 %v395, 0.0
      %v428 = vmax.f32 %v396, 0.0
      %429 = vst [vmem:[%s221] sm:$0xff] %v397
      %430 = vst [vmem:[%s221 + $0x8] sm:$0xff] %v398
      %431 = vst [vmem:[%s221 + $0x10] sm:$0xff] %v399
      %432 = vst [vmem:[%s221 + $0x18] sm:$0xff] %v400
      %433 = vst [vmem:[%s221 + $0x20] sm:$0xff] %v401
      %434 = vst [vmem:[%s221 + $0x28] sm:$0xff] %v402
      %435 = vst [vmem:[%s221 + $0x30] sm:$0xff] %v403
      %436 = vst [vmem:[%s221 + $0x38] sm:$0xff] %v404
      %437 = vst [vmem:[%s221 + $0x40] sm:$0xff] %v405
      %438 = vst [vmem:[%s221 + $0x48] sm:$0xff] %v406
      %439 = vst [vmem:[%s221 + $0x50] sm:$0xff] %v407
      %440 = vst [vmem:[%s221 + $0x58] sm:$0xff] %v408
      %441 = vst [vmem:[%s221 + $0x60] sm:$0xff] %v409
      %442 = vst [vmem:[%s221 + $0x68] sm:$0xff] %v410
      %443 = vst [vmem:[%s221 + $0x70] sm:$0xff] %v411
      %444 = vst [vmem:[%s221 + $0x78] sm:$0xff] %v412
      %445 = vst [vmem:[%s221 + $0x80] sm:$0xff] %v413
      %446 = vst [vmem:[%s221 + $0x88] sm:$0xff] %v414
      %447 = vst [vmem:[%s221 + $0x90] sm:$0xff] %v415
      %448 = vst [vmem:[%s221 + $0x98] sm:$0xff] %v416
      %449 = vst [vmem:[%s221 + $0xa0] sm:$0xff] %v417
      %450 = vst [vmem:[%s221 + $0xa8] sm:$0xff] %v418
      %451 = vst [vmem:[%s221 + $0xb0] sm:$0xff] %v419
      %452 = vst [vmem:[%s221 + $0xb8] sm:$0xff] %v420
      %453 = vst [vmem:[%s221 + $0xc0] sm:$0xff] %v421
      %454 = vst [vmem:[%s221 + $0xc8] sm:$0xff] %v422
      %455 = vst [vmem:[%s221 + $0xd0] sm:$0xff] %v423
      %456 = vst [vmem:[%s221 + $0xd8] sm:$0xff] %v424
      %457 = vst [vmem:[%s221 + $0xe0] sm:$0xff] %v425
      %458 = vst [vmem:[%s221 + $0xe8] sm:$0xff] %v426
      %459 = vst [vmem:[%s221 + $0xf0] sm:$0xff] %v427
      %460 = vst [vmem:[%s221 + $0xf8] sm:$0xff] %v428
      %s461 = smul.u32 32, %s15
      %p462 = scmp.lt.s32.totalorder %s461, 63
      %s463 = scalar_select %p462, %s461, 63
      %s464 = smul.addr %s463, 8
      %s465 = scalar_lea.vmem %s4, %s464
      // Predicated region
      $region37: #{deconv_bottleneck.7} parent=35 // pred_check
        %p466 = pneg %p127
      $region38: #{deconv_bottleneck.7} parent=35 // pred_check_branch
        %468 = sbr.rel (%p466) target = $region40
      $region39: #{deconv_bottleneck.7} parent=35 // pred_region
        %s469 = smul.u32 32, %s15
      $region40: #{deconv_bottleneck.7} parent=35 // pred_fallthru
        _
    $region36: #{deconv_bottleneck.7} parent=5 // pred_fallthru
      _
    %p470 = scmp.le.s32.totalorder 2, %s10
    // Predicated region
    $region41: #{deconv_bottleneck.7} parent=5 // pred_check
      %p471 = pneg %p470
    $region42: #{deconv_bottleneck.7} parent=5 // pred_check_branch
      %473 = sbr.rel (%p471) target = $region44
    $region43: #{deconv_bottleneck.7} parent=5 // pred_region
      %s474 = ssub.s32 %s10, 2
      // Predicated region
      $region45: #{deconv_bottleneck.7} parent=43 // pred_check
        %p475 = pneg %p133
      $region46: #{deconv_bottleneck.7} parent=43 // pred_check_branch
        %477 = sbr.rel (%p475) target = $region48
      $region47: #{deconv_bottleneck.7} parent=43 // pred_region
        %s478 = smul.u32 32, %s16
        %p479 = scmp.lt.s32.totalorder %s478, 63
        %s480 = scalar_select %p479, %s478, 63
        %s481 = smul.addr %s480, 8
        %s482 = scalar_lea.vmem %s4, %s481
      $region48: #{deconv_bottleneck.7} parent=43 // pred_fallthru
        _
    $region44: #{deconv_bottleneck.7} parent=5 // pred_fallthru
      _
  $region6: #{deconv_bottleneck.7} parent=0 // loop_footer
    %s14 = sadd.s32 1, %s10
  $region7: #{deconv_bottleneck.7} parent=0 // loop_footer_branch
    %9 = sbr.rel target = $region3
  $region8: #{deconv_bottleneck.7} parent=0 // loop_exit
    _

// kernel: deconv_bottleneck.6
$region0: #{deconv_bottleneck.6}
  #allocation0 [shape = 'u32[]', space=smem, size = 0x4, offset = 0x4, fixed_abs, tag = 'smem constant byte address 0x4 - core index']
  #allocation1 [shape = 'u32[144,128]{1,0:T(1,128)}', space=vmem, size = 0x12000, scoped, tag = 'internal scratch']
  %s0 = inlined_call_operand.vmem [shape: f32[512,128], index: 0, kind: input, shape index: {}]
  %s1 = inlined_call_operand.vmem [shape: bf16[128,128], index: 1, kind: input, shape index: {}]
  %s2 = inlined_call_operand.vmem [shape: f32[1,128], index: 2, kind: input, shape index: {}]
  %s3 = inlined_call_operand.vmem [shape: f32[1,128], index: 3, kind: input, shape index: {}]
  %s4 = inlined_call_operand.vmem [shape: f32[512,128], index: 4, kind: output, shape index: {0}]
  %s5 = inlined_call_operand.vmem [shape: f32[2,8,128], index: 5, kind: output, shape index: {1}]
  %s6 = inlined_call_operand.vmem [shape: f32[2,8,128], index: 6, kind: output, shape index: {2}]
  %7 = xla_tuple %s4, %s5, %s6
  %s8 = sld [smem:[#allocation0]]
  $region65: #{deconv_bottleneck.6} parent=0
    _
  %s10 = ssub.s32 1, %s8
  %s11 = scalar_select 0, %s10, %s8
  loop: start=0, step=1, limit=4
  $region2: #{deconv_bottleneck.6} parent=0 // loop_pre_header
    _
  $region3: #{deconv_bottleneck.6} parent=0 // loop_header
    %s13 = sphi 0, %s17
    %p14 = scmp.ge.s32.totalorder %s13, 4
    %s23 = sphi 0, %s25
    %s26 = sphi 0, %s23
    %s27 = sphi 0, %s26
    %s43 = sphi 0, %s27
    %s47 = sphi 0, %s47
    %s49 = sphi 0, %s47
    %s50 = sphi 0, %s49
    %s64 = sphi 0, %s50
    %s68 = sphi 0, %s68
    %s70 = sphi 0, %s68
    %s71 = sphi 0, %s70
    %s85 = sphi 0, %s71
    %s89 = sphi 0, %s89
    %s91 = sphi 0, %s89
    %s92 = sphi 0, %s91
    %s106 = sphi 0, %s92
    %s112 = sphi 0, %s114
    %s115 = sphi 0, %s112
    %s116 = sphi 0, %s115
    %s132 = sphi 0, %s116
    %s138 = sphi 0, %s140
    %s141 = sphi 0, %s138
    %s142 = sphi 0, %s141
    %s158 = sphi 0, %s142
    %s164 = sphi 0, %s166
    %s167 = sphi 0, %s164
    %s168 = sphi 0, %s167
    %s184 = sphi 0, %s168
  $region4: #{deconv_bottleneck.6} parent=0 // loop_header_branch
    %16 = sbr.rel (%p14) target = $region8
  $region5: #{deconv_bottleneck.6} parent=0 // loop_body
    %s18 = ssub.s32 %s13, 1
    %s19 = ssub.s32 %s13, 2
    %s20 = sadd.s32 %s13, 1
    %s21 = ssub.s32 %s13, %s20
    %p22 = scmp.eq.s32.totalorder %s21, 0
    %s24 = sadd.s32 %s23, 1
    %s25 = scalar_select %p22, %s23, %s24
    %p28 = pneg %p22
    %p29 = scmp.eq.s32.totalorder %s13, 1
    %p30 = por %p28, %p29
    %p31 = scmp.ne.s32.totalorder %s23, %s26
    %p32 = scmp.eq.s32.totalorder %s13, 0
    %p33 = por %p31, %p32
    %p34 = scmp.ne.s32.totalorder %s23, %s26
    %p35 = scmp.eq.s32.totalorder %s18, 1
    %p36 = por %p34, %p35
    %p37 = scmp.ne.s32.totalorder %s26, %s27
    %p38 = scmp.eq.s32.totalorder %s18, 0
    %p39 = por %p37, %p38
    %p40 = scmp.ne.s32.totalorder %s26, %s27
    %p41 = scmp.eq.s32.totalorder %s19, 1
    %p42 = por %p40, %p41
    %p44 = scmp.ne.s32.totalorder %s27, %s43
    %p45 = scmp.eq.s32.totalorder %s19, 0
    %p46 = por %p44, %p45
    %s48 = sadd.s32 %s47, 1
    %p51 = scmp.eq.s32.totalorder %s13, 1
    %p52 = scmp.ne.s32.totalorder %s47, %s49
    %p53 = scmp.eq.s32.totalorder %s13, 0
    %p54 = por %p52, %p53
    %p55 = scmp.ne.s32.totalorder %s47, %s49
    %p56 = scmp.eq.s32.totalorder %s18, 1
    %p57 = por %p55, %p56
    %p58 = scmp.ne.s32.totalorder %s49, %s50
    %p59 = scmp.eq.s32.totalorder %s18, 0
    %p60 = por %p58, %p59
    %p61 = scmp.ne.s32.totalorder %s49, %s50
    %p62 = scmp.eq.s32.totalorder %s19, 1
    %p63 = por %p61, %p62
    %p65 = scmp.ne.s32.totalorder %s50, %s64
    %p66 = scmp.eq.s32.totalorder %s19, 0
    %p67 = por %p65, %p66
    %s69 = sadd.s32 %s68, 1
    %p72 = scmp.eq.s32.totalorder %s13, 1
    %p73 = scmp.ne.s32.totalorder %s68, %s70
    %p74 = scmp.eq.s32.totalorder %s13, 0
    %p75 = por %p73, %p74
    %p76 = scmp.ne.s32.totalorder %s68, %s70
    %p77 = scmp.eq.s32.totalorder %s18, 1
    %p78 = por %p76, %p77
    %p79 = scmp.ne.s32.totalorder %s70, %s71
    %p80 = scmp.eq.s32.totalorder %s18, 0
    %p81 = por %p79, %p80
    %p82 = scmp.ne.s32.totalorder %s70, %s71
    %p83 = scmp.eq.s32.totalorder %s19, 1
    %p84 = por %p82, %p83
    %p86 = scmp.ne.s32.totalorder %s71, %s85
    %p87 = scmp.eq.s32.totalorder %s19, 0
    %p88 = por %p86, %p87
    %s90 = sadd.s32 %s89, 1
    %p93 = scmp.eq.s32.totalorder %s13, 1
    %p94 = scmp.ne.s32.totalorder %s89, %s91
    %p95 = scmp.eq.s32.totalorder %s13, 0
    %p96 = por %p94, %p95
    %p97 = scmp.ne.s32.totalorder %s89, %s91
    %p98 = scmp.eq.s32.totalorder %s18, 1
    %p99 = por %p97, %p98
    %p100 = scmp.ne.s32.totalorder %s91, %s92
    %p101 = scmp.eq.s32.totalorder %s18, 0
    %p102 = por %p100, %p101
    %p103 = scmp.ne.s32.totalorder %s91, %s92
    %p104 = scmp.eq.s32.totalorder %s19, 1
    %p105 = por %p103, %p104
    %p107 = scmp.ne.s32.totalorder %s92, %s106
    %p108 = scmp.eq.s32.totalorder %s19, 0
    %p109 = por %p107, %p108
    %s110 = ssub.s32 %s13, %s20
    %p111 = scmp.eq.s32.totalorder %s110, 0
    %s113 = sadd.s32 %s112, 1
    %s114 = scalar_select %p111, %s112, %s113
    %p117 = pneg %p111
    %p118 = scmp.eq.s32.totalorder %s13, 1
    %p119 = por %p117, %p118
    %p120 = scmp.ne.s32.totalorder %s112, %s115
    %p121 = scmp.eq.s32.totalorder %s13, 0
    %p122 = por %p120, %p121
    %p123 = scmp.ne.s32.totalorder %s112, %s115
    %p124 = scmp.eq.s32.totalorder %s18, 1
    %p125 = por %p123, %p124
    %p126 = scmp.ne.s32.totalorder %s115, %s116
    %p127 = scmp.eq.s32.totalorder %s18, 0
    %p128 = por %p126, %p127
    %p129 = scmp.ne.s32.totalorder %s115, %s116
    %p130 = scmp.eq.s32.totalorder %s19, 1
    %p131 = por %p129, %p130
    %p133 = scmp.ne.s32.totalorder %s116, %s132
    %p134 = scmp.eq.s32.totalorder %s19, 0
    %p135 = por %p133, %p134
    %s136 = ssub.s32 %s13, %s20
    %p137 = scmp.eq.s32.totalorder %s136, 0
    %s139 = sadd.s32 %s138, 1
    %s140 = scalar_select %p137, %s138, %s139
    %p143 = pneg %p137
    %p144 = scmp.eq.s32.totalorder %s13, 1
    %p145 = por %p143, %p144
    %p146 = scmp.ne.s32.totalorder %s138, %s141
    %p147 = scmp.eq.s32.totalorder %s13, 0
    %p148 = por %p146, %p147
    %p149 = scmp.ne.s32.totalorder %s138, %s141
    %p150 = scmp.eq.s32.totalorder %s18, 1
    %p151 = por %p149, %p150
    %p152 = scmp.ne.s32.totalorder %s141, %s142
    %p153 = scmp.eq.s32.totalorder %s18, 0
    %p154 = por %p152, %p153
    %p155 = scmp.ne.s32.totalorder %s141, %s142
    %p156 = scmp.eq.s32.totalorder %s19, 1
    %p157 = por %p155, %p156
    %p159 = scmp.ne.s32.totalorder %s142, %s158
    %p160 = scmp.eq.s32.totalorder %s19, 0
    %p161 = por %p159, %p160
    %s162 = ssub.s32 %s13, %s20
    %p163 = scmp.eq.s32.totalorder %s162, 0
    %s165 = sadd.s32 %s164, 1
    %s166 = scalar_select %p163, %s164, %s165
    %p169 = pneg %p163
    %p170 = scmp.eq.s32.totalorder %s13, 1
    %p171 = por %p169, %p170
    %p172 = scmp.ne.s32.totalorder %s164, %s167
    %p173 = scmp.eq.s32.totalorder %s13, 0
    %p174 = por %p172, %p173
    %p175 = scmp.ne.s32.totalorder %s164, %s167
    %p176 = scmp.eq.s32.totalorder %s18, 1
    %p177 = por %p175, %p176
    %p178 = scmp.ne.s32.totalorder %s167, %s168
    %p179 = scmp.eq.s32.totalorder %s18, 0
    %p180 = por %p178, %p179
    %p181 = scmp.ne.s32.totalorder %s167, %s168
    %p182 = scmp.eq.s32.totalorder %s19, 1
    %p183 = por %p181, %p182
    %p185 = scmp.ne.s32.totalorder %s168, %s184
    %p186 = scmp.eq.s32.totalorder %s19, 0
    %p187 = por %p185, %p186
    %p188 = scmp.le.s32.totalorder 1, %s13
    %p189 = scmp.lt.s32.totalorder %s13, 3
    %p190 = pnand %p188, %p189
    %p191 = pneg %p190
    // Predicated region
    $region9: #{deconv_bottleneck.6} parent=5 // pred_check
      _
    $region10: #{deconv_bottleneck.6} parent=5 // pred_check_branch
      %193 = sbr.rel (%p190) target = $region12
    $region11: #{deconv_bottleneck.6} parent=5 // pred_region
      %s194 = ssub.s32 %s13, 1
      // Predicated region
      $region13: #{deconv_bottleneck.6} parent=11 // pred_check
        %p195 = pneg %p60
      $region14: #{deconv_bottleneck.6} parent=11 // pred_check_branch
        %197 = sbr.rel (%p195) target = $region16
      $region15: #{deconv_bottleneck.6} parent=11 // pred_region
        _
      $region16: #{deconv_bottleneck.6} parent=11 // pred_fallthru
        _
      // Predicated region
      $region17: #{deconv_bottleneck.6} parent=11 // pred_check
        %p198 = pneg %p81
      $region18: #{deconv_bottleneck.6} parent=11 // pred_check_branch
        %200 = sbr.rel (%p198) target = $region20
      $region19: #{deconv_bottleneck.6} parent=11 // pred_region
        _
      $region20: #{deconv_bottleneck.6} parent=11 // pred_fallthru
        _
      // Predicated region
      $region21: #{deconv_bottleneck.6} parent=11 // pred_check
        %p201 = pneg %p102
      $region22: #{deconv_bottleneck.6} parent=11 // pred_check_branch
        %203 = sbr.rel (%p201) target = $region24
      $region23: #{deconv_bottleneck.6} parent=11 // pred_region
        _
      $region24: #{deconv_bottleneck.6} parent=11 // pred_fallthru
        _
    $region12: #{deconv_bottleneck.6} parent=5 // pred_fallthru
      _
    %p204 = scmp.lt.s32.totalorder %s13, 2
    // Predicated region
    $region25: #{deconv_bottleneck.6} parent=5 // pred_check
      %p205 = pneg %p204
    $region26: #{deconv_bottleneck.6} parent=5 // pred_check_branch
      %207 = sbr.rel (%p205) target = $region28
    $region27: #{deconv_bottleneck.6} parent=5 // pred_region
      // Predicated region
      $region29: #{deconv_bottleneck.6} parent=27 // pred_check
        %p208 = pneg %p33
      $region30: #{deconv_bottleneck.6} parent=27 // pred_check_branch
        %210 = sbr.rel (%p208) target = $region32
      $region31: #{deconv_bottleneck.6} parent=27 // pred_region
        %s211 = smul.u32 32, %s13
        %p212 = scmp.lt.s32.totalorder %s211, 63
        %s213 = scalar_select %p212, %s211, 63
        %s214 = smul.addr %s213, 8
        %s215 = scalar_lea.vmem %s0, %s214
        %s216 = smul.u32 32, %s13
      $region32: #{deconv_bottleneck.6} parent=27 // pred_fallthru
        _
    $region28: #{deconv_bottleneck.6} parent=5 // pred_fallthru
      _
    %p217 = scmp.le.s32.totalorder 1, %s13
    %p218 = scmp.lt.s32.totalorder %s13, 3
    %p219 = pnand %p217, %p218
    %p220 = pneg %p219
    // Predicated region
    $region33: #{deconv_bottleneck.6} parent=5 // pred_check
      _
    $region34: #{deconv_bottleneck.6} parent=5 // pred_check_branch
      %222 = sbr.rel (%p219) target = $region36
    $region35: #{deconv_bottleneck.6} parent=5 // pred_region
      %s223 = ssub.s32 %s13, 1
      %s224 = smul.u32 32, %s18
      %p225 = scmp.lt.s32.totalorder %s224, 63
      %s226 = scalar_select %p225, %s224, 63
      %s227 = smul.addr %s226, 8
      %s228 = scalar_lea.vmem %s0, %s227
      %p229 = pneg %p39
      %p230 = pneg %p36
      %p231 = pneg %p60
      %p232 = pneg %p57
      %p233 = pneg %p81
      %p234 = pneg %p78
      %p235 = pneg %p102
      %p236 = pneg %p99
      %p237 = pneg %p128
      %p238 = pneg %p125
      %s239 = smul.u32 32, %s18
      %p240 = scmp.lt.s32.totalorder %s239, 63
      %s241 = scalar_select %p240, %s239, 63
      %s242 = smul.addr %s241, 8
      %s243 = scalar_lea.vmem %s4, %s242
      %p244 = pneg %p154
      %p245 = pneg %p151
      %p246 = scmp.lt.s32.totalorder %s18, 1
      %s247 = scalar_select %p246, %s18, 1
      %s248 = smul.addr %s247, 8
      %s249 = scalar_lea.vmem %s5, %s248
      %p250 = pneg %p180
      %p251 = pneg %p177
      %p252 = scmp.lt.s32.totalorder %s18, 1
      %s253 = scalar_select %p252, %s18, 1
      %s254 = smul.addr %s253, 8
      %s255 = scalar_lea.vmem %s6, %s254
      %s256 = smul.u32 32, %s18
      %p257 = scmp.lt.s32.totalorder %s256, 63
      %s258 = scalar_select %p257, %s256, 63
      %s259 = smul.addr %s258, 8
      %s260 = scalar_lea.vmem %s0, %s259
      %s261 = smul.u32 32, %s18
      %s262 = smul.u32 32, %s18
      %p263 = scmp.lt.s32.totalorder %s262, 63
      %s264 = scalar_select %p263, %s262, 63
      %s265 = smul.addr %s264, 8
      %s266 = scalar_lea.vmem %s4, %s265
      %s267 = smul.u32 32, %s18
      %p268 = scmp.lt.s32.totalorder %s18, 1
      %s269 = scalar_select %p268, %s18, 1
      %s270 = smul.addr %s269, 8
      %s271 = scalar_lea.vmem %s5, %s270
      %p272 = scmp.lt.s32.totalorder %s18, 1
      %s273 = scalar_select %p272, %s18, 1
      %s274 = smul.addr %s273, 8
      %s275 = scalar_lea.vmem %s6, %s274
      %v277 = vld [vmem:[%s260] sm:$0xff]
      %v278 = vld [vmem:[%s260 + $0x8] sm:$0xff]
      %v279 = vld [vmem:[%s260 + $0x10] sm:$0xff]
      %v280 = vld [vmem:[%s260 + $0x18] sm:$0xff]
      %v281 = vld [vmem:[%s260 + $0x20] sm:$0xff]
      %v282 = vld [vmem:[%s260 + $0x28] sm:$0xff]
      %v283 = vld [vmem:[%s260 + $0x30] sm:$0xff]
      %v284 = vld [vmem:[%s260 + $0x38] sm:$0xff]
      %v285 = vld [vmem:[%s260 + $0x40] sm:$0xff]
      %v286 = vld [vmem:[%s260 + $0x48] sm:$0xff]
      %v287 = vld [vmem:[%s260 + $0x50] sm:$0xff]
      %v288 = vld [vmem:[%s260 + $0x58] sm:$0xff]
      %v289 = vld [vmem:[%s260 + $0x60] sm:$0xff]
      %v290 = vld [vmem:[%s260 + $0x68] sm:$0xff]
      %v291 = vld [vmem:[%s260 + $0x70] sm:$0xff]
      %v292 = vld [vmem:[%s260 + $0x78] sm:$0xff]
      %v293 = vld [vmem:[%s260 + $0x80] sm:$0xff]
      %v294 = vld [vmem:[%s260 + $0x88] sm:$0xff]
      %v295 = vld [vmem:[%s260 + $0x90] sm:$0xff]
      %v296 = vld [vmem:[%s260 + $0x98] sm:$0xff]
      %v297 = vld [vmem:[%s260 + $0xa0] sm:$0xff]
      %v298 = vld [vmem:[%s260 + $0xa8] sm:$0xff]
      %v299 = vld [vmem:[%s260 + $0xb0] sm:$0xff]
      %v300 = vld [vmem:[%s260 + $0xb8] sm:$0xff]
      %v301 = vld [vmem:[%s260 + $0xc0] sm:$0xff]
      %v302 = vld [vmem:[%s260 + $0xc8] sm:$0xff]
      %v303 = vld [vmem:[%s260 + $0xd0] sm:$0xff]
      %v304 = vld [vmem:[%s260 + $0xd8] sm:$0xff]
      %v305 = vld [vmem:[%s260 + $0xe0] sm:$0xff]
      %v306 = vld [vmem:[%s260 + $0xe8] sm:$0xff]
      %v307 = vld [vmem:[%s260 + $0xf0] sm:$0xff]
      %v308 = vld [vmem:[%s260 + $0xf8] sm:$0xff]
      %v309 = vld [vmem:[%s2] sm:$0x1]
      %v311 = vlaneseq
      %v312 = vshrl.u32 %v311, 7
      %v313 = vsub.s32 0, %v312
      %v314 = vrot.slane %v309, %v313
      %v316 = vmul.f32 %v277, %v314
      %v317 = vmul.f32 %v278, %v314
      %v318 = vmul.f32 %v279, %v314
      %v319 = vmul.f32 %v280, %v314
      %v320 = vmul.f32 %v281, %v314
      %v321 = vmul.f32 %v282, %v314
      %v322 = vmul.f32 %v283, %v314
      %v323 = vmul.f32 %v284, %v314
      %v324 = vmul.f32 %v285, %v314
      %v325 = vmul.f32 %v286, %v314
      %v326 = vmul.f32 %v287, %v314
      %v327 = vmul.f32 %v288, %v314
      %v328 = vmul.f32 %v289, %v314
      %v329 = vmul.f32 %v290, %v314
      %v330 = vmul.f32 %v291, %v314
      %v331 = vmul.f32 %v292, %v314
      %v332 = vmul.f32 %v293, %v314
      %v333 = vmul.f32 %v294, %v314
      %v334 = vmul.f32 %v295, %v314
      %v335 = vmul.f32 %v296, %v314
      %v336 = vmul.f32 %v297, %v314
      %v337 = vmul.f32 %v298, %v314
      %v338 = vmul.f32 %v299, %v314
      %v339 = vmul.f32 %v300, %v314
      %v340 = vmul.f32 %v301, %v314
      %v341 = vmul.f32 %v302, %v314
      %v342 = vmul.f32 %v303, %v314
      %v343 = vmul.f32 %v304, %v314
      %v344 = vmul.f32 %v305, %v314
      %v345 = vmul.f32 %v306, %v314
      %v346 = vmul.f32 %v307, %v314
      %v347 = vmul.f32 %v308, %v314
      %v348 = vld [vmem:[%s3] sm:$0x1]
      %v350 = vlaneseq
      %v351 = vshrl.u32 %v350, 7
      %v352 = vsub.s32 0, %v351
      %v353 = vrot.slane %v348, %v352
      %v355 = vadd.f32 %v316, %v353
      %v356 = vadd.f32 %v317, %v353
      %v357 = vadd.f32 %v318, %v353
      %v358 = vadd.f32 %v319, %v353
      %v359 = vadd.f32 %v320, %v353
      %v360 = vadd.f32 %v321, %v353
      %v361 = vadd.f32 %v322, %v353
      %v362 = vadd.f32 %v323, %v353
      %v363 = vadd.f32 %v324, %v353
      %v364 = vadd.f32 %v325, %v353
      %v365 = vadd.f32 %v326, %v353
      %v366 = vadd.f32 %v327, %v353
      %v367 = vadd.f32 %v328, %v353
      %v368 = vadd.f32 %v329, %v353
      %v369 = vadd.f32 %v330, %v353
      %v370 = vadd.f32 %v331, %v353
      %v371 = vadd.f32 %v332, %v353
      %v372 = vadd.f32 %v333, %v353
      %v373 = vadd.f32 %v334, %v353
      %v374 = vadd.f32 %v335, %v353
      %v375 = vadd.f32 %v336, %v353
      %v376 = vadd.f32 %v337, %v353
      %v377 = vadd.f32 %v338, %v353
      %v378 = vadd.f32 %v339, %v353
      %v379 = vadd.f32 %v340, %v353
      %v380 = vadd.f32 %v341, %v353
      %v381 = vadd.f32 %v342, %v353
      %v382 = vadd.f32 %v343, %v353
      %v383 = vadd.f32 %v344, %v353
      %v384 = vadd.f32 %v345, %v353
      %v385 = vadd.f32 %v346, %v353
      %v386 = vadd.f32 %v347, %v353
      %v387 = vmax.f32 %v355, 0.0
      %v388 = vmax.f32 %v356, 0.0
      %v389 = vmax.f32 %v357, 0.0
      %v390 = vmax.f32 %v358, 0.0
      %v391 = vmax.f32 %v359, 0.0
      %v392 = vmax.f32 %v360, 0.0
      %v393 = vmax.f32 %v361, 0.0
      %v394 = vmax.f32 %v362, 0.0
      %v395 = vmax.f32 %v363, 0.0
      %v396 = vmax.f32 %v364, 0.0
      %v397 = vmax.f32 %v365, 0.0
      %v398 = vmax.f32 %v366, 0.0
      %v399 = vmax.f32 %v367, 0.0
      %v400 = vmax.f32 %v368, 0.0
      %v401 = vmax.f32 %v369, 0.0
      %v402 = vmax.f32 %v370, 0.0
      %v403 = vmax.f32 %v371, 0.0
      %v404 = vmax.f32 %v372, 0.0
      %v405 = vmax.f32 %v373, 0.0
      %v406 = vmax.f32 %v374, 0.0
      %v407 = vmax.f32 %v375, 0.0
      %v408 = vmax.f32 %v376, 0.0
      %v409 = vmax.f32 %v377, 0.0
      %v410 = vmax.f32 %v378, 0.0
      %v411 = vmax.f32 %v379, 0.0
      %v412 = vmax.f32 %v380, 0.0
      %v413 = vmax.f32 %v381, 0.0
      %v414 = vmax.f32 %v382, 0.0
      %v415 = vmax.f32 %v383, 0.0
      %v416 = vmax.f32 %v384, 0.0
      %v417 = vmax.f32 %v385, 0.0
      %v418 = vmax.f32 %v386, 0.0
      %v419 = vpack.c.bf16 %v388, %v387
      %v420 = vpack.c.bf16 %v390, %v389
      %v421 = vpack.c.bf16 %v392, %v391
      %v422 = vpack.c.bf16 %v394, %v393
      %v423 = vpack.c.bf16 %v396, %v395
      %v424 = vpack.c.bf16 %v398, %v397
      %v425 = vpack.c.bf16 %v400, %v399
      %v426 = vpack.c.bf16 %v402, %v401
      %v427 = vpack.c.bf16 %v404, %v403
      %v428 = vpack.c.bf16 %v406, %v405
      %v429 = vpack.c.bf16 %v408, %v407
      %v430 = vpack.c.bf16 %v410, %v409
      %v431 = vpack.c.bf16 %v412, %v411
      %v432 = vpack.c.bf16 %v414, %v413
      %v433 = vpack.c.bf16 %v416, %v415
      %v434 = vpack.c.bf16 %v418, %v417
      %v435 = vld [vmem:[%s1] sm:$0xf]
      %v436 = vld [vmem:[%s1 + $0x4] sm:$0xf]
      %v437 = vld [vmem:[%s1 + $0x8] sm:$0xf]
      %v438 = vld [vmem:[%s1 + $0xc] sm:$0xf]
      %v439 = vld [vmem:[%s1 + $0x10] sm:$0xf]
      %v440 = vld [vmem:[%s1 + $0x14] sm:$0xf]
      %v441 = vld [vmem:[%s1 + $0x18] sm:$0xf]
      %v442 = vld [vmem:[%s1 + $0x1c] sm:$0xf]
      %v443 = vld [vmem:[%s1 + $0x20] sm:$0xf]
      %v444 = vld [vmem:[%s1 + $0x24] sm:$0xf]
      %v445 = vld [vmem:[%s1 + $0x28] sm:$0xf]
      %v446 = vld [vmem:[%s1 + $0x2c] sm:$0xf]
      %v447 = vld [vmem:[%s1 + $0x30] sm:$0xf]
      %v448 = vld [vmem:[%s1 + $0x34] sm:$0xf]
      %v449 = vld [vmem:[%s1 + $0x38] sm:$0xf]
      %v450 = vld [vmem:[%s1 + $0x3c] sm:$0xf]
      %v467 = vunpack.c.l.b16 %v435
      %v468 = vunpack.c.l.b16 %v436
      %v469 = vunpack.c.l.b16 %v437
      %v470 = vunpack.c.l.b16 %v438
      %v471 = vunpack.c.l.b16 %v439
      %v472 = vunpack.c.l.b16 %v440
      %v473 = vunpack.c.l.b16 %v441
      %v474 = vunpack.c.l.b16 %v442
      %v475 = vunpack.c.l.b16 %v443
      %v476 = vunpack.c.l.b16 %v444
      %v477 = vunpack.c.l.b16 %v445
      %v478 = vunpack.c.l.b16 %v446
      %v479 = vunpack.c.l.b16 %v447
      %v480 = vunpack.c.l.b16 %v448
      %v481 = vunpack.c.l.b16 %v449
      %v482 = vunpack.c.l.b16 %v450
      %v483 = vpack.c.b16 %v468, %v467
      %v484 = vpack.c.b16 %v470, %v469
      %v485 = vpack.c.b16 %v472, %v471
      %v486 = vpack.c.b16 %v474, %v473
      %v487 = vpack.c.b16 %v476, %v475
      %v488 = vpack.c.b16 %v478, %v477
      %v489 = vpack.c.b16 %v480, %v479
      %v490 = vpack.c.b16 %v482, %v481
      %499 = vmatprep.subr.bf16.mxu0 0
      %500 = vmatpush1.bf16.msra.mxu0 %v490
      %501 = vmatprep.subr.bf16.mxu0 0
      %502 = vmatpush1.bf16.msra.mxu0 %v489
      %503 = vmatprep.subr.bf16.mxu0 0
      %504 = vmatpush1.bf16.msra.mxu0 %v488
      %505 = vmatprep.subr.bf16.mxu0 0
      %506 = vmatpush1.bf16.msra.mxu0 %v487
      %507 = vmatprep.subr.bf16.mxu0 0
      %508 = vmatpush1.bf16.msra.mxu0 %v486
      %509 = vmatprep.subr.bf16.mxu0 0
      %510 = vmatpush1.bf16.msra.mxu0 %v485
      %511 = vmatprep.subr.bf16.mxu0 0
      %512 = vmatpush1.bf16.msra.mxu0 %v484
      %513 = vmatprep.subr.bf16.mxu0 0
      %514 = vmatpush1.bf16.msra.mxu0 %v483
      %515 = vmatprep.subr.bf16.mxu0 0
      %516 = vmatpush2.bf16.msra.mxu0 0
      %517 = vmatprep.subr.bf16.mxu0 0
      %518 = vmatpush2.bf16.msra.mxu0 0
      %519 = vmatprep.subr.bf16.mxu0 0
      %520 = vmatpush2.bf16.msra.mxu0 0
      %521 = vmatprep.subr.bf16.mxu0 0
      %522 = vmatpush2.bf16.msra.mxu0 0
      %523 = vmatprep.subr.bf16.mxu0 0
      %524 = vmatpush2.bf16.msra.mxu0 0
      %525 = vmatprep.subr.bf16.mxu0 0
      %526 = vmatpush2.bf16.msra.mxu0 0
      %527 = vmatprep.subr.bf16.mxu0 0
      %528 = vmatpush2.bf16.msra.mxu0 0
      %529 = vmatprep.subr.bf16.mxu0 0
      %530 = vmatpush2.bf16.msra.mxu0 0
      %531 = vmatprep.mubr.bf16.mxu0 0
      %532 = vmatmul.mubr.bf16.gmra.mxu0 %v419
      %v533 = vpop.f32.mrf.mxu0
      %v534 = vadd.f32 0.0, %v533
      %v535 = vpop.f32.mrf.mxu0
      %v536 = vpop.f32.mrf.mxu0
      %v537 = vadd.f32 0.0, %v536
      %v538 = vpop.f32.mrf.mxu0
      %539 = vmatprep.mubr.bf16.mxu0 0
      %540 = vmatmul.mubr.bf16.gmra.mxu0 %v420
      %v541 = vpop.f32.mrf.mxu0
      %v542 = vadd.f32 0.0, %v541
      %v543 = vpop.f32.mrf.mxu0
      %v544 = vpop.f32.mrf.mxu0
      %v545 = vadd.f32 0.0, %v544
      %v546 = vpop.f32.mrf.mxu0
      %547 = vmatprep.mubr.bf16.mxu0 0
      %548 = vmatmul.mubr.bf16.gmra.mxu0 %v421
      %v549 = vpop.f32.mrf.mxu0
      %v550 = vadd.f32 0.0, %v549
      %v551 = vpop.f32.mrf.mxu0
      %v552 = vpop.f32.mrf.mxu0
      %v553 = vadd.f32 0.0, %v552
      %v554 = vpop.f32.mrf.mxu0
      %555 = vmatprep.mubr.bf16.mxu0 0
      %556 = vmatmul.mubr.bf16.gmra.mxu0 %v422
      %v557 = vpop.f32.mrf.mxu0
      %v558 = vadd.f32 0.0, %v557
      %v559 = vpop.f32.mrf.mxu0
      %v560 = vpop.f32.mrf.mxu0
      %v561 = vadd.f32 0.0, %v560
      %v562 = vpop.f32.mrf.mxu0
      %563 = vmatprep.mubr.bf16.mxu0 0
      %564 = vmatmul.mubr.bf16.gmra.mxu0 %v423
      %v565 = vpop.f32.mrf.mxu0
      %v566 = vadd.f32 0.0, %v565
      %v567 = vpop.f32.mrf.mxu0
      %v568 = vpop.f32.mrf.mxu0
      %v569 = vadd.f32 0.0, %v568
      %v570 = vpop.f32.mrf.mxu0
      %571 = vmatprep.mubr.bf16.mxu0 0
      %572 = vmatmul.mubr.bf16.gmra.mxu0 %v424
      %v573 = vpop.f32.mrf.mxu0
      %v574 = vadd.f32 0.0, %v573
      %v575 = vpop.f32.mrf.mxu0
      %v576 = vpop.f32.mrf.mxu0
      %v577 = vadd.f32 0.0, %v576
      %v578 = vpop.f32.mrf.mxu0
      %579 = vmatprep.mubr.bf16.mxu0 0
      %580 = vmatmul.mubr.bf16.gmra.mxu0 %v425
      %v581 = vpop.f32.mrf.mxu0
      %v582 = vadd.f32 0.0, %v581
      %v583 = vpop.f32.mrf.mxu0
      %v584 = vpop.f32.mrf.mxu0
      %v585 = vadd.f32 0.0, %v584
      %v586 = vpop.f32.mrf.mxu0
      %587 = vmatprep.mubr.bf16.mxu0 0
      %588 = vmatmul.mubr.bf16.gmra.mxu0 %v426
      %v589 = vpop.f32.mrf.mxu0
      %v590 = vadd.f32 0.0, %v589
      %v591 = vpop.f32.mrf.mxu0
      %v592 = vpop.f32.mrf.mxu0
      %v593 = vadd.f32 0.0, %v592
      %v594 = vpop.f32.mrf.mxu0
      %595 = vmatprep.mubr.bf16.mxu0 0
      %596 = vmatmul.mubr.bf16.gmra.mxu0 %v427
      %v597 = vpop.f32.mrf.mxu0
      %v598 = vadd.f32 0.0, %v597
      %v599 = vpop.f32.mrf.mxu0
      %v600 = vpop.f32.mrf.mxu0
      %v601 = vadd.f32 0.0, %v600
      %v602 = vpop.f32.mrf.mxu0
      %603 = vmatprep.mubr.bf16.mxu0 0
      %604 = vmatmul.mubr.bf16.gmra.mxu0 %v428
      %v605 = vpop.f32.mrf.mxu0
      %v606 = vadd.f32 0.0, %v605
      %v607 = vpop.f32.mrf.mxu0
      %v608 = vpop.f32.mrf.mxu0
      %v609 = vadd.f32 0.0, %v608
      %v610 = vpop.f32.mrf.mxu0
      %611 = vmatprep.mubr.bf16.mxu0 0
      %612 = vmatmul.mubr.bf16.gmra.mxu0 %v429
      %v613 = vpop.f32.mrf.mxu0
      %v614 = vadd.f32 0.0, %v613
      %v615 = vpop.f32.mrf.mxu0
      %v616 = vpop.f32.mrf.mxu0
      %v617 = vadd.f32 0.0, %v616
      %v618 = vpop.f32.mrf.mxu0
      %619 = vmatprep.mubr.bf16.mxu0 0
      %620 = vmatmul.mubr.bf16.gmra.mxu0 %v430
      %v621 = vpop.f32.mrf.mxu0
      %v622 = vadd.f32 0.0, %v621
      %v623 = vpop.f32.mrf.mxu0
      %v624 = vpop.f32.mrf.mxu0
      %v625 = vadd.f32 0.0, %v624
      %v626 = vpop.f32.mrf.mxu0
      %627 = vmatprep.mubr.bf16.mxu0 0
      %628 = vmatmul.mubr.bf16.gmra.mxu0 %v431
      %v629 = vpop.f32.mrf.mxu0
      %v630 = vadd.f32 0.0, %v629
      %v631 = vpop.f32.mrf.mxu0
      %v632 = vpop.f32.mrf.mxu0
      %v633 = vadd.f32 0.0, %v632
      %v634 = vpop.f32.mrf.mxu0
      %635 = vmatprep.mubr.bf16.mxu0 0
      %636 = vmatmul.mubr.bf16.gmra.mxu0 %v432
      %v637 = vpop.f32.mrf.mxu0
      %v638 = vadd.f32 0.0, %v637
      %v639 = vpop.f32.mrf.mxu0
      %v640 = vpop.f32.mrf.mxu0
      %v641 = vadd.f32 0.0, %v640
      %v642 = vpop.f32.mrf.mxu0
      %643 = vmatprep.mubr.bf16.mxu0 0
      %644 = vmatmul.mubr.bf16.gmra.mxu0 %v433
      %v645 = vpop.f32.mrf.mxu0
      %v646 = vadd.f32 0.0, %v645
      %v647 = vpop.f32.mrf.mxu0
      %v648 = vpop.f32.mrf.mxu0
      %v649 = vadd.f32 0.0, %v648
      %v650 = vpop.f32.mrf.mxu0
      %651 = vmatprep.mubr.bf16.mxu0 0
      %652 = vmatmul.mubr.bf16.gmra.mxu0 %v434
      %v653 = vpop.f32.mrf.mxu0
      %v654 = vadd.f32 0.0, %v653
      %v655 = vpop.f32.mrf.mxu0
      %v656 = vpop.f32.mrf.mxu0
      %v657 = vadd.f32 0.0, %v656
      %v658 = vpop.f32.mrf.mxu0
      %659 = vdwg.mxu0
      %660 = vst [vmem:[%s266] sm:$0xff] %v534
      %661 = vst [vmem:[%s266 + $0x8] sm:$0xff] %v537
      %662 = vst [vmem:[%s266 + $0x10] sm:$0xff] %v542
      %663 = vst [vmem:[%s266 + $0x18] sm:$0xff] %v545
      %664 = vst [vmem:[%s266 + $0x20] sm:$0xff] %v550
      %665 = vst [vmem:[%s266 + $0x28] sm:$0xff] %v553
      %666 = vst [vmem:[%s266 + $0x30] sm:$0xff] %v558
      %667 = vst [vmem:[%s266 + $0x38] sm:$0xff] %v561
      %668 = vst [vmem:[%s266 + $0x40] sm:$0xff] %v566
      %669 = vst [vmem:[%s266 + $0x48] sm:$0xff] %v569
      %670 = vst [vmem:[%s266 + $0x50] sm:$0xff] %v574
      %671 = vst [vmem:[%s266 + $0x58] sm:$0xff] %v577
      %672 = vst [vmem:[%s266 + $0x60] sm:$0xff] %v582
      %673 = vst [vmem:[%s266 + $0x68] sm:$0xff] %v585
      %674 = vst [vmem:[%s266 + $0x70] sm:$0xff] %v590
      %675 = vst [vmem:[%s266 + $0x78] sm:$0xff] %v593
      %676 = vst [vmem:[%s266 + $0x80] sm:$0xff] %v598
      %677 = vst [vmem:[%s266 + $0x88] sm:$0xff] %v601
      %678 = vst [vmem:[%s266 + $0x90] sm:$0xff] %v606
      %679 = vst [vmem:[%s266 + $0x98] sm:$0xff] %v609
      %680 = vst [vmem:[%s266 + $0xa0] sm:$0xff] %v614
      %681 = vst [vmem:[%s266 + $0xa8] sm:$0xff] %v617
      %682 = vst [vmem:[%s266 + $0xb0] sm:$0xff] %v622
      %683 = vst [vmem:[%s266 + $0xb8] sm:$0xff] %v625
      %684 = vst [vmem:[%s266 + $0xc0] sm:$0xff] %v630
      %685 = vst [vmem:[%s266 + $0xc8] sm:$0xff] %v633
      %686 = vst [vmem:[%s266 + $0xd0] sm:$0xff] %v638
      %687 = vst [vmem:[%s266 + $0xd8] sm:$0xff] %v641
      %688 = vst [vmem:[%s266 + $0xe0] sm:$0xff] %v646
      %689 = vst [vmem:[%s266 + $0xe8] sm:$0xff] %v649
      %690 = vst [vmem:[%s266 + $0xf0] sm:$0xff] %v654
      %691 = vst [vmem:[%s266 + $0xf8] sm:$0xff] %v657
      %v692 = vadd.f32 %v534, %v537
      %v693 = vadd.f32 %v692, %v542
      %v694 = vadd.f32 %v693, %v545
      %v695 = vadd.f32 %v694, %v550
      %v696 = vadd.f32 %v695, %v553
      %v697 = vadd.f32 %v696, %v558
      %v698 = vadd.f32 %v697, %v561
      %v699 = vadd.f32 %v698, %v566
      %v700 = vadd.f32 %v699, %v569
      %v701 = vadd.f32 %v700, %v574
      %v702 = vadd.f32 %v701, %v577
      %v703 = vadd.f32 %v702, %v582
      %v704 = vadd.f32 %v703, %v585
      %v705 = vadd.f32 %v704, %v590
      %v706 = vadd.f32 %v705, %v593
      %v707 = vadd.f32 %v706, %v598
      %v708 = vadd.f32 %v707, %v601
      %v709 = vadd.f32 %v708, %v606
      %v710 = vadd.f32 %v709, %v609
      %v711 = vadd.f32 %v710, %v614
      %v712 = vadd.f32 %v711, %v617
      %v713 = vadd.f32 %v712, %v622
      %v714 = vadd.f32 %v713, %v625
      %v715 = vadd.f32 %v714, %v630
      %v716 = vadd.f32 %v715, %v633
      %v717 = vadd.f32 %v716, %v638
      %v718 = vadd.f32 %v717, %v641
      %v719 = vadd.f32 %v718, %v646
      %v720 = vadd.f32 %v719, %v649
      %v721 = vadd.f32 %v720, %v654
      %v722 = vadd.f32 %v721, %v657
      %v723 = vrot.slane %v722, 4
      %v724 = vadd.f32 %v722, %v723
      %v725 = vrot.slane %v724, 2
      %v726 = vadd.f32 %v724, %v725
      %v727 = vrot.slane %v726, 1
      %v728 = vadd.f32 %v726, %v727
      %729 = vst [vmem:[%s271] sm:$0x1] %v728
      %730 = vst [vmem:[%s271 + $0x1] sm:$0x7f] 0.0
      %v731 = vmul.f32 %v534, %v534
      %v732 = vmul.f32 %v537, %v537
      %v733 = vmul.f32 %v542, %v542
      %v734 = vmul.f32 %v545, %v545
      %v735 = vmul.f32 %v550, %v550
      %v736 = vmul.f32 %v553, %v553
      %v737 = vmul.f32 %v558, %v558
      %v738 = vmul.f32 %v561, %v561
      %v739 = vmul.f32 %v566, %v566
      %v740 = vmul.f32 %v569, %v569
      %v741 = vmul.f32 %v574, %v574
      %v742 = vmul.f32 %v577, %v577
      %v743 = vmul.f32 %v582, %v582
      %v744 = vmul.f32 %v585, %v585
      %v745 = vmul.f32 %v590, %v590
      %v746 = vmul.f32 %v593, %v593
      %v747 = vmul.f32 %v598, %v598
      %v748 = vmul.f32 %v601, %v601
      %v749 = vmul.f32 %v606, %v606
      %v750 = vmul.f32 %v609, %v609
      %v751 = vmul.f32 %v614, %v614
      %v752 = vmul.f32 %v617, %v617
      %v753 = vmul.f32 %v622, %v622
      %v754 = vmul.f32 %v625, %v625
      %v755 = vmul.f32 %v630, %v630
      %v756 = vmul.f32 %v633, %v633
      %v757 = vmul.f32 %v638, %v638
      %v758 = vmul.f32 %v641, %v641
      %v759 = vmul.f32 %v646, %v646
      %v760 = vmul.f32 %v649, %v649
      %v761 = vmul.f32 %v654, %v654
      %v762 = vmul.f32 %v657, %v657
      %v763 = vadd.f32 %v731, %v732
      %v764 = vadd.f32 %v763, %v733
      %v765 = vadd.f32 %v764, %v734
      %v766 = vadd.f32 %v765, %v735
      %v767 = vadd.f32 %v766, %v736
      %v768 = vadd.f32 %v767, %v737
      %v769 = vadd.f32 %v768, %v738
      %v770 = vadd.f32 %v769, %v739
      %v771 = vadd.f32 %v770, %v740
      %v772 = vadd.f32 %v771, %v741
      %v773 = vadd.f32 %v772, %v742
      %v774 = vadd.f32 %v773, %v743
      %v775 = vadd.f32 %v774, %v744
      %v776 = vadd.f32 %v775, %v745
      %v777 = vadd.f32 %v776, %v746
      %v778 = vadd.f32 %v777, %v747
      %v779 = vadd.f32 %v778, %v748
      %v780 = vadd.f32 %v779, %v749
      %v781 = vadd.f32 %v780, %v750
      %v782 = vadd.f32 %v781, %v751
      %v783 = vadd.f32 %v782, %v752
      %v784 = vadd.f32 %v783, %v753
      %v785 = vadd.f32 %v784, %v754
      %v786 = vadd.f32 %v785, %v755
      %v787 = vadd.f32 %v786, %v756
      %v788 = vadd.f32 %v787, %v757
      %v789 = vadd.f32 %v788, %v758
      %v790 = vadd.f32 %v789, %v759
      %v791 = vadd.f32 %v790, %v760
      %v792 = vadd.f32 %v791, %v761
      %v793 = vadd.f32 %v792, %v762
      %v794 = vrot.slane %v793, 4
      %v795 = vadd.f32 %v793, %v794
      %v796 = vrot.slane %v795, 2
      %v797 = vadd.f32 %v795, %v796
      %v798 = vrot.slane %v797, 1
      %v799 = vadd.f32 %v797, %v798
      %800 = vst [vmem:[%s275] sm:$0x1] %v799
      %801 = vst [vmem:[%s275 + $0x1] sm:$0x7f] 0.0
      %s802 = smul.u32 32, %s18
      %p803 = scmp.lt.s32.totalorder %s802, 63
      %s804 = scalar_select %p803, %s802, 63
      %s805 = smul.addr %s804, 8
      %s806 = scalar_lea.vmem %s4, %s805
      %p807 = scmp.lt.s32.totalorder %s18, 1
      %s808 = scalar_select %p807, %s18, 1
      %s809 = smul.addr %s808, 8
      %s810 = scalar_lea.vmem %s5, %s809
      %p811 = scmp.lt.s32.totalorder %s18, 1
      %s812 = scalar_select %p811, %s18, 1
      %s813 = smul.addr %s812, 8
      %s814 = scalar_lea.vmem %s6, %s813
      // Predicated region
      $region37: #{deconv_bottleneck.6} parent=35 // pred_check
        %p815 = pneg %p125
      $region38: #{deconv_bottleneck.6} parent=35 // pred_check_branch
        %817 = sbr.rel (%p815) target = $region40
      $region39: #{deconv_bottleneck.6} parent=35 // pred_region
        %s818 = smul.u32 32, %s18
      $region40: #{deconv_bottleneck.6} parent=35 // pred_fallthru
        _
      // Predicated region
      $region41: #{deconv_bottleneck.6} parent=35 // pred_check
        %p819 = pneg %p151
      $region42: #{deconv_bottleneck.6} parent=35 // pred_check_branch
        %821 = sbr.rel (%p819) target = $region44
      $region43: #{deconv_bottleneck.6} parent=35 // pred_region
        _
      $region44: #{deconv_bottleneck.6} parent=35 // pred_fallthru
        _
      // Predicated region
      $region45: #{deconv_bottleneck.6} parent=35 // pred_check
        %p822 = pneg %p177
      $region46: #{deconv_bottleneck.6} parent=35 // pred_check_branch
        %824 = sbr.rel (%p822) target = $region48
      $region47: #{deconv_bottleneck.6} parent=35 // pred_region
        _
      $region48: #{deconv_bottleneck.6} parent=35 // pred_fallthru
        _
    $region36: #{deconv_bottleneck.6} parent=5 // pred_fallthru
      _
    %p825 = scmp.le.s32.totalorder 2, %s13
    // Predicated region
    $region49: #{deconv_bottleneck.6} parent=5 // pred_check
      %p826 = pneg %p825
    $region50: #{deconv_bottleneck.6} parent=5 // pred_check_branch
      %828 = sbr.rel (%p826) target = $region52
    $region51: #{deconv_bottleneck.6} parent=5 // pred_region
      %s829 = ssub.s32 %s13, 2
      // Predicated region
      $region53: #{deconv_bottleneck.6} parent=51 // pred_check
        %p830 = pneg %p131
      $region54: #{deconv_bottleneck.6} parent=51 // pred_check_branch
        %832 = sbr.rel (%p830) target = $region56
      $region55: #{deconv_bottleneck.6} parent=51 // pred_region
        %s833 = smul.u32 32, %s19
        %p834 = scmp.lt.s32.totalorder %s833, 63
        %s835 = scalar_select %p834, %s833, 63
        %s836 = smul.addr %s835, 8
        %s837 = scalar_lea.vmem %s4, %s836
      $region56: #{deconv_bottleneck.6} parent=51 // pred_fallthru
        _
      // Predicated region
      $region57: #{deconv_bottleneck.6} parent=51 // pred_check
        %p838 = pneg %p157
      $region58: #{deconv_bottleneck.6} parent=51 // pred_check_branch
        %840 = sbr.rel (%p838) target = $region60
      $region59: #{deconv_bottleneck.6} parent=51 // pred_region
        %p841 = scmp.lt.s32.totalorder %s19, 1
        %s842 = scalar_select %p841, %s19, 1
        %s843 = smul.addr %s842, 8
        %s844 = scalar_lea.vmem %s5, %s843
      $region60: #{deconv_bottleneck.6} parent=51 // pred_fallthru
        _
      // Predicated region
      $region61: #{deconv_bottleneck.6} parent=51 // pred_check
        %p845 = pneg %p183
      $region62: #{deconv_bottleneck.6} parent=51 // pred_check_branch
        %847 = sbr.rel (%p845) target = $region64
      $region63: #{deconv_bottleneck.6} parent=51 // pred_region
        %p848 = scmp.lt.s32.totalorder %s19, 1
        %s849 = scalar_select %p848, %s19, 1
        %s850 = smul.addr %s849, 8
        %s851 = scalar_lea.vmem %s6, %s850
      $region64: #{deconv_bottleneck.6} parent=51 // pred_fallthru
        _
    $region52: #{deconv_bottleneck.6} parent=5 // pred_fallthru
      _
  $region6: #{deconv_bottleneck.6} parent=0 // loop_footer
    %s17 = sadd.s32 1, %s13
  $region7: #{deconv_bottleneck.6} parent=0 // loop_footer_branch
    %12 = sbr.rel target = $region3
  $region8: #{deconv_bottleneck.6} parent=0 // loop_exit
    _

// kernel: deconv_bottleneck.4
$region0: #{deconv_bottleneck.4}
  #allocation0 [shape = 'u32[]', space=smem, size = 0x4, offset = 0x4, fixed_abs, tag = 'smem constant byte address 0x4 - core index']
  #allocation1 [shape = 'u32[144,128]{1,0:T(1,128)}', space=vmem, size = 0x12000, scoped, tag = 'internal scratch']
  %s0 = inlined_call_operand.vmem [shape: f32[512,128], index: 0, kind: input, shape index: {}]
  %s1 = inlined_call_operand.vmem [shape: bf16[128,128], index: 1, kind: input, shape index: {}]
  %s2 = inlined_call_operand.vmem [shape: f32[1,128], index: 2, kind: input, shape index: {}]
  %s3 = inlined_call_operand.vmem [shape: f32[1,128], index: 3, kind: input, shape index: {}]
  %s4 = inlined_call_operand.vmem [shape: f32[512,128], index: 4, kind: output, shape index: {0}]
  %s5 = inlined_call_operand.vmem [shape: f32[2,8,128], index: 5, kind: output, shape index: {1}]
  %s6 = inlined_call_operand.vmem [shape: f32[2,8,128], index: 6, kind: output, shape index: {2}]
  %7 = xla_tuple %s4, %s5, %s6
  %s8 = sld [smem:[#allocation0]]
  $region65: #{deconv_bottleneck.4} parent=0
    _
  %s10 = ssub.s32 1, %s8
  %s11 = scalar_select 0, %s10, %s8
  loop: start=0, step=1, limit=4
  $region2: #{deconv_bottleneck.4} parent=0 // loop_pre_header
    _
  $region3: #{deconv_bottleneck.4} parent=0 // loop_header
    %s13 = sphi 0, %s17
    %p14 = scmp.ge.s32.totalorder %s13, 4
    %s23 = sphi 0, %s25
    %s26 = sphi 0, %s23
    %s27 = sphi 0, %s26
    %s43 = sphi 0, %s27
    %s47 = sphi 0, %s47
    %s49 = sphi 0, %s47
    %s50 = sphi 0, %s49
    %s64 = sphi 0, %s50
    %s68 = sphi 0, %s68
    %s70 = sphi 0, %s68
    %s71 = sphi 0, %s70
    %s85 = sphi 0, %s71
    %s89 = sphi 0, %s89
    %s91 = sphi 0, %s89
    %s92 = sphi 0, %s91
    %s106 = sphi 0, %s92
    %s112 = sphi 0, %s114
    %s115 = sphi 0, %s112
    %s116 = sphi 0, %s115
    %s132 = sphi 0, %s116
    %s138 = sphi 0, %s140
    %s141 = sphi 0, %s138
    %s142 = sphi 0, %s141
    %s158 = sphi 0, %s142
    %s164 = sphi 0, %s166
    %s167 = sphi 0, %s164
    %s168 = sphi 0, %s167
    %s184 = sphi 0, %s168
  $region4: #{deconv_bottleneck.4} parent=0 // loop_header_branch
    %16 = sbr.rel (%p14) target = $region8
  $region5: #{deconv_bottleneck.4} parent=0 // loop_body
    %s18 = ssub.s32 %s13, 1
    %s19 = ssub.s32 %s13, 2
    %s20 = sadd.s32 %s13, 1
    %s21 = ssub.s32 %s13, %s20
    %p22 = scmp.eq.s32.totalorder %s21, 0
    %s24 = sadd.s32 %s23, 1
    %s25 = scalar_select %p22, %s23, %s24
    %p28 = pneg %p22
    %p29 = scmp.eq.s32.totalorder %s13, 1
    %p30 = por %p28, %p29
    %p31 = scmp.ne.s32.totalorder %s23, %s26
    %p32 = scmp.eq.s32.totalorder %s13, 0
    %p33 = por %p31, %p32
    %p34 = scmp.ne.s32.totalorder %s23, %s26
    %p35 = scmp.eq.s32.totalorder %s18, 1
    %p36 = por %p34, %p35
    %p37 = scmp.ne.s32.totalorder %s26, %s27
    %p38 = scmp.eq.s32.totalorder %s18, 0
    %p39 = por %p37, %p38
    %p40 = scmp.ne.s32.totalorder %s26, %s27
    %p41 = scmp.eq.s32.totalorder %s19, 1
    %p42 = por %p40, %p41
    %p44 = scmp.ne.s32.totalorder %s27, %s43
    %p45 = scmp.eq.s32.totalorder %s19, 0
    %p46 = por %p44, %p45
    %s48 = sadd.s32 %s47, 1
    %p51 = scmp.eq.s32.totalorder %s13, 1
    %p52 = scmp.ne.s32.totalorder %s47, %s49
    %p53 = scmp.eq.s32.totalorder %s13, 0
    %p54 = por %p52, %p53
    %p55 = scmp.ne.s32.totalorder %s47, %s49
    %p56 = scmp.eq.s32.totalorder %s18, 1
    %p57 = por %p55, %p56
    %p58 = scmp.ne.s32.totalorder %s49, %s50
    %p59 = scmp.eq.s32.totalorder %s18, 0
    %p60 = por %p58, %p59
    %p61 = scmp.ne.s32.totalorder %s49, %s50
    %p62 = scmp.eq.s32.totalorder %s19, 1
    %p63 = por %p61, %p62
    %p65 = scmp.ne.s32.totalorder %s50, %s64
    %p66 = scmp.eq.s32.totalorder %s19, 0
    %p67 = por %p65, %p66
    %s69 = sadd.s32 %s68, 1
    %p72 = scmp.eq.s32.totalorder %s13, 1
    %p73 = scmp.ne.s32.totalorder %s68, %s70
    %p74 = scmp.eq.s32.totalorder %s13, 0
    %p75 = por %p73, %p74
    %p76 = scmp.ne.s32.totalorder %s68, %s70
    %p77 = scmp.eq.s32.totalorder %s18, 1
    %p78 = por %p76, %p77
    %p79 = scmp.ne.s32.totalorder %s70, %s71
    %p80 = scmp.eq.s32.totalorder %s18, 0
    %p81 = por %p79, %p80
    %p82 = scmp.ne.s32.totalorder %s70, %s71
    %p83 = scmp.eq.s32.totalorder %s19, 1
    %p84 = por %p82, %p83
    %p86 = scmp.ne.s32.totalorder %s71, %s85
    %p87 = scmp.eq.s32.totalorder %s19, 0
    %p88 = por %p86, %p87
    %s90 = sadd.s32 %s89, 1
    %p93 = scmp.eq.s32.totalorder %s13, 1
    %p94 = scmp.ne.s32.totalorder %s89, %s91
    %p95 = scmp.eq.s32.totalorder %s13, 0
    %p96 = por %p94, %p95
    %p97 = scmp.ne.s32.totalorder %s89, %s91
    %p98 = scmp.eq.s32.totalorder %s18, 1
    %p99 = por %p97, %p98
    %p100 = scmp.ne.s32.totalorder %s91, %s92
    %p101 = scmp.eq.s32.totalorder %s18, 0
    %p102 = por %p100, %p101
    %p103 = scmp.ne.s32.totalorder %s91, %s92
    %p104 = scmp.eq.s32.totalorder %s19, 1
    %p105 = por %p103, %p104
    %p107 = scmp.ne.s32.totalorder %s92, %s106
    %p108 = scmp.eq.s32.totalorder %s19, 0
    %p109 = por %p107, %p108
    %s110 = ssub.s32 %s13, %s20
    %p111 = scmp.eq.s32.totalorder %s110, 0
    %s113 = sadd.s32 %s112, 1
    %s114 = scalar_select %p111, %s112, %s113
    %p117 = pneg %p111
    %p118 = scmp.eq.s32.totalorder %s13, 1
    %p119 = por %p117, %p118
    %p120 = scmp.ne.s32.totalorder %s112, %s115
    %p121 = scmp.eq.s32.totalorder %s13, 0
    %p122 = por %p120, %p121
    %p123 = scmp.ne.s32.totalorder %s112, %s115
    %p124 = scmp.eq.s32.totalorder %s18, 1
    %p125 = por %p123, %p124
    %p126 = scmp.ne.s32.totalorder %s115, %s116
    %p127 = scmp.eq.s32.totalorder %s18, 0
    %p128 = por %p126, %p127
    %p129 = scmp.ne.s32.totalorder %s115, %s116
    %p130 = scmp.eq.s32.totalorder %s19, 1
    %p131 = por %p129, %p130
    %p133 = scmp.ne.s32.totalorder %s116, %s132
    %p134 = scmp.eq.s32.totalorder %s19, 0
    %p135 = por %p133, %p134
    %s136 = ssub.s32 %s13, %s20
    %p137 = scmp.eq.s32.totalorder %s136, 0
    %s139 = sadd.s32 %s138, 1
    %s140 = scalar_select %p137, %s138, %s139
    %p143 = pneg %p137
    %p144 = scmp.eq.s32.totalorder %s13, 1
    %p145 = por %p143, %p144
    %p146 = scmp.ne.s32.totalorder %s138, %s141
    %p147 = scmp.eq.s32.totalorder %s13, 0
    %p148 = por %p146, %p147
    %p149 = scmp.ne.s32.totalorder %s138, %s141
    %p150 = scmp.eq.s32.totalorder %s18, 1
    %p151 = por %p149, %p150
    %p152 = scmp.ne.s32.totalorder %s141, %s142
    %p153 = scmp.eq.s32.totalorder %s18, 0
    %p154 = por %p152, %p153
    %p155 = scmp.ne.s32.totalorder %s141, %s142
    %p156 = scmp.eq.s32.totalorder %s19, 1
    %p157 = por %p155, %p156
    %p159 = scmp.ne.s32.totalorder %s142, %s158
    %p160 = scmp.eq.s32.totalorder %s19, 0
    %p161 = por %p159, %p160
    %s162 = ssub.s32 %s13, %s20
    %p163 = scmp.eq.s32.totalorder %s162, 0
    %s165 = sadd.s32 %s164, 1
    %s166 = scalar_select %p163, %s164, %s165
    %p169 = pneg %p163
    %p170 = scmp.eq.s32.totalorder %s13, 1
    %p171 = por %p169, %p170
    %p172 = scmp.ne.s32.totalorder %s164, %s167
    %p173 = scmp.eq.s32.totalorder %s13, 0
    %p174 = por %p172, %p173
    %p175 = scmp.ne.s32.totalorder %s164, %s167
    %p176 = scmp.eq.s32.totalorder %s18, 1
    %p177 = por %p175, %p176
    %p178 = scmp.ne.s32.totalorder %s167, %s168
    %p179 = scmp.eq.s32.totalorder %s18, 0
    %p180 = por %p178, %p179
    %p181 = scmp.ne.s32.totalorder %s167, %s168
    %p182 = scmp.eq.s32.totalorder %s19, 1
    %p183 = por %p181, %p182
    %p185 = scmp.ne.s32.totalorder %s168, %s184
    %p186 = scmp.eq.s32.totalorder %s19, 0
    %p187 = por %p185, %p186
    %p188 = scmp.le.s32.totalorder 1, %s13
    %p189 = scmp.lt.s32.totalorder %s13, 3
    %p190 = pnand %p188, %p189
    %p191 = pneg %p190
    // Predicated region
    $region9: #{deconv_bottleneck.4} parent=5 // pred_check
      _
    $region10: #{deconv_bottleneck.4} parent=5 // pred_check_branch
      %193 = sbr.rel (%p190) target = $region12
    $region11: #{deconv_bottleneck.4} parent=5 // pred_region
      %s194 = ssub.s32 %s13, 1
      // Predicated region
      $region13: #{deconv_bottleneck.4} parent=11 // pred_check
        %p195 = pneg %p60
      $region14: #{deconv_bottleneck.4} parent=11 // pred_check_branch
        %197 = sbr.rel (%p195) target = $region16
      $region15: #{deconv_bottleneck.4} parent=11 // pred_region
        _
      $region16: #{deconv_bottleneck.4} parent=11 // pred_fallthru
        _
      // Predicated region
      $region17: #{deconv_bottleneck.4} parent=11 // pred_check
        %p198 = pneg %p81
      $region18: #{deconv_bottleneck.4} parent=11 // pred_check_branch
        %200 = sbr.rel (%p198) target = $region20
      $region19: #{deconv_bottleneck.4} parent=11 // pred_region
        _
      $region20: #{deconv_bottleneck.4} parent=11 // pred_fallthru
        _
      // Predicated region
      $region21: #{deconv_bottleneck.4} parent=11 // pred_check
        %p201 = pneg %p102
      $region22: #{deconv_bottleneck.4} parent=11 // pred_check_branch
        %203 = sbr.rel (%p201) target = $region24
      $region23: #{deconv_bottleneck.4} parent=11 // pred_region
        _
      $region24: #{deconv_bottleneck.4} parent=11 // pred_fallthru
        _
    $region12: #{deconv_bottleneck.4} parent=5 // pred_fallthru
      _
    %p204 = scmp.lt.s32.totalorder %s13, 2
    // Predicated region
    $region25: #{deconv_bottleneck.4} parent=5 // pred_check
      %p205 = pneg %p204
    $region26: #{deconv_bottleneck.4} parent=5 // pred_check_branch
      %207 = sbr.rel (%p205) target = $region28
    $region27: #{deconv_bottleneck.4} parent=5 // pred_region
      // Predicated region
      $region29: #{deconv_bottleneck.4} parent=27 // pred_check
        %p208 = pneg %p33
      $region30: #{deconv_bottleneck.4} parent=27 // pred_check_branch
        %210 = sbr.rel (%p208) target = $region32
      $region31: #{deconv_bottleneck.4} parent=27 // pred_region
        %s211 = smul.u32 32, %s13
        %p212 = scmp.lt.s32.totalorder %s211, 63
        %s213 = scalar_select %p212, %s211, 63
        %s214 = smul.addr %s213, 8
        %s215 = scalar_lea.vmem %s0, %s214
        %s216 = smul.u32 32, %s13
      $region32: #{deconv_bottleneck.4} parent=27 // pred_fallthru
        _
    $region28: #{deconv_bottleneck.4} parent=5 // pred_fallthru
      _
    %p217 = scmp.le.s32.totalorder 1, %s13
    %p218 = scmp.lt.s32.totalorder %s13, 3
    %p219 = pnand %p217, %p218
    %p220 = pneg %p219
    // Predicated region
    $region33: #{deconv_bottleneck.4} parent=5 // pred_check
      _
    $region34: #{deconv_bottleneck.4} parent=5 // pred_check_branch
      %222 = sbr.rel (%p219) target = $region36
    $region35: #{deconv_bottleneck.4} parent=5 // pred_region
      %s223 = ssub.s32 %s13, 1
      %s224 = smul.u32 32, %s18
      %p225 = scmp.lt.s32.totalorder %s224, 63
      %s226 = scalar_select %p225, %s224, 63
      %s227 = smul.addr %s226, 8
      %s228 = scalar_lea.vmem %s0, %s227
      %p229 = pneg %p39
      %p230 = pneg %p36
      %p231 = pneg %p60
      %p232 = pneg %p57
      %p233 = pneg %p81
      %p234 = pneg %p78
      %p235 = pneg %p102
      %p236 = pneg %p99
      %p237 = pneg %p128
      %p238 = pneg %p125
      %s239 = smul.u32 32, %s18
      %p240 = scmp.lt.s32.totalorder %s239, 63
      %s241 = scalar_select %p240, %s239, 63
      %s242 = smul.addr %s241, 8
      %s243 = scalar_lea.vmem %s4, %s242
      %p244 = pneg %p154
      %p245 = pneg %p151
      %p246 = scmp.lt.s32.totalorder %s18, 1
      %s247 = scalar_select %p246, %s18, 1
      %s248 = smul.addr %s247, 8
      %s249 = scalar_lea.vmem %s5, %s248
      %p250 = pneg %p180
      %p251 = pneg %p177
      %p252 = scmp.lt.s32.totalorder %s18, 1
      %s253 = scalar_select %p252, %s18, 1
      %s254 = smul.addr %s253, 8
      %s255 = scalar_lea.vmem %s6, %s254
      %s256 = smul.u32 32, %s18
      %p257 = scmp.lt.s32.totalorder %s256, 63
      %s258 = scalar_select %p257, %s256, 63
      %s259 = smul.addr %s258, 8
      %s260 = scalar_lea.vmem %s0, %s259
      %s261 = smul.u32 32, %s18
      %s262 = smul.u32 32, %s18
      %p263 = scmp.lt.s32.totalorder %s262, 63
      %s264 = scalar_select %p263, %s262, 63
      %s265 = smul.addr %s264, 8
      %s266 = scalar_lea.vmem %s4, %s265
      %s267 = smul.u32 32, %s18
      %p268 = scmp.lt.s32.totalorder %s18, 1
      %s269 = scalar_select %p268, %s18, 1
      %s270 = smul.addr %s269, 8
      %s271 = scalar_lea.vmem %s5, %s270
      %p272 = scmp.lt.s32.totalorder %s18, 1
      %s273 = scalar_select %p272, %s18, 1
      %s274 = smul.addr %s273, 8
      %s275 = scalar_lea.vmem %s6, %s274
      %v277 = vld [vmem:[%s260] sm:$0xff]
      %v278 = vld [vmem:[%s260 + $0x8] sm:$0xff]
      %v279 = vld [vmem:[%s260 + $0x10] sm:$0xff]
      %v280 = vld [vmem:[%s260 + $0x18] sm:$0xff]
      %v281 = vld [vmem:[%s260 + $0x20] sm:$0xff]
      %v282 = vld [vmem:[%s260 + $0x28] sm:$0xff]
      %v283 = vld [vmem:[%s260 + $0x30] sm:$0xff]
      %v284 = vld [vmem:[%s260 + $0x38] sm:$0xff]
      %v285 = vld [vmem:[%s260 + $0x40] sm:$0xff]
      %v286 = vld [vmem:[%s260 + $0x48] sm:$0xff]
      %v287 = vld [vmem:[%s260 + $0x50] sm:$0xff]
      %v288 = vld [vmem:[%s260 + $0x58] sm:$0xff]
      %v289 = vld [vmem:[%s260 + $0x60] sm:$0xff]
      %v290 = vld [vmem:[%s260 + $0x68] sm:$0xff]
      %v291 = vld [vmem:[%s260 + $0x70] sm:$0xff]
      %v292 = vld [vmem:[%s260 + $0x78] sm:$0xff]
      %v293 = vld [vmem:[%s260 + $0x80] sm:$0xff]
      %v294 = vld [vmem:[%s260 + $0x88] sm:$0xff]
      %v295 = vld [vmem:[%s260 + $0x90] sm:$0xff]
      %v296 = vld [vmem:[%s260 + $0x98] sm:$0xff]
      %v297 = vld [vmem:[%s260 + $0xa0] sm:$0xff]
      %v298 = vld [vmem:[%s260 + $0xa8] sm:$0xff]
      %v299 = vld [vmem:[%s260 + $0xb0] sm:$0xff]
      %v300 = vld [vmem:[%s260 + $0xb8] sm:$0xff]
      %v301 = vld [vmem:[%s260 + $0xc0] sm:$0xff]
      %v302 = vld [vmem:[%s260 + $0xc8] sm:$0xff]
      %v303 = vld [vmem:[%s260 + $0xd0] sm:$0xff]
      %v304 = vld [vmem:[%s260 + $0xd8] sm:$0xff]
      %v305 = vld [vmem:[%s260 + $0xe0] sm:$0xff]
      %v306 = vld [vmem:[%s260 + $0xe8] sm:$0xff]
      %v307 = vld [vmem:[%s260 + $0xf0] sm:$0xff]
      %v308 = vld [vmem:[%s260 + $0xf8] sm:$0xff]
      %v309 = vpack.c.bf16 %v278, %v277
      %v310 = vpack.c.bf16 %v280, %v279
      %v311 = vpack.c.bf16 %v282, %v281
      %v312 = vpack.c.bf16 %v284, %v283
      %v313 = vpack.c.bf16 %v286, %v285
      %v314 = vpack.c.bf16 %v288, %v287
      %v315 = vpack.c.bf16 %v290, %v289
      %v316 = vpack.c.bf16 %v292, %v291
      %v317 = vpack.c.bf16 %v294, %v293
      %v318 = vpack.c.bf16 %v296, %v295
      %v319 = vpack.c.bf16 %v298, %v297
      %v320 = vpack.c.bf16 %v300, %v299
      %v321 = vpack.c.bf16 %v302, %v301
      %v322 = vpack.c.bf16 %v304, %v303
      %v323 = vpack.c.bf16 %v306, %v305
      %v324 = vpack.c.bf16 %v308, %v307
      %v325 = vld [vmem:[%s1] sm:$0xf]
      %v326 = vld [vmem:[%s1 + $0x4] sm:$0xf]
      %v327 = vld [vmem:[%s1 + $0x8] sm:$0xf]
      %v328 = vld [vmem:[%s1 + $0xc] sm:$0xf]
      %v329 = vld [vmem:[%s1 + $0x10] sm:$0xf]
      %v330 = vld [vmem:[%s1 + $0x14] sm:$0xf]
      %v331 = vld [vmem:[%s1 + $0x18] sm:$0xf]
      %v332 = vld [vmem:[%s1 + $0x1c] sm:$0xf]
      %v333 = vld [vmem:[%s1 + $0x20] sm:$0xf]
      %v334 = vld [vmem:[%s1 + $0x24] sm:$0xf]
      %v335 = vld [vmem:[%s1 + $0x28] sm:$0xf]
      %v336 = vld [vmem:[%s1 + $0x2c] sm:$0xf]
      %v337 = vld [vmem:[%s1 + $0x30] sm:$0xf]
      %v338 = vld [vmem:[%s1 + $0x34] sm:$0xf]
      %v339 = vld [vmem:[%s1 + $0x38] sm:$0xf]
      %v340 = vld [vmem:[%s1 + $0x3c] sm:$0xf]
      %v357 = vunpack.c.l.b16 %v325
      %v358 = vunpack.c.l.b16 %v326
      %v359 = vunpack.c.l.b16 %v327
      %v360 = vunpack.c.l.b16 %v328
      %v361 = vunpack.c.l.b16 %v329
      %v362 = vunpack.c.l.b16 %v330
      %v363 = vunpack.c.l.b16 %v331
      %v364 = vunpack.c.l.b16 %v332
      %v365 = vunpack.c.l.b16 %v333
      %v366 = vunpack.c.l.b16 %v334
      %v367 = vunpack.c.l.b16 %v335
      %v368 = vunpack.c.l.b16 %v336
      %v369 = vunpack.c.l.b16 %v337
      %v370 = vunpack.c.l.b16 %v338
      %v371 = vunpack.c.l.b16 %v339
      %v372 = vunpack.c.l.b16 %v340
      %v373 = vpack.c.b16 %v358, %v357
      %v374 = vpack.c.b16 %v360, %v359
      %v375 = vpack.c.b16 %v362, %v361
      %v376 = vpack.c.b16 %v364, %v363
      %v377 = vpack.c.b16 %v366, %v365
      %v378 = vpack.c.b16 %v368, %v367
      %v379 = vpack.c.b16 %v370, %v369
      %v380 = vpack.c.b16 %v372, %v371
      %389 = vmatprep.subr.bf16.mxu0 0
      %390 = vmatpush1.bf16.msra.mxu0 %v380
      %391 = vmatprep.subr.bf16.mxu0 0
      %392 = vmatpush1.bf16.msra.mxu0 %v379
      %393 = vmatprep.subr.bf16.mxu0 0
      %394 = vmatpush1.bf16.msra.mxu0 %v378
      %395 = vmatprep.subr.bf16.mxu0 0
      %396 = vmatpush1.bf16.msra.mxu0 %v377
      %397 = vmatprep.subr.bf16.mxu0 0
      %398 = vmatpush1.bf16.msra.mxu0 %v376
      %399 = vmatprep.subr.bf16.mxu0 0
      %400 = vmatpush1.bf16.msra.mxu0 %v375
      %401 = vmatprep.subr.bf16.mxu0 0
      %402 = vmatpush1.bf16.msra.mxu0 %v374
      %403 = vmatprep.subr.bf16.mxu0 0
      %404 = vmatpush1.bf16.msra.mxu0 %v373
      %405 = vmatprep.subr.bf16.mxu0 0
      %406 = vmatpush2.bf16.msra.mxu0 0
      %407 = vmatprep.subr.bf16.mxu0 0
      %408 = vmatpush2.bf16.msra.mxu0 0
      %409 = vmatprep.subr.bf16.mxu0 0
      %410 = vmatpush2.bf16.msra.mxu0 0
      %411 = vmatprep.subr.bf16.mxu0 0
      %412 = vmatpush2.bf16.msra.mxu0 0
      %413 = vmatprep.subr.bf16.mxu0 0
      %414 = vmatpush2.bf16.msra.mxu0 0
      %415 = vmatprep.subr.bf16.mxu0 0
      %416 = vmatpush2.bf16.msra.mxu0 0
      %417 = vmatprep.subr.bf16.mxu0 0
      %418 = vmatpush2.bf16.msra.mxu0 0
      %419 = vmatprep.subr.bf16.mxu0 0
      %420 = vmatpush2.bf16.msra.mxu0 0
      %421 = vmatprep.mubr.bf16.mxu0 0
      %422 = vmatmul.mubr.bf16.gmra.mxu0 %v309
      %v423 = vpop.f32.mrf.mxu0
      %v424 = vadd.f32 0.0, %v423
      %v425 = vpop.f32.mrf.mxu0
      %v426 = vpop.f32.mrf.mxu0
      %v427 = vadd.f32 0.0, %v426
      %v428 = vpop.f32.mrf.mxu0
      %429 = vmatprep.mubr.bf16.mxu0 0
      %430 = vmatmul.mubr.bf16.gmra.mxu0 %v310
      %v431 = vpop.f32.mrf.mxu0
      %v432 = vadd.f32 0.0, %v431
      %v433 = vpop.f32.mrf.mxu0
      %v434 = vpop.f32.mrf.mxu0
      %v435 = vadd.f32 0.0, %v434
      %v436 = vpop.f32.mrf.mxu0
      %437 = vmatprep.mubr.bf16.mxu0 0
      %438 = vmatmul.mubr.bf16.gmra.mxu0 %v311
      %v439 = vpop.f32.mrf.mxu0
      %v440 = vadd.f32 0.0, %v439
      %v441 = vpop.f32.mrf.mxu0
      %v442 = vpop.f32.mrf.mxu0
      %v443 = vadd.f32 0.0, %v442
      %v444 = vpop.f32.mrf.mxu0
      %445 = vmatprep.mubr.bf16.mxu0 0
      %446 = vmatmul.mubr.bf16.gmra.mxu0 %v312
      %v447 = vpop.f32.mrf.mxu0
      %v448 = vadd.f32 0.0, %v447
      %v449 = vpop.f32.mrf.mxu0
      %v450 = vpop.f32.mrf.mxu0
      %v451 = vadd.f32 0.0, %v450
      %v452 = vpop.f32.mrf.mxu0
      %453 = vmatprep.mubr.bf16.mxu0 0
      %454 = vmatmul.mubr.bf16.gmra.mxu0 %v313
      %v455 = vpop.f32.mrf.mxu0
      %v456 = vadd.f32 0.0, %v455
      %v457 = vpop.f32.mrf.mxu0
      %v458 = vpop.f32.mrf.mxu0
      %v459 = vadd.f32 0.0, %v458
      %v460 = vpop.f32.mrf.mxu0
      %461 = vmatprep.mubr.bf16.mxu0 0
      %462 = vmatmul.mubr.bf16.gmra.mxu0 %v314
      %v463 = vpop.f32.mrf.mxu0
      %v464 = vadd.f32 0.0, %v463
      %v465 = vpop.f32.mrf.mxu0
      %v466 = vpop.f32.mrf.mxu0
      %v467 = vadd.f32 0.0, %v466
      %v468 = vpop.f32.mrf.mxu0
      %469 = vmatprep.mubr.bf16.mxu0 0
      %470 = vmatmul.mubr.bf16.gmra.mxu0 %v315
      %v471 = vpop.f32.mrf.mxu0
      %v472 = vadd.f32 0.0, %v471
      %v473 = vpop.f32.mrf.mxu0
      %v474 = vpop.f32.mrf.mxu0
      %v475 = vadd.f32 0.0, %v474
      %v476 = vpop.f32.mrf.mxu0
      %477 = vmatprep.mubr.bf16.mxu0 0
      %478 = vmatmul.mubr.bf16.gmra.mxu0 %v316
      %v479 = vpop.f32.mrf.mxu0
      %v480 = vadd.f32 0.0, %v479
      %v481 = vpop.f32.mrf.mxu0
      %v482 = vpop.f32.mrf.mxu0
      %v483 = vadd.f32 0.0, %v482
      %v484 = vpop.f32.mrf.mxu0
      %485 = vmatprep.mubr.bf16.mxu0 0
      %486 = vmatmul.mubr.bf16.gmra.mxu0 %v317
      %v487 = vpop.f32.mrf.mxu0
      %v488 = vadd.f32 0.0, %v487
      %v489 = vpop.f32.mrf.mxu0
      %v490 = vpop.f32.mrf.mxu0
      %v491 = vadd.f32 0.0, %v490
      %v492 = vpop.f32.mrf.mxu0
      %493 = vmatprep.mubr.bf16.mxu0 0
      %494 = vmatmul.mubr.bf16.gmra.mxu0 %v318
      %v495 = vpop.f32.mrf.mxu0
      %v496 = vadd.f32 0.0, %v495
      %v497 = vpop.f32.mrf.mxu0
      %v498 = vpop.f32.mrf.mxu0
      %v499 = vadd.f32 0.0, %v498
      %v500 = vpop.f32.mrf.mxu0
      %501 = vmatprep.mubr.bf16.mxu0 0
      %502 = vmatmul.mubr.bf16.gmra.mxu0 %v319
      %v503 = vpop.f32.mrf.mxu0
      %v504 = vadd.f32 0.0, %v503
      %v505 = vpop.f32.mrf.mxu0
      %v506 = vpop.f32.mrf.mxu0
      %v507 = vadd.f32 0.0, %v506
      %v508 = vpop.f32.mrf.mxu0
      %509 = vmatprep.mubr.bf16.mxu0 0
      %510 = vmatmul.mubr.bf16.gmra.mxu0 %v320
      %v511 = vpop.f32.mrf.mxu0
      %v512 = vadd.f32 0.0, %v511
      %v513 = vpop.f32.mrf.mxu0
      %v514 = vpop.f32.mrf.mxu0
      %v515 = vadd.f32 0.0, %v514
      %v516 = vpop.f32.mrf.mxu0
      %517 = vmatprep.mubr.bf16.mxu0 0
      %518 = vmatmul.mubr.bf16.gmra.mxu0 %v321
      %v519 = vpop.f32.mrf.mxu0
      %v520 = vadd.f32 0.0, %v519
      %v521 = vpop.f32.mrf.mxu0
      %v522 = vpop.f32.mrf.mxu0
      %v523 = vadd.f32 0.0, %v522
      %v524 = vpop.f32.mrf.mxu0
      %525 = vmatprep.mubr.bf16.mxu0 0
      %526 = vmatmul.mubr.bf16.gmra.mxu0 %v322
      %v527 = vpop.f32.mrf.mxu0
      %v528 = vadd.f32 0.0, %v527
      %v529 = vpop.f32.mrf.mxu0
      %v530 = vpop.f32.mrf.mxu0
      %v531 = vadd.f32 0.0, %v530
      %v532 = vpop.f32.mrf.mxu0
      %533 = vmatprep.mubr.bf16.mxu0 0
      %534 = vmatmul.mubr.bf16.gmra.mxu0 %v323
      %v535 = vpop.f32.mrf.mxu0
      %v536 = vadd.f32 0.0, %v535
      %v537 = vpop.f32.mrf.mxu0
      %v538 = vpop.f32.mrf.mxu0
      %v539 = vadd.f32 0.0, %v538
      %v540 = vpop.f32.mrf.mxu0
      %541 = vmatprep.mubr.bf16.mxu0 0
      %542 = vmatmul.mubr.bf16.gmra.mxu0 %v324
      %v543 = vpop.f32.mrf.mxu0
      %v544 = vadd.f32 0.0, %v543
      %v545 = vpop.f32.mrf.mxu0
      %v546 = vpop.f32.mrf.mxu0
      %v547 = vadd.f32 0.0, %v546
      %v548 = vpop.f32.mrf.mxu0
      %549 = vdwg.mxu0
      %550 = vst [vmem:[%s266] sm:$0xff] %v424
      %551 = vst [vmem:[%s266 + $0x8] sm:$0xff] %v427
      %552 = vst [vmem:[%s266 + $0x10] sm:$0xff] %v432
      %553 = vst [vmem:[%s266 + $0x18] sm:$0xff] %v435
      %554 = vst [vmem:[%s266 + $0x20] sm:$0xff] %v440
      %555 = vst [vmem:[%s266 + $0x28] sm:$0xff] %v443
      %556 = vst [vmem:[%s266 + $0x30] sm:$0xff] %v448
      %557 = vst [vmem:[%s266 + $0x38] sm:$0xff] %v451
      %558 = vst [vmem:[%s266 + $0x40] sm:$0xff] %v456
      %559 = vst [vmem:[%s266 + $0x48] sm:$0xff] %v459
      %560 = vst [vmem:[%s266 + $0x50] sm:$0xff] %v464
      %561 = vst [vmem:[%s266 + $0x58] sm:$0xff] %v467
      %562 = vst [vmem:[%s266 + $0x60] sm:$0xff] %v472
      %563 = vst [vmem:[%s266 + $0x68] sm:$0xff] %v475
      %564 = vst [vmem:[%s266 + $0x70] sm:$0xff] %v480
      %565 = vst [vmem:[%s266 + $0x78] sm:$0xff] %v483
      %566 = vst [vmem:[%s266 + $0x80] sm:$0xff] %v488
      %567 = vst [vmem:[%s266 + $0x88] sm:$0xff] %v491
      %568 = vst [vmem:[%s266 + $0x90] sm:$0xff] %v496
      %569 = vst [vmem:[%s266 + $0x98] sm:$0xff] %v499
      %570 = vst [vmem:[%s266 + $0xa0] sm:$0xff] %v504
      %571 = vst [vmem:[%s266 + $0xa8] sm:$0xff] %v507
      %572 = vst [vmem:[%s266 + $0xb0] sm:$0xff] %v512
      %573 = vst [vmem:[%s266 + $0xb8] sm:$0xff] %v515
      %574 = vst [vmem:[%s266 + $0xc0] sm:$0xff] %v520
      %575 = vst [vmem:[%s266 + $0xc8] sm:$0xff] %v523
      %576 = vst [vmem:[%s266 + $0xd0] sm:$0xff] %v528
      %577 = vst [vmem:[%s266 + $0xd8] sm:$0xff] %v531
      %578 = vst [vmem:[%s266 + $0xe0] sm:$0xff] %v536
      %579 = vst [vmem:[%s266 + $0xe8] sm:$0xff] %v539
      %580 = vst [vmem:[%s266 + $0xf0] sm:$0xff] %v544
      %581 = vst [vmem:[%s266 + $0xf8] sm:$0xff] %v547
      %v582 = vadd.f32 %v424, %v427
      %v583 = vadd.f32 %v582, %v432
      %v584 = vadd.f32 %v583, %v435
      %v585 = vadd.f32 %v584, %v440
      %v586 = vadd.f32 %v585, %v443
      %v587 = vadd.f32 %v586, %v448
      %v588 = vadd.f32 %v587, %v451
      %v589 = vadd.f32 %v588, %v456
      %v590 = vadd.f32 %v589, %v459
      %v591 = vadd.f32 %v590, %v464
      %v592 = vadd.f32 %v591, %v467
      %v593 = vadd.f32 %v592, %v472
      %v594 = vadd.f32 %v593, %v475
      %v595 = vadd.f32 %v594, %v480
      %v596 = vadd.f32 %v595, %v483
      %v597 = vadd.f32 %v596, %v488
      %v598 = vadd.f32 %v597, %v491
      %v599 = vadd.f32 %v598, %v496
      %v600 = vadd.f32 %v599, %v499
      %v601 = vadd.f32 %v600, %v504
      %v602 = vadd.f32 %v601, %v507
      %v603 = vadd.f32 %v602, %v512
      %v604 = vadd.f32 %v603, %v515
      %v605 = vadd.f32 %v604, %v520
      %v606 = vadd.f32 %v605, %v523
      %v607 = vadd.f32 %v606, %v528
      %v608 = vadd.f32 %v607, %v531
      %v609 = vadd.f32 %v608, %v536
      %v610 = vadd.f32 %v609, %v539
      %v611 = vadd.f32 %v610, %v544
      %v612 = vadd.f32 %v611, %v547
      %v613 = vrot.slane %v612, 4
      %v614 = vadd.f32 %v612, %v613
      %v615 = vrot.slane %v614, 2
      %v616 = vadd.f32 %v614, %v615
      %v617 = vrot.slane %v616, 1
      %v618 = vadd.f32 %v616, %v617
      %619 = vst [vmem:[%s271] sm:$0x1] %v618
      %620 = vst [vmem:[%s271 + $0x1] sm:$0x7f] 0.0
      %v621 = vmul.f32 %v424, %v424
      %v622 = vmul.f32 %v427, %v427
      %v623 = vmul.f32 %v432, %v432
      %v624 = vmul.f32 %v435, %v435
      %v625 = vmul.f32 %v440, %v440
      %v626 = vmul.f32 %v443, %v443
      %v627 = vmul.f32 %v448, %v448
      %v628 = vmul.f32 %v451, %v451
      %v629 = vmul.f32 %v456, %v456
      %v630 = vmul.f32 %v459, %v459
      %v631 = vmul.f32 %v464, %v464
      %v632 = vmul.f32 %v467, %v467
      %v633 = vmul.f32 %v472, %v472
      %v634 = vmul.f32 %v475, %v475
      %v635 = vmul.f32 %v480, %v480
      %v636 = vmul.f32 %v483, %v483
      %v637 = vmul.f32 %v488, %v488
      %v638 = vmul.f32 %v491, %v491
      %v639 = vmul.f32 %v496, %v496
      %v640 = vmul.f32 %v499, %v499
      %v641 = vmul.f32 %v504, %v504
      %v642 = vmul.f32 %v507, %v507
      %v643 = vmul.f32 %v512, %v512
      %v644 = vmul.f32 %v515, %v515
      %v645 = vmul.f32 %v520, %v520
      %v646 = vmul.f32 %v523, %v523
      %v647 = vmul.f32 %v528, %v528
      %v648 = vmul.f32 %v531, %v531
      %v649 = vmul.f32 %v536, %v536
      %v650 = vmul.f32 %v539, %v539
      %v651 = vmul.f32 %v544, %v544
      %v652 = vmul.f32 %v547, %v547
      %v653 = vadd.f32 %v621, %v622
      %v654 = vadd.f32 %v653, %v623
      %v655 = vadd.f32 %v654, %v624
      %v656 = vadd.f32 %v655, %v625
      %v657 = vadd.f32 %v656, %v626
      %v658 = vadd.f32 %v657, %v627
      %v659 = vadd.f32 %v658, %v628
      %v660 = vadd.f32 %v659, %v629
      %v661 = vadd.f32 %v660, %v630
      %v662 = vadd.f32 %v661, %v631
      %v663 = vadd.f32 %v662, %v632
      %v664 = vadd.f32 %v663, %v633
      %v665 = vadd.f32 %v664, %v634
      %v666 = vadd.f32 %v665, %v635
      %v667 = vadd.f32 %v666, %v636
      %v668 = vadd.f32 %v667, %v637
      %v669 = vadd.f32 %v668, %v638
      %v670 = vadd.f32 %v669, %v639
      %v671 = vadd.f32 %v670, %v640
      %v672 = vadd.f32 %v671, %v641
      %v673 = vadd.f32 %v672, %v642
      %v674 = vadd.f32 %v673, %v643
      %v675 = vadd.f32 %v674, %v644
      %v676 = vadd.f32 %v675, %v645
      %v677 = vadd.f32 %v676, %v646
      %v678 = vadd.f32 %v677, %v647
      %v679 = vadd.f32 %v678, %v648
      %v680 = vadd.f32 %v679, %v649
      %v681 = vadd.f32 %v680, %v650
      %v682 = vadd.f32 %v681, %v651
      %v683 = vadd.f32 %v682, %v652
      %v684 = vrot.slane %v683, 4
      %v685 = vadd.f32 %v683, %v684
      %v686 = vrot.slane %v685, 2
      %v687 = vadd.f32 %v685, %v686
      %v688 = vrot.slane %v687, 1
      %v689 = vadd.f32 %v687, %v688
      %690 = vst [vmem:[%s275] sm:$0x1] %v689
      %691 = vst [vmem:[%s275 + $0x1] sm:$0x7f] 0.0
      %s692 = smul.u32 32, %s18
      %p693 = scmp.lt.s32.totalorder %s692, 63
      %s694 = scalar_select %p693, %s692, 63
      %s695 = smul.addr %s694, 8
      %s696 = scalar_lea.vmem %s4, %s695
      %p697 = scmp.lt.s32.totalorder %s18, 1
      %s698 = scalar_select %p697, %s18, 1
      %s699 = smul.addr %s698, 8
      %s700 = scalar_lea.vmem %s5, %s699
      %p701 = scmp.lt.s32.totalorder %s18, 1
      %s702 = scalar_select %p701, %s18, 1
      %s703 = smul.addr %s702, 8
      %s704 = scalar_lea.vmem %s6, %s703
      // Predicated region
      $region37: #{deconv_bottleneck.4} parent=35 // pred_check
        %p705 = pneg %p125
      $region38: #{deconv_bottleneck.4} parent=35 // pred_check_branch
        %707 = sbr.rel (%p705) target = $region40
      $region39: #{deconv_bottleneck.4} parent=35 // pred_region
        %s708 = smul.u32 32, %s18
      $region40: #{deconv_bottleneck.4} parent=35 // pred_fallthru
        _
      // Predicated region
      $region41: #{deconv_bottleneck.4} parent=35 // pred_check
        %p709 = pneg %p151
      $region42: #{deconv_bottleneck.4} parent=35 // pred_check_branch
        %711 = sbr.rel (%p709) target = $region44
      $region43: #{deconv_bottleneck.4} parent=35 // pred_region
        _
      $region44: #{deconv_bottleneck.4} parent=35 // pred_fallthru
        _
      // Predicated region
      $region45: #{deconv_bottleneck.4} parent=35 // pred_check
        %p712 = pneg %p177
      $region46: #{deconv_bottleneck.4} parent=35 // pred_check_branch
        %714 = sbr.rel (%p712) target = $region48
      $region47: #{deconv_bottleneck.4} parent=35 // pred_region
        _
      $region48: #{deconv_bottleneck.4} parent=35 // pred_fallthru
        _
    $region36: #{deconv_bottleneck.4} parent=5 // pred_fallthru
      _
    %p715 = scmp.le.s32.totalorder 2, %s13
    // Predicated region
    $region49: #{deconv_bottleneck.4} parent=5 // pred_check
      %p716 = pneg %p715
    $region50: #{deconv_bottleneck.4} parent=5 // pred_check_branch
      %718 = sbr.rel (%p716) target = $region52
    $region51: #{deconv_bottleneck.4} parent=5 // pred_region
      %s719 = ssub.s32 %s13, 2
      // Predicated region
      $region53: #{deconv_bottleneck.4} parent=51 // pred_check
        %p720 = pneg %p131
      $region54: #{deconv_bottleneck.4} parent=51 // pred_check_branch
        %722 = sbr.rel (%p720) target = $region56
      $region55: #{deconv_bottleneck.4} parent=51 // pred_region
        %s723 = smul.u32 32, %s19
        %p724 = scmp.lt.s32.totalorder %s723, 63
        %s725 = scalar_select %p724, %s723, 63
        %s726 = smul.addr %s725, 8
        %s727 = scalar_lea.vmem %s4, %s726
      $region56: #{deconv_bottleneck.4} parent=51 // pred_fallthru
        _
      // Predicated region
      $region57: #{deconv_bottleneck.4} parent=51 // pred_check
        %p728 = pneg %p157
      $region58: #{deconv_bottleneck.4} parent=51 // pred_check_branch
        %730 = sbr.rel (%p728) target = $region60
      $region59: #{deconv_bottleneck.4} parent=51 // pred_region
        %p731 = scmp.lt.s32.totalorder %s19, 1
        %s732 = scalar_select %p731, %s19, 1
        %s733 = smul.addr %s732, 8
        %s734 = scalar_lea.vmem %s5, %s733
      $region60: #{deconv_bottleneck.4} parent=51 // pred_fallthru
        _
      // Predicated region
      $region61: #{deconv_bottleneck.4} parent=51 // pred_check
        %p735 = pneg %p183
      $region62: #{deconv_bottleneck.4} parent=51 // pred_check_branch
        %737 = sbr.rel (%p735) target = $region64
      $region63: #{deconv_bottleneck.4} parent=51 // pred_region
        %p738 = scmp.lt.s32.totalorder %s19, 1
        %s739 = scalar_select %p738, %s19, 1
        %s740 = smul.addr %s739, 8
        %s741 = scalar_lea.vmem %s6, %s740
      $region64: #{deconv_bottleneck.4} parent=51 // pred_fallthru
        _
    $region52: #{deconv_bottleneck.4} parent=5 // pred_fallthru
      _
  $region6: #{deconv_bottleneck.4} parent=0 // loop_footer
    %s17 = sadd.s32 1, %s13
  $region7: #{deconv_bottleneck.4} parent=0 // loop_footer_branch
    %12 = sbr.rel target = $region3
  $region8: #{deconv_bottleneck.4} parent=0 // loop_exit
    _

// kernel: deconv_bottleneck.5
$region0: #{deconv_bottleneck.5}
  #allocation0 [shape = 'u32[]', space=smem, size = 0x4, offset = 0x4, fixed_abs, tag = 'smem constant byte address 0x4 - core index']
  #allocation1 [shape = 'u32[144,128]{1,0:T(1,128)}', space=vmem, size = 0x12000, scoped, tag = 'internal scratch']
  #allocation2 [shape = 'f32[18,18,128]{2,1,0:T(8,128)}', space=vmem, size = 0x36000, scoped, tag = 'scratch operand']
  #allocation3 [shape = 'f32[256,128]{1,0:T(8,128)}', space=vmem, size = 0x20000, scoped, tag = 'scratch operand']
  %s0 = inlined_call_operand.vmem [shape: f32[2,16,16,128], index: 0, kind: input, shape index: {}]
  %s1 = inlined_call_operand.vmem [shape: bf16[9,128,128], index: 1, kind: input, shape index: {}]
  %s2 = inlined_call_operand.vmem [shape: f32[1,128], index: 2, kind: input, shape index: {}]
  %s3 = inlined_call_operand.vmem [shape: f32[1,128], index: 3, kind: input, shape index: {}]
  %s4 = inlined_call_operand.vmem [shape: f32[2,16,16,128], index: 4, kind: output, shape index: {0}]
  %s5 = inlined_call_operand.vmem [shape: f32[2,8,128], index: 5, kind: output, shape index: {1}]
  %s6 = inlined_call_operand.vmem [shape: f32[2,8,128], index: 6, kind: output, shape index: {2}]
  %7 = xla_tuple %s4, %s5, %s6
  %s8 = sld [smem:[#allocation0]]
  $region65: #{deconv_bottleneck.5} parent=0
    _
  %s10 = ssub.s32 1, %s8
  %s11 = scalar_select 0, %s10, %s8
  loop: start=0, step=1, limit=4
  $region2: #{deconv_bottleneck.5} parent=0 // loop_pre_header
    _
  $region3: #{deconv_bottleneck.5} parent=0 // loop_header
    %s13 = sphi 0, %s17
    %p14 = scmp.ge.s32.totalorder %s13, 4
    %s23 = sphi 0, %s25
    %s26 = sphi 0, %s23
    %s27 = sphi 0, %s26
    %s43 = sphi 0, %s27
    %s47 = sphi 0, %s47
    %s49 = sphi 0, %s47
    %s50 = sphi 0, %s49
    %s64 = sphi 0, %s50
    %s68 = sphi 0, %s68
    %s70 = sphi 0, %s68
    %s71 = sphi 0, %s70
    %s85 = sphi 0, %s71
    %s89 = sphi 0, %s89
    %s91 = sphi 0, %s89
    %s92 = sphi 0, %s91
    %s106 = sphi 0, %s92
    %s112 = sphi 0, %s114
    %s115 = sphi 0, %s112
    %s116 = sphi 0, %s115
    %s132 = sphi 0, %s116
    %s138 = sphi 0, %s140
    %s141 = sphi 0, %s138
    %s142 = sphi 0, %s141
    %s158 = sphi 0, %s142
    %s164 = sphi 0, %s166
    %s167 = sphi 0, %s164
    %s168 = sphi 0, %s167
    %s184 = sphi 0, %s168
  $region4: #{deconv_bottleneck.5} parent=0 // loop_header_branch
    %16 = sbr.rel (%p14) target = $region8
  $region5: #{deconv_bottleneck.5} parent=0 // loop_body
    %s18 = ssub.s32 %s13, 1
    %s19 = ssub.s32 %s13, 2
    %s20 = sadd.s32 %s13, 1
    %s21 = ssub.s32 %s13, %s20
    %p22 = scmp.eq.s32.totalorder %s21, 0
    %s24 = sadd.s32 %s23, 1
    %s25 = scalar_select %p22, %s23, %s24
    %p28 = pneg %p22
    %p29 = scmp.eq.s32.totalorder %s13, 1
    %p30 = por %p28, %p29
    %p31 = scmp.ne.s32.totalorder %s23, %s26
    %p32 = scmp.eq.s32.totalorder %s13, 0
    %p33 = por %p31, %p32
    %p34 = scmp.ne.s32.totalorder %s23, %s26
    %p35 = scmp.eq.s32.totalorder %s18, 1
    %p36 = por %p34, %p35
    %p37 = scmp.ne.s32.totalorder %s26, %s27
    %p38 = scmp.eq.s32.totalorder %s18, 0
    %p39 = por %p37, %p38
    %p40 = scmp.ne.s32.totalorder %s26, %s27
    %p41 = scmp.eq.s32.totalorder %s19, 1
    %p42 = por %p40, %p41
    %p44 = scmp.ne.s32.totalorder %s27, %s43
    %p45 = scmp.eq.s32.totalorder %s19, 0
    %p46 = por %p44, %p45
    %s48 = sadd.s32 %s47, 1
    %p51 = scmp.eq.s32.totalorder %s13, 1
    %p52 = scmp.ne.s32.totalorder %s47, %s49
    %p53 = scmp.eq.s32.totalorder %s13, 0
    %p54 = por %p52, %p53
    %p55 = scmp.ne.s32.totalorder %s47, %s49
    %p56 = scmp.eq.s32.totalorder %s18, 1
    %p57 = por %p55, %p56
    %p58 = scmp.ne.s32.totalorder %s49, %s50
    %p59 = scmp.eq.s32.totalorder %s18, 0
    %p60 = por %p58, %p59
    %p61 = scmp.ne.s32.totalorder %s49, %s50
    %p62 = scmp.eq.s32.totalorder %s19, 1
    %p63 = por %p61, %p62
    %p65 = scmp.ne.s32.totalorder %s50, %s64
    %p66 = scmp.eq.s32.totalorder %s19, 0
    %p67 = por %p65, %p66
    %s69 = sadd.s32 %s68, 1
    %p72 = scmp.eq.s32.totalorder %s13, 1
    %p73 = scmp.ne.s32.totalorder %s68, %s70
    %p74 = scmp.eq.s32.totalorder %s13, 0
    %p75 = por %p73, %p74
    %p76 = scmp.ne.s32.totalorder %s68, %s70
    %p77 = scmp.eq.s32.totalorder %s18, 1
    %p78 = por %p76, %p77
    %p79 = scmp.ne.s32.totalorder %s70, %s71
    %p80 = scmp.eq.s32.totalorder %s18, 0
    %p81 = por %p79, %p80
    %p82 = scmp.ne.s32.totalorder %s70, %s71
    %p83 = scmp.eq.s32.totalorder %s19, 1
    %p84 = por %p82, %p83
    %p86 = scmp.ne.s32.totalorder %s71, %s85
    %p87 = scmp.eq.s32.totalorder %s19, 0
    %p88 = por %p86, %p87
    %s90 = sadd.s32 %s89, 1
    %p93 = scmp.eq.s32.totalorder %s13, 1
    %p94 = scmp.ne.s32.totalorder %s89, %s91
    %p95 = scmp.eq.s32.totalorder %s13, 0
    %p96 = por %p94, %p95
    %p97 = scmp.ne.s32.totalorder %s89, %s91
    %p98 = scmp.eq.s32.totalorder %s18, 1
    %p99 = por %p97, %p98
    %p100 = scmp.ne.s32.totalorder %s91, %s92
    %p101 = scmp.eq.s32.totalorder %s18, 0
    %p102 = por %p100, %p101
    %p103 = scmp.ne.s32.totalorder %s91, %s92
    %p104 = scmp.eq.s32.totalorder %s19, 1
    %p105 = por %p103, %p104
    %p107 = scmp.ne.s32.totalorder %s92, %s106
    %p108 = scmp.eq.s32.totalorder %s19, 0
    %p109 = por %p107, %p108
    %s110 = ssub.s32 %s13, %s20
    %p111 = scmp.eq.s32.totalorder %s110, 0
    %s113 = sadd.s32 %s112, 1
    %s114 = scalar_select %p111, %s112, %s113
    %p117 = pneg %p111
    %p118 = scmp.eq.s32.totalorder %s13, 1
    %p119 = por %p117, %p118
    %p120 = scmp.ne.s32.totalorder %s112, %s115
    %p121 = scmp.eq.s32.totalorder %s13, 0
    %p122 = por %p120, %p121
    %p123 = scmp.ne.s32.totalorder %s112, %s115
    %p124 = scmp.eq.s32.totalorder %s18, 1
    %p125 = por %p123, %p124
    %p126 = scmp.ne.s32.totalorder %s115, %s116
    %p127 = scmp.eq.s32.totalorder %s18, 0
    %p128 = por %p126, %p127
    %p129 = scmp.ne.s32.totalorder %s115, %s116
    %p130 = scmp.eq.s32.totalorder %s19, 1
    %p131 = por %p129, %p130
    %p133 = scmp.ne.s32.totalorder %s116, %s132
    %p134 = scmp.eq.s32.totalorder %s19, 0
    %p135 = por %p133, %p134
    %s136 = ssub.s32 %s13, %s20
    %p137 = scmp.eq.s32.totalorder %s136, 0
    %s139 = sadd.s32 %s138, 1
    %s140 = scalar_select %p137, %s138, %s139
    %p143 = pneg %p137
    %p144 = scmp.eq.s32.totalorder %s13, 1
    %p145 = por %p143, %p144
    %p146 = scmp.ne.s32.totalorder %s138, %s141
    %p147 = scmp.eq.s32.totalorder %s13, 0
    %p148 = por %p146, %p147
    %p149 = scmp.ne.s32.totalorder %s138, %s141
    %p150 = scmp.eq.s32.totalorder %s18, 1
    %p151 = por %p149, %p150
    %p152 = scmp.ne.s32.totalorder %s141, %s142
    %p153 = scmp.eq.s32.totalorder %s18, 0
    %p154 = por %p152, %p153
    %p155 = scmp.ne.s32.totalorder %s141, %s142
    %p156 = scmp.eq.s32.totalorder %s19, 1
    %p157 = por %p155, %p156
    %p159 = scmp.ne.s32.totalorder %s142, %s158
    %p160 = scmp.eq.s32.totalorder %s19, 0
    %p161 = por %p159, %p160
    %s162 = ssub.s32 %s13, %s20
    %p163 = scmp.eq.s32.totalorder %s162, 0
    %s165 = sadd.s32 %s164, 1
    %s166 = scalar_select %p163, %s164, %s165
    %p169 = pneg %p163
    %p170 = scmp.eq.s32.totalorder %s13, 1
    %p171 = por %p169, %p170
    %p172 = scmp.ne.s32.totalorder %s164, %s167
    %p173 = scmp.eq.s32.totalorder %s13, 0
    %p174 = por %p172, %p173
    %p175 = scmp.ne.s32.totalorder %s164, %s167
    %p176 = scmp.eq.s32.totalorder %s18, 1
    %p177 = por %p175, %p176
    %p178 = scmp.ne.s32.totalorder %s167, %s168
    %p179 = scmp.eq.s32.totalorder %s18, 0
    %p180 = por %p178, %p179
    %p181 = scmp.ne.s32.totalorder %s167, %s168
    %p182 = scmp.eq.s32.totalorder %s19, 1
    %p183 = por %p181, %p182
    %p185 = scmp.ne.s32.totalorder %s168, %s184
    %p186 = scmp.eq.s32.totalorder %s19, 0
    %p187 = por %p185, %p186
    %p188 = scmp.le.s32.totalorder 1, %s13
    %p189 = scmp.lt.s32.totalorder %s13, 3
    %p190 = pnand %p188, %p189
    %p191 = pneg %p190
    // Predicated region
    $region9: #{deconv_bottleneck.5} parent=5 // pred_check
      _
    $region10: #{deconv_bottleneck.5} parent=5 // pred_check_branch
      %193 = sbr.rel (%p190) target = $region12
    $region11: #{deconv_bottleneck.5} parent=5 // pred_region
      %s194 = ssub.s32 %s13, 1
      // Predicated region
      $region13: #{deconv_bottleneck.5} parent=11 // pred_check
        %p195 = pneg %p60
      $region14: #{deconv_bottleneck.5} parent=11 // pred_check_branch
        %197 = sbr.rel (%p195) target = $region16
      $region15: #{deconv_bottleneck.5} parent=11 // pred_region
        _
      $region16: #{deconv_bottleneck.5} parent=11 // pred_fallthru
        _
      // Predicated region
      $region17: #{deconv_bottleneck.5} parent=11 // pred_check
        %p198 = pneg %p81
      $region18: #{deconv_bottleneck.5} parent=11 // pred_check_branch
        %200 = sbr.rel (%p198) target = $region20
      $region19: #{deconv_bottleneck.5} parent=11 // pred_region
        _
      $region20: #{deconv_bottleneck.5} parent=11 // pred_fallthru
        _
      // Predicated region
      $region21: #{deconv_bottleneck.5} parent=11 // pred_check
        %p201 = pneg %p102
      $region22: #{deconv_bottleneck.5} parent=11 // pred_check_branch
        %203 = sbr.rel (%p201) target = $region24
      $region23: #{deconv_bottleneck.5} parent=11 // pred_region
        _
      $region24: #{deconv_bottleneck.5} parent=11 // pred_fallthru
        _
    $region12: #{deconv_bottleneck.5} parent=5 // pred_fallthru
      _
    %p204 = scmp.lt.s32.totalorder %s13, 2
    // Predicated region
    $region25: #{deconv_bottleneck.5} parent=5 // pred_check
      %p205 = pneg %p204
    $region26: #{deconv_bottleneck.5} parent=5 // pred_check_branch
      %207 = sbr.rel (%p205) target = $region28
    $region27: #{deconv_bottleneck.5} parent=5 // pred_region
      // Predicated region
      $region29: #{deconv_bottleneck.5} parent=27 // pred_check
        %p208 = pneg %p33
      $region30: #{deconv_bottleneck.5} parent=27 // pred_check_branch
        %210 = sbr.rel (%p208) target = $region32
      $region31: #{deconv_bottleneck.5} parent=27 // pred_region
        %p211 = scmp.lt.s32.totalorder %s13, 1
        %s212 = scalar_select %p211, %s13, 1
        %s213 = smul.addr %s212, 32
        %s214 = smul.addr %s213, 8
        %s215 = scalar_lea.vmem %s0, %s214
      $region32: #{deconv_bottleneck.5} parent=27 // pred_fallthru
        _
    $region28: #{deconv_bottleneck.5} parent=5 // pred_fallthru
      _
    %p216 = scmp.le.s32.totalorder 1, %s13
    %p217 = scmp.lt.s32.totalorder %s13, 3
    %p218 = pnand %p216, %p217
    %p219 = pneg %p218
    // Predicated region
    $region33: #{deconv_bottleneck.5} parent=5 // pred_check
      _
    $region34: #{deconv_bottleneck.5} parent=5 // pred_check_branch
      %221 = sbr.rel (%p218) target = $region36
    $region35: #{deconv_bottleneck.5} parent=5 // pred_region
      %s222 = ssub.s32 %s13, 1
      %p223 = scmp.lt.s32.totalorder %s18, 1
      %s224 = scalar_select %p223, %s18, 1
      %s225 = smul.addr %s224, 32
      %s226 = smul.addr %s225, 8
      %s227 = scalar_lea.vmem %s0, %s226
      %p228 = pneg %p39
      %p229 = pneg %p36
      %p230 = pneg %p60
      %p231 = pneg %p57
      %p232 = pneg %p81
      %p233 = pneg %p78
      %p234 = pneg %p102
      %p235 = pneg %p99
      %p236 = pneg %p128
      %p237 = pneg %p125
      %p238 = scmp.lt.s32.totalorder %s18, 1
      %s239 = scalar_select %p238, %s18, 1
      %s240 = smul.addr %s239, 32
      %s241 = smul.addr %s240, 8
      %s242 = scalar_lea.vmem %s4, %s241
      %p243 = pneg %p154
      %p244 = pneg %p151
      %p245 = scmp.lt.s32.totalorder %s18, 1
      %s246 = scalar_select %p245, %s18, 1
      %s247 = smul.addr %s246, 8
      %s248 = scalar_lea.vmem %s5, %s247
      %p249 = pneg %p180
      %p250 = pneg %p177
      %p251 = scmp.lt.s32.totalorder %s18, 1
      %s252 = scalar_select %p251, %s18, 1
      %s253 = smul.addr %s252, 8
      %s254 = scalar_lea.vmem %s6, %s253
      %p255 = scmp.lt.s32.totalorder %s18, 1
      %s256 = scalar_select %p255, %s18, 1
      %s257 = smul.addr %s256, 32
      %s258 = smul.addr %s257, 8
      %s259 = scalar_lea.vmem %s0, %s258
      %p260 = scmp.lt.s32.totalorder %s18, 1
      %s261 = scalar_select %p260, %s18, 1
      %s262 = smul.addr %s261, 32
      %s263 = smul.addr %s262, 8
      %s264 = scalar_lea.vmem %s4, %s263
      %p265 = scmp.lt.s32.totalorder %s18, 1
      %s266 = scalar_select %p265, %s18, 1
      %s267 = smul.addr %s266, 8
      %s268 = scalar_lea.vmem %s5, %s267
      %p269 = scmp.lt.s32.totalorder %s18, 1
      %s270 = scalar_select %p269, %s18, 1
      %s271 = smul.addr %s270, 8
      %s272 = scalar_lea.vmem %s6, %s271
      %274 = vst [vmem:[#allocation2] sm:$0xff] 0.0
      %275 = vst [vmem:[#allocation2 + $0x8] sm:$0xff] 0.0
      %276 = vst [vmem:[#allocation2 + $0x10] sm:$0x3] 0.0
      %s277 = scalar_lea.vmem [#allocation2], 408
      %278 = vst [vmem:[%s277] sm:$0xff] 0.0
      %279 = vst [vmem:[%s277 + $0x8] sm:$0xff] 0.0
      %280 = vst [vmem:[%s277 + $0x10] sm:$0x3] 0.0
      %s281 = scalar_lea.vmem [#allocation2], 24
      %282 = vst [vmem:[%s281] sm:$0x1] 0.0
      %283 = vst [vmem:[%s281 + $0x18] sm:$0x1] 0.0
      %284 = vst [vmem:[%s281 + $0x30] sm:$0x1] 0.0
      %285 = vst [vmem:[%s281 + $0x48] sm:$0x1] 0.0
      %286 = vst [vmem:[%s281 + $0x60] sm:$0x1] 0.0
      %287 = vst [vmem:[%s281 + $0x78] sm:$0x1] 0.0
      %288 = vst [vmem:[%s281 + $0x90] sm:$0x1] 0.0
      %289 = vst [vmem:[%s281 + $0xa8] sm:$0x1] 0.0
      %290 = vst [vmem:[%s281 + $0xc0] sm:$0x1] 0.0
      %291 = vst [vmem:[%s281 + $0xd8] sm:$0x1] 0.0
      %292 = vst [vmem:[%s281 + $0xf0] sm:$0x1] 0.0
      %293 = vst [vmem:[%s281 + $0x108] sm:$0x1] 0.0
      %294 = vst [vmem:[%s281 + $0x120] sm:$0x1] 0.0
      %295 = vst [vmem:[%s281 + $0x138] sm:$0x1] 0.0
      %296 = vst [vmem:[%s281 + $0x150] sm:$0x1] 0.0
      %297 = vst [vmem:[%s281 + $0x168] sm:$0x1] 0.0
      %298 = vst [vmem:[%s281 + $0x11] sm:$0x1] 0.0
      %299 = vst [vmem:[%s281 + $0x29] sm:$0x1] 0.0
      %300 = vst [vmem:[%s281 + $0x41] sm:$0x1] 0.0
      %301 = vst [vmem:[%s281 + $0x59] sm:$0x1] 0.0
      %302 = vst [vmem:[%s281 + $0x71] sm:$0x1] 0.0
      %303 = vst [vmem:[%s281 + $0x89] sm:$0x1] 0.0
      %304 = vst [vmem:[%s281 + $0xa1] sm:$0x1] 0.0
      %305 = vst [vmem:[%s281 + $0xb9] sm:$0x1] 0.0
      %306 = vst [vmem:[%s281 + $0xd1] sm:$0x1] 0.0
      %307 = vst [vmem:[%s281 + $0xe9] sm:$0x1] 0.0
      %308 = vst [vmem:[%s281 + $0x101] sm:$0x1] 0.0
      %309 = vst [vmem:[%s281 + $0x119] sm:$0x1] 0.0
      %310 = vst [vmem:[%s281 + $0x131] sm:$0x1] 0.0
      %311 = vst [vmem:[%s281 + $0x149] sm:$0x1] 0.0
      %312 = vst [vmem:[%s281 + $0x161] sm:$0x1] 0.0
      %313 = vst [vmem:[%s281 + $0x179] sm:$0x1] 0.0
      %v314 = vld [vmem:[%s2] sm:$0x1]
      %v315 = vld [vmem:[%s3] sm:$0x1]
      %v316 = vld [vmem:[%s259] sm:$0xff]
      %v317 = vld [vmem:[%s259 + $0x8] sm:$0xff]
      %v318 = vld [vmem:[%s259 + $0x10] sm:$0xff]
      %v319 = vld [vmem:[%s259 + $0x18] sm:$0xff]
      %v320 = vld [vmem:[%s259 + $0x20] sm:$0xff]
      %v321 = vld [vmem:[%s259 + $0x28] sm:$0xff]
      %v322 = vld [vmem:[%s259 + $0x30] sm:$0xff]
      %v323 = vld [vmem:[%s259 + $0x38] sm:$0xff]
      %v324 = vld [vmem:[%s259 + $0x40] sm:$0xff]
      %v325 = vld [vmem:[%s259 + $0x48] sm:$0xff]
      %v326 = vld [vmem:[%s259 + $0x50] sm:$0xff]
      %v327 = vld [vmem:[%s259 + $0x58] sm:$0xff]
      %v328 = vld [vmem:[%s259 + $0x60] sm:$0xff]
      %v329 = vld [vmem:[%s259 + $0x68] sm:$0xff]
      %v330 = vld [vmem:[%s259 + $0x70] sm:$0xff]
      %v331 = vld [vmem:[%s259 + $0x78] sm:$0xff]
      %v332 = vld [vmem:[%s259 + $0x80] sm:$0xff]
      %v333 = vld [vmem:[%s259 + $0x88] sm:$0xff]
      %v334 = vld [vmem:[%s259 + $0x90] sm:$0xff]
      %v335 = vld [vmem:[%s259 + $0x98] sm:$0xff]
      %v336 = vld [vmem:[%s259 + $0xa0] sm:$0xff]
      %v337 = vld [vmem:[%s259 + $0xa8] sm:$0xff]
      %v338 = vld [vmem:[%s259 + $0xb0] sm:$0xff]
      %v339 = vld [vmem:[%s259 + $0xb8] sm:$0xff]
      %v340 = vld [vmem:[%s259 + $0xc0] sm:$0xff]
      %v341 = vld [vmem:[%s259 + $0xc8] sm:$0xff]
      %v342 = vld [vmem:[%s259 + $0xd0] sm:$0xff]
      %v343 = vld [vmem:[%s259 + $0xd8] sm:$0xff]
      %v344 = vld [vmem:[%s259 + $0xe0] sm:$0xff]
      %v345 = vld [vmem:[%s259 + $0xe8] sm:$0xff]
      %v346 = vld [vmem:[%s259 + $0xf0] sm:$0xff]
      %v347 = vld [vmem:[%s259 + $0xf8] sm:$0xff]
      %v349 = vlaneseq
      %v350 = vshrl.u32 %v349, 7
      %v351 = vsub.s32 0, %v350
      %v352 = vrot.slane %v314, %v351
      %v354 = vmul.f32 %v316, %v352
      %v355 = vmul.f32 %v317, %v352
      %v356 = vmul.f32 %v318, %v352
      %v357 = vmul.f32 %v319, %v352
      %v358 = vmul.f32 %v320, %v352
      %v359 = vmul.f32 %v321, %v352
      %v360 = vmul.f32 %v322, %v352
      %v361 = vmul.f32 %v323, %v352
      %v362 = vmul.f32 %v324, %v352
      %v363 = vmul.f32 %v325, %v352
      %v364 = vmul.f32 %v326, %v352
      %v365 = vmul.f32 %v327, %v352
      %v366 = vmul.f32 %v328, %v352
      %v367 = vmul.f32 %v329, %v352
      %v368 = vmul.f32 %v330, %v352
      %v369 = vmul.f32 %v331, %v352
      %v370 = vmul.f32 %v332, %v352
      %v371 = vmul.f32 %v333, %v352
      %v372 = vmul.f32 %v334, %v352
      %v373 = vmul.f32 %v335, %v352
      %v374 = vmul.f32 %v336, %v352
      %v375 = vmul.f32 %v337, %v352
      %v376 = vmul.f32 %v338, %v352
      %v377 = vmul.f32 %v339, %v352
      %v378 = vmul.f32 %v340, %v352
      %v379 = vmul.f32 %v341, %v352
      %v380 = vmul.f32 %v342, %v352
      %v381 = vmul.f32 %v343, %v352
      %v382 = vmul.f32 %v344, %v352
      %v383 = vmul.f32 %v345, %v352
      %v384 = vmul.f32 %v346, %v352
      %v385 = vmul.f32 %v347, %v352
      %v387 = vlaneseq
      %v388 = vshrl.u32 %v387, 7
      %v389 = vsub.s32 0, %v388
      %v390 = vrot.slane %v315, %v389
      %v392 = vadd.f32 %v354, %v390
      %v393 = vadd.f32 %v355, %v390
      %v394 = vadd.f32 %v356, %v390
      %v395 = vadd.f32 %v357, %v390
      %v396 = vadd.f32 %v358, %v390
      %v397 = vadd.f32 %v359, %v390
      %v398 = vadd.f32 %v360, %v390
      %v399 = vadd.f32 %v361, %v390
      %v400 = vadd.f32 %v362, %v390
      %v401 = vadd.f32 %v363, %v390
      %v402 = vadd.f32 %v364, %v390
      %v403 = vadd.f32 %v365, %v390
      %v404 = vadd.f32 %v366, %v390
      %v405 = vadd.f32 %v367, %v390
      %v406 = vadd.f32 %v368, %v390
      %v407 = vadd.f32 %v369, %v390
      %v408 = vadd.f32 %v370, %v390
      %v409 = vadd.f32 %v371, %v390
      %v410 = vadd.f32 %v372, %v390
      %v411 = vadd.f32 %v373, %v390
      %v412 = vadd.f32 %v374, %v390
      %v413 = vadd.f32 %v375, %v390
      %v414 = vadd.f32 %v376, %v390
      %v415 = vadd.f32 %v377, %v390
      %v416 = vadd.f32 %v378, %v390
      %v417 = vadd.f32 %v379, %v390
      %v418 = vadd.f32 %v380, %v390
      %v419 = vadd.f32 %v381, %v390
      %v420 = vadd.f32 %v382, %v390
      %v421 = vadd.f32 %v383, %v390
      %v422 = vadd.f32 %v384, %v390
      %v423 = vadd.f32 %v385, %v390
      %v424 = vmax.f32 %v392, 0.0
      %v425 = vmax.f32 %v393, 0.0
      %v426 = vmax.f32 %v394, 0.0
      %v427 = vmax.f32 %v395, 0.0
      %v428 = vmax.f32 %v396, 0.0
      %v429 = vmax.f32 %v397, 0.0
      %v430 = vmax.f32 %v398, 0.0
      %v431 = vmax.f32 %v399, 0.0
      %v432 = vmax.f32 %v400, 0.0
      %v433 = vmax.f32 %v401, 0.0
      %v434 = vmax.f32 %v402, 0.0
      %v435 = vmax.f32 %v403, 0.0
      %v436 = vmax.f32 %v404, 0.0
      %v437 = vmax.f32 %v405, 0.0
      %v438 = vmax.f32 %v406, 0.0
      %v439 = vmax.f32 %v407, 0.0
      %v440 = vmax.f32 %v408, 0.0
      %v441 = vmax.f32 %v409, 0.0
      %v442 = vmax.f32 %v410, 0.0
      %v443 = vmax.f32 %v411, 0.0
      %v444 = vmax.f32 %v412, 0.0
      %v445 = vmax.f32 %v413, 0.0
      %v446 = vmax.f32 %v414, 0.0
      %v447 = vmax.f32 %v415, 0.0
      %v448 = vmax.f32 %v416, 0.0
      %v449 = vmax.f32 %v417, 0.0
      %v450 = vmax.f32 %v418, 0.0
      %v451 = vmax.f32 %v419, 0.0
      %v452 = vmax.f32 %v420, 0.0
      %v453 = vmax.f32 %v421, 0.0
      %v454 = vmax.f32 %v422, 0.0
      %v455 = vmax.f32 %v423, 0.0
      %456 = vst [vmem:[%s281 + $0x1] sm:$0xff] %v424
      %457 = vst [vmem:[%s281 + $0x9] sm:$0xff] %v425
      %458 = vst [vmem:[%s281 + $0x19] sm:$0xff] %v426
      %459 = vst [vmem:[%s281 + $0x21] sm:$0xff] %v427
      %460 = vst [vmem:[%s281 + $0x31] sm:$0xff] %v428
      %461 = vst [vmem:[%s281 + $0x39] sm:$0xff] %v429
      %462 = vst [vmem:[%s281 + $0x49] sm:$0xff] %v430
      %463 = vst [vmem:[%s281 + $0x51] sm:$0xff] %v431
      %464 = vst [vmem:[%s281 + $0x61] sm:$0xff] %v432
      %465 = vst [vmem:[%s281 + $0x69] sm:$0xff] %v433
      %466 = vst [vmem:[%s281 + $0x79] sm:$0xff] %v434
      %467 = vst [vmem:[%s281 + $0x81] sm:$0xff] %v435
      %468 = vst [vmem:[%s281 + $0x91] sm:$0xff] %v436
      %469 = vst [vmem:[%s281 + $0x99] sm:$0xff] %v437
      %470 = vst [vmem:[%s281 + $0xa9] sm:$0xff] %v438
      %471 = vst [vmem:[%s281 + $0xb1] sm:$0xff] %v439
      %472 = vst [vmem:[%s281 + $0xc1] sm:$0xff] %v440
      %473 = vst [vmem:[%s281 + $0xc9] sm:$0xff] %v441
      %474 = vst [vmem:[%s281 + $0xd9] sm:$0xff] %v442
      %475 = vst [vmem:[%s281 + $0xe1] sm:$0xff] %v443
      %476 = vst [vmem:[%s281 + $0xf1] sm:$0xff] %v444
      %477 = vst [vmem:[%s281 + $0xf9] sm:$0xff] %v445
      %478 = vst [vmem:[%s281 + $0x109] sm:$0xff] %v446
      %479 = vst [vmem:[%s281 + $0x111] sm:$0xff] %v447
      %480 = vst [vmem:[%s281 + $0x121] sm:$0xff] %v448
      %481 = vst [vmem:[%s281 + $0x129] sm:$0xff] %v449
      %482 = vst [vmem:[%s281 + $0x139] sm:$0xff] %v450
      %483 = vst [vmem:[%s281 + $0x141] sm:$0xff] %v451
      %484 = vst [vmem:[%s281 + $0x151] sm:$0xff] %v452
      %485 = vst [vmem:[%s281 + $0x159] sm:$0xff] %v453
      %486 = vst [vmem:[%s281 + $0x169] sm:$0xff] %v454
      %487 = vst [vmem:[%s281 + $0x171] sm:$0xff] %v455
      %v488 = vld [vmem:[#allocation2] sm:$0xff]
      %v489 = vld [vmem:[#allocation2 + $0x8] sm:$0xff]
      %v490 = vld [vmem:[#allocation2 + $0x18] sm:$0xff]
      %v491 = vld [vmem:[#allocation2 + $0x20] sm:$0xff]
      %v492 = vld [vmem:[#allocation2 + $0x30] sm:$0xff]
      %v493 = vld [vmem:[#allocation2 + $0x38] sm:$0xff]
      %v494 = vld [vmem:[#allocation2 + $0x48] sm:$0xff]
      %v495 = vld [vmem:[#allocation2 + $0x50] sm:$0xff]
      %v496 = vld [vmem:[#allocation2 + $0x60] sm:$0xff]
      %v497 = vld [vmem:[#allocation2 + $0x68] sm:$0xff]
      %v498 = vld [vmem:[#allocation2 + $0x78] sm:$0xff]
      %v499 = vld [vmem:[#allocation2 + $0x80] sm:$0xff]
      %v500 = vld [vmem:[#allocation2 + $0x90] sm:$0xff]
      %v501 = vld [vmem:[#allocation2 + $0x98] sm:$0xff]
      %v502 = vld [vmem:[#allocation2 + $0xa8] sm:$0xff]
      %v503 = vld [vmem:[#allocation2 + $0xb0] sm:$0xff]
      %v504 = vld [vmem:[#allocation2 + $0xc0] sm:$0xff]
      %v505 = vld [vmem:[#allocation2 + $0xc8] sm:$0xff]
      %v506 = vld [vmem:[#allocation2 + $0xd8] sm:$0xff]
      %v507 = vld [vmem:[#allocation2 + $0xe0] sm:$0xff]
      %v508 = vld [vmem:[#allocation2 + $0xf0] sm:$0xff]
      %v509 = vld [vmem:[#allocation2 + $0xf8] sm:$0xff]
      %v510 = vld [vmem:[#allocation2 + $0x108] sm:$0xff]
      %v511 = vld [vmem:[#allocation2 + $0x110] sm:$0xff]
      %v512 = vld [vmem:[#allocation2 + $0x120] sm:$0xff]
      %v513 = vld [vmem:[#allocation2 + $0x128] sm:$0xff]
      %v514 = vld [vmem:[#allocation2 + $0x138] sm:$0xff]
      %v515 = vld [vmem:[#allocation2 + $0x140] sm:$0xff]
      %v516 = vld [vmem:[#allocation2 + $0x150] sm:$0xff]
      %v517 = vld [vmem:[#allocation2 + $0x158] sm:$0xff]
      %v518 = vld [vmem:[#allocation2 + $0x168] sm:$0xff]
      %v519 = vld [vmem:[#allocation2 + $0x170] sm:$0xff]
      %v520 = vpack.c.bf16 %v489, %v488
      %v521 = vpack.c.bf16 %v491, %v490
      %v522 = vpack.c.bf16 %v493, %v492
      %v523 = vpack.c.bf16 %v495, %v494
      %v524 = vpack.c.bf16 %v497, %v496
      %v525 = vpack.c.bf16 %v499, %v498
      %v526 = vpack.c.bf16 %v501, %v500
      %v527 = vpack.c.bf16 %v503, %v502
      %v528 = vpack.c.bf16 %v505, %v504
      %v529 = vpack.c.bf16 %v507, %v506
      %v530 = vpack.c.bf16 %v509, %v508
      %v531 = vpack.c.bf16 %v511, %v510
      %v532 = vpack.c.bf16 %v513, %v512
      %v533 = vpack.c.bf16 %v515, %v514
      %v534 = vpack.c.bf16 %v517, %v516
      %v535 = vpack.c.bf16 %v519, %v518
      %v536 = vld [vmem:[%s1] sm:$0xf]
      %v537 = vld [vmem:[%s1 + $0x4] sm:$0xf]
      %v538 = vld [vmem:[%s1 + $0x8] sm:$0xf]
      %v539 = vld [vmem:[%s1 + $0xc] sm:$0xf]
      %v540 = vld [vmem:[%s1 + $0x10] sm:$0xf]
      %v541 = vld [vmem:[%s1 + $0x14] sm:$0xf]
      %v542 = vld [vmem:[%s1 + $0x18] sm:$0xf]
      %v543 = vld [vmem:[%s1 + $0x1c] sm:$0xf]
      %v544 = vld [vmem:[%s1 + $0x20] sm:$0xf]
      %v545 = vld [vmem:[%s1 + $0x24] sm:$0xf]
      %v546 = vld [vmem:[%s1 + $0x28] sm:$0xf]
      %v547 = vld [vmem:[%s1 + $0x2c] sm:$0xf]
      %v548 = vld [vmem:[%s1 + $0x30] sm:$0xf]
      %v549 = vld [vmem:[%s1 + $0x34] sm:$0xf]
      %v550 = vld [vmem:[%s1 + $0x38] sm:$0xf]
      %v551 = vld [vmem:[%s1 + $0x3c] sm:$0xf]
      %v568 = vunpack.c.l.b16 %v536
      %v569 = vunpack.c.l.b16 %v537
      %v570 = vunpack.c.l.b16 %v538
      %v571 = vunpack.c.l.b16 %v539
      %v572 = vunpack.c.l.b16 %v540
      %v573 = vunpack.c.l.b16 %v541
      %v574 = vunpack.c.l.b16 %v542
      %v575 = vunpack.c.l.b16 %v543
      %v576 = vunpack.c.l.b16 %v544
      %v577 = vunpack.c.l.b16 %v545
      %v578 = vunpack.c.l.b16 %v546
      %v579 = vunpack.c.l.b16 %v547
      %v580 = vunpack.c.l.b16 %v548
      %v581 = vunpack.c.l.b16 %v549
      %v582 = vunpack.c.l.b16 %v550
      %v583 = vunpack.c.l.b16 %v551
      %v584 = vpack.c.b16 %v569, %v568
      %v585 = vpack.c.b16 %v571, %v570
      %v586 = vpack.c.b16 %v573, %v572
      %v587 = vpack.c.b16 %v575, %v574
      %v588 = vpack.c.b16 %v577, %v576
      %v589 = vpack.c.b16 %v579, %v578
      %v590 = vpack.c.b16 %v581, %v580
      %v591 = vpack.c.b16 %v583, %v582
      %600 = vmatprep.subr.bf16.mxu0 0
      %601 = vmatpush1.bf16.msra.mxu0 %v591
      %602 = vmatprep.subr.bf16.mxu0 0
      %603 = vmatpush1.bf16.msra.mxu0 %v590
      %604 = vmatprep.subr.bf16.mxu0 0
      %605 = vmatpush1.bf16.msra.mxu0 %v589
      %606 = vmatprep.subr.bf16.mxu0 0
      %607 = vmatpush1.bf16.msra.mxu0 %v588
      %608 = vmatprep.subr.bf16.mxu0 0
      %609 = vmatpush1.bf16.msra.mxu0 %v587
      %610 = vmatprep.subr.bf16.mxu0 0
      %611 = vmatpush1.bf16.msra.mxu0 %v586
      %612 = vmatprep.subr.bf16.mxu0 0
      %613 = vmatpush1.bf16.msra.mxu0 %v585
      %614 = vmatprep.subr.bf16.mxu0 0
      %615 = vmatpush1.bf16.msra.mxu0 %v584
      %616 = vmatprep.subr.bf16.mxu0 0
      %617 = vmatpush2.bf16.msra.mxu0 0
      %618 = vmatprep.subr.bf16.mxu0 0
      %619 = vmatpush2.bf16.msra.mxu0 0
      %620 = vmatprep.subr.bf16.mxu0 0
      %621 = vmatpush2.bf16.msra.mxu0 0
      %622 = vmatprep.subr.bf16.mxu0 0
      %623 = vmatpush2.bf16.msra.mxu0 0
      %624 = vmatprep.subr.bf16.mxu0 0
      %625 = vmatpush2.bf16.msra.mxu0 0
      %626 = vmatprep.subr.bf16.mxu0 0
      %627 = vmatpush2.bf16.msra.mxu0 0
      %628 = vmatprep.subr.bf16.mxu0 0
      %629 = vmatpush2.bf16.msra.mxu0 0
      %630 = vmatprep.subr.bf16.mxu0 0
      %631 = vmatpush2.bf16.msra.mxu0 0
      %632 = vmatprep.mubr.bf16.mxu0 0
      %633 = vmatmul.mubr.bf16.gmra.mxu0 %v520
      %v634 = vpop.f32.mrf.mxu0
      %v635 = vadd.f32 0.0, %v634
      %v636 = vpop.f32.mrf.mxu0
      %v637 = vpop.f32.mrf.mxu0
      %v638 = vadd.f32 0.0, %v637
      %v639 = vpop.f32.mrf.mxu0
      %640 = vmatprep.mubr.bf16.mxu0 0
      %641 = vmatmul.mubr.bf16.gmra.mxu0 %v521
      %v642 = vpop.f32.mrf.mxu0
      %v643 = vadd.f32 0.0, %v642
      %v644 = vpop.f32.mrf.mxu0
      %v645 = vpop.f32.mrf.mxu0
      %v646 = vadd.f32 0.0, %v645
      %v647 = vpop.f32.mrf.mxu0
      %648 = vmatprep.mubr.bf16.mxu0 0
      %649 = vmatmul.mubr.bf16.gmra.mxu0 %v522
      %v650 = vpop.f32.mrf.mxu0
      %v651 = vadd.f32 0.0, %v650
      %v652 = vpop.f32.mrf.mxu0
      %v653 = vpop.f32.mrf.mxu0
      %v654 = vadd.f32 0.0, %v653
      %v655 = vpop.f32.mrf.mxu0
      %656 = vmatprep.mubr.bf16.mxu0 0
      %657 = vmatmul.mubr.bf16.gmra.mxu0 %v523
      %v658 = vpop.f32.mrf.mxu0
      %v659 = vadd.f32 0.0, %v658
      %v660 = vpop.f32.mrf.mxu0
      %v661 = vpop.f32.mrf.mxu0
      %v662 = vadd.f32 0.0, %v661
      %v663 = vpop.f32.mrf.mxu0
      %664 = vmatprep.mubr.bf16.mxu0 0
      %665 = vmatmul.mubr.bf16.gmra.mxu0 %v524
      %v666 = vpop.f32.mrf.mxu0
      %v667 = vadd.f32 0.0, %v666
      %v668 = vpop.f32.mrf.mxu0
      %v669 = vpop.f32.mrf.mxu0
      %v670 = vadd.f32 0.0, %v669
      %v671 = vpop.f32.mrf.mxu0
      %672 = vmatprep.mubr.bf16.mxu0 0
      %673 = vmatmul.mubr.bf16.gmra.mxu0 %v525
      %v674 = vpop.f32.mrf.mxu0
      %v675 = vadd.f32 0.0, %v674
      %v676 = vpop.f32.mrf.mxu0
      %v677 = vpop.f32.mrf.mxu0
      %v678 = vadd.f32 0.0, %v677
      %v679 = vpop.f32.mrf.mxu0
      %680 = vmatprep.mubr.bf16.mxu0 0
      %681 = vmatmul.mubr.bf16.gmra.mxu0 %v526
      %v682 = vpop.f32.mrf.mxu0
      %v683 = vadd.f32 0.0, %v682
      %v684 = vpop.f32.mrf.mxu0
      %v685 = vpop.f32.mrf.mxu0
      %v686 = vadd.f32 0.0, %v685
      %v687 = vpop.f32.mrf.mxu0
      %688 = vmatprep.mubr.bf16.mxu0 0
      %689 = vmatmul.mubr.bf16.gmra.mxu0 %v527
      %v690 = vpop.f32.mrf.mxu0
      %v691 = vadd.f32 0.0, %v690
      %v692 = vpop.f32.mrf.mxu0
      %v693 = vpop.f32.mrf.mxu0
      %v694 = vadd.f32 0.0, %v693
      %v695 = vpop.f32.mrf.mxu0
      %696 = vmatprep.mubr.bf16.mxu0 0
      %697 = vmatmul.mubr.bf16.gmra.mxu0 %v528
      %v698 = vpop.f32.mrf.mxu0
      %v699 = vadd.f32 0.0, %v698
      %v700 = vpop.f32.mrf.mxu0
      %v701 = vpop.f32.mrf.mxu0
      %v702 = vadd.f32 0.0, %v701
      %v703 = vpop.f32.mrf.mxu0
      %704 = vmatprep.mubr.bf16.mxu0 0
      %705 = vmatmul.mubr.bf16.gmra.mxu0 %v529
      %v706 = vpop.f32.mrf.mxu0
      %v707 = vadd.f32 0.0, %v706
      %v708 = vpop.f32.mrf.mxu0
      %v709 = vpop.f32.mrf.mxu0
      %v710 = vadd.f32 0.0, %v709
      %v711 = vpop.f32.mrf.mxu0
      %712 = vmatprep.mubr.bf16.mxu0 0
      %713 = vmatmul.mubr.bf16.gmra.mxu0 %v530
      %v714 = vpop.f32.mrf.mxu0
      %v715 = vadd.f32 0.0, %v714
      %v716 = vpop.f32.mrf.mxu0
      %v717 = vpop.f32.mrf.mxu0
      %v718 = vadd.f32 0.0, %v717
      %v719 = vpop.f32.mrf.mxu0
      %720 = vmatprep.mubr.bf16.mxu0 0
      %721 = vmatmul.mubr.bf16.gmra.mxu0 %v531
      %v722 = vpop.f32.mrf.mxu0
      %v723 = vadd.f32 0.0, %v722
      %v724 = vpop.f32.mrf.mxu0
      %v725 = vpop.f32.mrf.mxu0
      %v726 = vadd.f32 0.0, %v725
      %v727 = vpop.f32.mrf.mxu0
      %728 = vmatprep.mubr.bf16.mxu0 0
      %729 = vmatmul.mubr.bf16.gmra.mxu0 %v532
      %v730 = vpop.f32.mrf.mxu0
      %v731 = vadd.f32 0.0, %v730
      %v732 = vpop.f32.mrf.mxu0
      %v733 = vpop.f32.mrf.mxu0
      %v734 = vadd.f32 0.0, %v733
      %v735 = vpop.f32.mrf.mxu0
      %736 = vmatprep.mubr.bf16.mxu0 0
      %737 = vmatmul.mubr.bf16.gmra.mxu0 %v533
      %v738 = vpop.f32.mrf.mxu0
      %v739 = vadd.f32 0.0, %v738
      %v740 = vpop.f32.mrf.mxu0
      %v741 = vpop.f32.mrf.mxu0
      %v742 = vadd.f32 0.0, %v741
      %v743 = vpop.f32.mrf.mxu0
      %744 = vmatprep.mubr.bf16.mxu0 0
      %745 = vmatmul.mubr.bf16.gmra.mxu0 %v534
      %v746 = vpop.f32.mrf.mxu0
      %v747 = vadd.f32 0.0, %v746
      %v748 = vpop.f32.mrf.mxu0
      %v749 = vpop.f32.mrf.mxu0
      %v750 = vadd.f32 0.0, %v749
      %v751 = vpop.f32.mrf.mxu0
      %752 = vmatprep.mubr.bf16.mxu0 0
      %753 = vmatmul.mubr.bf16.gmra.mxu0 %v535
      %v754 = vpop.f32.mrf.mxu0
      %v755 = vadd.f32 0.0, %v754
      %v756 = vpop.f32.mrf.mxu0
      %v757 = vpop.f32.mrf.mxu0
      %v758 = vadd.f32 0.0, %v757
      %v759 = vpop.f32.mrf.mxu0
      %760 = vdwg.mxu0
      %761 = vst [vmem:[#allocation3] sm:$0xff] %v635
      %762 = vst [vmem:[#allocation3 + $0x8] sm:$0xff] %v638
      %763 = vst [vmem:[#allocation3 + $0x10] sm:$0xff] %v643
      %764 = vst [vmem:[#allocation3 + $0x18] sm:$0xff] %v646
      %765 = vst [vmem:[#allocation3 + $0x20] sm:$0xff] %v651
      %766 = vst [vmem:[#allocation3 + $0x28] sm:$0xff] %v654
      %767 = vst [vmem:[#allocation3 + $0x30] sm:$0xff] %v659
      %768 = vst [vmem:[#allocation3 + $0x38] sm:$0xff] %v662
      %769 = vst [vmem:[#allocation3 + $0x40] sm:$0xff] %v667
      %770 = vst [vmem:[#allocation3 + $0x48] sm:$0xff] %v670
      %771 = vst [vmem:[#allocation3 + $0x50] sm:$0xff] %v675
      %772 = vst [vmem:[#allocation3 + $0x58] sm:$0xff] %v678
      %773 = vst [vmem:[#allocation3 + $0x60] sm:$0xff] %v683
      %774 = vst [vmem:[#allocation3 + $0x68] sm:$0xff] %v686
      %775 = vst [vmem:[#allocation3 + $0x70] sm:$0xff] %v691
      %776 = vst [vmem:[#allocation3 + $0x78] sm:$0xff] %v694
      %777 = vst [vmem:[#allocation3 + $0x80] sm:$0xff] %v699
      %778 = vst [vmem:[#allocation3 + $0x88] sm:$0xff] %v702
      %779 = vst [vmem:[#allocation3 + $0x90] sm:$0xff] %v707
      %780 = vst [vmem:[#allocation3 + $0x98] sm:$0xff] %v710
      %781 = vst [vmem:[#allocation3 + $0xa0] sm:$0xff] %v715
      %782 = vst [vmem:[#allocation3 + $0xa8] sm:$0xff] %v718
      %783 = vst [vmem:[#allocation3 + $0xb0] sm:$0xff] %v723
      %784 = vst [vmem:[#allocation3 + $0xb8] sm:$0xff] %v726
      %785 = vst [vmem:[#allocation3 + $0xc0] sm:$0xff] %v731
      %786 = vst [vmem:[#allocation3 + $0xc8] sm:$0xff] %v734
      %787 = vst [vmem:[#allocation3 + $0xd0] sm:$0xff] %v739
      %788 = vst [vmem:[#allocation3 + $0xd8] sm:$0xff] %v742
      %789 = vst [vmem:[#allocation3 + $0xe0] sm:$0xff] %v747
      %790 = vst [vmem:[#allocation3 + $0xe8] sm:$0xff] %v750
      %791 = vst [vmem:[#allocation3 + $0xf0] sm:$0xff] %v755
      %792 = vst [vmem:[#allocation3 + $0xf8] sm:$0xff] %v758
      %v793 = vld [vmem:[#allocation2 + $0x1] sm:$0xff]
      %v794 = vld [vmem:[#allocation2 + $0x9] sm:$0xff]
      %v795 = vld [vmem:[#allocation2 + $0x19] sm:$0xff]
      %v796 = vld [vmem:[#allocation2 + $0x21] sm:$0xff]
      %v797 = vld [vmem:[#allocation2 + $0x31] sm:$0xff]
      %v798 = vld [vmem:[#allocation2 + $0x39] sm:$0xff]
      %v799 = vld [vmem:[#allocation2 + $0x49] sm:$0xff]
      %v800 = vld [vmem:[#allocation2 + $0x51] sm:$0xff]
      %v801 = vld [vmem:[#allocation2 + $0x61] sm:$0xff]
      %v802 = vld [vmem:[#allocation2 + $0x69] sm:$0xff]
      %v803 = vld [vmem:[#allocation2 + $0x79] sm:$0xff]
      %v804 = vld [vmem:[#allocation2 + $0x81] sm:$0xff]
      %v805 = vld [vmem:[#allocation2 + $0x91] sm:$0xff]
      %v806 = vld [vmem:[#allocation2 + $0x99] sm:$0xff]
      %v807 = vld [vmem:[#allocation2 + $0xa9] sm:$0xff]
      %v808 = vld [vmem:[#allocation2 + $0xb1] sm:$0xff]
      %v809 = vld [vmem:[#allocation2 + $0xc1] sm:$0xff]
      %v810 = vld [vmem:[#allocation2 + $0xc9] sm:$0xff]
      %v811 = vld [vmem:[#allocation2 + $0xd9] sm:$0xff]
      %v812 = vld [vmem:[#allocation2 + $0xe1] sm:$0xff]
      %v813 = vld [vmem:[#allocation2 + $0xf1] sm:$0xff]
      %v814 = vld [vmem:[#allocation2 + $0xf9] sm:$0xff]
      %v815 = vld [vmem:[#allocation2 + $0x109] sm:$0xff]
      %v816 = vld [vmem:[#allocation2 + $0x111] sm:$0xff]
      %v817 = vld [vmem:[#allocation2 + $0x121] sm:$0xff]
      %v818 = vld [vmem:[#allocation2 + $0x129] sm:$0xff]
      %v819 = vld [vmem:[#allocation2 + $0x139] sm:$0xff]
      %v820 = vld [vmem:[#allocation2 + $0x141] sm:$0xff]
      %v821 = vld [vmem:[#allocation2 + $0x151] sm:$0xff]
      %v822 = vld [vmem:[#allocation2 + $0x159] sm:$0xff]
      %v823 = vld [vmem:[#allocation2 + $0x169] sm:$0xff]
      %v824 = vld [vmem:[#allocation2 + $0x171] sm:$0xff]
      %v825 = vpack.c.bf16 %v794, %v793
      %v826 = vpack.c.bf16 %v796, %v795
      %v827 = vpack.c.bf16 %v798, %v797
      %v828 = vpack.c.bf16 %v800, %v799
      %v829 = vpack.c.bf16 %v802, %v801
      %v830 = vpack.c.bf16 %v804, %v803
      %v831 = vpack.c.bf16 %v806, %v805
      %v832 = vpack.c.bf16 %v808, %v807
      %v833 = vpack.c.bf16 %v810, %v809
      %v834 = vpack.c.bf16 %v812, %v811
      %v835 = vpack.c.bf16 %v814, %v813
      %v836 = vpack.c.bf16 %v816, %v815
      %v837 = vpack.c.bf16 %v818, %v817
      %v838 = vpack.c.bf16 %v820, %v819
      %v839 = vpack.c.bf16 %v822, %v821
      %v840 = vpack.c.bf16 %v824, %v823
      %s841 = scalar_lea.vmem %s1, 64
      %v842 = vld [vmem:[%s841] sm:$0xf]
      %v843 = vld [vmem:[%s841 + $0x4] sm:$0xf]
      %v844 = vld [vmem:[%s841 + $0x8] sm:$0xf]
      %v845 = vld [vmem:[%s841 + $0xc] sm:$0xf]
      %v846 = vld [vmem:[%s841 + $0x10] sm:$0xf]
      %v847 = vld [vmem:[%s841 + $0x14] sm:$0xf]
      %v848 = vld [vmem:[%s841 + $0x18] sm:$0xf]
      %v849 = vld [vmem:[%s841 + $0x1c] sm:$0xf]
      %v850 = vld [vmem:[%s841 + $0x20] sm:$0xf]
      %v851 = vld [vmem:[%s841 + $0x24] sm:$0xf]
      %v852 = vld [vmem:[%s841 + $0x28] sm:$0xf]
      %v853 = vld [vmem:[%s841 + $0x2c] sm:$0xf]
      %v854 = vld [vmem:[%s841 + $0x30] sm:$0xf]
      %v855 = vld [vmem:[%s841 + $0x34] sm:$0xf]
      %v856 = vld [vmem:[%s841 + $0x38] sm:$0xf]
      %v857 = vld [vmem:[%s841 + $0x3c] sm:$0xf]
      %v874 = vunpack.c.l.b16 %v842
      %v875 = vunpack.c.l.b16 %v843
      %v876 = vunpack.c.l.b16 %v844
      %v877 = vunpack.c.l.b16 %v845
      %v878 = vunpack.c.l.b16 %v846
      %v879 = vunpack.c.l.b16 %v847
      %v880 = vunpack.c.l.b16 %v848
      %v881 = vunpack.c.l.b16 %v849
      %v882 = vunpack.c.l.b16 %v850
      %v883 = vunpack.c.l.b16 %v851
      %v884 = vunpack.c.l.b16 %v852
      %v885 = vunpack.c.l.b16 %v853
      %v886 = vunpack.c.l.b16 %v854
      %v887 = vunpack.c.l.b16 %v855
      %v888 = vunpack.c.l.b16 %v856
      %v889 = vunpack.c.l.b16 %v857
      %v890 = vpack.c.b16 %v875, %v874
      %v891 = vpack.c.b16 %v877, %v876
      %v892 = vpack.c.b16 %v879, %v878
      %v893 = vpack.c.b16 %v881, %v880
      %v894 = vpack.c.b16 %v883, %v882
      %v895 = vpack.c.b16 %v885, %v884
      %v896 = vpack.c.b16 %v887, %v886
      %v897 = vpack.c.b16 %v889, %v888
      %906 = vmatprep.subr.bf16.mxu0 0
      %907 = vmatpush1.bf16.msra.mxu0 %v897
      %908 = vmatprep.subr.bf16.mxu0 0
      %909 = vmatpush1.bf16.msra.mxu0 %v896
      %910 = vmatprep.subr.bf16.mxu0 0
      %911 = vmatpush1.bf16.msra.mxu0 %v895
      %912 = vmatprep.subr.bf16.mxu0 0
      %913 = vmatpush1.bf16.msra.mxu0 %v894
      %914 = vmatprep.subr.bf16.mxu0 0
      %915 = vmatpush1.bf16.msra.mxu0 %v893
      %916 = vmatprep.subr.bf16.mxu0 0
      %917 = vmatpush1.bf16.msra.mxu0 %v892
      %918 = vmatprep.subr.bf16.mxu0 0
      %919 = vmatpush1.bf16.msra.mxu0 %v891
      %920 = vmatprep.subr.bf16.mxu0 0
      %921 = vmatpush1.bf16.msra.mxu0 %v890
      %922 = vmatprep.subr.bf16.mxu0 0
      %923 = vmatpush2.bf16.msra.mxu0 0
      %924 = vmatprep.subr.bf16.mxu0 0
      %925 = vmatpush2.bf16.msra.mxu0 0
      %926 = vmatprep.subr.bf16.mxu0 0
      %927 = vmatpush2.bf16.msra.mxu0 0
      %928 = vmatprep.subr.bf16.mxu0 0
      %929 = vmatpush2.bf16.msra.mxu0 0
      %930 = vmatprep.subr.bf16.mxu0 0
      %931 = vmatpush2.bf16.msra.mxu0 0
      %932 = vmatprep.subr.bf16.mxu0 0
      %933 = vmatpush2.bf16.msra.mxu0 0
      %934 = vmatprep.subr.bf16.mxu0 0
      %935 = vmatpush2.bf16.msra.mxu0 0
      %936 = vmatprep.subr.bf16.mxu0 0
      %937 = vmatpush2.bf16.msra.mxu0 0
      %938 = vmatprep.mubr.bf16.mxu0 0
      %939 = vmatmul.mubr.bf16.gmra.mxu0 %v825
      %v940 = vpop.f32.mrf.mxu0
      %v941 = vadd.f32 0.0, %v940
      %v942 = vpop.f32.mrf.mxu0
      %v943 = vpop.f32.mrf.mxu0
      %v944 = vadd.f32 0.0, %v943
      %v945 = vpop.f32.mrf.mxu0
      %946 = vmatprep.mubr.bf16.mxu0 0
      %947 = vmatmul.mubr.bf16.gmra.mxu0 %v826
      %v948 = vpop.f32.mrf.mxu0
      %v949 = vadd.f32 0.0, %v948
      %v950 = vpop.f32.mrf.mxu0
      %v951 = vpop.f32.mrf.mxu0
      %v952 = vadd.f32 0.0, %v951
      %v953 = vpop.f32.mrf.mxu0
      %954 = vmatprep.mubr.bf16.mxu0 0
      %955 = vmatmul.mubr.bf16.gmra.mxu0 %v827
      %v956 = vpop.f32.mrf.mxu0
      %v957 = vadd.f32 0.0, %v956
      %v958 = vpop.f32.mrf.mxu0
      %v959 = vpop.f32.mrf.mxu0
      %v960 = vadd.f32 0.0, %v959
      %v961 = vpop.f32.mrf.mxu0
      %962 = vmatprep.mubr.bf16.mxu0 0
      %963 = vmatmul.mubr.bf16.gmra.mxu0 %v828
      %v964 = vpop.f32.mrf.mxu0
      %v965 = vadd.f32 0.0, %v964
      %v966 = vpop.f32.mrf.mxu0
      %v967 = vpop.f32.mrf.mxu0
      %v968 = vadd.f32 0.0, %v967
      %v969 = vpop.f32.mrf.mxu0
      %970 = vmatprep.mubr.bf16.mxu0 0
      %971 = vmatmul.mubr.bf16.gmra.mxu0 %v829
      %v972 = vpop.f32.mrf.mxu0
      %v973 = vadd.f32 0.0, %v972
      %v974 = vpop.f32.mrf.mxu0
      %v975 = vpop.f32.mrf.mxu0
      %v976 = vadd.f32 0.0, %v975
      %v977 = vpop.f32.mrf.mxu0
      %978 = vmatprep.mubr.bf16.mxu0 0
      %979 = vmatmul.mubr.bf16.gmra.mxu0 %v830
      %v980 = vpop.f32.mrf.mxu0
      %v981 = vadd.f32 0.0, %v980
      %v982 = vpop.f32.mrf.mxu0
      %v983 = vpop.f32.mrf.mxu0
      %v984 = vadd.f32 0.0, %v983
      %v985 = vpop.f32.mrf.mxu0
      %986 = vmatprep.mubr.bf16.mxu0 0
      %987 = vmatmul.mubr.bf16.gmra.mxu0 %v831
      %v988 = vpop.f32.mrf.mxu0
      %v989 = vadd.f32 0.0, %v988
      %v990 = vpop.f32.mrf.mxu0
      %v991 = vpop.f32.mrf.mxu0
      %v992 = vadd.f32 0.0, %v991
      %v993 = vpop.f32.mrf.mxu0
      %994 = vmatprep.mubr.bf16.mxu0 0
      %995 = vmatmul.mubr.bf16.gmra.mxu0 %v832
      %v996 = vpop.f32.mrf.mxu0
      %v997 = vadd.f32 0.0, %v996
      %v998 = vpop.f32.mrf.mxu0
      %v999 = vpop.f32.mrf.mxu0
      %v1000 = vadd.f32 0.0, %v999
      %v1001 = vpop.f32.mrf.mxu0
      %1002 = vmatprep.mubr.bf16.mxu0 0
      %1003 = vmatmul.mubr.bf16.gmra.mxu0 %v833
      %v1004 = vpop.f32.mrf.mxu0
      %v1005 = vadd.f32 0.0, %v1004
      %v1006 = vpop.f32.mrf.mxu0
      %v1007 = vpop.f32.mrf.mxu0
      %v1008 = vadd.f32 0.0, %v1007
      %v1009 = vpop.f32.mrf.mxu0
      %1010 = vmatprep.mubr.bf16.mxu0 0
      %1011 = vmatmul.mubr.bf16.gmra.mxu0 %v834
      %v1012 = vpop.f32.mrf.mxu0
      %v1013 = vadd.f32 0.0, %v1012
      %v1014 = vpop.f32.mrf.mxu0
      %v1015 = vpop.f32.mrf.mxu0
      %v1016 = vadd.f32 0.0, %v1015
      %v1017 = vpop.f32.mrf.mxu0
      %1018 = vmatprep.mubr.bf16.mxu0 0
      %1019 = vmatmul.mubr.bf16.gmra.mxu0 %v835
      %v1020 = vpop.f32.mrf.mxu0
      %v1021 = vadd.f32 0.0, %v1020
      %v1022 = vpop.f32.mrf.mxu0
      %v1023 = vpop.f32.mrf.mxu0
      %v1024 = vadd.f32 0.0, %v1023
      %v1025 = vpop.f32.mrf.mxu0
      %1026 = vmatprep.mubr.bf16.mxu0 0
      %1027 = vmatmul.mubr.bf16.gmra.mxu0 %v836
      %v1028 = vpop.f32.mrf.mxu0
      %v1029 = vadd.f32 0.0, %v1028
      %v1030 = vpop.f32.mrf.mxu0
      %v1031 = vpop.f32.mrf.mxu0
      %v1032 = vadd.f32 0.0, %v1031
      %v1033 = vpop.f32.mrf.mxu0
      %1034 = vmatprep.mubr.bf16.mxu0 0
      %1035 = vmatmul.mubr.bf16.gmra.mxu0 %v837
      %v1036 = vpop.f32.mrf.mxu0
      %v1037 = vadd.f32 0.0, %v1036
      %v1038 = vpop.f32.mrf.mxu0
      %v1039 = vpop.f32.mrf.mxu0
      %v1040 = vadd.f32 0.0, %v1039
      %v1041 = vpop.f32.mrf.mxu0
      %1042 = vmatprep.mubr.bf16.mxu0 0
      %1043 = vmatmul.mubr.bf16.gmra.mxu0 %v838
      %v1044 = vpop.f32.mrf.mxu0
      %v1045 = vadd.f32 0.0, %v1044
      %v1046 = vpop.f32.mrf.mxu0
      %v1047 = vpop.f32.mrf.mxu0
      %v1048 = vadd.f32 0.0, %v1047
      %v1049 = vpop.f32.mrf.mxu0
      %1050 = vmatprep.mubr.bf16.mxu0 0
      %1051 = vmatmul.mubr.bf16.gmra.mxu0 %v839
      %v1052 = vpop.f32.mrf.mxu0
      %v1053 = vadd.f32 0.0, %v1052
      %v1054 = vpop.f32.mrf.mxu0
      %v1055 = vpop.f32.mrf.mxu0
      %v1056 = vadd.f32 0.0, %v1055
      %v1057 = vpop.f32.mrf.mxu0
      %1058 = vmatprep.mubr.bf16.mxu0 0
      %1059 = vmatmul.mubr.bf16.gmra.mxu0 %v840
      %v1060 = vpop.f32.mrf.mxu0
      %v1061 = vadd.f32 0.0, %v1060
      %v1062 = vpop.f32.mrf.mxu0
      %v1063 = vpop.f32.mrf.mxu0
      %v1064 = vadd.f32 0.0, %v1063
      %v1065 = vpop.f32.mrf.mxu0
      %1066 = vdwg.mxu0
      %v1067 = vld [vmem:[#allocation3] sm:$0xff]
      %v1068 = vld [vmem:[#allocation3 + $0x8] sm:$0xff]
      %v1069 = vld [vmem:[#allocation3 + $0x10] sm:$0xff]
      %v1070 = vld [vmem:[#allocation3 + $0x18] sm:$0xff]
      %v1071 = vld [vmem:[#allocation3 + $0x20] sm:$0xff]
      %v1072 = vld [vmem:[#allocation3 + $0x28] sm:$0xff]
      %v1073 = vld [vmem:[#allocation3 + $0x30] sm:$0xff]
      %v1074 = vld [vmem:[#allocation3 + $0x38] sm:$0xff]
      %v1075 = vld [vmem:[#allocation3 + $0x40] sm:$0xff]
      %v1076 = vld [vmem:[#allocation3 + $0x48] sm:$0xff]
      %v1077 = vld [vmem:[#allocation3 + $0x50] sm:$0xff]
      %v1078 = vld [vmem:[#allocation3 + $0x58] sm:$0xff]
      %v1079 = vld [vmem:[#allocation3 + $0x60] sm:$0xff]
      %v1080 = vld [vmem:[#allocation3 + $0x68] sm:$0xff]
      %v1081 = vld [vmem:[#allocation3 + $0x70] sm:$0xff]
      %v1082 = vld [vmem:[#allocation3 + $0x78] sm:$0xff]
      %v1083 = vld [vmem:[#allocation3 + $0x80] sm:$0xff]
      %v1084 = vld [vmem:[#allocation3 + $0x88] sm:$0xff]
      %v1085 = vld [vmem:[#allocation3 + $0x90] sm:$0xff]
      %v1086 = vld [vmem:[#allocation3 + $0x98] sm:$0xff]
      %v1087 = vld [vmem:[#allocation3 + $0xa0] sm:$0xff]
      %v1088 = vld [vmem:[#allocation3 + $0xa8] sm:$0xff]
      %v1089 = vld [vmem:[#allocation3 + $0xb0] sm:$0xff]
      %v1090 = vld [vmem:[#allocation3 + $0xb8] sm:$0xff]
      %v1091 = vld [vmem:[#allocation3 + $0xc0] sm:$0xff]
      %v1092 = vld [vmem:[#allocation3 + $0xc8] sm:$0xff]
      %v1093 = vld [vmem:[#allocation3 + $0xd0] sm:$0xff]
      %v1094 = vld [vmem:[#allocation3 + $0xd8] sm:$0xff]
      %v1095 = vld [vmem:[#allocation3 + $0xe0] sm:$0xff]
      %v1096 = vld [vmem:[#allocation3 + $0xe8] sm:$0xff]
      %v1097 = vld [vmem:[#allocation3 + $0xf0] sm:$0xff]
      %v1098 = vld [vmem:[#allocation3 + $0xf8] sm:$0xff]
      %v1099 = vadd.f32 %v1067, %v941
      %v1100 = vadd.f32 %v1068, %v944
      %v1101 = vadd.f32 %v1069, %v949
      %v1102 = vadd.f32 %v1070, %v952
      %v1103 = vadd.f32 %v1071, %v957
      %v1104 = vadd.f32 %v1072, %v960
      %v1105 = vadd.f32 %v1073, %v965
      %v1106 = vadd.f32 %v1074, %v968
      %v1107 = vadd.f32 %v1075, %v973
      %v1108 = vadd.f32 %v1076, %v976
      %v1109 = vadd.f32 %v1077, %v981
      %v1110 = vadd.f32 %v1078, %v984
      %v1111 = vadd.f32 %v1079, %v989
      %v1112 = vadd.f32 %v1080, %v992
      %v1113 = vadd.f32 %v1081, %v997
      %v1114 = vadd.f32 %v1082, %v1000
      %v1115 = vadd.f32 %v1083, %v1005
      %v1116 = vadd.f32 %v1084, %v1008
      %v1117 = vadd.f32 %v1085, %v1013
      %v1118 = vadd.f32 %v1086, %v1016
      %v1119 = vadd.f32 %v1087, %v1021
      %v1120 = vadd.f32 %v1088, %v1024
      %v1121 = vadd.f32 %v1089, %v1029
      %v1122 = vadd.f32 %v1090, %v1032
      %v1123 = vadd.f32 %v1091, %v1037
      %v1124 = vadd.f32 %v1092, %v1040
      %v1125 = vadd.f32 %v1093, %v1045
      %v1126 = vadd.f32 %v1094, %v1048
      %v1127 = vadd.f32 %v1095, %v1053
      %v1128 = vadd.f32 %v1096, %v1056
      %v1129 = vadd.f32 %v1097, %v1061
      %v1130 = vadd.f32 %v1098, %v1064
      %1131 = vst [vmem:[#allocation3] sm:$0xff] %v1099
      %1132 = vst [vmem:[#allocation3 + $0x8] sm:$0xff] %v1100
      %1133 = vst [vmem:[#allocation3 + $0x10] sm:$0xff] %v1101
      %1134 = vst [vmem:[#allocation3 + $0x18] sm:$0xff] %v1102
      %1135 = vst [vmem:[#allocation3 + $0x20] sm:$0xff] %v1103
      %1136 = vst [vmem:[#allocation3 + $0x28] sm:$0xff] %v1104
      %1137 = vst [vmem:[#allocation3 + $0x30] sm:$0xff] %v1105
      %1138 = vst [vmem:[#allocation3 + $0x38] sm:$0xff] %v1106
      %1139 = vst [vmem:[#allocation3 + $0x40] sm:$0xff] %v1107
      %1140 = vst [vmem:[#allocation3 + $0x48] sm:$0xff] %v1108
      %1141 = vst [vmem:[#allocation3 + $0x50] sm:$0xff] %v1109
      %1142 = vst [vmem:[#allocation3 + $0x58] sm:$0xff] %v1110
      %1143 = vst [vmem:[#allocation3 + $0x60] sm:$0xff] %v1111
      %1144 = vst [vmem:[#allocation3 + $0x68] sm:$0xff] %v1112
      %1145 = vst [vmem:[#allocation3 + $0x70] sm:$0xff] %v1113
      %1146 = vst [vmem:[#allocation3 + $0x78] sm:$0xff] %v1114
      %1147 = vst [vmem:[#allocation3 + $0x80] sm:$0xff] %v1115
      %1148 = vst [vmem:[#allocation3 + $0x88] sm:$0xff] %v1116
      %1149 = vst [vmem:[#allocation3 + $0x90] sm:$0xff] %v1117
      %1150 = vst [vmem:[#allocation3 + $0x98] sm:$0xff] %v1118
      %1151 = vst [vmem:[#allocation3 + $0xa0] sm:$0xff] %v1119
      %1152 = vst [vmem:[#allocation3 + $0xa8] sm:$0xff] %v1120
      %1153 = vst [vmem:[#allocation3 + $0xb0] sm:$0xff] %v1121
      %1154 = vst [vmem:[#allocation3 + $0xb8] sm:$0xff] %v1122
      %1155 = vst [vmem:[#allocation3 + $0xc0] sm:$0xff] %v1123
      %1156 = vst [vmem:[#allocation3 + $0xc8] sm:$0xff] %v1124
      %1157 = vst [vmem:[#allocation3 + $0xd0] sm:$0xff] %v1125
      %1158 = vst [vmem:[#allocation3 + $0xd8] sm:$0xff] %v1126
      %1159 = vst [vmem:[#allocation3 + $0xe0] sm:$0xff] %v1127
      %1160 = vst [vmem:[#allocation3 + $0xe8] sm:$0xff] %v1128
      %1161 = vst [vmem:[#allocation3 + $0xf0] sm:$0xff] %v1129
      %1162 = vst [vmem:[#allocation3 + $0xf8] sm:$0xff] %v1130
      %v1163 = vld [vmem:[#allocation2 + $0x2] sm:$0xff]
      %v1164 = vld [vmem:[#allocation2 + $0xa] sm:$0xff]
      %v1165 = vld [vmem:[#allocation2 + $0x1a] sm:$0xff]
      %v1166 = vld [vmem:[#allocation2 + $0x22] sm:$0xff]
      %v1167 = vld [vmem:[#allocation2 + $0x32] sm:$0xff]
      %v1168 = vld [vmem:[#allocation2 + $0x3a] sm:$0xff]
      %v1169 = vld [vmem:[#allocation2 + $0x4a] sm:$0xff]
      %v1170 = vld [vmem:[#allocation2 + $0x52] sm:$0xff]
      %v1171 = vld [vmem:[#allocation2 + $0x62] sm:$0xff]
      %v1172 = vld [vmem:[#allocation2 + $0x6a] sm:$0xff]
      %v1173 = vld [vmem:[#allocation2 + $0x7a] sm:$0xff]
      %v1174 = vld [vmem:[#allocation2 + $0x82] sm:$0xff]
      %v1175 = vld [vmem:[#allocation2 + $0x92] sm:$0xff]
      %v1176 = vld [vmem:[#allocation2 + $0x9a] sm:$0xff]
      %v1177 = vld [vmem:[#allocation2 + $0xaa] sm:$0xff]
      %v1178 = vld [vmem:[#allocation2 + $0xb2] sm:$0xff]
      %v1179 = vld [vmem:[#allocation2 + $0xc2] sm:$0xff]
      %v1180 = vld [vmem:[#allocation2 + $0xca] sm:$0xff]
      %v1181 = vld [vmem:[#allocation2 + $0xda] sm:$0xff]
      %v1182 = vld [vmem:[#allocation2 + $0xe2] sm:$0xff]
      %v1183 = vld [vmem:[#allocation2 + $0xf2] sm:$0xff]
      %v1184 = vld [vmem:[#allocation2 + $0xfa] sm:$0xff]
      %v1185 = vld [vmem:[#allocation2 + $0x10a] sm:$0xff]
      %v1186 = vld [vmem:[#allocation2 + $0x112] sm:$0xff]
      %v1187 = vld [vmem:[#allocation2 + $0x122] sm:$0xff]
      %v1188 = vld [vmem:[#allocation2 + $0x12a] sm:$0xff]
      %v1189 = vld [vmem:[#allocation2 + $0x13a] sm:$0xff]
      %v1190 = vld [vmem:[#allocation2 + $0x142] sm:$0xff]
      %v1191 = vld [vmem:[#allocation2 + $0x152] sm:$0xff]
      %v1192 = vld [vmem:[#allocation2 + $0x15a] sm:$0xff]
      %v1193 = vld [vmem:[#allocation2 + $0x16a] sm:$0xff]
      %v1194 = vld [vmem:[#allocation2 + $0x172] sm:$0xff]
      %v1195 = vpack.c.bf16 %v1164, %v1163
      %v1196 = vpack.c.bf16 %v1166, %v1165
      %v1197 = vpack.c.bf16 %v1168, %v1167
      %v1198 = vpack.c.bf16 %v1170, %v1169
      %v1199 = vpack.c.bf16 %v1172, %v1171
      %v1200 = vpack.c.bf16 %v1174, %v1173
      %v1201 = vpack.c.bf16 %v1176, %v1175
      %v1202 = vpack.c.bf16 %v1178, %v1177
      %v1203 = vpack.c.bf16 %v1180, %v1179
      %v1204 = vpack.c.bf16 %v1182, %v1181
      %v1205 = vpack.c.bf16 %v1184, %v1183
      %v1206 = vpack.c.bf16 %v1186, %v1185
      %v1207 = vpack.c.bf16 %v1188, %v1187
      %v1208 = vpack.c.bf16 %v1190, %v1189
      %v1209 = vpack.c.bf16 %v1192, %v1191
      %v1210 = vpack.c.bf16 %v1194, %v1193
      %s1211 = scalar_lea.vmem %s1, 128
      %v1212 = vld [vmem:[%s1211] sm:$0xf]
      %v1213 = vld [vmem:[%s1211 + $0x4] sm:$0xf]
      %v1214 = vld [vmem:[%s1211 + $0x8] sm:$0xf]
      %v1215 = vld [vmem:[%s1211 + $0xc] sm:$0xf]
      %v1216 = vld [vmem:[%s1211 + $0x10] sm:$0xf]
      %v1217 = vld [vmem:[%s1211 + $0x14] sm:$0xf]
      %v1218 = vld [vmem:[%s1211 + $0x18] sm:$0xf]
      %v1219 = vld [vmem:[%s1211 + $0x1c] sm:$0xf]
      %v1220 = vld [vmem:[%s1211 + $0x20] sm:$0xf]
      %v1221 = vld [vmem:[%s1211 + $0x24] sm:$0xf]
      %v1222 = vld [vmem:[%s1211 + $0x28] sm:$0xf]
      %v1223 = vld [vmem:[%s1211 + $0x2c] sm:$0xf]
      %v1224 = vld [vmem:[%s1211 + $0x30] sm:$0xf]
      %v1225 = vld [vmem:[%s1211 + $0x34] sm:$0xf]
      %v1226 = vld [vmem:[%s1211 + $0x38] sm:$0xf]
      %v1227 = vld [vmem:[%s1211 + $0x3c] sm:$0xf]
      %v1244 = vunpack.c.l.b16 %v1212
      %v1245 = vunpack.c.l.b16 %v1213
      %v1246 = vunpack.c.l.b16 %v1214
      %v1247 = vunpack.c.l.b16 %v1215
      %v1248 = vunpack.c.l.b16 %v1216
      %v1249 = vunpack.c.l.b16 %v1217
      %v1250 = vunpack.c.l.b16 %v1218
      %v1251 = vunpack.c.l.b16 %v1219
      %v1252 = vunpack.c.l.b16 %v1220
      %v1253 = vunpack.c.l.b16 %v1221
      %v1254 = vunpack.c.l.b16 %v1222
      %v1255 = vunpack.c.l.b16 %v1223
      %v1256 = vunpack.c.l.b16 %v1224
      %v1257 = vunpack.c.l.b16 %v1225
      %v1258 = vunpack.c.l.b16 %v1226
      %v1259 = vunpack.c.l.b16 %v1227
      %v1260 = vpack.c.b16 %v1245, %v1244
      %v1261 = vpack.c.b16 %v1247, %v1246
      %v1262 = vpack.c.b16 %v1249, %v1248
      %v1263 = vpack.c.b16 %v1251, %v1250
      %v1264 = vpack.c.b16 %v1253, %v1252
      %v1265 = vpack.c.b16 %v1255, %v1254
      %v1266 = vpack.c.b16 %v1257, %v1256
      %v1267 = vpack.c.b16 %v1259, %v1258
      %1276 = vmatprep.subr.bf16.mxu0 0
      %1277 = vmatpush1.bf16.msra.mxu0 %v1267
      %1278 = vmatprep.subr.bf16.mxu0 0
      %1279 = vmatpush1.bf16.msra.mxu0 %v1266
      %1280 = vmatprep.subr.bf16.mxu0 0
      %1281 = vmatpush1.bf16.msra.mxu0 %v1265
      %1282 = vmatprep.subr.bf16.mxu0 0
      %1283 = vmatpush1.bf16.msra.mxu0 %v1264
      %1284 = vmatprep.subr.bf16.mxu0 0
      %1285 = vmatpush1.bf16.msra.mxu0 %v1263
      %1286 = vmatprep.subr.bf16.mxu0 0
      %1287 = vmatpush1.bf16.msra.mxu0 %v1262
      %1288 = vmatprep.subr.bf16.mxu0 0
      %1289 = vmatpush1.bf16.msra.mxu0 %v1261
      %1290 = vmatprep.subr.bf16.mxu0 0
      %1291 = vmatpush1.bf16.msra.mxu0 %v1260
      %1292 = vmatprep.subr.bf16.mxu0 0
      %1293 = vmatpush2.bf16.msra.mxu0 0
      %1294 = vmatprep.subr.bf16.mxu0 0
      %1295 = vmatpush2.bf16.msra.mxu0 0
      %1296 = vmatprep.subr.bf16.mxu0 0
      %1297 = vmatpush2.bf16.msra.mxu0 0
      %1298 = vmatprep.subr.bf16.mxu0 0
      %1299 = vmatpush2.bf16.msra.mxu0 0
      %1300 = vmatprep.subr.bf16.mxu0 0
      %1301 = vmatpush2.bf16.msra.mxu0 0
      %1302 = vmatprep.subr.bf16.mxu0 0
      %1303 = vmatpush2.bf16.msra.mxu0 0
      %1304 = vmatprep.subr.bf16.mxu0 0
      %1305 = vmatpush2.bf16.msra.mxu0 0
      %1306 = vmatprep.subr.bf16.mxu0 0
      %1307 = vmatpush2.bf16.msra.mxu0 0
      %1308 = vmatprep.mubr.bf16.mxu0 0
      %1309 = vmatmul.mubr.bf16.gmra.mxu0 %v1195
      %v1310 = vpop.f32.mrf.mxu0
      %v1311 = vadd.f32 0.0, %v1310
      %v1312 = vpop.f32.mrf.mxu0
      %v1313 = vpop.f32.mrf.mxu0
      %v1314 = vadd.f32 0.0, %v1313
      %v1315 = vpop.f32.mrf.mxu0
      %1316 = vmatprep.mubr.bf16.mxu0 0
      %1317 = vmatmul.mubr.bf16.gmra.mxu0 %v1196
      %v1318 = vpop.f32.mrf.mxu0
      %v1319 = vadd.f32 0.0, %v1318
      %v1320 = vpop.f32.mrf.mxu0
      %v1321 = vpop.f32.mrf.mxu0
      %v1322 = vadd.f32 0.0, %v1321
      %v1323 = vpop.f32.mrf.mxu0
      %1324 = vmatprep.mubr.bf16.mxu0 0
      %1325 = vmatmul.mubr.bf16.gmra.mxu0 %v1197
      %v1326 = vpop.f32.mrf.mxu0
      %v1327 = vadd.f32 0.0, %v1326
      %v1328 = vpop.f32.mrf.mxu0
      %v1329 = vpop.f32.mrf.mxu0
      %v1330 = vadd.f32 0.0, %v1329
      %v1331 = vpop.f32.mrf.mxu0
      %1332 = vmatprep.mubr.bf16.mxu0 0
      %1333 = vmatmul.mubr.bf16.gmra.mxu0 %v1198
      %v1334 = vpop.f32.mrf.mxu0
      %v1335 = vadd.f32 0.0, %v1334
      %v1336 = vpop.f32.mrf.mxu0
      %v1337 = vpop.f32.mrf.mxu0
      %v1338 = vadd.f32 0.0, %v1337
      %v1339 = vpop.f32.mrf.mxu0
      %1340 = vmatprep.mubr.bf16.mxu0 0
      %1341 = vmatmul.mubr.bf16.gmra.mxu0 %v1199
      %v1342 = vpop.f32.mrf.mxu0
      %v1343 = vadd.f32 0.0, %v1342
      %v1344 = vpop.f32.mrf.mxu0
      %v1345 = vpop.f32.mrf.mxu0
      %v1346 = vadd.f32 0.0, %v1345
      %v1347 = vpop.f32.mrf.mxu0
      %1348 = vmatprep.mubr.bf16.mxu0 0
      %1349 = vmatmul.mubr.bf16.gmra.mxu0 %v1200
      %v1350 = vpop.f32.mrf.mxu0
      %v1351 = vadd.f32 0.0, %v1350
      %v1352 = vpop.f32.mrf.mxu0
      %v1353 = vpop.f32.mrf.mxu0
      %v1354 = vadd.f32 0.0, %v1353
      %v1355 = vpop.f32.mrf.mxu0
      %1356 = vmatprep.mubr.bf16.mxu0 0
      %1357 = vmatmul.mubr.bf16.gmra.mxu0 %v1201
      %v1358 = vpop.f32.mrf.mxu0
      %v1359 = vadd.f32 0.0, %v1358
      %v1360 = vpop.f32.mrf.mxu0
      %v1361 = vpop.f32.mrf.mxu0
      %v1362 = vadd.f32 0.0, %v1361
      %v1363 = vpop.f32.mrf.mxu0
      %1364 = vmatprep.mubr.bf16.mxu0 0
      %1365 = vmatmul.mubr.bf16.gmra.mxu0 %v1202
      %v1366 = vpop.f32.mrf.mxu0
      %v1367 = vadd.f32 0.0, %v1366
      %v1368 = vpop.f32.mrf.mxu0
      %v1369 = vpop.f32.mrf.mxu0
      %v1370 = vadd.f32 0.0, %v1369
      %v1371 = vpop.f32.mrf.mxu0
      %1372 = vmatprep.mubr.bf16.mxu0 0
      %1373 = vmatmul.mubr.bf16.gmra.mxu0 %v1203
      %v1374 = vpop.f32.mrf.mxu0
      %v1375 = vadd.f32 0.0, %v1374
      %v1376 = vpop.f32.mrf.mxu0
      %v1377 = vpop.f32.mrf.mxu0
      %v1378 = vadd.f32 0.0, %v1377
      %v1379 = vpop.f32.mrf.mxu0
      %1380 = vmatprep.mubr.bf16.mxu0 0
      %1381 = vmatmul.mubr.bf16.gmra.mxu0 %v1204
      %v1382 = vpop.f32.mrf.mxu0
      %v1383 = vadd.f32 0.0, %v1382
      %v1384 = vpop.f32.mrf.mxu0
      %v1385 = vpop.f32.mrf.mxu0
      %v1386 = vadd.f32 0.0, %v1385
      %v1387 = vpop.f32.mrf.mxu0
      %1388 = vmatprep.mubr.bf16.mxu0 0
      %1389 = vmatmul.mubr.bf16.gmra.mxu0 %v1205
      %v1390 = vpop.f32.mrf.mxu0
      %v1391 = vadd.f32 0.0, %v1390
      %v1392 = vpop.f32.mrf.mxu0
      %v1393 = vpop.f32.mrf.mxu0
      %v1394 = vadd.f32 0.0, %v1393
      %v1395 = vpop.f32.mrf.mxu0
      %1396 = vmatprep.mubr.bf16.mxu0 0
      %1397 = vmatmul.mubr.bf16.gmra.mxu0 %v1206
      %v1398 = vpop.f32.mrf.mxu0
      %v1399 = vadd.f32 0.0, %v1398
      %v1400 = vpop.f32.mrf.mxu0
      %v1401 = vpop.f32.mrf.mxu0
      %v1402 = vadd.f32 0.0, %v1401
      %v1403 = vpop.f32.mrf.mxu0
      %1404 = vmatprep.mubr.bf16.mxu0 0
      %1405 = vmatmul.mubr.bf16.gmra.mxu0 %v1207
      %v1406 = vpop.f32.mrf.mxu0
      %v1407 = vadd.f32 0.0, %v1406
      %v1408 = vpop.f32.mrf.mxu0
      %v1409 = vpop.f32.mrf.mxu0
      %v1410 = vadd.f32 0.0, %v1409
      %v1411 = vpop.f32.mrf.mxu0
      %1412 = vmatprep.mubr.bf16.mxu0 0
      %1413 = vmatmul.mubr.bf16.gmra.mxu0 %v1208
      %v1414 = vpop.f32.mrf.mxu0
      %v1415 = vadd.f32 0.0, %v1414
      %v1416 = vpop.f32.mrf.mxu0
      %v1417 = vpop.f32.mrf.mxu0
      %v1418 = vadd.f32 0.0, %v1417
      %v1419 = vpop.f32.mrf.mxu0
      %1420 = vmatprep.mubr.bf16.mxu0 0
      %1421 = vmatmul.mubr.bf16.gmra.mxu0 %v1209
      %v1422 = vpop.f32.mrf.mxu0
      %v1423 = vadd.f32 0.0, %v1422
      %v1424 = vpop.f32.mrf.mxu0
      %v1425 = vpop.f32.mrf.mxu0
      %v1426 = vadd.f32 0.0, %v1425
      %v1427 = vpop.f32.mrf.mxu0
      %1428 = vmatprep.mubr.bf16.mxu0 0
      %1429 = vmatmul.mubr.bf16.gmra.mxu0 %v1210
      %v1430 = vpop.f32.mrf.mxu0
      %v1431 = vadd.f32 0.0, %v1430
      %v1432 = vpop.f32.mrf.mxu0
      %v1433 = vpop.f32.mrf.mxu0
      %v1434 = vadd.f32 0.0, %v1433
      %v1435 = vpop.f32.mrf.mxu0
      %1436 = vdwg.mxu0
      %v1437 = vld [vmem:[#allocation3] sm:$0xff]
      %v1438 = vld [vmem:[#allocation3 + $0x8] sm:$0xff]
      %v1439 = vld [vmem:[#allocation3 + $0x10] sm:$0xff]
      %v1440 = vld [vmem:[#allocation3 + $0x18] sm:$0xff]
      %v1441 = vld [vmem:[#allocation3 + $0x20] sm:$0xff]
      %v1442 = vld [vmem:[#allocation3 + $0x28] sm:$0xff]
      %v1443 = vld [vmem:[#allocation3 + $0x30] sm:$0xff]
      %v1444 = vld [vmem:[#allocation3 + $0x38] sm:$0xff]
      %v1445 = vld [vmem:[#allocation3 + $0x40] sm:$0xff]
      %v1446 = vld [vmem:[#allocation3 + $0x48] sm:$0xff]
      %v1447 = vld [vmem:[#allocation3 + $0x50] sm:$0xff]
      %v1448 = vld [vmem:[#allocation3 + $0x58] sm:$0xff]
      %v1449 = vld [vmem:[#allocation3 + $0x60] sm:$0xff]
      %v1450 = vld [vmem:[#allocation3 + $0x68] sm:$0xff]
      %v1451 = vld [vmem:[#allocation3 + $0x70] sm:$0xff]
      %v1452 = vld [vmem:[#allocation3 + $0x78] sm:$0xff]
      %v1453 = vld [vmem:[#allocation3 + $0x80] sm:$0xff]
      %v1454 = vld [vmem:[#allocation3 + $0x88] sm:$0xff]
      %v1455 = vld [vmem:[#allocation3 + $0x90] sm:$0xff]
      %v1456 = vld [vmem:[#allocation3 + $0x98] sm:$0xff]
      %v1457 = vld [vmem:[#allocation3 + $0xa0] sm:$0xff]
      %v1458 = vld [vmem:[#allocation3 + $0xa8] sm:$0xff]
      %v1459 = vld [vmem:[#allocation3 + $0xb0] sm:$0xff]
      %v1460 = vld [vmem:[#allocation3 + $0xb8] sm:$0xff]
      %v1461 = vld [vmem:[#allocation3 + $0xc0] sm:$0xff]
      %v1462 = vld [vmem:[#allocation3 + $0xc8] sm:$0xff]
      %v1463 = vld [vmem:[#allocation3 + $0xd0] sm:$0xff]
      %v1464 = vld [vmem:[#allocation3 + $0xd8] sm:$0xff]
      %v1465 = vld [vmem:[#allocation3 + $0xe0] sm:$0xff]
      %v1466 = vld [vmem:[#allocation3 + $0xe8] sm:$0xff]
      %v1467 = vld [vmem:[#allocation3 + $0xf0] sm:$0xff]
      %v1468 = vld [vmem:[#allocation3 + $0xf8] sm:$0xff]
      %v1469 = vadd.f32 %v1437, %v1311
      %v1470 = vadd.f32 %v1438, %v1314
      %v1471 = vadd.f32 %v1439, %v1319
      %v1472 = vadd.f32 %v1440, %v1322
      %v1473 = vadd.f32 %v1441, %v1327
      %v1474 = vadd.f32 %v1442, %v1330
      %v1475 = vadd.f32 %v1443, %v1335
      %v1476 = vadd.f32 %v1444, %v1338
      %v1477 = vadd.f32 %v1445, %v1343
      %v1478 = vadd.f32 %v1446, %v1346
      %v1479 = vadd.f32 %v1447, %v1351
      %v1480 = vadd.f32 %v1448, %v1354
      %v1481 = vadd.f32 %v1449, %v1359
      %v1482 = vadd.f32 %v1450, %v1362
      %v1483 = vadd.f32 %v1451, %v1367
      %v1484 = vadd.f32 %v1452, %v1370
      %v1485 = vadd.f32 %v1453, %v1375
      %v1486 = vadd.f32 %v1454, %v1378
      %v1487 = vadd.f32 %v1455, %v1383
      %v1488 = vadd.f32 %v1456, %v1386
      %v1489 = vadd.f32 %v1457, %v1391
      %v1490 = vadd.f32 %v1458, %v1394
      %v1491 = vadd.f32 %v1459, %v1399
      %v1492 = vadd.f32 %v1460, %v1402
      %v1493 = vadd.f32 %v1461, %v1407
      %v1494 = vadd.f32 %v1462, %v1410
      %v1495 = vadd.f32 %v1463, %v1415
      %v1496 = vadd.f32 %v1464, %v1418
      %v1497 = vadd.f32 %v1465, %v1423
      %v1498 = vadd.f32 %v1466, %v1426
      %v1499 = vadd.f32 %v1467, %v1431
      %v1500 = vadd.f32 %v1468, %v1434
      %1501 = vst [vmem:[#allocation3] sm:$0xff] %v1469
      %1502 = vst [vmem:[#allocation3 + $0x8] sm:$0xff] %v1470
      %1503 = vst [vmem:[#allocation3 + $0x10] sm:$0xff] %v1471
      %1504 = vst [vmem:[#allocation3 + $0x18] sm:$0xff] %v1472
      %1505 = vst [vmem:[#allocation3 + $0x20] sm:$0xff] %v1473
      %1506 = vst [vmem:[#allocation3 + $0x28] sm:$0xff] %v1474
      %1507 = vst [vmem:[#allocation3 + $0x30] sm:$0xff] %v1475
      %1508 = vst [vmem:[#allocation3 + $0x38] sm:$0xff] %v1476
      %1509 = vst [vmem:[#allocation3 + $0x40] sm:$0xff] %v1477
      %1510 = vst [vmem:[#allocation3 + $0x48] sm:$0xff] %v1478
      %1511 = vst [vmem:[#allocation3 + $0x50] sm:$0xff] %v1479
      %1512 = vst [vmem:[#allocation3 + $0x58] sm:$0xff] %v1480
      %1513 = vst [vmem:[#allocation3 + $0x60] sm:$0xff] %v1481
      %1514 = vst [vmem:[#allocation3 + $0x68] sm:$0xff] %v1482
      %1515 = vst [vmem:[#allocation3 + $0x70] sm:$0xff] %v1483
      %1516 = vst [vmem:[#allocation3 + $0x78] sm:$0xff] %v1484
      %1517 = vst [vmem:[#allocation3 + $0x80] sm:$0xff] %v1485
      %1518 = vst [vmem:[#allocation3 + $0x88] sm:$0xff] %v1486
      %1519 = vst [vmem:[#allocation3 + $0x90] sm:$0xff] %v1487
      %1520 = vst [vmem:[#allocation3 + $0x98] sm:$0xff] %v1488
      %1521 = vst [vmem:[#allocation3 + $0xa0] sm:$0xff] %v1489
      %1522 = vst [vmem:[#allocation3 + $0xa8] sm:$0xff] %v1490
      %1523 = vst [vmem:[#allocation3 + $0xb0] sm:$0xff] %v1491
      %1524 = vst [vmem:[#allocation3 + $0xb8] sm:$0xff] %v1492
      %1525 = vst [vmem:[#allocation3 + $0xc0] sm:$0xff] %v1493
      %1526 = vst [vmem:[#allocation3 + $0xc8] sm:$0xff] %v1494
      %1527 = vst [vmem:[#allocation3 + $0xd0] sm:$0xff] %v1495
      %1528 = vst [vmem:[#allocation3 + $0xd8] sm:$0xff] %v1496
      %1529 = vst [vmem:[#allocation3 + $0xe0] sm:$0xff] %v1497
      %1530 = vst [vmem:[#allocation3 + $0xe8] sm:$0xff] %v1498
      %1531 = vst [vmem:[#allocation3 + $0xf0] sm:$0xff] %v1499
      %1532 = vst [vmem:[#allocation3 + $0xf8] sm:$0xff] %v1500
      %v1533 = vld [vmem:[%s281] sm:$0xff]
      %v1534 = vld [vmem:[%s281 + $0x8] sm:$0xff]
      %v1535 = vld [vmem:[%s281 + $0x18] sm:$0xff]
      %v1536 = vld [vmem:[%s281 + $0x20] sm:$0xff]
      %v1537 = vld [vmem:[%s281 + $0x30] sm:$0xff]
      %v1538 = vld [vmem:[%s281 + $0x38] sm:$0xff]
      %v1539 = vld [vmem:[%s281 + $0x48] sm:$0xff]
      %v1540 = vld [vmem:[%s281 + $0x50] sm:$0xff]
      %v1541 = vld [vmem:[%s281 + $0x60] sm:$0xff]
      %v1542 = vld [vmem:[%s281 + $0x68] sm:$0xff]
      %v1543 = vld [vmem:[%s281 + $0x78] sm:$0xff]
      %v1544 = vld [vmem:[%s281 + $0x80] sm:$0xff]
      %v1545 = vld [vmem:[%s281 + $0x90] sm:$0xff]
      %v1546 = vld [vmem:[%s281 + $0x98] sm:$0xff]
      %v1547 = vld [vmem:[%s281 + $0xa8] sm:$0xff]
      %v1548 = vld [vmem:[%s281 + $0xb0] sm:$0xff]
      %v1549 = vld [vmem:[%s281 + $0xc0] sm:$0xff]
      %v1550 = vld [vmem:[%s281 + $0xc8] sm:$0xff]
      %v1551 = vld [vmem:[%s281 + $0xd8] sm:$0xff]
      %v1552 = vld [vmem:[%s281 + $0xe0] sm:$0xff]
      %v1553 = vld [vmem:[%s281 + $0xf0] sm:$0xff]
      %v1554 = vld [vmem:[%s281 + $0xf8] sm:$0xff]
      %v1555 = vld [vmem:[%s281 + $0x108] sm:$0xff]
      %v1556 = vld [vmem:[%s281 + $0x110] sm:$0xff]
      %v1557 = vld [vmem:[%s281 + $0x120] sm:$0xff]
      %v1558 = vld [vmem:[%s281 + $0x128] sm:$0xff]
      %v1559 = vld [vmem:[%s281 + $0x138] sm:$0xff]
      %v1560 = vld [vmem:[%s281 + $0x140] sm:$0xff]
      %v1561 = vld [vmem:[%s281 + $0x150] sm:$0xff]
      %v1562 = vld [vmem:[%s281 + $0x158] sm:$0xff]
      %v1563 = vld [vmem:[%s281 + $0x168] sm:$0xff]
      %v1564 = vld [vmem:[%s281 + $0x170] sm:$0xff]
      %v1565 = vpack.c.bf16 %v1534, %v1533
      %v1566 = vpack.c.bf16 %v1536, %v1535
      %v1567 = vpack.c.bf16 %v1538, %v1537
      %v1568 = vpack.c.bf16 %v1540, %v1539
      %v1569 = vpack.c.bf16 %v1542, %v1541
      %v1570 = vpack.c.bf16 %v1544, %v1543
      %v1571 = vpack.c.bf16 %v1546, %v1545
      %v1572 = vpack.c.bf16 %v1548, %v1547
      %v1573 = vpack.c.bf16 %v1550, %v1549
      %v1574 = vpack.c.bf16 %v1552, %v1551
      %v1575 = vpack.c.bf16 %v1554, %v1553
      %v1576 = vpack.c.bf16 %v1556, %v1555
      %v1577 = vpack.c.bf16 %v1558, %v1557
      %v1578 = vpack.c.bf16 %v1560, %v1559
      %v1579 = vpack.c.bf16 %v1562, %v1561
      %v1580 = vpack.c.bf16 %v1564, %v1563
      %s1581 = scalar_lea.vmem %s1, 192
      %v1582 = vld [vmem:[%s1581] sm:$0xf]
      %v1583 = vld [vmem:[%s1581 + $0x4] sm:$0xf]
      %v1584 = vld [vmem:[%s1581 + $0x8] sm:$0xf]
      %v1585 = vld [vmem:[%s1581 + $0xc] sm:$0xf]
      %v1586 = vld [vmem:[%s1581 + $0x10] sm:$0xf]
      %v1587 = vld [vmem:[%s1581 + $0x14] sm:$0xf]
      %v1588 = vld [vmem:[%s1581 + $0x18] sm:$0xf]
      %v1589 = vld [vmem:[%s1581 + $0x1c] sm:$0xf]
      %v1590 = vld [vmem:[%s1581 + $0x20] sm:$0xf]
      %v1591 = vld [vmem:[%s1581 + $0x24] sm:$0xf]
      %v1592 = vld [vmem:[%s1581 + $0x28] sm:$0xf]
      %v1593 = vld [vmem:[%s1581 + $0x2c] sm:$0xf]
      %v1594 = vld [vmem:[%s1581 + $0x30] sm:$0xf]
      %v1595 = vld [vmem:[%s1581 + $0x34] sm:$0xf]
      %v1596 = vld [vmem:[%s1581 + $0x38] sm:$0xf]
      %v1597 = vld [vmem:[%s1581 + $0x3c] sm:$0xf]
      %v1614 = vunpack.c.l.b16 %v1582
      %v1615 = vunpack.c.l.b16 %v1583
      %v1616 = vunpack.c.l.b16 %v1584
      %v1617 = vunpack.c.l.b16 %v1585
      %v1618 = vunpack.c.l.b16 %v1586
      %v1619 = vunpack.c.l.b16 %v1587
      %v1620 = vunpack.c.l.b16 %v1588
      %v1621 = vunpack.c.l.b16 %v1589
      %v1622 = vunpack.c.l.b16 %v1590
      %v1623 = vunpack.c.l.b16 %v1591
      %v1624 = vunpack.c.l.b16 %v1592
      %v1625 = vunpack.c.l.b16 %v1593
      %v1626 = vunpack.c.l.b16 %v1594
      %v1627 = vunpack.c.l.b16 %v1595
      %v1628 = vunpack.c.l.b16 %v1596
      %v1629 = vunpack.c.l.b16 %v1597
      %v1630 = vpack.c.b16 %v1615, %v1614
      %v1631 = vpack.c.b16 %v1617, %v1616
      %v1632 = vpack.c.b16 %v1619, %v1618
      %v1633 = vpack.c.b16 %v1621, %v1620
      %v1634 = vpack.c.b16 %v1623, %v1622
      %v1635 = vpack.c.b16 %v1625, %v1624
      %v1636 = vpack.c.b16 %v1627, %v1626
      %v1637 = vpack.c.b16 %v1629, %v1628
      %1646 = vmatprep.subr.bf16.mxu0 0
      %1647 = vmatpush1.bf16.msra.mxu0 %v1637
      %1648 = vmatprep.subr.bf16.mxu0 0
      %1649 = vmatpush1.bf16.msra.mxu0 %v1636
      %1650 = vmatprep.subr.bf16.mxu0 0
      %1651 = vmatpush1.bf16.msra.mxu0 %v1635
      %1652 = vmatprep.subr.bf16.mxu0 0
      %1653 = vmatpush1.bf16.msra.mxu0 %v1634
      %1654 = vmatprep.subr.bf16.mxu0 0
      %1655 = vmatpush1.bf16.msra.mxu0 %v1633
      %1656 = vmatprep.subr.bf16.mxu0 0
      %1657 = vmatpush1.bf16.msra.mxu0 %v1632
      %1658 = vmatprep.subr.bf16.mxu0 0
      %1659 = vmatpush1.bf16.msra.mxu0 %v1631
      %1660 = vmatprep.subr.bf16.mxu0 0
      %1661 = vmatpush1.bf16.msra.mxu0 %v1630
      %1662 = vmatprep.subr.bf16.mxu0 0
      %1663 = vmatpush2.bf16.msra.mxu0 0
      %1664 = vmatprep.subr.bf16.mxu0 0
      %1665 = vmatpush2.bf16.msra.mxu0 0
      %1666 = vmatprep.subr.bf16.mxu0 0
      %1667 = vmatpush2.bf16.msra.mxu0 0
      %1668 = vmatprep.subr.bf16.mxu0 0
      %1669 = vmatpush2.bf16.msra.mxu0 0
      %1670 = vmatprep.subr.bf16.mxu0 0
      %1671 = vmatpush2.bf16.msra.mxu0 0
      %1672 = vmatprep.subr.bf16.mxu0 0
      %1673 = vmatpush2.bf16.msra.mxu0 0
      %1674 = vmatprep.subr.bf16.mxu0 0
      %1675 = vmatpush2.bf16.msra.mxu0 0
      %1676 = vmatprep.subr.bf16.mxu0 0
      %1677 = vmatpush2.bf16.msra.mxu0 0
      %1678 = vmatprep.mubr.bf16.mxu0 0
      %1679 = vmatmul.mubr.bf16.gmra.mxu0 %v1565
      %v1680 = vpop.f32.mrf.mxu0
      %v1681 = vadd.f32 0.0, %v1680
      %v1682 = vpop.f32.mrf.mxu0
      %v1683 = vpop.f32.mrf.mxu0
      %v1684 = vadd.f32 0.0, %v1683
      %v1685 = vpop.f32.mrf.mxu0
      %1686 = vmatprep.mubr.bf16.mxu0 0
      %1687 = vmatmul.mubr.bf16.gmra.mxu0 %v1566
      %v1688 = vpop.f32.mrf.mxu0
      %v1689 = vadd.f32 0.0, %v1688
      %v1690 = vpop.f32.mrf.mxu0
      %v1691 = vpop.f32.mrf.mxu0
      %v1692 = vadd.f32 0.0, %v1691
      %v1693 = vpop.f32.mrf.mxu0
      %1694 = vmatprep.mubr.bf16.mxu0 0
      %1695 = vmatmul.mubr.bf16.gmra.mxu0 %v1567
      %v1696 = vpop.f32.mrf.mxu0
      %v1697 = vadd.f32 0.0, %v1696
      %v1698 = vpop.f32.mrf.mxu0
      %v1699 = vpop.f32.mrf.mxu0
      %v1700 = vadd.f32 0.0, %v1699
      %v1701 = vpop.f32.mrf.mxu0
      %1702 = vmatprep.mubr.bf16.mxu0 0
      %1703 = vmatmul.mubr.bf16.gmra.mxu0 %v1568
      %v1704 = vpop.f32.mrf.mxu0
      %v1705 = vadd.f32 0.0, %v1704
      %v1706 = vpop.f32.mrf.mxu0
      %v1707 = vpop.f32.mrf.mxu0
      %v1708 = vadd.f32 0.0, %v1707
      %v1709 = vpop.f32.mrf.mxu0
      %1710 = vmatprep.mubr.bf16.mxu0 0
      %1711 = vmatmul.mubr.bf16.gmra.mxu0 %v1569
      %v1712 = vpop.f32.mrf.mxu0
      %v1713 = vadd.f32 0.0, %v1712
      %v1714 = vpop.f32.mrf.mxu0
      %v1715 = vpop.f32.mrf.mxu0
      %v1716 = vadd.f32 0.0, %v1715
      %v1717 = vpop.f32.mrf.mxu0
      %1718 = vmatprep.mubr.bf16.mxu0 0
      %1719 = vmatmul.mubr.bf16.gmra.mxu0 %v1570
      %v1720 = vpop.f32.mrf.mxu0
      %v1721 = vadd.f32 0.0, %v1720
      %v1722 = vpop.f32.mrf.mxu0
      %v1723 = vpop.f32.mrf.mxu0
      %v1724 = vadd.f32 0.0, %v1723
      %v1725 = vpop.f32.mrf.mxu0
      %1726 = vmatprep.mubr.bf16.mxu0 0
      %1727 = vmatmul.mubr.bf16.gmra.mxu0 %v1571
      %v1728 = vpop.f32.mrf.mxu0
      %v1729 = vadd.f32 0.0, %v1728
      %v1730 = vpop.f32.mrf.mxu0
      %v1731 = vpop.f32.mrf.mxu0
      %v1732 = vadd.f32 0.0, %v1731
      %v1733 = vpop.f32.mrf.mxu0
      %1734 = vmatprep.mubr.bf16.mxu0 0
      %1735 = vmatmul.mubr.bf16.gmra.mxu0 %v1572
      %v1736 = vpop.f32.mrf.mxu0
      %v1737 = vadd.f32 0.0, %v1736
      %v1738 = vpop.f32.mrf.mxu0
      %v1739 = vpop.f32.mrf.mxu0
      %v1740 = vadd.f32 0.0, %v1739
      %v1741 = vpop.f32.mrf.mxu0
      %1742 = vmatprep.mubr.bf16.mxu0 0
      %1743 = vmatmul.mubr.bf16.gmra.mxu0 %v1573
      %v1744 = vpop.f32.mrf.mxu0
      %v1745 = vadd.f32 0.0, %v1744
      %v1746 = vpop.f32.mrf.mxu0
      %v1747 = vpop.f32.mrf.mxu0
      %v1748 = vadd.f32 0.0, %v1747
      %v1749 = vpop.f32.mrf.mxu0
      %1750 = vmatprep.mubr.bf16.mxu0 0
      %1751 = vmatmul.mubr.bf16.gmra.mxu0 %v1574
      %v1752 = vpop.f32.mrf.mxu0
      %v1753 = vadd.f32 0.0, %v1752
      %v1754 = vpop.f32.mrf.mxu0
      %v1755 = vpop.f32.mrf.mxu0
      %v1756 = vadd.f32 0.0, %v1755
      %v1757 = vpop.f32.mrf.mxu0
      %1758 = vmatprep.mubr.bf16.mxu0 0
      %1759 = vmatmul.mubr.bf16.gmra.mxu0 %v1575
      %v1760 = vpop.f32.mrf.mxu0
      %v1761 = vadd.f32 0.0, %v1760
      %v1762 = vpop.f32.mrf.mxu0
      %v1763 = vpop.f32.mrf.mxu0
      %v1764 = vadd.f32 0.0, %v1763
      %v1765 = vpop.f32.mrf.mxu0
      %1766 = vmatprep.mubr.bf16.mxu0 0
      %1767 = vmatmul.mubr.bf16.gmra.mxu0 %v1576
      %v1768 = vpop.f32.mrf.mxu0
      %v1769 = vadd.f32 0.0, %v1768
      %v1770 = vpop.f32.mrf.mxu0
      %v1771 = vpop.f32.mrf.mxu0
      %v1772 = vadd.f32 0.0, %v1771
      %v1773 = vpop.f32.mrf.mxu0
      %1774 = vmatprep.mubr.bf16.mxu0 0
      %1775 = vmatmul.mubr.bf16.gmra.mxu0 %v1577
      %v1776 = vpop.f32.mrf.mxu0
      %v1777 = vadd.f32 0.0, %v1776
      %v1778 = vpop.f32.mrf.mxu0
      %v1779 = vpop.f32.mrf.mxu0
      %v1780 = vadd.f32 0.0, %v1779
      %v1781 = vpop.f32.mrf.mxu0
      %1782 = vmatprep.mubr.bf16.mxu0 0
      %1783 = vmatmul.mubr.bf16.gmra.mxu0 %v1578
      %v1784 = vpop.f32.mrf.mxu0
      %v1785 = vadd.f32 0.0, %v1784
      %v1786 = vpop.f32.mrf.mxu0
      %v1787 = vpop.f32.mrf.mxu0
      %v1788 = vadd.f32 0.0, %v1787
      %v1789 = vpop.f32.mrf.mxu0
      %1790 = vmatprep.mubr.bf16.mxu0 0
      %1791 = vmatmul.mubr.bf16.gmra.mxu0 %v1579
      %v1792 = vpop.f32.mrf.mxu0
      %v1793 = vadd.f32 0.0, %v1792
      %v1794 = vpop.f32.mrf.mxu0
      %v1795 = vpop.f32.mrf.mxu0
      %v1796 = vadd.f32 0.0, %v1795
      %v1797 = vpop.f32.mrf.mxu0
      %1798 = vmatprep.mubr.bf16.mxu0 0
      %1799 = vmatmul.mubr.bf16.gmra.mxu0 %v1580
      %v1800 = vpop.f32.mrf.mxu0
      %v1801 = vadd.f32 0.0, %v1800
      %v1802 = vpop.f32.mrf.mxu0
      %v1803 = vpop.f32.mrf.mxu0
      %v1804 = vadd.f32 0.0, %v1803
      %v1805 = vpop.f32.mrf.mxu0
      %1806 = vdwg.mxu0
      %v1807 = vld [vmem:[#allocation3] sm:$0xff]
      %v1808 = vld [vmem:[#allocation3 + $0x8] sm:$0xff]
      %v1809 = vld [vmem:[#allocation3 + $0x10] sm:$0xff]
      %v1810 = vld [vmem:[#allocation3 + $0x18] sm:$0xff]
      %v1811 = vld [vmem:[#allocation3 + $0x20] sm:$0xff]
      %v1812 = vld [vmem:[#allocation3 + $0x28] sm:$0xff]
      %v1813 = vld [vmem:[#allocation3 + $0x30] sm:$0xff]
      %v1814 = vld [vmem:[#allocation3 + $0x38] sm:$0xff]
      %v1815 = vld [vmem:[#allocation3 + $0x40] sm:$0xff]
      %v1816 = vld [vmem:[#allocation3 + $0x48] sm:$0xff]
      %v1817 = vld [vmem:[#allocation3 + $0x50] sm:$0xff]
      %v1818 = vld [vmem:[#allocation3 + $0x58] sm:$0xff]
      %v1819 = vld [vmem:[#allocation3 + $0x60] sm:$0xff]
      %v1820 = vld [vmem:[#allocation3 + $0x68] sm:$0xff]
      %v1821 = vld [vmem:[#allocation3 + $0x70] sm:$0xff]
      %v1822 = vld [vmem:[#allocation3 + $0x78] sm:$0xff]
      %v1823 = vld [vmem:[#allocation3 + $0x80] sm:$0xff]
      %v1824 = vld [vmem:[#allocation3 + $0x88] sm:$0xff]
      %v1825 = vld [vmem:[#allocation3 + $0x90] sm:$0xff]
      %v1826 = vld [vmem:[#allocation3 + $0x98] sm:$0xff]
      %v1827 = vld [vmem:[#allocation3 + $0xa0] sm:$0xff]
      %v1828 = vld [vmem:[#allocation3 + $0xa8] sm:$0xff]
      %v1829 = vld [vmem:[#allocation3 + $0xb0] sm:$0xff]
      %v1830 = vld [vmem:[#allocation3 + $0xb8] sm:$0xff]
      %v1831 = vld [vmem:[#allocation3 + $0xc0] sm:$0xff]
      %v1832 = vld [vmem:[#allocation3 + $0xc8] sm:$0xff]
      %v1833 = vld [vmem:[#allocation3 + $0xd0] sm:$0xff]
      %v1834 = vld [vmem:[#allocation3 + $0xd8] sm:$0xff]
      %v1835 = vld [vmem:[#allocation3 + $0xe0] sm:$0xff]
      %v1836 = vld [vmem:[#allocation3 + $0xe8] sm:$0xff]
      %v1837 = vld [vmem:[#allocation3 + $0xf0] sm:$0xff]
      %v1838 = vld [vmem:[#allocation3 + $0xf8] sm:$0xff]
      %v1839 = vadd.f32 %v1807, %v1681
      %v1840 = vadd.f32 %v1808, %v1684
      %v1841 = vadd.f32 %v1809, %v1689
      %v1842 = vadd.f32 %v1810, %v1692
      %v1843 = vadd.f32 %v1811, %v1697
      %v1844 = vadd.f32 %v1812, %v1700
      %v1845 = vadd.f32 %v1813, %v1705
      %v1846 = vadd.f32 %v1814, %v1708
      %v1847 = vadd.f32 %v1815, %v1713
      %v1848 = vadd.f32 %v1816, %v1716
      %v1849 = vadd.f32 %v1817, %v1721
      %v1850 = vadd.f32 %v1818, %v1724
      %v1851 = vadd.f32 %v1819, %v1729
      %v1852 = vadd.f32 %v1820, %v1732
      %v1853 = vadd.f32 %v1821, %v1737
      %v1854 = vadd.f32 %v1822, %v1740
      %v1855 = vadd.f32 %v1823, %v1745
      %v1856 = vadd.f32 %v1824, %v1748
      %v1857 = vadd.f32 %v1825, %v1753
      %v1858 = vadd.f32 %v1826, %v1756
      %v1859 = vadd.f32 %v1827, %v1761
      %v1860 = vadd.f32 %v1828, %v1764
      %v1861 = vadd.f32 %v1829, %v1769
      %v1862 = vadd.f32 %v1830, %v1772
      %v1863 = vadd.f32 %v1831, %v1777
      %v1864 = vadd.f32 %v1832, %v1780
      %v1865 = vadd.f32 %v1833, %v1785
      %v1866 = vadd.f32 %v1834, %v1788
      %v1867 = vadd.f32 %v1835, %v1793
      %v1868 = vadd.f32 %v1836, %v1796
      %v1869 = vadd.f32 %v1837, %v1801
      %v1870 = vadd.f32 %v1838, %v1804
      %1871 = vst [vmem:[#allocation3] sm:$0xff] %v1839
      %1872 = vst [vmem:[#allocation3 + $0x8] sm:$0xff] %v1840
      %1873 = vst [vmem:[#allocation3 + $0x10] sm:$0xff] %v1841
      %1874 = vst [vmem:[#allocation3 + $0x18] sm:$0xff] %v1842
      %1875 = vst [vmem:[#allocation3 + $0x20] sm:$0xff] %v1843
      %1876 = vst [vmem:[#allocation3 + $0x28] sm:$0xff] %v1844
      %1877 = vst [vmem:[#allocation3 + $0x30] sm:$0xff] %v1845
      %1878 = vst [vmem:[#allocation3 + $0x38] sm:$0xff] %v1846
      %1879 = vst [vmem:[#allocation3 + $0x40] sm:$0xff] %v1847
      %1880 = vst [vmem:[#allocation3 + $0x48] sm:$0xff] %v1848
      %1881 = vst [vmem:[#allocation3 + $0x50] sm:$0xff] %v1849
      %1882 = vst [vmem:[#allocation3 + $0x58] sm:$0xff] %v1850
      %1883 = vst [vmem:[#allocation3 + $0x60] sm:$0xff] %v1851
      %1884 = vst [vmem:[#allocation3 + $0x68] sm:$0xff] %v1852
      %1885 = vst [vmem:[#allocation3 + $0x70] sm:$0xff] %v1853
      %1886 = vst [vmem:[#allocation3 + $0x78] sm:$0xff] %v1854
      %1887 = vst [vmem:[#allocation3 + $0x80] sm:$0xff] %v1855
      %1888 = vst [vmem:[#allocation3 + $0x88] sm:$0xff] %v1856
      %1889 = vst [vmem:[#allocation3 + $0x90] sm:$0xff] %v1857
      %1890 = vst [vmem:[#allocation3 + $0x98] sm:$0xff] %v1858
      %1891 = vst [vmem:[#allocation3 + $0xa0] sm:$0xff] %v1859
      %1892 = vst [vmem:[#allocation3 + $0xa8] sm:$0xff] %v1860
      %1893 = vst [vmem:[#allocation3 + $0xb0] sm:$0xff] %v1861
      %1894 = vst [vmem:[#allocation3 + $0xb8] sm:$0xff] %v1862
      %1895 = vst [vmem:[#allocation3 + $0xc0] sm:$0xff] %v1863
      %1896 = vst [vmem:[#allocation3 + $0xc8] sm:$0xff] %v1864
      %1897 = vst [vmem:[#allocation3 + $0xd0] sm:$0xff] %v1865
      %1898 = vst [vmem:[#allocation3 + $0xd8] sm:$0xff] %v1866
      %1899 = vst [vmem:[#allocation3 + $0xe0] sm:$0xff] %v1867
      %1900 = vst [vmem:[#allocation3 + $0xe8] sm:$0xff] %v1868
      %1901 = vst [vmem:[#allocation3 + $0xf0] sm:$0xff] %v1869
      %1902 = vst [vmem:[#allocation3 + $0xf8] sm:$0xff] %v1870
      %v1903 = vld [vmem:[%s281 + $0x1] sm:$0xff]
      %v1904 = vld [vmem:[%s281 + $0x9] sm:$0xff]
      %v1905 = vld [vmem:[%s281 + $0x19] sm:$0xff]
      %v1906 = vld [vmem:[%s281 + $0x21] sm:$0xff]
      %v1907 = vld [vmem:[%s281 + $0x31] sm:$0xff]
      %v1908 = vld [vmem:[%s281 + $0x39] sm:$0xff]
      %v1909 = vld [vmem:[%s281 + $0x49] sm:$0xff]
      %v1910 = vld [vmem:[%s281 + $0x51] sm:$0xff]
      %v1911 = vld [vmem:[%s281 + $0x61] sm:$0xff]
      %v1912 = vld [vmem:[%s281 + $0x69] sm:$0xff]
      %v1913 = vld [vmem:[%s281 + $0x79] sm:$0xff]
      %v1914 = vld [vmem:[%s281 + $0x81] sm:$0xff]
      %v1915 = vld [vmem:[%s281 + $0x91] sm:$0xff]
      %v1916 = vld [vmem:[%s281 + $0x99] sm:$0xff]
      %v1917 = vld [vmem:[%s281 + $0xa9] sm:$0xff]
      %v1918 = vld [vmem:[%s281 + $0xb1] sm:$0xff]
      %v1919 = vld [vmem:[%s281 + $0xc1] sm:$0xff]
      %v1920 = vld [vmem:[%s281 + $0xc9] sm:$0xff]
      %v1921 = vld [vmem:[%s281 + $0xd9] sm:$0xff]
      %v1922 = vld [vmem:[%s281 + $0xe1] sm:$0xff]
      %v1923 = vld [vmem:[%s281 + $0xf1] sm:$0xff]
      %v1924 = vld [vmem:[%s281 + $0xf9] sm:$0xff]
      %v1925 = vld [vmem:[%s281 + $0x109] sm:$0xff]
      %v1926 = vld [vmem:[%s281 + $0x111] sm:$0xff]
      %v1927 = vld [vmem:[%s281 + $0x121] sm:$0xff]
      %v1928 = vld [vmem:[%s281 + $0x129] sm:$0xff]
      %v1929 = vld [vmem:[%s281 + $0x139] sm:$0xff]
      %v1930 = vld [vmem:[%s281 + $0x141] sm:$0xff]
      %v1931 = vld [vmem:[%s281 + $0x151] sm:$0xff]
      %v1932 = vld [vmem:[%s281 + $0x159] sm:$0xff]
      %v1933 = vld [vmem:[%s281 + $0x169] sm:$0xff]
      %v1934 = vld [vmem:[%s281 + $0x171] sm:$0xff]
      %v1935 = vpack.c.bf16 %v1904, %v1903
      %v1936 = vpack.c.bf16 %v1906, %v1905
      %v1937 = vpack.c.bf16 %v1908, %v1907
      %v1938 = vpack.c.bf16 %v1910, %v1909
      %v1939 = vpack.c.bf16 %v1912, %v1911
      %v1940 = vpack.c.bf16 %v1914, %v1913
      %v1941 = vpack.c.bf16 %v1916, %v1915
      %v1942 = vpack.c.bf16 %v1918, %v1917
      %v1943 = vpack.c.bf16 %v1920, %v1919
      %v1944 = vpack.c.bf16 %v1922, %v1921
      %v1945 = vpack.c.bf16 %v1924, %v1923
      %v1946 = vpack.c.bf16 %v1926, %v1925
      %v1947 = vpack.c.bf16 %v1928, %v1927
      %v1948 = vpack.c.bf16 %v1930, %v1929
      %v1949 = vpack.c.bf16 %v1932, %v1931
      %v1950 = vpack.c.bf16 %v1934, %v1933
      %s1951 = scalar_lea.vmem %s1, 256
      %v1952 = vld [vmem:[%s1951] sm:$0xf]
      %v1953 = vld [vmem:[%s1951 + $0x4] sm:$0xf]
      %v1954 = vld [vmem:[%s1951 + $0x8] sm:$0xf]
      %v1955 = vld [vmem:[%s1951 + $0xc] sm:$0xf]
      %v1956 = vld [vmem:[%s1951 + $0x10] sm:$0xf]
      %v1957 = vld [vmem:[%s1951 + $0x14] sm:$0xf]
      %v1958 = vld [vmem:[%s1951 + $0x18] sm:$0xf]
      %v1959 = vld [vmem:[%s1951 + $0x1c] sm:$0xf]
      %v1960 = vld [vmem:[%s1951 + $0x20] sm:$0xf]
      %v1961 = vld [vmem:[%s1951 + $0x24] sm:$0xf]
      %v1962 = vld [vmem:[%s1951 + $0x28] sm:$0xf]
      %v1963 = vld [vmem:[%s1951 + $0x2c] sm:$0xf]
      %v1964 = vld [vmem:[%s1951 + $0x30] sm:$0xf]
      %v1965 = vld [vmem:[%s1951 + $0x34] sm:$0xf]
      %v1966 = vld [vmem:[%s1951 + $0x38] sm:$0xf]
      %v1967 = vld [vmem:[%s1951 + $0x3c] sm:$0xf]
      %v1984 = vunpack.c.l.b16 %v1952
      %v1985 = vunpack.c.l.b16 %v1953
      %v1986 = vunpack.c.l.b16 %v1954
      %v1987 = vunpack.c.l.b16 %v1955
      %v1988 = vunpack.c.l.b16 %v1956
      %v1989 = vunpack.c.l.b16 %v1957
      %v1990 = vunpack.c.l.b16 %v1958
      %v1991 = vunpack.c.l.b16 %v1959
      %v1992 = vunpack.c.l.b16 %v1960
      %v1993 = vunpack.c.l.b16 %v1961
      %v1994 = vunpack.c.l.b16 %v1962
      %v1995 = vunpack.c.l.b16 %v1963
      %v1996 = vunpack.c.l.b16 %v1964
      %v1997 = vunpack.c.l.b16 %v1965
      %v1998 = vunpack.c.l.b16 %v1966
      %v1999 = vunpack.c.l.b16 %v1967
      %v2000 = vpack.c.b16 %v1985, %v1984
      %v2001 = vpack.c.b16 %v1987, %v1986
      %v2002 = vpack.c.b16 %v1989, %v1988
      %v2003 = vpack.c.b16 %v1991, %v1990
      %v2004 = vpack.c.b16 %v1993, %v1992
      %v2005 = vpack.c.b16 %v1995, %v1994
      %v2006 = vpack.c.b16 %v1997, %v1996
      %v2007 = vpack.c.b16 %v1999, %v1998
      %2016 = vmatprep.subr.bf16.mxu0 0
      %2017 = vmatpush1.bf16.msra.mxu0 %v2007
      %2018 = vmatprep.subr.bf16.mxu0 0
      %2019 = vmatpush1.bf16.msra.mxu0 %v2006
      %2020 = vmatprep.subr.bf16.mxu0 0
      %2021 = vmatpush1.bf16.msra.mxu0 %v2005
      %2022 = vmatprep.subr.bf16.mxu0 0
      %2023 = vmatpush1.bf16.msra.mxu0 %v2004
      %2024 = vmatprep.subr.bf16.mxu0 0
      %2025 = vmatpush1.bf16.msra.mxu0 %v2003
      %2026 = vmatprep.subr.bf16.mxu0 0
      %2027 = vmatpush1.bf16.msra.mxu0 %v2002
      %2028 = vmatprep.subr.bf16.mxu0 0
      %2029 = vmatpush1.bf16.msra.mxu0 %v2001
      %2030 = vmatprep.subr.bf16.mxu0 0
      %2031 = vmatpush1.bf16.msra.mxu0 %v2000
      %2032 = vmatprep.subr.bf16.mxu0 0
      %2033 = vmatpush2.bf16.msra.mxu0 0
      %2034 = vmatprep.subr.bf16.mxu0 0
      %2035 = vmatpush2.bf16.msra.mxu0 0
      %2036 = vmatprep.subr.bf16.mxu0 0
      %2037 = vmatpush2.bf16.msra.mxu0 0
      %2038 = vmatprep.subr.bf16.mxu0 0
      %2039 = vmatpush2.bf16.msra.mxu0 0
      %2040 = vmatprep.subr.bf16.mxu0 0
      %2041 = vmatpush2.bf16.msra.mxu0 0
      %2042 = vmatprep.subr.bf16.mxu0 0
      %2043 = vmatpush2.bf16.msra.mxu0 0
      %2044 = vmatprep.subr.bf16.mxu0 0
      %2045 = vmatpush2.bf16.msra.mxu0 0
      %2046 = vmatprep.subr.bf16.mxu0 0
      %2047 = vmatpush2.bf16.msra.mxu0 0
      %2048 = vmatprep.mubr.bf16.mxu0 0
      %2049 = vmatmul.mubr.bf16.gmra.mxu0 %v1935
      %v2050 = vpop.f32.mrf.mxu0
      %v2051 = vadd.f32 0.0, %v2050
      %v2052 = vpop.f32.mrf.mxu0
      %v2053 = vpop.f32.mrf.mxu0
      %v2054 = vadd.f32 0.0, %v2053
      %v2055 = vpop.f32.mrf.mxu0
      %2056 = vmatprep.mubr.bf16.mxu0 0
      %2057 = vmatmul.mubr.bf16.gmra.mxu0 %v1936
      %v2058 = vpop.f32.mrf.mxu0
      %v2059 = vadd.f32 0.0, %v2058
      %v2060 = vpop.f32.mrf.mxu0
      %v2061 = vpop.f32.mrf.mxu0
      %v2062 = vadd.f32 0.0, %v2061
      %v2063 = vpop.f32.mrf.mxu0
      %2064 = vmatprep.mubr.bf16.mxu0 0
      %2065 = vmatmul.mubr.bf16.gmra.mxu0 %v1937
      %v2066 = vpop.f32.mrf.mxu0
      %v2067 = vadd.f32 0.0, %v2066
      %v2068 = vpop.f32.mrf.mxu0
      %v2069 = vpop.f32.mrf.mxu0
      %v2070 = vadd.f32 0.0, %v2069
      %v2071 = vpop.f32.mrf.mxu0
      %2072 = vmatprep.mubr.bf16.mxu0 0
      %2073 = vmatmul.mubr.bf16.gmra.mxu0 %v1938
      %v2074 = vpop.f32.mrf.mxu0
      %v2075 = vadd.f32 0.0, %v2074
      %v2076 = vpop.f32.mrf.mxu0
      %v2077 = vpop.f32.mrf.mxu0
      %v2078 = vadd.f32 0.0, %v2077
      %v2079 = vpop.f32.mrf.mxu0
      %2080 = vmatprep.mubr.bf16.mxu0 0
      %2081 = vmatmul.mubr.bf16.gmra.mxu0 %v1939
      %v2082 = vpop.f32.mrf.mxu0
      %v2083 = vadd.f32 0.0, %v2082
      %v2084 = vpop.f32.mrf.mxu0
      %v2085 = vpop.f32.mrf.mxu0
      %v2086 = vadd.f32 0.0, %v2085
      %v2087 = vpop.f32.mrf.mxu0
      %2088 = vmatprep.mubr.bf16.mxu0 0
      %2089 = vmatmul.mubr.bf16.gmra.mxu0 %v1940
      %v2090 = vpop.f32.mrf.mxu0
      %v2091 = vadd.f32 0.0, %v2090
      %v2092 = vpop.f32.mrf.mxu0
      %v2093 = vpop.f32.mrf.mxu0
      %v2094 = vadd.f32 0.0, %v2093
      %v2095 = vpop.f32.mrf.mxu0
      %2096 = vmatprep.mubr.bf16.mxu0 0
      %2097 = vmatmul.mubr.bf16.gmra.mxu0 %v1941
      %v2098 = vpop.f32.mrf.mxu0
      %v2099 = vadd.f32 0.0, %v2098
      %v2100 = vpop.f32.mrf.mxu0
      %v2101 = vpop.f32.mrf.mxu0
      %v2102 = vadd.f32 0.0, %v2101
      %v2103 = vpop.f32.mrf.mxu0
      %2104 = vmatprep.mubr.bf16.mxu0 0
      %2105 = vmatmul.mubr.bf16.gmra.mxu0 %v1942
      %v2106 = vpop.f32.mrf.mxu0
      %v2107 = vadd.f32 0.0, %v2106
      %v2108 = vpop.f32.mrf.mxu0
      %v2109 = vpop.f32.mrf.mxu0
      %v2110 = vadd.f32 0.0, %v2109
      %v2111 = vpop.f32.mrf.mxu0
      %2112 = vmatprep.mubr.bf16.mxu0 0
      %2113 = vmatmul.mubr.bf16.gmra.mxu0 %v1943
      %v2114 = vpop.f32.mrf.mxu0
      %v2115 = vadd.f32 0.0, %v2114
      %v2116 = vpop.f32.mrf.mxu0
      %v2117 = vpop.f32.mrf.mxu0
      %v2118 = vadd.f32 0.0, %v2117
      %v2119 = vpop.f32.mrf.mxu0
      %2120 = vmatprep.mubr.bf16.mxu0 0
      %2121 = vmatmul.mubr.bf16.gmra.mxu0 %v1944
      %v2122 = vpop.f32.mrf.mxu0
      %v2123 = vadd.f32 0.0, %v2122
      %v2124 = vpop.f32.mrf.mxu0
      %v2125 = vpop.f32.mrf.mxu0
      %v2126 = vadd.f32 0.0, %v2125
      %v2127 = vpop.f32.mrf.mxu0
      %2128 = vmatprep.mubr.bf16.mxu0 0
      %2129 = vmatmul.mubr.bf16.gmra.mxu0 %v1945
      %v2130 = vpop.f32.mrf.mxu0
      %v2131 = vadd.f32 0.0, %v2130
      %v2132 = vpop.f32.mrf.mxu0
      %v2133 = vpop.f32.mrf.mxu0
      %v2134 = vadd.f32 0.0, %v2133
      %v2135 = vpop.f32.mrf.mxu0
      %2136 = vmatprep.mubr.bf16.mxu0 0
      %2137 = vmatmul.mubr.bf16.gmra.mxu0 %v1946
      %v2138 = vpop.f32.mrf.mxu0
      %v2139 = vadd.f32 0.0, %v2138
      %v2140 = vpop.f32.mrf.mxu0
      %v2141 = vpop.f32.mrf.mxu0
      %v2142 = vadd.f32 0.0, %v2141
      %v2143 = vpop.f32.mrf.mxu0
      %2144 = vmatprep.mubr.bf16.mxu0 0
      %2145 = vmatmul.mubr.bf16.gmra.mxu0 %v1947
      %v2146 = vpop.f32.mrf.mxu0
      %v2147 = vadd.f32 0.0, %v2146
      %v2148 = vpop.f32.mrf.mxu0
      %v2149 = vpop.f32.mrf.mxu0
      %v2150 = vadd.f32 0.0, %v2149
      %v2151 = vpop.f32.mrf.mxu0
      %2152 = vmatprep.mubr.bf16.mxu0 0
      %2153 = vmatmul.mubr.bf16.gmra.mxu0 %v1948
      %v2154 = vpop.f32.mrf.mxu0
      %v2155 = vadd.f32 0.0, %v2154
      %v2156 = vpop.f32.mrf.mxu0
      %v2157 = vpop.f32.mrf.mxu0
      %v2158 = vadd.f32 0.0, %v2157
      %v2159 = vpop.f32.mrf.mxu0
      %2160 = vmatprep.mubr.bf16.mxu0 0
      %2161 = vmatmul.mubr.bf16.gmra.mxu0 %v1949
      %v2162 = vpop.f32.mrf.mxu0
      %v2163 = vadd.f32 0.0, %v2162
      %v2164 = vpop.f32.mrf.mxu0
      %v2165 = vpop.f32.mrf.mxu0
      %v2166 = vadd.f32 0.0, %v2165
      %v2167 = vpop.f32.mrf.mxu0
      %2168 = vmatprep.mubr.bf16.mxu0 0
      %2169 = vmatmul.mubr.bf16.gmra.mxu0 %v1950
      %v2170 = vpop.f32.mrf.mxu0
      %v2171 = vadd.f32 0.0, %v2170
      %v2172 = vpop.f32.mrf.mxu0
      %v2173 = vpop.f32.mrf.mxu0
      %v2174 = vadd.f32 0.0, %v2173
      %v2175 = vpop.f32.mrf.mxu0
      %2176 = vdwg.mxu0
      %v2177 = vld [vmem:[#allocation3] sm:$0xff]
      %v2178 = vld [vmem:[#allocation3 + $0x8] sm:$0xff]
      %v2179 = vld [vmem:[#allocation3 + $0x10] sm:$0xff]
      %v2180 = vld [vmem:[#allocation3 + $0x18] sm:$0xff]
      %v2181 = vld [vmem:[#allocation3 + $0x20] sm:$0xff]
      %v2182 = vld [vmem:[#allocation3 + $0x28] sm:$0xff]
      %v2183 = vld [vmem:[#allocation3 + $0x30] sm:$0xff]
      %v2184 = vld [vmem:[#allocation3 + $0x38] sm:$0xff]
      %v2185 = vld [vmem:[#allocation3 + $0x40] sm:$0xff]
      %v2186 = vld [vmem:[#allocation3 + $0x48] sm:$0xff]
      %v2187 = vld [vmem:[#allocation3 + $0x50] sm:$0xff]
      %v2188 = vld [vmem:[#allocation3 + $0x58] sm:$0xff]
      %v2189 = vld [vmem:[#allocation3 + $0x60] sm:$0xff]
      %v2190 = vld [vmem:[#allocation3 + $0x68] sm:$0xff]
      %v2191 = vld [vmem:[#allocation3 + $0x70] sm:$0xff]
      %v2192 = vld [vmem:[#allocation3 + $0x78] sm:$0xff]
      %v2193 = vld [vmem:[#allocation3 + $0x80] sm:$0xff]
      %v2194 = vld [vmem:[#allocation3 + $0x88] sm:$0xff]
      %v2195 = vld [vmem:[#allocation3 + $0x90] sm:$0xff]
      %v2196 = vld [vmem:[#allocation3 + $0x98] sm:$0xff]
      %v2197 = vld [vmem:[#allocation3 + $0xa0] sm:$0xff]
      %v2198 = vld [vmem:[#allocation3 + $0xa8] sm:$0xff]
      %v2199 = vld [vmem:[#allocation3 + $0xb0] sm:$0xff]
      %v2200 = vld [vmem:[#allocation3 + $0xb8] sm:$0xff]
      %v2201 = vld [vmem:[#allocation3 + $0xc0] sm:$0xff]
      %v2202 = vld [vmem:[#allocation3 + $0xc8] sm:$0xff]
      %v2203 = vld [vmem:[#allocation3 + $0xd0] sm:$0xff]
      %v2204 = vld [vmem:[#allocation3 + $0xd8] sm:$0xff]
      %v2205 = vld [vmem:[#allocation3 + $0xe0] sm:$0xff]
      %v2206 = vld [vmem:[#allocation3 + $0xe8] sm:$0xff]
      %v2207 = vld [vmem:[#allocation3 + $0xf0] sm:$0xff]
      %v2208 = vld [vmem:[#allocation3 + $0xf8] sm:$0xff]
      %v2209 = vadd.f32 %v2177, %v2051
      %v2210 = vadd.f32 %v2178, %v2054
      %v2211 = vadd.f32 %v2179, %v2059
      %v2212 = vadd.f32 %v2180, %v2062
      %v2213 = vadd.f32 %v2181, %v2067
      %v2214 = vadd.f32 %v2182, %v2070
      %v2215 = vadd.f32 %v2183, %v2075
      %v2216 = vadd.f32 %v2184, %v2078
      %v2217 = vadd.f32 %v2185, %v2083
      %v2218 = vadd.f32 %v2186, %v2086
      %v2219 = vadd.f32 %v2187, %v2091
      %v2220 = vadd.f32 %v2188, %v2094
      %v2221 = vadd.f32 %v2189, %v2099
      %v2222 = vadd.f32 %v2190, %v2102
      %v2223 = vadd.f32 %v2191, %v2107
      %v2224 = vadd.f32 %v2192, %v2110
      %v2225 = vadd.f32 %v2193, %v2115
      %v2226 = vadd.f32 %v2194, %v2118
      %v2227 = vadd.f32 %v2195, %v2123
      %v2228 = vadd.f32 %v2196, %v2126
      %v2229 = vadd.f32 %v2197, %v2131
      %v2230 = vadd.f32 %v2198, %v2134
      %v2231 = vadd.f32 %v2199, %v2139
      %v2232 = vadd.f32 %v2200, %v2142
      %v2233 = vadd.f32 %v2201, %v2147
      %v2234 = vadd.f32 %v2202, %v2150
      %v2235 = vadd.f32 %v2203, %v2155
      %v2236 = vadd.f32 %v2204, %v2158
      %v2237 = vadd.f32 %v2205, %v2163
      %v2238 = vadd.f32 %v2206, %v2166
      %v2239 = vadd.f32 %v2207, %v2171
      %v2240 = vadd.f32 %v2208, %v2174
      %2241 = vst [vmem:[#allocation3] sm:$0xff] %v2209
      %2242 = vst [vmem:[#allocation3 + $0x8] sm:$0xff] %v2210
      %2243 = vst [vmem:[#allocation3 + $0x10] sm:$0xff] %v2211
      %2244 = vst [vmem:[#allocation3 + $0x18] sm:$0xff] %v2212
      %2245 = vst [vmem:[#allocation3 + $0x20] sm:$0xff] %v2213
      %2246 = vst [vmem:[#allocation3 + $0x28] sm:$0xff] %v2214
      %2247 = vst [vmem:[#allocation3 + $0x30] sm:$0xff] %v2215
      %2248 = vst [vmem:[#allocation3 + $0x38] sm:$0xff] %v2216
      %2249 = vst [vmem:[#allocation3 + $0x40] sm:$0xff] %v2217
      %2250 = vst [vmem:[#allocation3 + $0x48] sm:$0xff] %v2218
      %2251 = vst [vmem:[#allocation3 + $0x50] sm:$0xff] %v2219
      %2252 = vst [vmem:[#allocation3 + $0x58] sm:$0xff] %v2220
      %2253 = vst [vmem:[#allocation3 + $0x60] sm:$0xff] %v2221
      %2254 = vst [vmem:[#allocation3 + $0x68] sm:$0xff] %v2222
      %2255 = vst [vmem:[#allocation3 + $0x70] sm:$0xff] %v2223
      %2256 = vst [vmem:[#allocation3 + $0x78] sm:$0xff] %v2224
      %2257 = vst [vmem:[#allocation3 + $0x80] sm:$0xff] %v2225
      %2258 = vst [vmem:[#allocation3 + $0x88] sm:$0xff] %v2226
      %2259 = vst [vmem:[#allocation3 + $0x90] sm:$0xff] %v2227
      %2260 = vst [vmem:[#allocation3 + $0x98] sm:$0xff] %v2228
      %2261 = vst [vmem:[#allocation3 + $0xa0] sm:$0xff] %v2229
      %2262 = vst [vmem:[#allocation3 + $0xa8] sm:$0xff] %v2230
      %2263 = vst [vmem:[#allocation3 + $0xb0] sm:$0xff] %v2231
      %2264 = vst [vmem:[#allocation3 + $0xb8] sm:$0xff] %v2232
      %2265 = vst [vmem:[#allocation3 + $0xc0] sm:$0xff] %v2233
      %2266 = vst [vmem:[#allocation3 + $0xc8] sm:$0xff] %v2234
      %2267 = vst [vmem:[#allocation3 + $0xd0] sm:$0xff] %v2235
      %2268 = vst [vmem:[#allocation3 + $0xd8] sm:$0xff] %v2236
      %2269 = vst [vmem:[#allocation3 + $0xe0] sm:$0xff] %v2237
      %2270 = vst [vmem:[#allocation3 + $0xe8] sm:$0xff] %v2238
      %2271 = vst [vmem:[#allocation3 + $0xf0] sm:$0xff] %v2239
      %2272 = vst [vmem:[#allocation3 + $0xf8] sm:$0xff] %v2240
      %v2273 = vld [vmem:[%s281 + $0x2] sm:$0xff]
      %v2274 = vld [vmem:[%s281 + $0xa] sm:$0xff]
      %v2275 = vld [vmem:[%s281 + $0x1a] sm:$0xff]
      %v2276 = vld [vmem:[%s281 + $0x22] sm:$0xff]
      %v2277 = vld [vmem:[%s281 + $0x32] sm:$0xff]
      %v2278 = vld [vmem:[%s281 + $0x3a] sm:$0xff]
      %v2279 = vld [vmem:[%s281 + $0x4a] sm:$0xff]
      %v2280 = vld [vmem:[%s281 + $0x52] sm:$0xff]
      %v2281 = vld [vmem:[%s281 + $0x62] sm:$0xff]
      %v2282 = vld [vmem:[%s281 + $0x6a] sm:$0xff]
      %v2283 = vld [vmem:[%s281 + $0x7a] sm:$0xff]
      %v2284 = vld [vmem:[%s281 + $0x82] sm:$0xff]
      %v2285 = vld [vmem:[%s281 + $0x92] sm:$0xff]
      %v2286 = vld [vmem:[%s281 + $0x9a] sm:$0xff]
      %v2287 = vld [vmem:[%s281 + $0xaa] sm:$0xff]
      %v2288 = vld [vmem:[%s281 + $0xb2] sm:$0xff]
      %v2289 = vld [vmem:[%s281 + $0xc2] sm:$0xff]
      %v2290 = vld [vmem:[%s281 + $0xca] sm:$0xff]
      %v2291 = vld [vmem:[%s281 + $0xda] sm:$0xff]
      %v2292 = vld [vmem:[%s281 + $0xe2] sm:$0xff]
      %v2293 = vld [vmem:[%s281 + $0xf2] sm:$0xff]
      %v2294 = vld [vmem:[%s281 + $0xfa] sm:$0xff]
      %v2295 = vld [vmem:[%s281 + $0x10a] sm:$0xff]
      %v2296 = vld [vmem:[%s281 + $0x112] sm:$0xff]
      %v2297 = vld [vmem:[%s281 + $0x122] sm:$0xff]
      %v2298 = vld [vmem:[%s281 + $0x12a] sm:$0xff]
      %v2299 = vld [vmem:[%s281 + $0x13a] sm:$0xff]
      %v2300 = vld [vmem:[%s281 + $0x142] sm:$0xff]
      %v2301 = vld [vmem:[%s281 + $0x152] sm:$0xff]
      %v2302 = vld [vmem:[%s281 + $0x15a] sm:$0xff]
      %v2303 = vld [vmem:[%s281 + $0x16a] sm:$0xff]
      %v2304 = vld [vmem:[%s281 + $0x172] sm:$0xff]
      %v2305 = vpack.c.bf16 %v2274, %v2273
      %v2306 = vpack.c.bf16 %v2276, %v2275
      %v2307 = vpack.c.bf16 %v2278, %v2277
      %v2308 = vpack.c.bf16 %v2280, %v2279
      %v2309 = vpack.c.bf16 %v2282, %v2281
      %v2310 = vpack.c.bf16 %v2284, %v2283
      %v2311 = vpack.c.bf16 %v2286, %v2285
      %v2312 = vpack.c.bf16 %v2288, %v2287
      %v2313 = vpack.c.bf16 %v2290, %v2289
      %v2314 = vpack.c.bf16 %v2292, %v2291
      %v2315 = vpack.c.bf16 %v2294, %v2293
      %v2316 = vpack.c.bf16 %v2296, %v2295
      %v2317 = vpack.c.bf16 %v2298, %v2297
      %v2318 = vpack.c.bf16 %v2300, %v2299
      %v2319 = vpack.c.bf16 %v2302, %v2301
      %v2320 = vpack.c.bf16 %v2304, %v2303
      %s2321 = scalar_lea.vmem %s1, 320
      %v2322 = vld [vmem:[%s2321] sm:$0xf]
      %v2323 = vld [vmem:[%s2321 + $0x4] sm:$0xf]
      %v2324 = vld [vmem:[%s2321 + $0x8] sm:$0xf]
      %v2325 = vld [vmem:[%s2321 + $0xc] sm:$0xf]
      %v2326 = vld [vmem:[%s2321 + $0x10] sm:$0xf]
      %v2327 = vld [vmem:[%s2321 + $0x14] sm:$0xf]
      %v2328 = vld [vmem:[%s2321 + $0x18] sm:$0xf]
      %v2329 = vld [vmem:[%s2321 + $0x1c] sm:$0xf]
      %v2330 = vld [vmem:[%s2321 + $0x20] sm:$0xf]
      %v2331 = vld [vmem:[%s2321 + $0x24] sm:$0xf]
      %v2332 = vld [vmem:[%s2321 + $0x28] sm:$0xf]
      %v2333 = vld [vmem:[%s2321 + $0x2c] sm:$0xf]
      %v2334 = vld [vmem:[%s2321 + $0x30] sm:$0xf]
      %v2335 = vld [vmem:[%s2321 + $0x34] sm:$0xf]
      %v2336 = vld [vmem:[%s2321 + $0x38] sm:$0xf]
      %v2337 = vld [vmem:[%s2321 + $0x3c] sm:$0xf]
      %v2354 = vunpack.c.l.b16 %v2322
      %v2355 = vunpack.c.l.b16 %v2323
      %v2356 = vunpack.c.l.b16 %v2324
      %v2357 = vunpack.c.l.b16 %v2325
      %v2358 = vunpack.c.l.b16 %v2326
      %v2359 = vunpack.c.l.b16 %v2327
      %v2360 = vunpack.c.l.b16 %v2328
      %v2361 = vunpack.c.l.b16 %v2329
      %v2362 = vunpack.c.l.b16 %v2330
      %v2363 = vunpack.c.l.b16 %v2331
      %v2364 = vunpack.c.l.b16 %v2332
      %v2365 = vunpack.c.l.b16 %v2333
      %v2366 = vunpack.c.l.b16 %v2334
      %v2367 = vunpack.c.l.b16 %v2335
      %v2368 = vunpack.c.l.b16 %v2336
      %v2369 = vunpack.c.l.b16 %v2337
      %v2370 = vpack.c.b16 %v2355, %v2354
      %v2371 = vpack.c.b16 %v2357, %v2356
      %v2372 = vpack.c.b16 %v2359, %v2358
      %v2373 = vpack.c.b16 %v2361, %v2360
      %v2374 = vpack.c.b16 %v2363, %v2362
      %v2375 = vpack.c.b16 %v2365, %v2364
      %v2376 = vpack.c.b16 %v2367, %v2366
      %v2377 = vpack.c.b16 %v2369, %v2368
      %2386 = vmatprep.subr.bf16.mxu0 0
      %2387 = vmatpush1.bf16.msra.mxu0 %v2377
      %2388 = vmatprep.subr.bf16.mxu0 0
      %2389 = vmatpush1.bf16.msra.mxu0 %v2376
      %2390 = vmatprep.subr.bf16.mxu0 0
      %2391 = vmatpush1.bf16.msra.mxu0 %v2375
      %2392 = vmatprep.subr.bf16.mxu0 0
      %2393 = vmatpush1.bf16.msra.mxu0 %v2374
      %2394 = vmatprep.subr.bf16.mxu0 0
      %2395 = vmatpush1.bf16.msra.mxu0 %v2373
      %2396 = vmatprep.subr.bf16.mxu0 0
      %2397 = vmatpush1.bf16.msra.mxu0 %v2372
      %2398 = vmatprep.subr.bf16.mxu0 0
      %2399 = vmatpush1.bf16.msra.mxu0 %v2371
      %2400 = vmatprep.subr.bf16.mxu0 0
      %2401 = vmatpush1.bf16.msra.mxu0 %v2370
      %2402 = vmatprep.subr.bf16.mxu0 0
      %2403 = vmatpush2.bf16.msra.mxu0 0
      %2404 = vmatprep.subr.bf16.mxu0 0
      %2405 = vmatpush2.bf16.msra.mxu0 0
      %2406 = vmatprep.subr.bf16.mxu0 0
      %2407 = vmatpush2.bf16.msra.mxu0 0
      %2408 = vmatprep.subr.bf16.mxu0 0
      %2409 = vmatpush2.bf16.msra.mxu0 0
      %2410 = vmatprep.subr.bf16.mxu0 0
      %2411 = vmatpush2.bf16.msra.mxu0 0
      %2412 = vmatprep.subr.bf16.mxu0 0
      %2413 = vmatpush2.bf16.msra.mxu0 0
      %2414 = vmatprep.subr.bf16.mxu0 0
      %2415 = vmatpush2.bf16.msra.mxu0 0
      %2416 = vmatprep.subr.bf16.mxu0 0
      %2417 = vmatpush2.bf16.msra.mxu0 0
      %2418 = vmatprep.mubr.bf16.mxu0 0
      %2419 = vmatmul.mubr.bf16.gmra.mxu0 %v2305
      %v2420 = vpop.f32.mrf.mxu0
      %v2421 = vadd.f32 0.0, %v2420
      %v2422 = vpop.f32.mrf.mxu0
      %v2423 = vpop.f32.mrf.mxu0
      %v2424 = vadd.f32 0.0, %v2423
      %v2425 = vpop.f32.mrf.mxu0
      %2426 = vmatprep.mubr.bf16.mxu0 0
      %2427 = vmatmul.mubr.bf16.gmra.mxu0 %v2306
      %v2428 = vpop.f32.mrf.mxu0
      %v2429 = vadd.f32 0.0, %v2428
      %v2430 = vpop.f32.mrf.mxu0
      %v2431 = vpop.f32.mrf.mxu0
      %v2432 = vadd.f32 0.0, %v2431
      %v2433 = vpop.f32.mrf.mxu0
      %2434 = vmatprep.mubr.bf16.mxu0 0
      %2435 = vmatmul.mubr.bf16.gmra.mxu0 %v2307
      %v2436 = vpop.f32.mrf.mxu0
      %v2437 = vadd.f32 0.0, %v2436
      %v2438 = vpop.f32.mrf.mxu0
      %v2439 = vpop.f32.mrf.mxu0
      %v2440 = vadd.f32 0.0, %v2439
      %v2441 = vpop.f32.mrf.mxu0
      %2442 = vmatprep.mubr.bf16.mxu0 0
      %2443 = vmatmul.mubr.bf16.gmra.mxu0 %v2308
      %v2444 = vpop.f32.mrf.mxu0
      %v2445 = vadd.f32 0.0, %v2444
      %v2446 = vpop.f32.mrf.mxu0
      %v2447 = vpop.f32.mrf.mxu0
      %v2448 = vadd.f32 0.0, %v2447
      %v2449 = vpop.f32.mrf.mxu0
      %2450 = vmatprep.mubr.bf16.mxu0 0
      %2451 = vmatmul.mubr.bf16.gmra.mxu0 %v2309
      %v2452 = vpop.f32.mrf.mxu0
      %v2453 = vadd.f32 0.0, %v2452
      %v2454 = vpop.f32.mrf.mxu0
      %v2455 = vpop.f32.mrf.mxu0
      %v2456 = vadd.f32 0.0, %v2455
      %v2457 = vpop.f32.mrf.mxu0
      %2458 = vmatprep.mubr.bf16.mxu0 0
      %2459 = vmatmul.mubr.bf16.gmra.mxu0 %v2310
      %v2460 = vpop.f32.mrf.mxu0
      %v2461 = vadd.f32 0.0, %v2460
      %v2462 = vpop.f32.mrf.mxu0
      %v2463 = vpop.f32.mrf.mxu0
      %v2464 = vadd.f32 0.0, %v2463
      %v2465 = vpop.f32.mrf.mxu0
      %2466 = vmatprep.mubr.bf16.mxu0 0
      %2467 = vmatmul.mubr.bf16.gmra.mxu0 %v2311
      %v2468 = vpop.f32.mrf.mxu0
      %v2469 = vadd.f32 0.0, %v2468
      %v2470 = vpop.f32.mrf.mxu0
      %v2471 = vpop.f32.mrf.mxu0
      %v2472 = vadd.f32 0.0, %v2471
      %v2473 = vpop.f32.mrf.mxu0
      %2474 = vmatprep.mubr.bf16.mxu0 0
      %2475 = vmatmul.mubr.bf16.gmra.mxu0 %v2312
      %v2476 = vpop.f32.mrf.mxu0
      %v2477 = vadd.f32 0.0, %v2476
      %v2478 = vpop.f32.mrf.mxu0
      %v2479 = vpop.f32.mrf.mxu0
      %v2480 = vadd.f32 0.0, %v2479
      %v2481 = vpop.f32.mrf.mxu0
      %2482 = vmatprep.mubr.bf16.mxu0 0
      %2483 = vmatmul.mubr.bf16.gmra.mxu0 %v2313
      %v2484 = vpop.f32.mrf.mxu0
      %v2485 = vadd.f32 0.0, %v2484
      %v2486 = vpop.f32.mrf.mxu0
      %v2487 = vpop.f32.mrf.mxu0
      %v2488 = vadd.f32 0.0, %v2487
      %v2489 = vpop.f32.mrf.mxu0
      %2490 = vmatprep.mubr.bf16.mxu0 0
      %2491 = vmatmul.mubr.bf16.gmra.mxu0 %v2314
      %v2492 = vpop.f32.mrf.mxu0
      %v2493 = vadd.f32 0.0, %v2492
      %v2494 = vpop.f32.mrf.mxu0
      %v2495 = vpop.f32.mrf.mxu0
      %v2496 = vadd.f32 0.0, %v2495
      %v2497 = vpop.f32.mrf.mxu0
      %2498 = vmatprep.mubr.bf16.mxu0 0
      %2499 = vmatmul.mubr.bf16.gmra.mxu0 %v2315
      %v2500 = vpop.f32.mrf.mxu0
      %v2501 = vadd.f32 0.0, %v2500
      %v2502 = vpop.f32.mrf.mxu0
      %v2503 = vpop.f32.mrf.mxu0
      %v2504 = vadd.f32 0.0, %v2503
      %v2505 = vpop.f32.mrf.mxu0
      %2506 = vmatprep.mubr.bf16.mxu0 0
      %2507 = vmatmul.mubr.bf16.gmra.mxu0 %v2316
      %v2508 = vpop.f32.mrf.mxu0
      %v2509 = vadd.f32 0.0, %v2508
      %v2510 = vpop.f32.mrf.mxu0
      %v2511 = vpop.f32.mrf.mxu0
      %v2512 = vadd.f32 0.0, %v2511
      %v2513 = vpop.f32.mrf.mxu0
      %2514 = vmatprep.mubr.bf16.mxu0 0
      %2515 = vmatmul.mubr.bf16.gmra.mxu0 %v2317
      %v2516 = vpop.f32.mrf.mxu0
      %v2517 = vadd.f32 0.0, %v2516
      %v2518 = vpop.f32.mrf.mxu0
      %v2519 = vpop.f32.mrf.mxu0
      %v2520 = vadd.f32 0.0, %v2519
      %v2521 = vpop.f32.mrf.mxu0
      %2522 = vmatprep.mubr.bf16.mxu0 0
      %2523 = vmatmul.mubr.bf16.gmra.mxu0 %v2318
      %v2524 = vpop.f32.mrf.mxu0
      %v2525 = vadd.f32 0.0, %v2524
      %v2526 = vpop.f32.mrf.mxu0
      %v2527 = vpop.f32.mrf.mxu0
      %v2528 = vadd.f32 0.0, %v2527
      %v2529 = vpop.f32.mrf.mxu0
      %2530 = vmatprep.mubr.bf16.mxu0 0
      %2531 = vmatmul.mubr.bf16.gmra.mxu0 %v2319
      %v2532 = vpop.f32.mrf.mxu0
      %v2533 = vadd.f32 0.0, %v2532
      %v2534 = vpop.f32.mrf.mxu0
      %v2535 = vpop.f32.mrf.mxu0
      %v2536 = vadd.f32 0.0, %v2535
      %v2537 = vpop.f32.mrf.mxu0
      %2538 = vmatprep.mubr.bf16.mxu0 0
      %2539 = vmatmul.mubr.bf16.gmra.mxu0 %v2320
      %v2540 = vpop.f32.mrf.mxu0
      %v2541 = vadd.f32 0.0, %v2540
      %v2542 = vpop.f32.mrf.mxu0
      %v2543 = vpop.f32.mrf.mxu0
      %v2544 = vadd.f32 0.0, %v2543
      %v2545 = vpop.f32.mrf.mxu0
      %2546 = vdwg.mxu0
      %v2547 = vld [vmem:[#allocation3] sm:$0xff]
      %v2548 = vld [vmem:[#allocation3 + $0x8] sm:$0xff]
      %v2549 = vld [vmem:[#allocation3 + $0x10] sm:$0xff]
      %v2550 = vld [vmem:[#allocation3 + $0x18] sm:$0xff]
      %v2551 = vld [vmem:[#allocation3 + $0x20] sm:$0xff]
      %v2552 = vld [vmem:[#allocation3 + $0x28] sm:$0xff]
      %v2553 = vld [vmem:[#allocation3 + $0x30] sm:$0xff]
      %v2554 = vld [vmem:[#allocation3 + $0x38] sm:$0xff]
      %v2555 = vld [vmem:[#allocation3 + $0x40] sm:$0xff]
      %v2556 = vld [vmem:[#allocation3 + $0x48] sm:$0xff]
      %v2557 = vld [vmem:[#allocation3 + $0x50] sm:$0xff]
      %v2558 = vld [vmem:[#allocation3 + $0x58] sm:$0xff]
      %v2559 = vld [vmem:[#allocation3 + $0x60] sm:$0xff]
      %v2560 = vld [vmem:[#allocation3 + $0x68] sm:$0xff]
      %v2561 = vld [vmem:[#allocation3 + $0x70] sm:$0xff]
      %v2562 = vld [vmem:[#allocation3 + $0x78] sm:$0xff]
      %v2563 = vld [vmem:[#allocation3 + $0x80] sm:$0xff]
      %v2564 = vld [vmem:[#allocation3 + $0x88] sm:$0xff]
      %v2565 = vld [vmem:[#allocation3 + $0x90] sm:$0xff]
      %v2566 = vld [vmem:[#allocation3 + $0x98] sm:$0xff]
      %v2567 = vld [vmem:[#allocation3 + $0xa0] sm:$0xff]
      %v2568 = vld [vmem:[#allocation3 + $0xa8] sm:$0xff]
      %v2569 = vld [vmem:[#allocation3 + $0xb0] sm:$0xff]
      %v2570 = vld [vmem:[#allocation3 + $0xb8] sm:$0xff]
      %v2571 = vld [vmem:[#allocation3 + $0xc0] sm:$0xff]
      %v2572 = vld [vmem:[#allocation3 + $0xc8] sm:$0xff]
      %v2573 = vld [vmem:[#allocation3 + $0xd0] sm:$0xff]
      %v2574 = vld [vmem:[#allocation3 + $0xd8] sm:$0xff]
      %v2575 = vld [vmem:[#allocation3 + $0xe0] sm:$0xff]
      %v2576 = vld [vmem:[#allocation3 + $0xe8] sm:$0xff]
      %v2577 = vld [vmem:[#allocation3 + $0xf0] sm:$0xff]
      %v2578 = vld [vmem:[#allocation3 + $0xf8] sm:$0xff]
      %v2579 = vadd.f32 %v2547, %v2421
      %v2580 = vadd.f32 %v2548, %v2424
      %v2581 = vadd.f32 %v2549, %v2429
      %v2582 = vadd.f32 %v2550, %v2432
      %v2583 = vadd.f32 %v2551, %v2437
      %v2584 = vadd.f32 %v2552, %v2440
      %v2585 = vadd.f32 %v2553, %v2445
      %v2586 = vadd.f32 %v2554, %v2448
      %v2587 = vadd.f32 %v2555, %v2453
      %v2588 = vadd.f32 %v2556, %v2456
      %v2589 = vadd.f32 %v2557, %v2461
      %v2590 = vadd.f32 %v2558, %v2464
      %v2591 = vadd.f32 %v2559, %v2469
      %v2592 = vadd.f32 %v2560, %v2472
      %v2593 = vadd.f32 %v2561, %v2477
      %v2594 = vadd.f32 %v2562, %v2480
      %v2595 = vadd.f32 %v2563, %v2485
      %v2596 = vadd.f32 %v2564, %v2488
      %v2597 = vadd.f32 %v2565, %v2493
      %v2598 = vadd.f32 %v2566, %v2496
      %v2599 = vadd.f32 %v2567, %v2501
      %v2600 = vadd.f32 %v2568, %v2504
      %v2601 = vadd.f32 %v2569, %v2509
      %v2602 = vadd.f32 %v2570, %v2512
      %v2603 = vadd.f32 %v2571, %v2517
      %v2604 = vadd.f32 %v2572, %v2520
      %v2605 = vadd.f32 %v2573, %v2525
      %v2606 = vadd.f32 %v2574, %v2528
      %v2607 = vadd.f32 %v2575, %v2533
      %v2608 = vadd.f32 %v2576, %v2536
      %v2609 = vadd.f32 %v2577, %v2541
      %v2610 = vadd.f32 %v2578, %v2544
      %2611 = vst [vmem:[#allocation3] sm:$0xff] %v2579
      %2612 = vst [vmem:[#allocation3 + $0x8] sm:$0xff] %v2580
      %2613 = vst [vmem:[#allocation3 + $0x10] sm:$0xff] %v2581
      %2614 = vst [vmem:[#allocation3 + $0x18] sm:$0xff] %v2582
      %2615 = vst [vmem:[#allocation3 + $0x20] sm:$0xff] %v2583
      %2616 = vst [vmem:[#allocation3 + $0x28] sm:$0xff] %v2584
      %2617 = vst [vmem:[#allocation3 + $0x30] sm:$0xff] %v2585
      %2618 = vst [vmem:[#allocation3 + $0x38] sm:$0xff] %v2586
      %2619 = vst [vmem:[#allocation3 + $0x40] sm:$0xff] %v2587
      %2620 = vst [vmem:[#allocation3 + $0x48] sm:$0xff] %v2588
      %2621 = vst [vmem:[#allocation3 + $0x50] sm:$0xff] %v2589
      %2622 = vst [vmem:[#allocation3 + $0x58] sm:$0xff] %v2590
      %2623 = vst [vmem:[#allocation3 + $0x60] sm:$0xff] %v2591
      %2624 = vst [vmem:[#allocation3 + $0x68] sm:$0xff] %v2592
      %2625 = vst [vmem:[#allocation3 + $0x70] sm:$0xff] %v2593
      %2626 = vst [vmem:[#allocation3 + $0x78] sm:$0xff] %v2594
      %2627 = vst [vmem:[#allocation3 + $0x80] sm:$0xff] %v2595
      %2628 = vst [vmem:[#allocation3 + $0x88] sm:$0xff] %v2596
      %2629 = vst [vmem:[#allocation3 + $0x90] sm:$0xff] %v2597
      %2630 = vst [vmem:[#allocation3 + $0x98] sm:$0xff] %v2598
      %2631 = vst [vmem:[#allocation3 + $0xa0] sm:$0xff] %v2599
      %2632 = vst [vmem:[#allocation3 + $0xa8] sm:$0xff] %v2600
      %2633 = vst [vmem:[#allocation3 + $0xb0] sm:$0xff] %v2601
      %2634 = vst [vmem:[#allocation3 + $0xb8] sm:$0xff] %v2602
      %2635 = vst [vmem:[#allocation3 + $0xc0] sm:$0xff] %v2603
      %2636 = vst [vmem:[#allocation3 + $0xc8] sm:$0xff] %v2604
      %2637 = vst [vmem:[#allocation3 + $0xd0] sm:$0xff] %v2605
      %2638 = vst [vmem:[#allocation3 + $0xd8] sm:$0xff] %v2606
      %2639 = vst [vmem:[#allocation3 + $0xe0] sm:$0xff] %v2607
      %2640 = vst [vmem:[#allocation3 + $0xe8] sm:$0xff] %v2608
      %2641 = vst [vmem:[#allocation3 + $0xf0] sm:$0xff] %v2609
      %2642 = vst [vmem:[#allocation3 + $0xf8] sm:$0xff] %v2610
      %s2643 = scalar_lea.vmem [#allocation2], 48
      %v2644 = vld [vmem:[%s2643] sm:$0xff]
      %v2645 = vld [vmem:[%s2643 + $0x8] sm:$0xff]
      %v2646 = vld [vmem:[%s2643 + $0x18] sm:$0xff]
      %v2647 = vld [vmem:[%s2643 + $0x20] sm:$0xff]
      %v2648 = vld [vmem:[%s2643 + $0x30] sm:$0xff]
      %v2649 = vld [vmem:[%s2643 + $0x38] sm:$0xff]
      %v2650 = vld [vmem:[%s2643 + $0x48] sm:$0xff]
      %v2651 = vld [vmem:[%s2643 + $0x50] sm:$0xff]
      %v2652 = vld [vmem:[%s2643 + $0x60] sm:$0xff]
      %v2653 = vld [vmem:[%s2643 + $0x68] sm:$0xff]
      %v2654 = vld [vmem:[%s2643 + $0x78] sm:$0xff]
      %v2655 = vld [vmem:[%s2643 + $0x80] sm:$0xff]
      %v2656 = vld [vmem:[%s2643 + $0x90] sm:$0xff]
      %v2657 = vld [vmem:[%s2643 + $0x98] sm:$0xff]
      %v2658 = vld [vmem:[%s2643 + $0xa8] sm:$0xff]
      %v2659 = vld [vmem:[%s2643 + $0xb0] sm:$0xff]
      %v2660 = vld [vmem:[%s2643 + $0xc0] sm:$0xff]
      %v2661 = vld [vmem:[%s2643 + $0xc8] sm:$0xff]
      %v2662 = vld [vmem:[%s2643 + $0xd8] sm:$0xff]
      %v2663 = vld [vmem:[%s2643 + $0xe0] sm:$0xff]
      %v2664 = vld [vmem:[%s2643 + $0xf0] sm:$0xff]
      %v2665 = vld [vmem:[%s2643 + $0xf8] sm:$0xff]
      %v2666 = vld [vmem:[%s2643 + $0x108] sm:$0xff]
      %v2667 = vld [vmem:[%s2643 + $0x110] sm:$0xff]
      %v2668 = vld [vmem:[%s2643 + $0x120] sm:$0xff]
      %v2669 = vld [vmem:[%s2643 + $0x128] sm:$0xff]
      %v2670 = vld [vmem:[%s2643 + $0x138] sm:$0xff]
      %v2671 = vld [vmem:[%s2643 + $0x140] sm:$0xff]
      %v2672 = vld [vmem:[%s2643 + $0x150] sm:$0xff]
      %v2673 = vld [vmem:[%s2643 + $0x158] sm:$0xff]
      %v2674 = vld [vmem:[%s2643 + $0x168] sm:$0xff]
      %v2675 = vld [vmem:[%s2643 + $0x170] sm:$0xff]
      %v2676 = vpack.c.bf16 %v2645, %v2644
      %v2677 = vpack.c.bf16 %v2647, %v2646
      %v2678 = vpack.c.bf16 %v2649, %v2648
      %v2679 = vpack.c.bf16 %v2651, %v2650
      %v2680 = vpack.c.bf16 %v2653, %v2652
      %v2681 = vpack.c.bf16 %v2655, %v2654
      %v2682 = vpack.c.bf16 %v2657, %v2656
      %v2683 = vpack.c.bf16 %v2659, %v2658
      %v2684 = vpack.c.bf16 %v2661, %v2660
      %v2685 = vpack.c.bf16 %v2663, %v2662
      %v2686 = vpack.c.bf16 %v2665, %v2664
      %v2687 = vpack.c.bf16 %v2667, %v2666
      %v2688 = vpack.c.bf16 %v2669, %v2668
      %v2689 = vpack.c.bf16 %v2671, %v2670
      %v2690 = vpack.c.bf16 %v2673, %v2672
      %v2691 = vpack.c.bf16 %v2675, %v2674
      %s2692 = scalar_lea.vmem %s1, 384
      %v2693 = vld [vmem:[%s2692] sm:$0xf]
      %v2694 = vld [vmem:[%s2692 + $0x4] sm:$0xf]
      %v2695 = vld [vmem:[%s2692 + $0x8] sm:$0xf]
      %v2696 = vld [vmem:[%s2692 + $0xc] sm:$0xf]
      %v2697 = vld [vmem:[%s2692 + $0x10] sm:$0xf]
      %v2698 = vld [vmem:[%s2692 + $0x14] sm:$0xf]
      %v2699 = vld [vmem:[%s2692 + $0x18] sm:$0xf]
      %v2700 = vld [vmem:[%s2692 + $0x1c] sm:$0xf]
      %v2701 = vld [vmem:[%s2692 + $0x20] sm:$0xf]
      %v2702 = vld [vmem:[%s2692 + $0x24] sm:$0xf]
      %v2703 = vld [vmem:[%s2692 + $0x28] sm:$0xf]
      %v2704 = vld [vmem:[%s2692 + $0x2c] sm:$0xf]
      %v2705 = vld [vmem:[%s2692 + $0x30] sm:$0xf]
      %v2706 = vld [vmem:[%s2692 + $0x34] sm:$0xf]
      %v2707 = vld [vmem:[%s2692 + $0x38] sm:$0xf]
      %v2708 = vld [vmem:[%s2692 + $0x3c] sm:$0xf]
      %v2725 = vunpack.c.l.b16 %v2693
      %v2726 = vunpack.c.l.b16 %v2694
      %v2727 = vunpack.c.l.b16 %v2695
      %v2728 = vunpack.c.l.b16 %v2696
      %v2729 = vunpack.c.l.b16 %v2697
      %v2730 = vunpack.c.l.b16 %v2698
      %v2731 = vunpack.c.l.b16 %v2699
      %v2732 = vunpack.c.l.b16 %v2700
      %v2733 = vunpack.c.l.b16 %v2701
      %v2734 = vunpack.c.l.b16 %v2702
      %v2735 = vunpack.c.l.b16 %v2703
      %v2736 = vunpack.c.l.b16 %v2704
      %v2737 = vunpack.c.l.b16 %v2705
      %v2738 = vunpack.c.l.b16 %v2706
      %v2739 = vunpack.c.l.b16 %v2707
      %v2740 = vunpack.c.l.b16 %v2708
      %v2741 = vpack.c.b16 %v2726, %v2725
      %v2742 = vpack.c.b16 %v2728, %v2727
      %v2743 = vpack.c.b16 %v2730, %v2729
      %v2744 = vpack.c.b16 %v2732, %v2731
      %v2745 = vpack.c.b16 %v2734, %v2733
      %v2746 = vpack.c.b16 %v2736, %v2735
      %v2747 = vpack.c.b16 %v2738, %v2737
      %v2748 = vpack.c.b16 %v2740, %v2739
      %2757 = vmatprep.subr.bf16.mxu0 0
      %2758 = vmatpush1.bf16.msra.mxu0 %v2748
      %2759 = vmatprep.subr.bf16.mxu0 0
      %2760 = vmatpush1.bf16.msra.mxu0 %v2747
      %2761 = vmatprep.subr.bf16.mxu0 0
      %2762 = vmatpush1.bf16.msra.mxu0 %v2746
      %2763 = vmatprep.subr.bf16.mxu0 0
      %2764 = vmatpush1.bf16.msra.mxu0 %v2745
      %2765 = vmatprep.subr.bf16.mxu0 0
      %2766 = vmatpush1.bf16.msra.mxu0 %v2744
      %2767 = vmatprep.subr.bf16.mxu0 0
      %2768 = vmatpush1.bf16.msra.mxu0 %v2743
      %2769 = vmatprep.subr.bf16.mxu0 0
      %2770 = vmatpush1.bf16.msra.mxu0 %v2742
      %2771 = vmatprep.subr.bf16.mxu0 0
      %2772 = vmatpush1.bf16.msra.mxu0 %v2741
      %2773 = vmatprep.subr.bf16.mxu0 0
      %2774 = vmatpush2.bf16.msra.mxu0 0
      %2775 = vmatprep.subr.bf16.mxu0 0
      %2776 = vmatpush2.bf16.msra.mxu0 0
      %2777 = vmatprep.subr.bf16.mxu0 0
      %2778 = vmatpush2.bf16.msra.mxu0 0
      %2779 = vmatprep.subr.bf16.mxu0 0
      %2780 = vmatpush2.bf16.msra.mxu0 0
      %2781 = vmatprep.subr.bf16.mxu0 0
      %2782 = vmatpush2.bf16.msra.mxu0 0
      %2783 = vmatprep.subr.bf16.mxu0 0
      %2784 = vmatpush2.bf16.msra.mxu0 0
      %2785 = vmatprep.subr.bf16.mxu0 0
      %2786 = vmatpush2.bf16.msra.mxu0 0
      %2787 = vmatprep.subr.bf16.mxu0 0
      %2788 = vmatpush2.bf16.msra.mxu0 0
      %2789 = vmatprep.mubr.bf16.mxu0 0
      %2790 = vmatmul.mubr.bf16.gmra.mxu0 %v2676
      %v2791 = vpop.f32.mrf.mxu0
      %v2792 = vadd.f32 0.0, %v2791
      %v2793 = vpop.f32.mrf.mxu0
      %v2794 = vpop.f32.mrf.mxu0
      %v2795 = vadd.f32 0.0, %v2794
      %v2796 = vpop.f32.mrf.mxu0
      %2797 = vmatprep.mubr.bf16.mxu0 0
      %2798 = vmatmul.mubr.bf16.gmra.mxu0 %v2677
      %v2799 = vpop.f32.mrf.mxu0
      %v2800 = vadd.f32 0.0, %v2799
      %v2801 = vpop.f32.mrf.mxu0
      %v2802 = vpop.f32.mrf.mxu0
      %v2803 = vadd.f32 0.0, %v2802
      %v2804 = vpop.f32.mrf.mxu0
      %2805 = vmatprep.mubr.bf16.mxu0 0
      %2806 = vmatmul.mubr.bf16.gmra.mxu0 %v2678
      %v2807 = vpop.f32.mrf.mxu0
      %v2808 = vadd.f32 0.0, %v2807
      %v2809 = vpop.f32.mrf.mxu0
      %v2810 = vpop.f32.mrf.mxu0
      %v2811 = vadd.f32 0.0, %v2810
      %v2812 = vpop.f32.mrf.mxu0
      %2813 = vmatprep.mubr.bf16.mxu0 0
      %2814 = vmatmul.mubr.bf16.gmra.mxu0 %v2679
      %v2815 = vpop.f32.mrf.mxu0
      %v2816 = vadd.f32 0.0, %v2815
      %v2817 = vpop.f32.mrf.mxu0
      %v2818 = vpop.f32.mrf.mxu0
      %v2819 = vadd.f32 0.0, %v2818
      %v2820 = vpop.f32.mrf.mxu0
      %2821 = vmatprep.mubr.bf16.mxu0 0
      %2822 = vmatmul.mubr.bf16.gmra.mxu0 %v2680
      %v2823 = vpop.f32.mrf.mxu0
      %v2824 = vadd.f32 0.0, %v2823
      %v2825 = vpop.f32.mrf.mxu0
      %v2826 = vpop.f32.mrf.mxu0
      %v2827 = vadd.f32 0.0, %v2826
      %v2828 = vpop.f32.mrf.mxu0
      %2829 = vmatprep.mubr.bf16.mxu0 0
      %2830 = vmatmul.mubr.bf16.gmra.mxu0 %v2681
      %v2831 = vpop.f32.mrf.mxu0
      %v2832 = vadd.f32 0.0, %v2831
      %v2833 = vpop.f32.mrf.mxu0
      %v2834 = vpop.f32.mrf.mxu0
      %v2835 = vadd.f32 0.0, %v2834
      %v2836 = vpop.f32.mrf.mxu0
      %2837 = vmatprep.mubr.bf16.mxu0 0
      %2838 = vmatmul.mubr.bf16.gmra.mxu0 %v2682
      %v2839 = vpop.f32.mrf.mxu0
      %v2840 = vadd.f32 0.0, %v2839
      %v2841 = vpop.f32.mrf.mxu0
      %v2842 = vpop.f32.mrf.mxu0
      %v2843 = vadd.f32 0.0, %v2842
      %v2844 = vpop.f32.mrf.mxu0
      %2845 = vmatprep.mubr.bf16.mxu0 0
      %2846 = vmatmul.mubr.bf16.gmra.mxu0 %v2683
      %v2847 = vpop.f32.mrf.mxu0
      %v2848 = vadd.f32 0.0, %v2847
      %v2849 = vpop.f32.mrf.mxu0
      %v2850 = vpop.f32.mrf.mxu0
      %v2851 = vadd.f32 0.0, %v2850
      %v2852 = vpop.f32.mrf.mxu0
      %2853 = vmatprep.mubr.bf16.mxu0 0
      %2854 = vmatmul.mubr.bf16.gmra.mxu0 %v2684
      %v2855 = vpop.f32.mrf.mxu0
      %v2856 = vadd.f32 0.0, %v2855
      %v2857 = vpop.f32.mrf.mxu0
      %v2858 = vpop.f32.mrf.mxu0
      %v2859 = vadd.f32 0.0, %v2858
      %v2860 = vpop.f32.mrf.mxu0
      %2861 = vmatprep.mubr.bf16.mxu0 0
      %2862 = vmatmul.mubr.bf16.gmra.mxu0 %v2685
      %v2863 = vpop.f32.mrf.mxu0
      %v2864 = vadd.f32 0.0, %v2863
      %v2865 = vpop.f32.mrf.mxu0
      %v2866 = vpop.f32.mrf.mxu0
      %v2867 = vadd.f32 0.0, %v2866
      %v2868 = vpop.f32.mrf.mxu0
      %2869 = vmatprep.mubr.bf16.mxu0 0
      %2870 = vmatmul.mubr.bf16.gmra.mxu0 %v2686
      %v2871 = vpop.f32.mrf.mxu0
      %v2872 = vadd.f32 0.0, %v2871
      %v2873 = vpop.f32.mrf.mxu0
      %v2874 = vpop.f32.mrf.mxu0
      %v2875 = vadd.f32 0.0, %v2874
      %v2876 = vpop.f32.mrf.mxu0
      %2877 = vmatprep.mubr.bf16.mxu0 0
      %2878 = vmatmul.mubr.bf16.gmra.mxu0 %v2687
      %v2879 = vpop.f32.mrf.mxu0
      %v2880 = vadd.f32 0.0, %v2879
      %v2881 = vpop.f32.mrf.mxu0
      %v2882 = vpop.f32.mrf.mxu0
      %v2883 = vadd.f32 0.0, %v2882
      %v2884 = vpop.f32.mrf.mxu0
      %2885 = vmatprep.mubr.bf16.mxu0 0
      %2886 = vmatmul.mubr.bf16.gmra.mxu0 %v2688
      %v2887 = vpop.f32.mrf.mxu0
      %v2888 = vadd.f32 0.0, %v2887
      %v2889 = vpop.f32.mrf.mxu0
      %v2890 = vpop.f32.mrf.mxu0
      %v2891 = vadd.f32 0.0, %v2890
      %v2892 = vpop.f32.mrf.mxu0
      %2893 = vmatprep.mubr.bf16.mxu0 0
      %2894 = vmatmul.mubr.bf16.gmra.mxu0 %v2689
      %v2895 = vpop.f32.mrf.mxu0
      %v2896 = vadd.f32 0.0, %v2895
      %v2897 = vpop.f32.mrf.mxu0
      %v2898 = vpop.f32.mrf.mxu0
      %v2899 = vadd.f32 0.0, %v2898
      %v2900 = vpop.f32.mrf.mxu0
      %2901 = vmatprep.mubr.bf16.mxu0 0
      %2902 = vmatmul.mubr.bf16.gmra.mxu0 %v2690
      %v2903 = vpop.f32.mrf.mxu0
      %v2904 = vadd.f32 0.0, %v2903
      %v2905 = vpop.f32.mrf.mxu0
      %v2906 = vpop.f32.mrf.mxu0
      %v2907 = vadd.f32 0.0, %v2906
      %v2908 = vpop.f32.mrf.mxu0
      %2909 = vmatprep.mubr.bf16.mxu0 0
      %2910 = vmatmul.mubr.bf16.gmra.mxu0 %v2691
      %v2911 = vpop.f32.mrf.mxu0
      %v2912 = vadd.f32 0.0, %v2911
      %v2913 = vpop.f32.mrf.mxu0
      %v2914 = vpop.f32.mrf.mxu0
      %v2915 = vadd.f32 0.0, %v2914
      %v2916 = vpop.f32.mrf.mxu0
      %2917 = vdwg.mxu0
      %v2918 = vld [vmem:[#allocation3] sm:$0xff]
      %v2919 = vld [vmem:[#allocation3 + $0x8] sm:$0xff]
      %v2920 = vld [vmem:[#allocation3 + $0x10] sm:$0xff]
      %v2921 = vld [vmem:[#allocation3 + $0x18] sm:$0xff]
      %v2922 = vld [vmem:[#allocation3 + $0x20] sm:$0xff]
      %v2923 = vld [vmem:[#allocation3 + $0x28] sm:$0xff]
      %v2924 = vld [vmem:[#allocation3 + $0x30] sm:$0xff]
      %v2925 = vld [vmem:[#allocation3 + $0x38] sm:$0xff]
      %v2926 = vld [vmem:[#allocation3 + $0x40] sm:$0xff]
      %v2927 = vld [vmem:[#allocation3 + $0x48] sm:$0xff]
      %v2928 = vld [vmem:[#allocation3 + $0x50] sm:$0xff]
      %v2929 = vld [vmem:[#allocation3 + $0x58] sm:$0xff]
      %v2930 = vld [vmem:[#allocation3 + $0x60] sm:$0xff]
      %v2931 = vld [vmem:[#allocation3 + $0x68] sm:$0xff]
      %v2932 = vld [vmem:[#allocation3 + $0x70] sm:$0xff]
      %v2933 = vld [vmem:[#allocation3 + $0x78] sm:$0xff]
      %v2934 = vld [vmem:[#allocation3 + $0x80] sm:$0xff]
      %v2935 = vld [vmem:[#allocation3 + $0x88] sm:$0xff]
      %v2936 = vld [vmem:[#allocation3 + $0x90] sm:$0xff]
      %v2937 = vld [vmem:[#allocation3 + $0x98] sm:$0xff]
      %v2938 = vld [vmem:[#allocation3 + $0xa0] sm:$0xff]
      %v2939 = vld [vmem:[#allocation3 + $0xa8] sm:$0xff]
      %v2940 = vld [vmem:[#allocation3 + $0xb0] sm:$0xff]
      %v2941 = vld [vmem:[#allocation3 + $0xb8] sm:$0xff]
      %v2942 = vld [vmem:[#allocation3 + $0xc0] sm:$0xff]
      %v2943 = vld [vmem:[#allocation3 + $0xc8] sm:$0xff]
      %v2944 = vld [vmem:[#allocation3 + $0xd0] sm:$0xff]
      %v2945 = vld [vmem:[#allocation3 + $0xd8] sm:$0xff]
      %v2946 = vld [vmem:[#allocation3 + $0xe0] sm:$0xff]
      %v2947 = vld [vmem:[#allocation3 + $0xe8] sm:$0xff]
      %v2948 = vld [vmem:[#allocation3 + $0xf0] sm:$0xff]
      %v2949 = vld [vmem:[#allocation3 + $0xf8] sm:$0xff]
      %v2950 = vadd.f32 %v2918, %v2792
      %v2951 = vadd.f32 %v2919, %v2795
      %v2952 = vadd.f32 %v2920, %v2800
      %v2953 = vadd.f32 %v2921, %v2803
      %v2954 = vadd.f32 %v2922, %v2808
      %v2955 = vadd.f32 %v2923, %v2811
      %v2956 = vadd.f32 %v2924, %v2816
      %v2957 = vadd.f32 %v2925, %v2819
      %v2958 = vadd.f32 %v2926, %v2824
      %v2959 = vadd.f32 %v2927, %v2827
      %v2960 = vadd.f32 %v2928, %v2832
      %v2961 = vadd.f32 %v2929, %v2835
      %v2962 = vadd.f32 %v2930, %v2840
      %v2963 = vadd.f32 %v2931, %v2843
      %v2964 = vadd.f32 %v2932, %v2848
      %v2965 = vadd.f32 %v2933, %v2851
      %v2966 = vadd.f32 %v2934, %v2856
      %v2967 = vadd.f32 %v2935, %v2859
      %v2968 = vadd.f32 %v2936, %v2864
      %v2969 = vadd.f32 %v2937, %v2867
      %v2970 = vadd.f32 %v2938, %v2872
      %v2971 = vadd.f32 %v2939, %v2875
      %v2972 = vadd.f32 %v2940, %v2880
      %v2973 = vadd.f32 %v2941, %v2883
      %v2974 = vadd.f32 %v2942, %v2888
      %v2975 = vadd.f32 %v2943, %v2891
      %v2976 = vadd.f32 %v2944, %v2896
      %v2977 = vadd.f32 %v2945, %v2899
      %v2978 = vadd.f32 %v2946, %v2904
      %v2979 = vadd.f32 %v2947, %v2907
      %v2980 = vadd.f32 %v2948, %v2912
      %v2981 = vadd.f32 %v2949, %v2915
      %2982 = vst [vmem:[#allocation3] sm:$0xff] %v2950
      %2983 = vst [vmem:[#allocation3 + $0x8] sm:$0xff] %v2951
      %2984 = vst [vmem:[#allocation3 + $0x10] sm:$0xff] %v2952
      %2985 = vst [vmem:[#allocation3 + $0x18] sm:$0xff] %v2953
      %2986 = vst [vmem:[#allocation3 + $0x20] sm:$0xff] %v2954
      %2987 = vst [vmem:[#allocation3 + $0x28] sm:$0xff] %v2955
      %2988 = vst [vmem:[#allocation3 + $0x30] sm:$0xff] %v2956
      %2989 = vst [vmem:[#allocation3 + $0x38] sm:$0xff] %v2957
      %2990 = vst [vmem:[#allocation3 + $0x40] sm:$0xff] %v2958
      %2991 = vst [vmem:[#allocation3 + $0x48] sm:$0xff] %v2959
      %2992 = vst [vmem:[#allocation3 + $0x50] sm:$0xff] %v2960
      %2993 = vst [vmem:[#allocation3 + $0x58] sm:$0xff] %v2961
      %2994 = vst [vmem:[#allocation3 + $0x60] sm:$0xff] %v2962
      %2995 = vst [vmem:[#allocation3 + $0x68] sm:$0xff] %v2963
      %2996 = vst [vmem:[#allocation3 + $0x70] sm:$0xff] %v2964
      %2997 = vst [vmem:[#allocation3 + $0x78] sm:$0xff] %v2965
      %2998 = vst [vmem:[#allocation3 + $0x80] sm:$0xff] %v2966
      %2999 = vst [vmem:[#allocation3 + $0x88] sm:$0xff] %v2967
      %3000 = vst [vmem:[#allocation3 + $0x90] sm:$0xff] %v2968
      %3001 = vst [vmem:[#allocation3 + $0x98] sm:$0xff] %v2969
      %3002 = vst [vmem:[#allocation3 + $0xa0] sm:$0xff] %v2970
      %3003 = vst [vmem:[#allocation3 + $0xa8] sm:$0xff] %v2971
      %3004 = vst [vmem:[#allocation3 + $0xb0] sm:$0xff] %v2972
      %3005 = vst [vmem:[#allocation3 + $0xb8] sm:$0xff] %v2973
      %3006 = vst [vmem:[#allocation3 + $0xc0] sm:$0xff] %v2974
      %3007 = vst [vmem:[#allocation3 + $0xc8] sm:$0xff] %v2975
      %3008 = vst [vmem:[#allocation3 + $0xd0] sm:$0xff] %v2976
      %3009 = vst [vmem:[#allocation3 + $0xd8] sm:$0xff] %v2977
      %3010 = vst [vmem:[#allocation3 + $0xe0] sm:$0xff] %v2978
      %3011 = vst [vmem:[#allocation3 + $0xe8] sm:$0xff] %v2979
      %3012 = vst [vmem:[#allocation3 + $0xf0] sm:$0xff] %v2980
      %3013 = vst [vmem:[#allocation3 + $0xf8] sm:$0xff] %v2981
      %v3014 = vld [vmem:[%s2643 + $0x1] sm:$0xff]
      %v3015 = vld [vmem:[%s2643 + $0x9] sm:$0xff]
      %v3016 = vld [vmem:[%s2643 + $0x19] sm:$0xff]
      %v3017 = vld [vmem:[%s2643 + $0x21] sm:$0xff]
      %v3018 = vld [vmem:[%s2643 + $0x31] sm:$0xff]
      %v3019 = vld [vmem:[%s2643 + $0x39] sm:$0xff]
      %v3020 = vld [vmem:[%s2643 + $0x49] sm:$0xff]
      %v3021 = vld [vmem:[%s2643 + $0x51] sm:$0xff]
      %v3022 = vld [vmem:[%s2643 + $0x61] sm:$0xff]
      %v3023 = vld [vmem:[%s2643 + $0x69] sm:$0xff]
      %v3024 = vld [vmem:[%s2643 + $0x79] sm:$0xff]
      %v3025 = vld [vmem:[%s2643 + $0x81] sm:$0xff]
      %v3026 = vld [vmem:[%s2643 + $0x91] sm:$0xff]
      %v3027 = vld [vmem:[%s2643 + $0x99] sm:$0xff]
      %v3028 = vld [vmem:[%s2643 + $0xa9] sm:$0xff]
      %v3029 = vld [vmem:[%s2643 + $0xb1] sm:$0xff]
      %v3030 = vld [vmem:[%s2643 + $0xc1] sm:$0xff]
      %v3031 = vld [vmem:[%s2643 + $0xc9] sm:$0xff]
      %v3032 = vld [vmem:[%s2643 + $0xd9] sm:$0xff]
      %v3033 = vld [vmem:[%s2643 + $0xe1] sm:$0xff]
      %v3034 = vld [vmem:[%s2643 + $0xf1] sm:$0xff]
      %v3035 = vld [vmem:[%s2643 + $0xf9] sm:$0xff]
      %v3036 = vld [vmem:[%s2643 + $0x109] sm:$0xff]
      %v3037 = vld [vmem:[%s2643 + $0x111] sm:$0xff]
      %v3038 = vld [vmem:[%s2643 + $0x121] sm:$0xff]
      %v3039 = vld [vmem:[%s2643 + $0x129] sm:$0xff]
      %v3040 = vld [vmem:[%s2643 + $0x139] sm:$0xff]
      %v3041 = vld [vmem:[%s2643 + $0x141] sm:$0xff]
      %v3042 = vld [vmem:[%s2643 + $0x151] sm:$0xff]
      %v3043 = vld [vmem:[%s2643 + $0x159] sm:$0xff]
      %v3044 = vld [vmem:[%s2643 + $0x169] sm:$0xff]
      %v3045 = vld [vmem:[%s2643 + $0x171] sm:$0xff]
      %v3046 = vpack.c.bf16 %v3015, %v3014
      %v3047 = vpack.c.bf16 %v3017, %v3016
      %v3048 = vpack.c.bf16 %v3019, %v3018
      %v3049 = vpack.c.bf16 %v3021, %v3020
      %v3050 = vpack.c.bf16 %v3023, %v3022
      %v3051 = vpack.c.bf16 %v3025, %v3024
      %v3052 = vpack.c.bf16 %v3027, %v3026
      %v3053 = vpack.c.bf16 %v3029, %v3028
      %v3054 = vpack.c.bf16 %v3031, %v3030
      %v3055 = vpack.c.bf16 %v3033, %v3032
      %v3056 = vpack.c.bf16 %v3035, %v3034
      %v3057 = vpack.c.bf16 %v3037, %v3036
      %v3058 = vpack.c.bf16 %v3039, %v3038
      %v3059 = vpack.c.bf16 %v3041, %v3040
      %v3060 = vpack.c.bf16 %v3043, %v3042
      %v3061 = vpack.c.bf16 %v3045, %v3044
      %s3062 = scalar_lea.vmem %s1, 448
      %v3063 = vld [vmem:[%s3062] sm:$0xf]
      %v3064 = vld [vmem:[%s3062 + $0x4] sm:$0xf]
      %v3065 = vld [vmem:[%s3062 + $0x8] sm:$0xf]
      %v3066 = vld [vmem:[%s3062 + $0xc] sm:$0xf]
      %v3067 = vld [vmem:[%s3062 + $0x10] sm:$0xf]
      %v3068 = vld [vmem:[%s3062 + $0x14] sm:$0xf]
      %v3069 = vld [vmem:[%s3062 + $0x18] sm:$0xf]
      %v3070 = vld [vmem:[%s3062 + $0x1c] sm:$0xf]
      %v3071 = vld [vmem:[%s3062 + $0x20] sm:$0xf]
      %v3072 = vld [vmem:[%s3062 + $0x24] sm:$0xf]
      %v3073 = vld [vmem:[%s3062 + $0x28] sm:$0xf]
      %v3074 = vld [vmem:[%s3062 + $0x2c] sm:$0xf]
      %v3075 = vld [vmem:[%s3062 + $0x30] sm:$0xf]
      %v3076 = vld [vmem:[%s3062 + $0x34] sm:$0xf]
      %v3077 = vld [vmem:[%s3062 + $0x38] sm:$0xf]
      %v3078 = vld [vmem:[%s3062 + $0x3c] sm:$0xf]
      %v3095 = vunpack.c.l.b16 %v3063
      %v3096 = vunpack.c.l.b16 %v3064
      %v3097 = vunpack.c.l.b16 %v3065
      %v3098 = vunpack.c.l.b16 %v3066
      %v3099 = vunpack.c.l.b16 %v3067
      %v3100 = vunpack.c.l.b16 %v3068
      %v3101 = vunpack.c.l.b16 %v3069
      %v3102 = vunpack.c.l.b16 %v3070
      %v3103 = vunpack.c.l.b16 %v3071
      %v3104 = vunpack.c.l.b16 %v3072
      %v3105 = vunpack.c.l.b16 %v3073
      %v3106 = vunpack.c.l.b16 %v3074
      %v3107 = vunpack.c.l.b16 %v3075
      %v3108 = vunpack.c.l.b16 %v3076
      %v3109 = vunpack.c.l.b16 %v3077
      %v3110 = vunpack.c.l.b16 %v3078
      %v3111 = vpack.c.b16 %v3096, %v3095
      %v3112 = vpack.c.b16 %v3098, %v3097
      %v3113 = vpack.c.b16 %v3100, %v3099
      %v3114 = vpack.c.b16 %v3102, %v3101
      %v3115 = vpack.c.b16 %v3104, %v3103
      %v3116 = vpack.c.b16 %v3106, %v3105
      %v3117 = vpack.c.b16 %v3108, %v3107
      %v3118 = vpack.c.b16 %v3110, %v3109
      %3127 = vmatprep.subr.bf16.mxu0 0
      %3128 = vmatpush1.bf16.msra.mxu0 %v3118
      %3129 = vmatprep.subr.bf16.mxu0 0
      %3130 = vmatpush1.bf16.msra.mxu0 %v3117
      %3131 = vmatprep.subr.bf16.mxu0 0
      %3132 = vmatpush1.bf16.msra.mxu0 %v3116
      %3133 = vmatprep.subr.bf16.mxu0 0
      %3134 = vmatpush1.bf16.msra.mxu0 %v3115
      %3135 = vmatprep.subr.bf16.mxu0 0
      %3136 = vmatpush1.bf16.msra.mxu0 %v3114
      %3137 = vmatprep.subr.bf16.mxu0 0
      %3138 = vmatpush1.bf16.msra.mxu0 %v3113
      %3139 = vmatprep.subr.bf16.mxu0 0
      %3140 = vmatpush1.bf16.msra.mxu0 %v3112
      %3141 = vmatprep.subr.bf16.mxu0 0
      %3142 = vmatpush1.bf16.msra.mxu0 %v3111
      %3143 = vmatprep.subr.bf16.mxu0 0
      %3144 = vmatpush2.bf16.msra.mxu0 0
      %3145 = vmatprep.subr.bf16.mxu0 0
      %3146 = vmatpush2.bf16.msra.mxu0 0
      %3147 = vmatprep.subr.bf16.mxu0 0
      %3148 = vmatpush2.bf16.msra.mxu0 0
      %3149 = vmatprep.subr.bf16.mxu0 0
      %3150 = vmatpush2.bf16.msra.mxu0 0
      %3151 = vmatprep.subr.bf16.mxu0 0
      %3152 = vmatpush2.bf16.msra.mxu0 0
      %3153 = vmatprep.subr.bf16.mxu0 0
      %3154 = vmatpush2.bf16.msra.mxu0 0
      %3155 = vmatprep.subr.bf16.mxu0 0
      %3156 = vmatpush2.bf16.msra.mxu0 0
      %3157 = vmatprep.subr.bf16.mxu0 0
      %3158 = vmatpush2.bf16.msra.mxu0 0
      %3159 = vmatprep.mubr.bf16.mxu0 0
      %3160 = vmatmul.mubr.bf16.gmra.mxu0 %v3046
      %v3161 = vpop.f32.mrf.mxu0
      %v3162 = vadd.f32 0.0, %v3161
      %v3163 = vpop.f32.mrf.mxu0
      %v3164 = vpop.f32.mrf.mxu0
      %v3165 = vadd.f32 0.0, %v3164
      %v3166 = vpop.f32.mrf.mxu0
      %3167 = vmatprep.mubr.bf16.mxu0 0
      %3168 = vmatmul.mubr.bf16.gmra.mxu0 %v3047
      %v3169 = vpop.f32.mrf.mxu0
      %v3170 = vadd.f32 0.0, %v3169
      %v3171 = vpop.f32.mrf.mxu0
      %v3172 = vpop.f32.mrf.mxu0
      %v3173 = vadd.f32 0.0, %v3172
      %v3174 = vpop.f32.mrf.mxu0
      %3175 = vmatprep.mubr.bf16.mxu0 0
      %3176 = vmatmul.mubr.bf16.gmra.mxu0 %v3048
      %v3177 = vpop.f32.mrf.mxu0
      %v3178 = vadd.f32 0.0, %v3177
      %v3179 = vpop.f32.mrf.mxu0
      %v3180 = vpop.f32.mrf.mxu0
      %v3181 = vadd.f32 0.0, %v3180
      %v3182 = vpop.f32.mrf.mxu0
      %3183 = vmatprep.mubr.bf16.mxu0 0
      %3184 = vmatmul.mubr.bf16.gmra.mxu0 %v3049
      %v3185 = vpop.f32.mrf.mxu0
      %v3186 = vadd.f32 0.0, %v3185
      %v3187 = vpop.f32.mrf.mxu0
      %v3188 = vpop.f32.mrf.mxu0
      %v3189 = vadd.f32 0.0, %v3188
      %v3190 = vpop.f32.mrf.mxu0
      %3191 = vmatprep.mubr.bf16.mxu0 0
      %3192 = vmatmul.mubr.bf16.gmra.mxu0 %v3050
      %v3193 = vpop.f32.mrf.mxu0
      %v3194 = vadd.f32 0.0, %v3193
      %v3195 = vpop.f32.mrf.mxu0
      %v3196 = vpop.f32.mrf.mxu0
      %v3197 = vadd.f32 0.0, %v3196
      %v3198 = vpop.f32.mrf.mxu0
      %3199 = vmatprep.mubr.bf16.mxu0 0
      %3200 = vmatmul.mubr.bf16.gmra.mxu0 %v3051
      %v3201 = vpop.f32.mrf.mxu0
      %v3202 = vadd.f32 0.0, %v3201
      %v3203 = vpop.f32.mrf.mxu0
      %v3204 = vpop.f32.mrf.mxu0
      %v3205 = vadd.f32 0.0, %v3204
      %v3206 = vpop.f32.mrf.mxu0
      %3207 = vmatprep.mubr.bf16.mxu0 0
      %3208 = vmatmul.mubr.bf16.gmra.mxu0 %v3052
      %v3209 = vpop.f32.mrf.mxu0
      %v3210 = vadd.f32 0.0, %v3209
      %v3211 = vpop.f32.mrf.mxu0
      %v3212 = vpop.f32.mrf.mxu0
      %v3213 = vadd.f32 0.0, %v3212
      %v3214 = vpop.f32.mrf.mxu0
      %3215 = vmatprep.mubr.bf16.mxu0 0
      %3216 = vmatmul.mubr.bf16.gmra.mxu0 %v3053
      %v3217 = vpop.f32.mrf.mxu0
      %v3218 = vadd.f32 0.0, %v3217
      %v3219 = vpop.f32.mrf.mxu0
      %v3220 = vpop.f32.mrf.mxu0
      %v3221 = vadd.f32 0.0, %v3220
      %v3222 = vpop.f32.mrf.mxu0
      %3223 = vmatprep.mubr.bf16.mxu0 0
      %3224 = vmatmul.mubr.bf16.gmra.mxu0 %v3054
      %v3225 = vpop.f32.mrf.mxu0
      %v3226 = vadd.f32 0.0, %v3225
      %v3227 = vpop.f32.mrf.mxu0
      %v3228 = vpop.f32.mrf.mxu0
      %v3229 = vadd.f32 0.0, %v3228
      %v3230 = vpop.f32.mrf.mxu0
      %3231 = vmatprep.mubr.bf16.mxu0 0
      %3232 = vmatmul.mubr.bf16.gmra.mxu0 %v3055
      %v3233 = vpop.f32.mrf.mxu0
      %v3234 = vadd.f32 0.0, %v3233
      %v3235 = vpop.f32.mrf.mxu0
      %v3236 = vpop.f32.mrf.mxu0
      %v3237 = vadd.f32 0.0, %v3236
      %v3238 = vpop.f32.mrf.mxu0
      %3239 = vmatprep.mubr.bf16.mxu0 0
      %3240 = vmatmul.mubr.bf16.gmra.mxu0 %v3056
      %v3241 = vpop.f32.mrf.mxu0
      %v3242 = vadd.f32 0.0, %v3241
      %v3243 = vpop.f32.mrf.mxu0
      %v3244 = vpop.f32.mrf.mxu0
      %v3245 = vadd.f32 0.0, %v3244
      %v3246 = vpop.f32.mrf.mxu0
      %3247 = vmatprep.mubr.bf16.mxu0 0
      %3248 = vmatmul.mubr.bf16.gmra.mxu0 %v3057
      %v3249 = vpop.f32.mrf.mxu0
      %v3250 = vadd.f32 0.0, %v3249
      %v3251 = vpop.f32.mrf.mxu0
      %v3252 = vpop.f32.mrf.mxu0
      %v3253 = vadd.f32 0.0, %v3252
      %v3254 = vpop.f32.mrf.mxu0
      %3255 = vmatprep.mubr.bf16.mxu0 0
      %3256 = vmatmul.mubr.bf16.gmra.mxu0 %v3058
      %v3257 = vpop.f32.mrf.mxu0
      %v3258 = vadd.f32 0.0, %v3257
      %v3259 = vpop.f32.mrf.mxu0
      %v3260 = vpop.f32.mrf.mxu0
      %v3261 = vadd.f32 0.0, %v3260
      %v3262 = vpop.f32.mrf.mxu0
      %3263 = vmatprep.mubr.bf16.mxu0 0
      %3264 = vmatmul.mubr.bf16.gmra.mxu0 %v3059
      %v3265 = vpop.f32.mrf.mxu0
      %v3266 = vadd.f32 0.0, %v3265
      %v3267 = vpop.f32.mrf.mxu0
      %v3268 = vpop.f32.mrf.mxu0
      %v3269 = vadd.f32 0.0, %v3268
      %v3270 = vpop.f32.mrf.mxu0
      %3271 = vmatprep.mubr.bf16.mxu0 0
      %3272 = vmatmul.mubr.bf16.gmra.mxu0 %v3060
      %v3273 = vpop.f32.mrf.mxu0
      %v3274 = vadd.f32 0.0, %v3273
      %v3275 = vpop.f32.mrf.mxu0
      %v3276 = vpop.f32.mrf.mxu0
      %v3277 = vadd.f32 0.0, %v3276
      %v3278 = vpop.f32.mrf.mxu0
      %3279 = vmatprep.mubr.bf16.mxu0 0
      %3280 = vmatmul.mubr.bf16.gmra.mxu0 %v3061
      %v3281 = vpop.f32.mrf.mxu0
      %v3282 = vadd.f32 0.0, %v3281
      %v3283 = vpop.f32.mrf.mxu0
      %v3284 = vpop.f32.mrf.mxu0
      %v3285 = vadd.f32 0.0, %v3284
      %v3286 = vpop.f32.mrf.mxu0
      %3287 = vdwg.mxu0
      %v3288 = vld [vmem:[#allocation3] sm:$0xff]
      %v3289 = vld [vmem:[#allocation3 + $0x8] sm:$0xff]
      %v3290 = vld [vmem:[#allocation3 + $0x10] sm:$0xff]
      %v3291 = vld [vmem:[#allocation3 + $0x18] sm:$0xff]
      %v3292 = vld [vmem:[#allocation3 + $0x20] sm:$0xff]
      %v3293 = vld [vmem:[#allocation3 + $0x28] sm:$0xff]
      %v3294 = vld [vmem:[#allocation3 + $0x30] sm:$0xff]
      %v3295 = vld [vmem:[#allocation3 + $0x38] sm:$0xff]
      %v3296 = vld [vmem:[#allocation3 + $0x40] sm:$0xff]
      %v3297 = vld [vmem:[#allocation3 + $0x48] sm:$0xff]
      %v3298 = vld [vmem:[#allocation3 + $0x50] sm:$0xff]
      %v3299 = vld [vmem:[#allocation3 + $0x58] sm:$0xff]
      %v3300 = vld [vmem:[#allocation3 + $0x60] sm:$0xff]
      %v3301 = vld [vmem:[#allocation3 + $0x68] sm:$0xff]
      %v3302 = vld [vmem:[#allocation3 + $0x70] sm:$0xff]
      %v3303 = vld [vmem:[#allocation3 + $0x78] sm:$0xff]
      %v3304 = vld [vmem:[#allocation3 + $0x80] sm:$0xff]
      %v3305 = vld [vmem:[#allocation3 + $0x88] sm:$0xff]
      %v3306 = vld [vmem:[#allocation3 + $0x90] sm:$0xff]
      %v3307 = vld [vmem:[#allocation3 + $0x98] sm:$0xff]
      %v3308 = vld [vmem:[#allocation3 + $0xa0] sm:$0xff]
      %v3309 = vld [vmem:[#allocation3 + $0xa8] sm:$0xff]
      %v3310 = vld [vmem:[#allocation3 + $0xb0] sm:$0xff]
      %v3311 = vld [vmem:[#allocation3 + $0xb8] sm:$0xff]
      %v3312 = vld [vmem:[#allocation3 + $0xc0] sm:$0xff]
      %v3313 = vld [vmem:[#allocation3 + $0xc8] sm:$0xff]
      %v3314 = vld [vmem:[#allocation3 + $0xd0] sm:$0xff]
      %v3315 = vld [vmem:[#allocation3 + $0xd8] sm:$0xff]
      %v3316 = vld [vmem:[#allocation3 + $0xe0] sm:$0xff]
      %v3317 = vld [vmem:[#allocation3 + $0xe8] sm:$0xff]
      %v3318 = vld [vmem:[#allocation3 + $0xf0] sm:$0xff]
      %v3319 = vld [vmem:[#allocation3 + $0xf8] sm:$0xff]
      %v3320 = vadd.f32 %v3288, %v3162
      %v3321 = vadd.f32 %v3289, %v3165
      %v3322 = vadd.f32 %v3290, %v3170
      %v3323 = vadd.f32 %v3291, %v3173
      %v3324 = vadd.f32 %v3292, %v3178
      %v3325 = vadd.f32 %v3293, %v3181
      %v3326 = vadd.f32 %v3294, %v3186
      %v3327 = vadd.f32 %v3295, %v3189
      %v3328 = vadd.f32 %v3296, %v3194
      %v3329 = vadd.f32 %v3297, %v3197
      %v3330 = vadd.f32 %v3298, %v3202
      %v3331 = vadd.f32 %v3299, %v3205
      %v3332 = vadd.f32 %v3300, %v3210
      %v3333 = vadd.f32 %v3301, %v3213
      %v3334 = vadd.f32 %v3302, %v3218
      %v3335 = vadd.f32 %v3303, %v3221
      %v3336 = vadd.f32 %v3304, %v3226
      %v3337 = vadd.f32 %v3305, %v3229
      %v3338 = vadd.f32 %v3306, %v3234
      %v3339 = vadd.f32 %v3307, %v3237
      %v3340 = vadd.f32 %v3308, %v3242
      %v3341 = vadd.f32 %v3309, %v3245
      %v3342 = vadd.f32 %v3310, %v3250
      %v3343 = vadd.f32 %v3311, %v3253
      %v3344 = vadd.f32 %v3312, %v3258
      %v3345 = vadd.f32 %v3313, %v3261
      %v3346 = vadd.f32 %v3314, %v3266
      %v3347 = vadd.f32 %v3315, %v3269
      %v3348 = vadd.f32 %v3316, %v3274
      %v3349 = vadd.f32 %v3317, %v3277
      %v3350 = vadd.f32 %v3318, %v3282
      %v3351 = vadd.f32 %v3319, %v3285
      %3352 = vst [vmem:[#allocation3] sm:$0xff] %v3320
      %3353 = vst [vmem:[#allocation3 + $0x8] sm:$0xff] %v3321
      %3354 = vst [vmem:[#allocation3 + $0x10] sm:$0xff] %v3322
      %3355 = vst [vmem:[#allocation3 + $0x18] sm:$0xff] %v3323
      %3356 = vst [vmem:[#allocation3 + $0x20] sm:$0xff] %v3324
      %3357 = vst [vmem:[#allocation3 + $0x28] sm:$0xff] %v3325
      %3358 = vst [vmem:[#allocation3 + $0x30] sm:$0xff] %v3326
      %3359 = vst [vmem:[#allocation3 + $0x38] sm:$0xff] %v3327
      %3360 = vst [vmem:[#allocation3 + $0x40] sm:$0xff] %v3328
      %3361 = vst [vmem:[#allocation3 + $0x48] sm:$0xff] %v3329
      %3362 = vst [vmem:[#allocation3 + $0x50] sm:$0xff] %v3330
      %3363 = vst [vmem:[#allocation3 + $0x58] sm:$0xff] %v3331
      %3364 = vst [vmem:[#allocation3 + $0x60] sm:$0xff] %v3332
      %3365 = vst [vmem:[#allocation3 + $0x68] sm:$0xff] %v3333
      %3366 = vst [vmem:[#allocation3 + $0x70] sm:$0xff] %v3334
      %3367 = vst [vmem:[#allocation3 + $0x78] sm:$0xff] %v3335
      %3368 = vst [vmem:[#allocation3 + $0x80] sm:$0xff] %v3336
      %3369 = vst [vmem:[#allocation3 + $0x88] sm:$0xff] %v3337
      %3370 = vst [vmem:[#allocation3 + $0x90] sm:$0xff] %v3338
      %3371 = vst [vmem:[#allocation3 + $0x98] sm:$0xff] %v3339
      %3372 = vst [vmem:[#allocation3 + $0xa0] sm:$0xff] %v3340
      %3373 = vst [vmem:[#allocation3 + $0xa8] sm:$0xff] %v3341
      %3374 = vst [vmem:[#allocation3 + $0xb0] sm:$0xff] %v3342
      %3375 = vst [vmem:[#allocation3 + $0xb8] sm:$0xff] %v3343
      %3376 = vst [vmem:[#allocation3 + $0xc0] sm:$0xff] %v3344
      %3377 = vst [vmem:[#allocation3 + $0xc8] sm:$0xff] %v3345
      %3378 = vst [vmem:[#allocation3 + $0xd0] sm:$0xff] %v3346
      %3379 = vst [vmem:[#allocation3 + $0xd8] sm:$0xff] %v3347
      %3380 = vst [vmem:[#allocation3 + $0xe0] sm:$0xff] %v3348
      %3381 = vst [vmem:[#allocation3 + $0xe8] sm:$0xff] %v3349
      %3382 = vst [vmem:[#allocation3 + $0xf0] sm:$0xff] %v3350
      %3383 = vst [vmem:[#allocation3 + $0xf8] sm:$0xff] %v3351
      %v3384 = vld [vmem:[%s2643 + $0x2] sm:$0xff]
      %v3385 = vld [vmem:[%s2643 + $0xa] sm:$0xff]
      %v3386 = vld [vmem:[%s2643 + $0x1a] sm:$0xff]
      %v3387 = vld [vmem:[%s2643 + $0x22] sm:$0xff]
      %v3388 = vld [vmem:[%s2643 + $0x32] sm:$0xff]
      %v3389 = vld [vmem:[%s2643 + $0x3a] sm:$0xff]
      %v3390 = vld [vmem:[%s2643 + $0x4a] sm:$0xff]
      %v3391 = vld [vmem:[%s2643 + $0x52] sm:$0xff]
      %v3392 = vld [vmem:[%s2643 + $0x62] sm:$0xff]
      %v3393 = vld [vmem:[%s2643 + $0x6a] sm:$0xff]
      %v3394 = vld [vmem:[%s2643 + $0x7a] sm:$0xff]
      %v3395 = vld [vmem:[%s2643 + $0x82] sm:$0xff]
      %v3396 = vld [vmem:[%s2643 + $0x92] sm:$0xff]
      %v3397 = vld [vmem:[%s2643 + $0x9a] sm:$0xff]
      %v3398 = vld [vmem:[%s2643 + $0xaa] sm:$0xff]
      %v3399 = vld [vmem:[%s2643 + $0xb2] sm:$0xff]
      %v3400 = vld [vmem:[%s2643 + $0xc2] sm:$0xff]
      %v3401 = vld [vmem:[%s2643 + $0xca] sm:$0xff]
      %v3402 = vld [vmem:[%s2643 + $0xda] sm:$0xff]
      %v3403 = vld [vmem:[%s2643 + $0xe2] sm:$0xff]
      %v3404 = vld [vmem:[%s2643 + $0xf2] sm:$0xff]
      %v3405 = vld [vmem:[%s2643 + $0xfa] sm:$0xff]
      %v3406 = vld [vmem:[%s2643 + $0x10a] sm:$0xff]
      %v3407 = vld [vmem:[%s2643 + $0x112] sm:$0xff]
      %v3408 = vld [vmem:[%s2643 + $0x122] sm:$0xff]
      %v3409 = vld [vmem:[%s2643 + $0x12a] sm:$0xff]
      %v3410 = vld [vmem:[%s2643 + $0x13a] sm:$0xff]
      %v3411 = vld [vmem:[%s2643 + $0x142] sm:$0xff]
      %v3412 = vld [vmem:[%s2643 + $0x152] sm:$0xff]
      %v3413 = vld [vmem:[%s2643 + $0x15a] sm:$0xff]
      %v3414 = vld [vmem:[%s2643 + $0x16a] sm:$0xff]
      %v3415 = vld [vmem:[%s2643 + $0x172] sm:$0xff]
      %v3416 = vpack.c.bf16 %v3385, %v3384
      %v3417 = vpack.c.bf16 %v3387, %v3386
      %v3418 = vpack.c.bf16 %v3389, %v3388
      %v3419 = vpack.c.bf16 %v3391, %v3390
      %v3420 = vpack.c.bf16 %v3393, %v3392
      %v3421 = vpack.c.bf16 %v3395, %v3394
      %v3422 = vpack.c.bf16 %v3397, %v3396
      %v3423 = vpack.c.bf16 %v3399, %v3398
      %v3424 = vpack.c.bf16 %v3401, %v3400
      %v3425 = vpack.c.bf16 %v3403, %v3402
      %v3426 = vpack.c.bf16 %v3405, %v3404
      %v3427 = vpack.c.bf16 %v3407, %v3406
      %v3428 = vpack.c.bf16 %v3409, %v3408
      %v3429 = vpack.c.bf16 %v3411, %v3410
      %v3430 = vpack.c.bf16 %v3413, %v3412
      %v3431 = vpack.c.bf16 %v3415, %v3414
      %s3432 = scalar_lea.vmem %s1, 512
      %v3433 = vld [vmem:[%s3432] sm:$0xf]
      %v3434 = vld [vmem:[%s3432 + $0x4] sm:$0xf]
      %v3435 = vld [vmem:[%s3432 + $0x8] sm:$0xf]
      %v3436 = vld [vmem:[%s3432 + $0xc] sm:$0xf]
      %v3437 = vld [vmem:[%s3432 + $0x10] sm:$0xf]
      %v3438 = vld [vmem:[%s3432 + $0x14] sm:$0xf]
      %v3439 = vld [vmem:[%s3432 + $0x18] sm:$0xf]
      %v3440 = vld [vmem:[%s3432 + $0x1c] sm:$0xf]
      %v3441 = vld [vmem:[%s3432 + $0x20] sm:$0xf]
      %v3442 = vld [vmem:[%s3432 + $0x24] sm:$0xf]
      %v3443 = vld [vmem:[%s3432 + $0x28] sm:$0xf]
      %v3444 = vld [vmem:[%s3432 + $0x2c] sm:$0xf]
      %v3445 = vld [vmem:[%s3432 + $0x30] sm:$0xf]
      %v3446 = vld [vmem:[%s3432 + $0x34] sm:$0xf]
      %v3447 = vld [vmem:[%s3432 + $0x38] sm:$0xf]
      %v3448 = vld [vmem:[%s3432 + $0x3c] sm:$0xf]
      %v3465 = vunpack.c.l.b16 %v3433
      %v3466 = vunpack.c.l.b16 %v3434
      %v3467 = vunpack.c.l.b16 %v3435
      %v3468 = vunpack.c.l.b16 %v3436
      %v3469 = vunpack.c.l.b16 %v3437
      %v3470 = vunpack.c.l.b16 %v3438
      %v3471 = vunpack.c.l.b16 %v3439
      %v3472 = vunpack.c.l.b16 %v3440
      %v3473 = vunpack.c.l.b16 %v3441
      %v3474 = vunpack.c.l.b16 %v3442
      %v3475 = vunpack.c.l.b16 %v3443
      %v3476 = vunpack.c.l.b16 %v3444
      %v3477 = vunpack.c.l.b16 %v3445
      %v3478 = vunpack.c.l.b16 %v3446
      %v3479 = vunpack.c.l.b16 %v3447
      %v3480 = vunpack.c.l.b16 %v3448
      %v3481 = vpack.c.b16 %v3466, %v3465
      %v3482 = vpack.c.b16 %v3468, %v3467
      %v3483 = vpack.c.b16 %v3470, %v3469
      %v3484 = vpack.c.b16 %v3472, %v3471
      %v3485 = vpack.c.b16 %v3474, %v3473
      %v3486 = vpack.c.b16 %v3476, %v3475
      %v3487 = vpack.c.b16 %v3478, %v3477
      %v3488 = vpack.c.b16 %v3480, %v3479
      %3497 = vmatprep.subr.bf16.mxu0 0
      %3498 = vmatpush1.bf16.msra.mxu0 %v3488
      %3499 = vmatprep.subr.bf16.mxu0 0
      %3500 = vmatpush1.bf16.msra.mxu0 %v3487
      %3501 = vmatprep.subr.bf16.mxu0 0
      %3502 = vmatpush1.bf16.msra.mxu0 %v3486
      %3503 = vmatprep.subr.bf16.mxu0 0
      %3504 = vmatpush1.bf16.msra.mxu0 %v3485
      %3505 = vmatprep.subr.bf16.mxu0 0
      %3506 = vmatpush1.bf16.msra.mxu0 %v3484
      %3507 = vmatprep.subr.bf16.mxu0 0
      %3508 = vmatpush1.bf16.msra.mxu0 %v3483
      %3509 = vmatprep.subr.bf16.mxu0 0
      %3510 = vmatpush1.bf16.msra.mxu0 %v3482
      %3511 = vmatprep.subr.bf16.mxu0 0
      %3512 = vmatpush1.bf16.msra.mxu0 %v3481
      %3513 = vmatprep.subr.bf16.mxu0 0
      %3514 = vmatpush2.bf16.msra.mxu0 0
      %3515 = vmatprep.subr.bf16.mxu0 0
      %3516 = vmatpush2.bf16.msra.mxu0 0
      %3517 = vmatprep.subr.bf16.mxu0 0
      %3518 = vmatpush2.bf16.msra.mxu0 0
      %3519 = vmatprep.subr.bf16.mxu0 0
      %3520 = vmatpush2.bf16.msra.mxu0 0
      %3521 = vmatprep.subr.bf16.mxu0 0
      %3522 = vmatpush2.bf16.msra.mxu0 0
      %3523 = vmatprep.subr.bf16.mxu0 0
      %3524 = vmatpush2.bf16.msra.mxu0 0
      %3525 = vmatprep.subr.bf16.mxu0 0
      %3526 = vmatpush2.bf16.msra.mxu0 0
      %3527 = vmatprep.subr.bf16.mxu0 0
      %3528 = vmatpush2.bf16.msra.mxu0 0
      %3529 = vmatprep.mubr.bf16.mxu0 0
      %3530 = vmatmul.mubr.bf16.gmra.mxu0 %v3416
      %v3531 = vpop.f32.mrf.mxu0
      %v3532 = vadd.f32 0.0, %v3531
      %v3533 = vpop.f32.mrf.mxu0
      %v3534 = vpop.f32.mrf.mxu0
      %v3535 = vadd.f32 0.0, %v3534
      %v3536 = vpop.f32.mrf.mxu0
      %3537 = vmatprep.mubr.bf16.mxu0 0
      %3538 = vmatmul.mubr.bf16.gmra.mxu0 %v3417
      %v3539 = vpop.f32.mrf.mxu0
      %v3540 = vadd.f32 0.0, %v3539
      %v3541 = vpop.f32.mrf.mxu0
      %v3542 = vpop.f32.mrf.mxu0
      %v3543 = vadd.f32 0.0, %v3542
      %v3544 = vpop.f32.mrf.mxu0
      %3545 = vmatprep.mubr.bf16.mxu0 0
      %3546 = vmatmul.mubr.bf16.gmra.mxu0 %v3418
      %v3547 = vpop.f32.mrf.mxu0
      %v3548 = vadd.f32 0.0, %v3547
      %v3549 = vpop.f32.mrf.mxu0
      %v3550 = vpop.f32.mrf.mxu0
      %v3551 = vadd.f32 0.0, %v3550
      %v3552 = vpop.f32.mrf.mxu0
      %3553 = vmatprep.mubr.bf16.mxu0 0
      %3554 = vmatmul.mubr.bf16.gmra.mxu0 %v3419
      %v3555 = vpop.f32.mrf.mxu0
      %v3556 = vadd.f32 0.0, %v3555
      %v3557 = vpop.f32.mrf.mxu0
      %v3558 = vpop.f32.mrf.mxu0
      %v3559 = vadd.f32 0.0, %v3558
      %v3560 = vpop.f32.mrf.mxu0
      %3561 = vmatprep.mubr.bf16.mxu0 0
      %3562 = vmatmul.mubr.bf16.gmra.mxu0 %v3420
      %v3563 = vpop.f32.mrf.mxu0
      %v3564 = vadd.f32 0.0, %v3563
      %v3565 = vpop.f32.mrf.mxu0
      %v3566 = vpop.f32.mrf.mxu0
      %v3567 = vadd.f32 0.0, %v3566
      %v3568 = vpop.f32.mrf.mxu0
      %3569 = vmatprep.mubr.bf16.mxu0 0
      %3570 = vmatmul.mubr.bf16.gmra.mxu0 %v3421
      %v3571 = vpop.f32.mrf.mxu0
      %v3572 = vadd.f32 0.0, %v3571
      %v3573 = vpop.f32.mrf.mxu0
      %v3574 = vpop.f32.mrf.mxu0
      %v3575 = vadd.f32 0.0, %v3574
      %v3576 = vpop.f32.mrf.mxu0
      %3577 = vmatprep.mubr.bf16.mxu0 0
      %3578 = vmatmul.mubr.bf16.gmra.mxu0 %v3422
      %v3579 = vpop.f32.mrf.mxu0
      %v3580 = vadd.f32 0.0, %v3579
      %v3581 = vpop.f32.mrf.mxu0
      %v3582 = vpop.f32.mrf.mxu0
      %v3583 = vadd.f32 0.0, %v3582
      %v3584 = vpop.f32.mrf.mxu0
      %3585 = vmatprep.mubr.bf16.mxu0 0
      %3586 = vmatmul.mubr.bf16.gmra.mxu0 %v3423
      %v3587 = vpop.f32.mrf.mxu0
      %v3588 = vadd.f32 0.0, %v3587
      %v3589 = vpop.f32.mrf.mxu0
      %v3590 = vpop.f32.mrf.mxu0
      %v3591 = vadd.f32 0.0, %v3590
      %v3592 = vpop.f32.mrf.mxu0
      %3593 = vmatprep.mubr.bf16.mxu0 0
      %3594 = vmatmul.mubr.bf16.gmra.mxu0 %v3424
      %v3595 = vpop.f32.mrf.mxu0
      %v3596 = vadd.f32 0.0, %v3595
      %v3597 = vpop.f32.mrf.mxu0
      %v3598 = vpop.f32.mrf.mxu0
      %v3599 = vadd.f32 0.0, %v3598
      %v3600 = vpop.f32.mrf.mxu0
      %3601 = vmatprep.mubr.bf16.mxu0 0
      %3602 = vmatmul.mubr.bf16.gmra.mxu0 %v3425
      %v3603 = vpop.f32.mrf.mxu0
      %v3604 = vadd.f32 0.0, %v3603
      %v3605 = vpop.f32.mrf.mxu0
      %v3606 = vpop.f32.mrf.mxu0
      %v3607 = vadd.f32 0.0, %v3606
      %v3608 = vpop.f32.mrf.mxu0
      %3609 = vmatprep.mubr.bf16.mxu0 0
      %3610 = vmatmul.mubr.bf16.gmra.mxu0 %v3426
      %v3611 = vpop.f32.mrf.mxu0
      %v3612 = vadd.f32 0.0, %v3611
      %v3613 = vpop.f32.mrf.mxu0
      %v3614 = vpop.f32.mrf.mxu0
      %v3615 = vadd.f32 0.0, %v3614
      %v3616 = vpop.f32.mrf.mxu0
      %3617 = vmatprep.mubr.bf16.mxu0 0
      %3618 = vmatmul.mubr.bf16.gmra.mxu0 %v3427
      %v3619 = vpop.f32.mrf.mxu0
      %v3620 = vadd.f32 0.0, %v3619
      %v3621 = vpop.f32.mrf.mxu0
      %v3622 = vpop.f32.mrf.mxu0
      %v3623 = vadd.f32 0.0, %v3622
      %v3624 = vpop.f32.mrf.mxu0
      %3625 = vmatprep.mubr.bf16.mxu0 0
      %3626 = vmatmul.mubr.bf16.gmra.mxu0 %v3428
      %v3627 = vpop.f32.mrf.mxu0
      %v3628 = vadd.f32 0.0, %v3627
      %v3629 = vpop.f32.mrf.mxu0
      %v3630 = vpop.f32.mrf.mxu0
      %v3631 = vadd.f32 0.0, %v3630
      %v3632 = vpop.f32.mrf.mxu0
      %3633 = vmatprep.mubr.bf16.mxu0 0
      %3634 = vmatmul.mubr.bf16.gmra.mxu0 %v3429
      %v3635 = vpop.f32.mrf.mxu0
      %v3636 = vadd.f32 0.0, %v3635
      %v3637 = vpop.f32.mrf.mxu0
      %v3638 = vpop.f32.mrf.mxu0
      %v3639 = vadd.f32 0.0, %v3638
      %v3640 = vpop.f32.mrf.mxu0
      %3641 = vmatprep.mubr.bf16.mxu0 0
      %3642 = vmatmul.mubr.bf16.gmra.mxu0 %v3430
      %v3643 = vpop.f32.mrf.mxu0
      %v3644 = vadd.f32 0.0, %v3643
      %v3645 = vpop.f32.mrf.mxu0
      %v3646 = vpop.f32.mrf.mxu0
      %v3647 = vadd.f32 0.0, %v3646
      %v3648 = vpop.f32.mrf.mxu0
      %3649 = vmatprep.mubr.bf16.mxu0 0
      %3650 = vmatmul.mubr.bf16.gmra.mxu0 %v3431
      %v3651 = vpop.f32.mrf.mxu0
      %v3652 = vadd.f32 0.0, %v3651
      %v3653 = vpop.f32.mrf.mxu0
      %v3654 = vpop.f32.mrf.mxu0
      %v3655 = vadd.f32 0.0, %v3654
      %v3656 = vpop.f32.mrf.mxu0
      %3657 = vdwg.mxu0
      %v3658 = vld [vmem:[#allocation3] sm:$0xff]
      %v3659 = vld [vmem:[#allocation3 + $0x8] sm:$0xff]
      %v3660 = vld [vmem:[#allocation3 + $0x10] sm:$0xff]
      %v3661 = vld [vmem:[#allocation3 + $0x18] sm:$0xff]
      %v3662 = vld [vmem:[#allocation3 + $0x20] sm:$0xff]
      %v3663 = vld [vmem:[#allocation3 + $0x28] sm:$0xff]
      %v3664 = vld [vmem:[#allocation3 + $0x30] sm:$0xff]
      %v3665 = vld [vmem:[#allocation3 + $0x38] sm:$0xff]
      %v3666 = vld [vmem:[#allocation3 + $0x40] sm:$0xff]
      %v3667 = vld [vmem:[#allocation3 + $0x48] sm:$0xff]
      %v3668 = vld [vmem:[#allocation3 + $0x50] sm:$0xff]
      %v3669 = vld [vmem:[#allocation3 + $0x58] sm:$0xff]
      %v3670 = vld [vmem:[#allocation3 + $0x60] sm:$0xff]
      %v3671 = vld [vmem:[#allocation3 + $0x68] sm:$0xff]
      %v3672 = vld [vmem:[#allocation3 + $0x70] sm:$0xff]
      %v3673 = vld [vmem:[#allocation3 + $0x78] sm:$0xff]
      %v3674 = vld [vmem:[#allocation3 + $0x80] sm:$0xff]
      %v3675 = vld [vmem:[#allocation3 + $0x88] sm:$0xff]
      %v3676 = vld [vmem:[#allocation3 + $0x90] sm:$0xff]
      %v3677 = vld [vmem:[#allocation3 + $0x98] sm:$0xff]
      %v3678 = vld [vmem:[#allocation3 + $0xa0] sm:$0xff]
      %v3679 = vld [vmem:[#allocation3 + $0xa8] sm:$0xff]
      %v3680 = vld [vmem:[#allocation3 + $0xb0] sm:$0xff]
      %v3681 = vld [vmem:[#allocation3 + $0xb8] sm:$0xff]
      %v3682 = vld [vmem:[#allocation3 + $0xc0] sm:$0xff]
      %v3683 = vld [vmem:[#allocation3 + $0xc8] sm:$0xff]
      %v3684 = vld [vmem:[#allocation3 + $0xd0] sm:$0xff]
      %v3685 = vld [vmem:[#allocation3 + $0xd8] sm:$0xff]
      %v3686 = vld [vmem:[#allocation3 + $0xe0] sm:$0xff]
      %v3687 = vld [vmem:[#allocation3 + $0xe8] sm:$0xff]
      %v3688 = vld [vmem:[#allocation3 + $0xf0] sm:$0xff]
      %v3689 = vld [vmem:[#allocation3 + $0xf8] sm:$0xff]
      %v3690 = vadd.f32 %v3658, %v3532
      %v3691 = vadd.f32 %v3659, %v3535
      %v3692 = vadd.f32 %v3660, %v3540
      %v3693 = vadd.f32 %v3661, %v3543
      %v3694 = vadd.f32 %v3662, %v3548
      %v3695 = vadd.f32 %v3663, %v3551
      %v3696 = vadd.f32 %v3664, %v3556
      %v3697 = vadd.f32 %v3665, %v3559
      %v3698 = vadd.f32 %v3666, %v3564
      %v3699 = vadd.f32 %v3667, %v3567
      %v3700 = vadd.f32 %v3668, %v3572
      %v3701 = vadd.f32 %v3669, %v3575
      %v3702 = vadd.f32 %v3670, %v3580
      %v3703 = vadd.f32 %v3671, %v3583
      %v3704 = vadd.f32 %v3672, %v3588
      %v3705 = vadd.f32 %v3673, %v3591
      %v3706 = vadd.f32 %v3674, %v3596
      %v3707 = vadd.f32 %v3675, %v3599
      %v3708 = vadd.f32 %v3676, %v3604
      %v3709 = vadd.f32 %v3677, %v3607
      %v3710 = vadd.f32 %v3678, %v3612
      %v3711 = vadd.f32 %v3679, %v3615
      %v3712 = vadd.f32 %v3680, %v3620
      %v3713 = vadd.f32 %v3681, %v3623
      %v3714 = vadd.f32 %v3682, %v3628
      %v3715 = vadd.f32 %v3683, %v3631
      %v3716 = vadd.f32 %v3684, %v3636
      %v3717 = vadd.f32 %v3685, %v3639
      %v3718 = vadd.f32 %v3686, %v3644
      %v3719 = vadd.f32 %v3687, %v3647
      %v3720 = vadd.f32 %v3688, %v3652
      %v3721 = vadd.f32 %v3689, %v3655
      %3722 = vst [vmem:[#allocation3] sm:$0xff] %v3690
      %3723 = vst [vmem:[#allocation3 + $0x8] sm:$0xff] %v3691
      %3724 = vst [vmem:[#allocation3 + $0x10] sm:$0xff] %v3692
      %3725 = vst [vmem:[#allocation3 + $0x18] sm:$0xff] %v3693
      %3726 = vst [vmem:[#allocation3 + $0x20] sm:$0xff] %v3694
      %3727 = vst [vmem:[#allocation3 + $0x28] sm:$0xff] %v3695
      %3728 = vst [vmem:[#allocation3 + $0x30] sm:$0xff] %v3696
      %3729 = vst [vmem:[#allocation3 + $0x38] sm:$0xff] %v3697
      %3730 = vst [vmem:[#allocation3 + $0x40] sm:$0xff] %v3698
      %3731 = vst [vmem:[#allocation3 + $0x48] sm:$0xff] %v3699
      %3732 = vst [vmem:[#allocation3 + $0x50] sm:$0xff] %v3700
      %3733 = vst [vmem:[#allocation3 + $0x58] sm:$0xff] %v3701
      %3734 = vst [vmem:[#allocation3 + $0x60] sm:$0xff] %v3702
      %3735 = vst [vmem:[#allocation3 + $0x68] sm:$0xff] %v3703
      %3736 = vst [vmem:[#allocation3 + $0x70] sm:$0xff] %v3704
      %3737 = vst [vmem:[#allocation3 + $0x78] sm:$0xff] %v3705
      %3738 = vst [vmem:[#allocation3 + $0x80] sm:$0xff] %v3706
      %3739 = vst [vmem:[#allocation3 + $0x88] sm:$0xff] %v3707
      %3740 = vst [vmem:[#allocation3 + $0x90] sm:$0xff] %v3708
      %3741 = vst [vmem:[#allocation3 + $0x98] sm:$0xff] %v3709
      %3742 = vst [vmem:[#allocation3 + $0xa0] sm:$0xff] %v3710
      %3743 = vst [vmem:[#allocation3 + $0xa8] sm:$0xff] %v3711
      %3744 = vst [vmem:[#allocation3 + $0xb0] sm:$0xff] %v3712
      %3745 = vst [vmem:[#allocation3 + $0xb8] sm:$0xff] %v3713
      %3746 = vst [vmem:[#allocation3 + $0xc0] sm:$0xff] %v3714
      %3747 = vst [vmem:[#allocation3 + $0xc8] sm:$0xff] %v3715
      %3748 = vst [vmem:[#allocation3 + $0xd0] sm:$0xff] %v3716
      %3749 = vst [vmem:[#allocation3 + $0xd8] sm:$0xff] %v3717
      %3750 = vst [vmem:[#allocation3 + $0xe0] sm:$0xff] %v3718
      %3751 = vst [vmem:[#allocation3 + $0xe8] sm:$0xff] %v3719
      %3752 = vst [vmem:[#allocation3 + $0xf0] sm:$0xff] %v3720
      %3753 = vst [vmem:[#allocation3 + $0xf8] sm:$0xff] %v3721
      %v3754 = vld [vmem:[#allocation3] sm:$0xff]
      %v3755 = vld [vmem:[#allocation3 + $0x8] sm:$0xff]
      %v3756 = vld [vmem:[#allocation3 + $0x10] sm:$0xff]
      %v3757 = vld [vmem:[#allocation3 + $0x18] sm:$0xff]
      %v3758 = vld [vmem:[#allocation3 + $0x20] sm:$0xff]
      %v3759 = vld [vmem:[#allocation3 + $0x28] sm:$0xff]
      %v3760 = vld [vmem:[#allocation3 + $0x30] sm:$0xff]
      %v3761 = vld [vmem:[#allocation3 + $0x38] sm:$0xff]
      %v3762 = vld [vmem:[#allocation3 + $0x40] sm:$0xff]
      %v3763 = vld [vmem:[#allocation3 + $0x48] sm:$0xff]
      %v3764 = vld [vmem:[#allocation3 + $0x50] sm:$0xff]
      %v3765 = vld [vmem:[#allocation3 + $0x58] sm:$0xff]
      %v3766 = vld [vmem:[#allocation3 + $0x60] sm:$0xff]
      %v3767 = vld [vmem:[#allocation3 + $0x68] sm:$0xff]
      %v3768 = vld [vmem:[#allocation3 + $0x70] sm:$0xff]
      %v3769 = vld [vmem:[#allocation3 + $0x78] sm:$0xff]
      %v3770 = vld [vmem:[#allocation3 + $0x80] sm:$0xff]
      %v3771 = vld [vmem:[#allocation3 + $0x88] sm:$0xff]
      %v3772 = vld [vmem:[#allocation3 + $0x90] sm:$0xff]
      %v3773 = vld [vmem:[#allocation3 + $0x98] sm:$0xff]
      %v3774 = vld [vmem:[#allocation3 + $0xa0] sm:$0xff]
      %v3775 = vld [vmem:[#allocation3 + $0xa8] sm:$0xff]
      %v3776 = vld [vmem:[#allocation3 + $0xb0] sm:$0xff]
      %v3777 = vld [vmem:[#allocation3 + $0xb8] sm:$0xff]
      %v3778 = vld [vmem:[#allocation3 + $0xc0] sm:$0xff]
      %v3779 = vld [vmem:[#allocation3 + $0xc8] sm:$0xff]
      %v3780 = vld [vmem:[#allocation3 + $0xd0] sm:$0xff]
      %v3781 = vld [vmem:[#allocation3 + $0xd8] sm:$0xff]
      %v3782 = vld [vmem:[#allocation3 + $0xe0] sm:$0xff]
      %v3783 = vld [vmem:[#allocation3 + $0xe8] sm:$0xff]
      %v3784 = vld [vmem:[#allocation3 + $0xf0] sm:$0xff]
      %v3785 = vld [vmem:[#allocation3 + $0xf8] sm:$0xff]
      %3786 = vst [vmem:[%s264] sm:$0xff] %v3754
      %3787 = vst [vmem:[%s264 + $0x8] sm:$0xff] %v3755
      %3788 = vst [vmem:[%s264 + $0x10] sm:$0xff] %v3756
      %3789 = vst [vmem:[%s264 + $0x18] sm:$0xff] %v3757
      %3790 = vst [vmem:[%s264 + $0x20] sm:$0xff] %v3758
      %3791 = vst [vmem:[%s264 + $0x28] sm:$0xff] %v3759
      %3792 = vst [vmem:[%s264 + $0x30] sm:$0xff] %v3760
      %3793 = vst [vmem:[%s264 + $0x38] sm:$0xff] %v3761
      %3794 = vst [vmem:[%s264 + $0x40] sm:$0xff] %v3762
      %3795 = vst [vmem:[%s264 + $0x48] sm:$0xff] %v3763
      %3796 = vst [vmem:[%s264 + $0x50] sm:$0xff] %v3764
      %3797 = vst [vmem:[%s264 + $0x58] sm:$0xff] %v3765
      %3798 = vst [vmem:[%s264 + $0x60] sm:$0xff] %v3766
      %3799 = vst [vmem:[%s264 + $0x68] sm:$0xff] %v3767
      %3800 = vst [vmem:[%s264 + $0x70] sm:$0xff] %v3768
      %3801 = vst [vmem:[%s264 + $0x78] sm:$0xff] %v3769
      %3802 = vst [vmem:[%s264 + $0x80] sm:$0xff] %v3770
      %3803 = vst [vmem:[%s264 + $0x88] sm:$0xff] %v3771
      %3804 = vst [vmem:[%s264 + $0x90] sm:$0xff] %v3772
      %3805 = vst [vmem:[%s264 + $0x98] sm:$0xff] %v3773
      %3806 = vst [vmem:[%s264 + $0xa0] sm:$0xff] %v3774
      %3807 = vst [vmem:[%s264 + $0xa8] sm:$0xff] %v3775
      %3808 = vst [vmem:[%s264 + $0xb0] sm:$0xff] %v3776
      %3809 = vst [vmem:[%s264 + $0xb8] sm:$0xff] %v3777
      %3810 = vst [vmem:[%s264 + $0xc0] sm:$0xff] %v3778
      %3811 = vst [vmem:[%s264 + $0xc8] sm:$0xff] %v3779
      %3812 = vst [vmem:[%s264 + $0xd0] sm:$0xff] %v3780
      %3813 = vst [vmem:[%s264 + $0xd8] sm:$0xff] %v3781
      %3814 = vst [vmem:[%s264 + $0xe0] sm:$0xff] %v3782
      %3815 = vst [vmem:[%s264 + $0xe8] sm:$0xff] %v3783
      %3816 = vst [vmem:[%s264 + $0xf0] sm:$0xff] %v3784
      %3817 = vst [vmem:[%s264 + $0xf8] sm:$0xff] %v3785
      %v3818 = vadd.f32 %v3754, %v3755
      %v3819 = vadd.f32 %v3818, %v3756
      %v3820 = vadd.f32 %v3819, %v3757
      %v3821 = vadd.f32 %v3820, %v3758
      %v3822 = vadd.f32 %v3821, %v3759
      %v3823 = vadd.f32 %v3822, %v3760
      %v3824 = vadd.f32 %v3823, %v3761
      %v3825 = vadd.f32 %v3824, %v3762
      %v3826 = vadd.f32 %v3825, %v3763
      %v3827 = vadd.f32 %v3826, %v3764
      %v3828 = vadd.f32 %v3827, %v3765
      %v3829 = vadd.f32 %v3828, %v3766
      %v3830 = vadd.f32 %v3829, %v3767
      %v3831 = vadd.f32 %v3830, %v3768
      %v3832 = vadd.f32 %v3831, %v3769
      %v3833 = vadd.f32 %v3832, %v3770
      %v3834 = vadd.f32 %v3833, %v3771
      %v3835 = vadd.f32 %v3834, %v3772
      %v3836 = vadd.f32 %v3835, %v3773
      %v3837 = vadd.f32 %v3836, %v3774
      %v3838 = vadd.f32 %v3837, %v3775
      %v3839 = vadd.f32 %v3838, %v3776
      %v3840 = vadd.f32 %v3839, %v3777
      %v3841 = vadd.f32 %v3840, %v3778
      %v3842 = vadd.f32 %v3841, %v3779
      %v3843 = vadd.f32 %v3842, %v3780
      %v3844 = vadd.f32 %v3843, %v3781
      %v3845 = vadd.f32 %v3844, %v3782
      %v3846 = vadd.f32 %v3845, %v3783
      %v3847 = vadd.f32 %v3846, %v3784
      %v3848 = vadd.f32 %v3847, %v3785
      %v3849 = vrot.slane %v3848, 4
      %v3850 = vadd.f32 %v3848, %v3849
      %v3851 = vrot.slane %v3850, 2
      %v3852 = vadd.f32 %v3850, %v3851
      %v3853 = vrot.slane %v3852, 1
      %v3854 = vadd.f32 %v3852, %v3853
      %3855 = vst [vmem:[%s268] sm:$0x1] %v3854
      %3856 = vst [vmem:[%s268 + $0x1] sm:$0x7f] 0.0
      %v3857 = vmul.f32 %v3754, %v3754
      %v3858 = vmul.f32 %v3755, %v3755
      %v3859 = vmul.f32 %v3756, %v3756
      %v3860 = vmul.f32 %v3757, %v3757
      %v3861 = vmul.f32 %v3758, %v3758
      %v3862 = vmul.f32 %v3759, %v3759
      %v3863 = vmul.f32 %v3760, %v3760
      %v3864 = vmul.f32 %v3761, %v3761
      %v3865 = vmul.f32 %v3762, %v3762
      %v3866 = vmul.f32 %v3763, %v3763
      %v3867 = vmul.f32 %v3764, %v3764
      %v3868 = vmul.f32 %v3765, %v3765
      %v3869 = vmul.f32 %v3766, %v3766
      %v3870 = vmul.f32 %v3767, %v3767
      %v3871 = vmul.f32 %v3768, %v3768
      %v3872 = vmul.f32 %v3769, %v3769
      %v3873 = vmul.f32 %v3770, %v3770
      %v3874 = vmul.f32 %v3771, %v3771
      %v3875 = vmul.f32 %v3772, %v3772
      %v3876 = vmul.f32 %v3773, %v3773
      %v3877 = vmul.f32 %v3774, %v3774
      %v3878 = vmul.f32 %v3775, %v3775
      %v3879 = vmul.f32 %v3776, %v3776
      %v3880 = vmul.f32 %v3777, %v3777
      %v3881 = vmul.f32 %v3778, %v3778
      %v3882 = vmul.f32 %v3779, %v3779
      %v3883 = vmul.f32 %v3780, %v3780
      %v3884 = vmul.f32 %v3781, %v3781
      %v3885 = vmul.f32 %v3782, %v3782
      %v3886 = vmul.f32 %v3783, %v3783
      %v3887 = vmul.f32 %v3784, %v3784
      %v3888 = vmul.f32 %v3785, %v3785
      %v3889 = vadd.f32 %v3857, %v3858
      %v3890 = vadd.f32 %v3889, %v3859
      %v3891 = vadd.f32 %v3890, %v3860
      %v3892 = vadd.f32 %v3891, %v3861
      %v3893 = vadd.f32 %v3892, %v3862
      %v3894 = vadd.f32 %v3893, %v3863
      %v3895 = vadd.f32 %v3894, %v3864
      %v3896 = vadd.f32 %v3895, %v3865
      %v3897 = vadd.f32 %v3896, %v3866
      %v3898 = vadd.f32 %v3897, %v3867
      %v3899 = vadd.f32 %v3898, %v3868
      %v3900 = vadd.f32 %v3899, %v3869
      %v3901 = vadd.f32 %v3900, %v3870
      %v3902 = vadd.f32 %v3901, %v3871
      %v3903 = vadd.f32 %v3902, %v3872
      %v3904 = vadd.f32 %v3903, %v3873
      %v3905 = vadd.f32 %v3904, %v3874
      %v3906 = vadd.f32 %v3905, %v3875
      %v3907 = vadd.f32 %v3906, %v3876
      %v3908 = vadd.f32 %v3907, %v3877
      %v3909 = vadd.f32 %v3908, %v3878
      %v3910 = vadd.f32 %v3909, %v3879
      %v3911 = vadd.f32 %v3910, %v3880
      %v3912 = vadd.f32 %v3911, %v3881
      %v3913 = vadd.f32 %v3912, %v3882
      %v3914 = vadd.f32 %v3913, %v3883
      %v3915 = vadd.f32 %v3914, %v3884
      %v3916 = vadd.f32 %v3915, %v3885
      %v3917 = vadd.f32 %v3916, %v3886
      %v3918 = vadd.f32 %v3917, %v3887
      %v3919 = vadd.f32 %v3918, %v3888
      %v3920 = vrot.slane %v3919, 4
      %v3921 = vadd.f32 %v3919, %v3920
      %v3922 = vrot.slane %v3921, 2
      %v3923 = vadd.f32 %v3921, %v3922
      %v3924 = vrot.slane %v3923, 1
      %v3925 = vadd.f32 %v3923, %v3924
      %3926 = vst [vmem:[%s272] sm:$0x1] %v3925
      %3927 = vst [vmem:[%s272 + $0x1] sm:$0x7f] 0.0
      %p3928 = scmp.lt.s32.totalorder %s18, 1
      %s3929 = scalar_select %p3928, %s18, 1
      %s3930 = smul.addr %s3929, 32
      %s3931 = smul.addr %s3930, 8
      %s3932 = scalar_lea.vmem %s4, %s3931
      %p3933 = scmp.lt.s32.totalorder %s18, 1
      %s3934 = scalar_select %p3933, %s18, 1
      %s3935 = smul.addr %s3934, 8
      %s3936 = scalar_lea.vmem %s5, %s3935
      %p3937 = scmp.lt.s32.totalorder %s18, 1
      %s3938 = scalar_select %p3937, %s18, 1
      %s3939 = smul.addr %s3938, 8
      %s3940 = scalar_lea.vmem %s6, %s3939
      // Predicated region
      $region37: #{deconv_bottleneck.5} parent=35 // pred_check
        %p3941 = pneg %p125
      $region38: #{deconv_bottleneck.5} parent=35 // pred_check_branch
        %3943 = sbr.rel (%p3941) target = $region40
      $region39: #{deconv_bottleneck.5} parent=35 // pred_region
        _
      $region40: #{deconv_bottleneck.5} parent=35 // pred_fallthru
        _
      // Predicated region
      $region41: #{deconv_bottleneck.5} parent=35 // pred_check
        %p3944 = pneg %p151
      $region42: #{deconv_bottleneck.5} parent=35 // pred_check_branch
        %3946 = sbr.rel (%p3944) target = $region44
      $region43: #{deconv_bottleneck.5} parent=35 // pred_region
        _
      $region44: #{deconv_bottleneck.5} parent=35 // pred_fallthru
        _
      // Predicated region
      $region45: #{deconv_bottleneck.5} parent=35 // pred_check
        %p3947 = pneg %p177
      $region46: #{deconv_bottleneck.5} parent=35 // pred_check_branch
        %3949 = sbr.rel (%p3947) target = $region48
      $region47: #{deconv_bottleneck.5} parent=35 // pred_region
        _
      $region48: #{deconv_bottleneck.5} parent=35 // pred_fallthru
        _
    $region36: #{deconv_bottleneck.5} parent=5 // pred_fallthru
      _
    %p3950 = scmp.le.s32.totalorder 2, %s13
    // Predicated region
    $region49: #{deconv_bottleneck.5} parent=5 // pred_check
      %p3951 = pneg %p3950
    $region50: #{deconv_bottleneck.5} parent=5 // pred_check_branch
      %3953 = sbr.rel (%p3951) target = $region52
    $region51: #{deconv_bottleneck.5} parent=5 // pred_region
      %s3954 = ssub.s32 %s13, 2
      // Predicated region
      $region53: #{deconv_bottleneck.5} parent=51 // pred_check
        %p3955 = pneg %p131
      $region54: #{deconv_bottleneck.5} parent=51 // pred_check_branch
        %3957 = sbr.rel (%p3955) target = $region56
      $region55: #{deconv_bottleneck.5} parent=51 // pred_region
        %p3958 = scmp.lt.s32.totalorder %s19, 1
        %s3959 = scalar_select %p3958, %s19, 1
        %s3960 = smul.addr %s3959, 32
        %s3961 = smul.addr %s3960, 8
        %s3962 = scalar_lea.vmem %s4, %s3961
      $region56: #{deconv_bottleneck.5} parent=51 // pred_fallthru
        _
      // Predicated region
      $region57: #{deconv_bottleneck.5} parent=51 // pred_check
        %p3963 = pneg %p157
      $region58: #{deconv_bottleneck.5} parent=51 // pred_check_branch
        %3965 = sbr.rel (%p3963) target = $region60
      $region59: #{deconv_bottleneck.5} parent=51 // pred_region
        %p3966 = scmp.lt.s32.totalorder %s19, 1
        %s3967 = scalar_select %p3966, %s19, 1
        %s3968 = smul.addr %s3967, 8
        %s3969 = scalar_lea.vmem %s5, %s3968
      $region60: #{deconv_bottleneck.5} parent=51 // pred_fallthru
        _
      // Predicated region
      $region61: #{deconv_bottleneck.5} parent=51 // pred_check
        %p3970 = pneg %p183
      $region62: #{deconv_bottleneck.5} parent=51 // pred_check_branch
        %3972 = sbr.rel (%p3970) target = $region64
      $region63: #{deconv_bottleneck.5} parent=51 // pred_region
        %p3973 = scmp.lt.s32.totalorder %s19, 1
        %s3974 = scalar_select %p3973, %s19, 1
        %s3975 = smul.addr %s3974, 8
        %s3976 = scalar_lea.vmem %s6, %s3975
      $region64: #{deconv_bottleneck.5} parent=51 // pred_fallthru
        _
    $region52: #{deconv_bottleneck.5} parent=5 // pred_fallthru
      _
  $region6: #{deconv_bottleneck.5} parent=0 // loop_footer
    %s17 = sadd.s32 1, %s13
  $region7: #{deconv_bottleneck.5} parent=0 // loop_footer_branch
    %12 = sbr.rel target = $region3
  $region8: #{deconv_bottleneck.5} parent=0 // loop_exit
    _

</llo_original>
